<compile_context>
chip_gen: v7x
topology: tpu7x:2x2x1
jax: 0.10.0
libtpu: 0.0.40
codegen_flags: <defaults>
</compile_context>

<pallas_src>
import numpy as np
import jax
import jax.numpy as jnp
from jax.experimental import pallas as pl
from jax.experimental.pallas import tpu as pltpu

# ---- module hyper-parameters (PyTorch __init__ defaults) ----
H_CH = 8          # h_channels
S_CH = 4          # s_channels
R_CH = 3          # r_channels
NUM_S = 38
NUM_R = 340
B = 2             # batch size for the example run

H = NUM_S + NUM_R          # 378 = conv "height"
W = H_CH                   # 8   = conv "width" (feature dim after cat)
HP = 384                   # slab rows (H padded up to a multiple of 8)
NEG_SLOPE = 0.2
BN_EPS = 1e-5


def _leaky(x):
    return jnp.where(x >= 0, x, NEG_SLOPE * x)


def cnn_kernel(s_ref, r_ref, sg_ref, sb_ref, rg_ref, rb_ref,
               ws_ref, wr_ref,
               m0_ref, m1_ref, m2_ref, m3_ref,
               cb0_ref, cb1_ref, cb2_ref, cb3_ref,
               wl_ref, bl_ref, w1_ref, b1_ref, w2_ref, b2_ref,
               out_ref):
    f32 = jnp.float32
    bf16 = jnp.bfloat16

    # ---------- BatchNorm1d (training-mode batch stats, two-pass variance) ----------
    s = s_ref[...]                                            # (B*NUM_S, S_CH)
    mu_s = jnp.mean(s, axis=0, keepdims=True)
    cs = s - mu_s
    var_s = jnp.mean(cs * cs, axis=0, keepdims=True)
    s = cs * jax.lax.rsqrt(var_s + BN_EPS) * sg_ref[...] + sb_ref[...]
    s = _leaky(jnp.dot(s, ws_ref[...], preferred_element_type=f32))   # (76, 8)

    r_raw = r_ref[...]                                        # (B*NUM_R, R_CH + 5)
    r = r_raw[:, 0:R_CH]
    mu_r = jnp.mean(r, axis=0, keepdims=True)
    cr = r - mu_r
    var_r = jnp.mean(cr * cr, axis=0, keepdims=True)
    r = cr * jax.lax.rsqrt(var_r + BN_EPS) * rg_ref[...] + rb_ref[...]
    r = _leaky(jnp.dot(r, wr_ref[...], preferred_element_type=f32))   # (680, 8)

    # ---------- assemble the batch-in-lanes conv slab (HP, B*W) = (384, 16) ----------
    # (the 38/340/6-row boundaries are intrinsically sublane-misaligned; this
    # tiny (~24 KB) one-off assembly keeps the proven value-level concat path)
    zpad = jnp.zeros((HP - H, W), f32)
    xb0 = jnp.concatenate([s[0:NUM_S], r[0:NUM_R], zpad], axis=0)            # (384, 8)
    xb1 = jnp.concatenate([s[NUM_S:2 * NUM_S], r[NUM_R:2 * NUM_R], zpad], axis=0)
    x = jnp.concatenate([xb0, xb1], axis=1)                                  # (384, 16)

    # valid-row mask (pad rows 378..383 re-zeroed after every conv layer)
    row = jax.lax.broadcasted_iota(jnp.int32, (HP, 1), 0)
    valid = row < H                                            # (HP, 1) bool

    def conv_layer(xin, m_ref, b_ref):
        # Vertical taps via XLU sublane rotation (positive shifts only).
        # Wrapped rows land on zero pad rows -> no boundary fixup needed.
        xd = pltpu.roll(xin, 1, 0)          # xd[h] = xin[h-1]
        xu = pltpu.roll(xin, HP - 1, 0)     # xu[h] = xin[h+1]
        # bf16 only at the MXU boundary; rolls & elementwise stay f32 (v5e-safe).
        xcat = jnp.concatenate([xd.astype(bf16), xin.astype(bf16),
                                xu.astype(bf16)], axis=1)       # (HP, 3*B*W*Cin)
        y = jnp.dot(xcat, m_ref[...], preferred_element_type=f32) + b_ref[...]
        return jnp.where(valid, _leaky(y), 0.0)

    # 4 x (Conv2d 3x3, stride 1, pad 1) + LeakyReLU, both batches along lanes
    x = conv_layer(x, m0_ref, cb0_ref)                        # (384, 128)
    x = conv_layer(x, m1_ref, cb1_ref)                        # (384, 128)
    x = conv_layer(x, m2_ref, cb2_ref)                        # (384, 128)
    x = conv_layer(x, m3_ref, cb3_ref)                        # (384, 16)

    # ---------- adaptive_avg_pool1d(.,1) over W fused with linr (one MXU dot) ----------
    # logits[b, j] = sum_{h, c} x[h, b*W + c] * wl[h, j] / W + bl[j]
    xt = jnp.transpose(x)                                     # (16, 384)
    t = jnp.dot(xt, wl_ref[...], preferred_element_type=f32)  # (16, 38), wl pre-scaled 1/W
    logits = jnp.concatenate([jnp.sum(t[0:W], axis=0, keepdims=True),
                              jnp.sum(t[W:2 * W], axis=0, keepdims=True)],
                             axis=0) + bl_ref[...]            # (B, NUM_S)

    # ---------- softmax over classes (batched) ----------
    m = jnp.max(logits, axis=1, keepdims=True)
    e = jnp.exp(logits - m)
    p = e / jnp.sum(e, axis=1, keepdims=True)

    # ---------- o branch, batched over B: rows 0 and NUM_R of r_raw, cols R_CH: ----------
    o = jnp.concatenate([r_raw[0:1, R_CH:R_CH + 5],
                         r_raw[NUM_R:NUM_R + 1, R_CH:R_CH + 5]], axis=0)   # (B, 5)
    h1 = _leaky(jnp.dot(o, w1_ref[...], preferred_element_type=f32) + b1_ref[...])
    oo = jnp.exp(jnp.dot(h1, w2_ref[...], preferred_element_type=f32) + b2_ref[...])

    out_ref[...] = oo * p                                     # single full store


def cnn_forward(s_x, r_x, params):
    args = (s_x, r_x) + tuple(params)
    vmem = pl.BlockSpec(memory_space=pltpu.MemorySpace.VMEM)
    return pl.pallas_call(
        cnn_kernel,
        out_shape=jax.ShapeDtypeStruct((B, NUM_S), jnp.float32),
        in_specs=[vmem] * len(args),
        out_specs=pl.BlockSpec(memory_space=pltpu.MemorySpace.VMEM),
    )(*args)


# ---------------- parameter packing (plain JAX / numpy glue) ----------------

def build_conv_mats(conv_w, conv_b):
    """Pack each Conv2d(3x3, pad=1) as ONE tap-fused, batch-block-diagonal
    matrix (3*B*W*C_in, B*W*C_out) acting on the batch-in-lanes row layout
    (column = b*W*C + w*C + c), plus a bias row (1, B*W*C_out)."""
    mats, brows = [], []
    for wt, bs in zip(conv_w, conv_b):
        co_n, ci_n = wt.shape[0], wt.shape[1]
        kin, kout = B * W * ci_n, B * W * co_n
        m = np.zeros((3, kin, kout), np.float32)
        for kh in range(3):
            for bb in range(B):
                for wo in range(W):
                    for kw in range(3):
                        wi = wo + kw - 1
                        if 0 <= wi < W:
                            rs = bb * W * ci_n + wi * ci_n
                            cs = bb * W * co_n + wo * co_n
                            m[kh, rs:rs + ci_n, cs:cs + co_n] = wt[:, :, kh, kw].T
        brow = np.tile(np.tile(np.asarray(bs, np.float32), W), B)[None, :]   # (1, kout)
        mats.append(jnp.asarray(m.reshape(3 * kin, kout), jnp.bfloat16))
        brows.append(jnp.asarray(brow, jnp.float32))
    return mats, brows


def init_params(key):
    ks = jax.random.split(key, 16)

    def rnd(k, shape, scale=0.1):
        return scale * jax.random.normal(k, shape, jnp.float32)

    # BatchNorm affine (PyTorch default init)
    sg = jnp.ones((1, S_CH), jnp.float32); sb = jnp.zeros((1, S_CH), jnp.float32)
    rg = jnp.ones((1, R_CH), jnp.float32); rb = jnp.zeros((1, R_CH), jnp.float32)
    # Linear(s_ch -> h, bias=False), Linear(r_ch -> h, bias=False), stored as (in, out)
    ws = rnd(ks[0], (S_CH, H_CH))
    wr = rnd(ks[1], (R_CH, H_CH))
    # conv stack: (C_out, C_in, 3, 3) weights + biases
    conv_shapes = [(H_CH, 1), (H_CH, H_CH), (H_CH, H_CH), (1, H_CH)]
    conv_w = [np.asarray(rnd(ks[2 + i], (co, ci, 3, 3))) for i, (co, ci) in enumerate(conv_shapes)]
    conv_b = [np.asarray(rnd(ks[6 + i], (co,))) for i, (co, _) in enumerate(conv_shapes)]
    mats, brows = build_conv_mats(conv_w, conv_b)
    # linr: Linear(378 -> 38); lino: Linear(5->8), Linear(8->38)
    wl = rnd(ks[10], (H, NUM_S)); bl = rnd(ks[11], (1, NUM_S))
    wlp = np.zeros((HP, NUM_S), np.float32)
    wlp[:H, :] = np.asarray(wl) / W                   # fold 1/W pooling, zero pad rows
    w1 = rnd(ks[12], (5, H_CH));  b1 = rnd(ks[13], (1, H_CH))
    w2 = rnd(ks[14], (H_CH, NUM_S)); b2 = rnd(ks[15], (1, NUM_S))

    params = (sg, sb, rg, rb, ws, wr,
              mats[0], mats[1], mats[2], mats[3],
              brows[0], brows[1], brows[2], brows[3],
              jnp.asarray(wlp), bl, w1, b1, w2, b2)
    raw = dict(conv_w=conv_w, conv_b=conv_b,
               ws=np.asarray(ws, np.float64), wr=np.asarray(wr, np.float64),
               wl=np.asarray(wl, np.float64), bl=np.asarray(bl, np.float64),
               w1=np.asarray(w1, np.float64), b1=np.asarray(b1, np.float64),
               w2=np.asarray(w2, np.float64), b2=np.asarray(b2, np.float64))
    return params, raw


# ---------------- float64 numpy reference (mirrors the torch forward) ----------------

def reference(s_x, r_x, raw):
    def leaky(x): return np.where(x >= 0, x, NEG_SLOPE * x)

    def bn(x):
        mu = x.mean(axis=0, keepdims=True)
        var = ((x - mu) ** 2).mean(axis=0, keepdims=True)
        return (x - mu) / np.sqrt(var + BN_EPS)

    s = np.asarray(s_x, np.float64)
    r_full = np.asarray(r_x, np.float64)
    o_x = r_full.reshape(B, NUM_R, R_CH + 5)[:, 0, R_CH:]                    # (B, 5)
    r = r_full.reshape(B, NUM_R, R_CH + 5)[:, :, :R_CH].reshape(-1, R_CH)
    s = leaky(bn(s) @ raw["ws"])
    r = leaky(bn(r) @ raw["wr"])
    x = np.concatenate([s.reshape(B, NUM_S, H_CH), r.reshape(B, NUM_R, H_CH)], axis=1)
    x = x[:, None, :, :]                                                     # (B,1,378,8)
    for wt, bs in zip(raw["conv_w"], raw["conv_b"]):
        wt = np.asarray(wt, np.float64); bs = np.asarray(bs, np.float64)
        co_n, ci_n = wt.shape[0], wt.shape[1]
        xpad = np.zeros((B, ci_n, H + 2, W + 2), np.float64)
        xpad[:, :, 1:H + 1, 1:W + 1] = x
        out = np.zeros((B, co_n, H, W), np.float64)
        for kh in range(3):
            for kw in range(3):
                out += np.einsum('oi,bihw->bohw', wt[:, :, kh, kw],
                                 xpad[:, :, kh:kh + H, kw:kw + W])
        x = leaky(out + bs[None, :, None, None])
    x = x[:, 0, :, :].mean(axis=2)                                           # (B, 378)
    logits = x @ raw["wl"] + raw["bl"]
    sm = np.exp(logits - logits.max(axis=1, keepdims=True))
    sm = sm / sm.sum(axis=1, keepdims=True)
    h1 = leaky(o_x @ raw["w1"] + raw["b1"])
    oo = np.exp(h1 @ raw["w2"] + raw["b2"])
    return oo * sm


if __name__ == "__main__":
    key = jax.random.PRNGKey(0)
    k_s, k_r, k_p = jax.random.split(key, 3)
    # torch forward expects s_x: (B*num_s, s_channels), r_x: (B*num_r, r_channels+5)
    s_x = jax.random.normal(k_s, (B * NUM_S, S_CH), jnp.float32)
    r_x = jax.random.normal(k_r, (B * NUM_R, R_CH + 5), jnp.float32)
    # edge_index is an argument of forward() but is never used -> not needed here.

    params, raw = init_params(k_p)
    out = cnn_forward(s_x, r_x, params)
    out = jax.block_until_ready(out)

    ref = reference(np.asarray(s_x), np.asarray(r_x), raw)
    err = np.abs(np.asarray(out, np.float64) - ref)
    tol = 2e-3 + 3e-2 * np.abs(ref)
    assert out.shape == (B, NUM_S), out.shape
    assert np.all(err <= tol), f"max abs err {err.max()}"
    print("KERNEL_OK")
</pallas_src>

<mosaic_0001>
module attributes {stable_mosaic.version = 11 : i64} {
  func.func @cnn_kernel(%arg0: memref<76x4xf32, #tpu.memory_space<vmem>>, %arg1: memref<680x8xf32, #tpu.memory_space<vmem>>, %arg2: memref<1x4xf32, #tpu.memory_space<vmem>>, %arg3: memref<1x4xf32, #tpu.memory_space<vmem>>, %arg4: memref<1x3xf32, #tpu.memory_space<vmem>>, %arg5: memref<1x3xf32, #tpu.memory_space<vmem>>, %arg6: memref<4x8xf32, #tpu.memory_space<vmem>>, %arg7: memref<3x8xf32, #tpu.memory_space<vmem>>, %arg8: memref<48x128xbf16, #tpu.memory_space<vmem>>, %arg9: memref<384x128xbf16, #tpu.memory_space<vmem>>, %arg10: memref<384x128xbf16, #tpu.memory_space<vmem>>, %arg11: memref<384x16xbf16, #tpu.memory_space<vmem>>, %arg12: memref<1x128xf32, #tpu.memory_space<vmem>>, %arg13: memref<1x128xf32, #tpu.memory_space<vmem>>, %arg14: memref<1x128xf32, #tpu.memory_space<vmem>>, %arg15: memref<1x16xf32, #tpu.memory_space<vmem>>, %arg16: memref<384x38xf32, #tpu.memory_space<vmem>>, %arg17: memref<1x38xf32, #tpu.memory_space<vmem>>, %arg18: memref<5x8xf32, #tpu.memory_space<vmem>>, %arg19: memref<1x8xf32, #tpu.memory_space<vmem>>, %arg20: memref<8x38xf32, #tpu.memory_space<vmem>>, %arg21: memref<1x38xf32, #tpu.memory_space<vmem>>, %arg22: memref<2x38xf32, #tpu.memory_space<vmem>>) attributes {dimension_semantics = [], scalar_prefetch = 0 : i64, scratch_operands = 0 : i64, tpu.core_type = #tpu.core_type<tc>} {
    %c0 = arith.constant 0 : index
    %c0_0 = arith.constant 0 : index
    %0 = vector.load %arg0[%c0, %c0_0] : memref<76x4xf32, #tpu.memory_space<vmem>>, vector<76x4xf32>
    %cst = arith.constant dense<0.000000e+00> : vector<4xf32>
    %1 = vector.multi_reduction <add>, %0, %cst [0] : vector<76x4xf32> to vector<4xf32>
    %2 = vector.shape_cast %1 : vector<4xf32> to vector<1x4xf32>
    %cst_1 = arith.constant 7.600000e+01 : f32
    %3 = vector.broadcast %cst_1 : f32 to vector<1x4xf32>
    %4 = arith.divf %2, %3 : vector<1x4xf32>
    %5 = vector.broadcast %4 : vector<1x4xf32> to vector<76x4xf32>
    %6 = arith.subf %0, %5 : vector<76x4xf32>
    %7 = arith.mulf %6, %6 : vector<76x4xf32>
    %cst_2 = arith.constant dense<0.000000e+00> : vector<4xf32>
    %8 = vector.multi_reduction <add>, %7, %cst_2 [0] : vector<76x4xf32> to vector<4xf32>
    %9 = vector.shape_cast %8 : vector<4xf32> to vector<1x4xf32>
    %cst_3 = arith.constant 7.600000e+01 : f32
    %10 = vector.broadcast %cst_3 : f32 to vector<1x4xf32>
    %11 = arith.divf %9, %10 : vector<1x4xf32>
    %cst_4 = arith.constant 9.99999974E-6 : f32
    %12 = vector.broadcast %cst_4 : f32 to vector<1x4xf32>
    %13 = arith.addf %11, %12 : vector<1x4xf32>
    %14 = math.rsqrt %13 : vector<1x4xf32>
    %15 = vector.broadcast %14 : vector<1x4xf32> to vector<76x4xf32>
    %16 = arith.mulf %6, %15 : vector<76x4xf32>
    %c0_5 = arith.constant 0 : index
    %c0_6 = arith.constant 0 : index
    %17 = vector.load %arg2[%c0_5, %c0_6] : memref<1x4xf32, #tpu.memory_space<vmem>>, vector<1x4xf32>
    %18 = vector.broadcast %17 : vector<1x4xf32> to vector<76x4xf32>
    %19 = arith.mulf %16, %18 : vector<76x4xf32>
    %c0_7 = arith.constant 0 : index
    %c0_8 = arith.constant 0 : index
    %20 = vector.load %arg3[%c0_7, %c0_8] : memref<1x4xf32, #tpu.memory_space<vmem>>, vector<1x4xf32>
    %21 = vector.broadcast %20 : vector<1x4xf32> to vector<76x4xf32>
    %22 = arith.addf %19, %21 : vector<76x4xf32>
    %c0_9 = arith.constant 0 : index
    %c0_10 = arith.constant 0 : index
    %23 = vector.load %arg6[%c0_9, %c0_10] : memref<4x8xf32, #tpu.memory_space<vmem>>, vector<4x8xf32>
    %cst_11 = arith.constant dense<0.000000e+00> : vector<76x8xf32>
    %24 = tpu.matmul %22, %23, %cst_11 {dimension_numbers = #tpu.dot_dimension_numbers<[1], [0], [0], [1], [0, 0, 1, 1], [], []>} : vector<76x4xf32>, vector<4x8xf32>, vector<76x8xf32> -> vector<76x8xf32>
    %cst_12 = arith.constant 0.000000e+00 : f32
    %25 = vector.broadcast %cst_12 : f32 to vector<76x8xf32>
    %26 = arith.cmpf oge, %24, %25 : vector<76x8xf32>
    %cst_13 = arith.constant 2.000000e-01 : f32
    %27 = vector.broadcast %cst_13 : f32 to vector<76x8xf32>
    %28 = arith.mulf %27, %24 : vector<76x8xf32>
    %29 = arith.select %26, %24, %28 : vector<76x8xi1>, vector<76x8xf32>
    %c0_14 = arith.constant 0 : index
    %c0_15 = arith.constant 0 : index
    %30 = vector.load %arg1[%c0_14, %c0_15] : memref<680x8xf32, #tpu.memory_space<vmem>>, vector<680x8xf32>
    %31 = vector.extract_strided_slice %30 {offsets = [0, 0], sizes = [680, 3], strides = [1, 1]} : vector<680x8xf32> to vector<680x3xf32>
    %cst_16 = arith.constant dense<0.000000e+00> : vector<3xf32>
    %32 = vector.multi_reduction <add>, %31, %cst_16 [0] : vector<680x3xf32> to vector<3xf32>
    %33 = vector.shape_cast %32 : vector<3xf32> to vector<1x3xf32>
    %cst_17 = arith.constant 6.800000e+02 : f32
    %34 = vector.broadcast %cst_17 : f32 to vector<1x3xf32>
    %35 = arith.divf %33, %34 : vector<1x3xf32>
    %36 = vector.broadcast %35 : vector<1x3xf32> to vector<680x3xf32>
    %37 = arith.subf %31, %36 : vector<680x3xf32>
    %38 = arith.mulf %37, %37 : vector<680x3xf32>
    %cst_18 = arith.constant dense<0.000000e+00> : vector<3xf32>
    %39 = vector.multi_reduction <add>, %38, %cst_18 [0] : vector<680x3xf32> to vector<3xf32>
    %40 = vector.shape_cast %39 : vector<3xf32> to vector<1x3xf32>
    %cst_19 = arith.constant 6.800000e+02 : f32
    %41 = vector.broadcast %cst_19 : f32 to vector<1x3xf32>
    %42 = arith.divf %40, %41 : vector<1x3xf32>
    %cst_20 = arith.constant 9.99999974E-6 : f32
    %43 = vector.broadcast %cst_20 : f32 to vector<1x3xf32>
    %44 = arith.addf %42, %43 : vector<1x3xf32>
    %45 = math.rsqrt %44 : vector<1x3xf32>
    %46 = vector.broadcast %45 : vector<1x3xf32> to vector<680x3xf32>
    %47 = arith.mulf %37, %46 : vector<680x3xf32>
    %c0_21 = arith.constant 0 : index
    %c0_22 = arith.constant 0 : index
    %48 = vector.load %arg4[%c0_21, %c0_22] : memref<1x3xf32, #tpu.memory_space<vmem>>, vector<1x3xf32>
    %49 = vector.broadcast %48 : vector<1x3xf32> to vector<680x3xf32>
    %50 = arith.mulf %47, %49 : vector<680x3xf32>
    %c0_23 = arith.constant 0 : index
    %c0_24 = arith.constant 0 : index
    %51 = vector.load %arg5[%c0_23, %c0_24] : memref<1x3xf32, #tpu.memory_space<vmem>>, vector<1x3xf32>
    %52 = vector.broadcast %51 : vector<1x3xf32> to vector<680x3xf32>
    %53 = arith.addf %50, %52 : vector<680x3xf32>
    %c0_25 = arith.constant 0 : index
    %c0_26 = arith.constant 0 : index
    %54 = vector.load %arg7[%c0_25, %c0_26] : memref<3x8xf32, #tpu.memory_space<vmem>>, vector<3x8xf32>
    %cst_27 = arith.constant dense<0.000000e+00> : vector<680x8xf32>
    %55 = tpu.matmul %53, %54, %cst_27 {dimension_numbers = #tpu.dot_dimension_numbers<[1], [0], [0], [1], [0, 0, 1, 1], [], []>} : vector<680x3xf32>, vector<3x8xf32>, vector<680x8xf32> -> vector<680x8xf32>
    %cst_28 = arith.constant 0.000000e+00 : f32
    %56 = vector.broadcast %cst_28 : f32 to vector<680x8xf32>
    %57 = arith.cmpf oge, %55, %56 : vector<680x8xf32>
    %cst_29 = arith.constant 2.000000e-01 : f32
    %58 = vector.broadcast %cst_29 : f32 to vector<680x8xf32>
    %59 = arith.mulf %58, %55 : vector<680x8xf32>
    %60 = arith.select %57, %55, %59 : vector<680x8xi1>, vector<680x8xf32>
    %cst_30 = arith.constant 0.000000e+00 : f32
    %61 = vector.broadcast %cst_30 : f32 to vector<6x8xf32>
    %62 = vector.extract_strided_slice %29 {offsets = [0, 0], sizes = [38, 8], strides = [1, 1]} : vector<76x8xf32> to vector<38x8xf32>
    %63 = vector.extract_strided_slice %60 {offsets = [0, 0], sizes = [340, 8], strides = [1, 1]} : vector<680x8xf32> to vector<340x8xf32>
    %64 = tpu.concatenate %62, %63, %61 in 0 : vector<38x8xf32>, vector<340x8xf32>, vector<6x8xf32> -> vector<384x8xf32>
    %65 = vector.extract_strided_slice %29 {offsets = [38, 0], sizes = [38, 8], strides = [1, 1]} : vector<76x8xf32> to vector<38x8xf32>
    %66 = vector.extract_strided_slice %60 {offsets = [340, 0], sizes = [340, 8], strides = [1, 1]} : vector<680x8xf32> to vector<340x8xf32>
    %67 = tpu.concatenate %65, %66, %61 in 0 : vector<38x8xf32>, vector<340x8xf32>, vector<6x8xf32> -> vector<384x8xf32>
    %68 = tpu.concatenate %64, %67 in 1 : vector<384x8xf32>, vector<384x8xf32> -> vector<384x16xf32>
    %69 = tpu.iota {dimensions = array<i32: 0>} : vector<384x1xi32>
    %c378_i32 = arith.constant 378 : i32
    %70 = vector.broadcast %c378_i32 : i32 to vector<384x1xi32>
    %71 = arith.cmpi slt, %69, %70 : vector<384x1xi32>
    %c1_i32 = arith.constant 1 : i32
    %72 = tpu.dynamic_rotate %68 by %c1_i32 dim 0 : vector<384x16xf32>, i32 -> vector<384x16xf32>
    %c383_i32 = arith.constant 383 : i32
    %73 = tpu.dynamic_rotate %68 by %c383_i32 dim 0 : vector<384x16xf32>, i32 -> vector<384x16xf32>
    %74 = arith.truncf %72 : vector<384x16xf32> to vector<384x16xbf16>
    %75 = arith.truncf %68 : vector<384x16xf32> to vector<384x16xbf16>
    %76 = arith.truncf %73 : vector<384x16xf32> to vector<384x16xbf16>
    %77 = tpu.concatenate %74, %75, %76 in 1 : vector<384x16xbf16>, vector<384x16xbf16>, vector<384x16xbf16> -> vector<384x48xbf16>
    %c0_31 = arith.constant 0 : index
    %c0_32 = arith.constant 0 : index
    %78 = vector.load %arg8[%c0_31, %c0_32] : memref<48x128xbf16, #tpu.memory_space<vmem>>, vector<48x128xbf16>
    %cst_33 = arith.constant dense<0.000000e+00> : vector<384x128xf32>
    %79 = tpu.matmul %77, %78, %cst_33 {dimension_numbers = #tpu.dot_dimension_numbers<[1], [0], [0], [1], [0, 0, 1, 1], [], []>} : vector<384x48xbf16>, vector<48x128xbf16>, vector<384x128xf32> -> vector<384x128xf32>
    %c0_34 = arith.constant 0 : index
    %c0_35 = arith.constant 0 : index
    %80 = vector.load %arg12[%c0_34, %c0_35] : memref<1x128xf32, #tpu.memory_space<vmem>>, vector<1x128xf32>
    %81 = vector.broadcast %80 : vector<1x128xf32> to vector<384x128xf32>
    %82 = arith.addf %79, %81 : vector<384x128xf32>
    %cst_36 = arith.constant 0.000000e+00 : f32
    %83 = vector.broadcast %cst_36 : f32 to vector<384x128xf32>
    %84 = arith.cmpf oge, %82, %83 : vector<384x128xf32>
    %cst_37 = arith.constant 2.000000e-01 : f32
    %85 = vector.broadcast %cst_37 : f32 to vector<384x128xf32>
    %86 = arith.mulf %85, %82 : vector<384x128xf32>
    %87 = arith.select %84, %82, %86 : vector<384x128xi1>, vector<384x128xf32>
    %cst_38 = arith.constant 0.000000e+00 : f32
    %88 = vector.shape_cast %71 : vector<384x1xi1> to vector<384x1xi1>
    %89 = vector.broadcast %88 : vector<384x1xi1> to vector<384x128xi1>
    %90 = vector.broadcast %cst_38 : f32 to vector<384x128xf32>
    %91 = arith.select %89, %87, %90 : vector<384x128xi1>, vector<384x128xf32>
    %c1_i32_39 = arith.constant 1 : i32
    %92 = tpu.dynamic_rotate %91 by %c1_i32_39 dim 0 : vector<384x128xf32>, i32 -> vector<384x128xf32>
    %c383_i32_40 = arith.constant 383 : i32
    %93 = tpu.dynamic_rotate %91 by %c383_i32_40 dim 0 : vector<384x128xf32>, i32 -> vector<384x128xf32>
    %94 = arith.truncf %92 : vector<384x128xf32> to vector<384x128xbf16>
    %95 = arith.truncf %91 : vector<384x128xf32> to vector<384x128xbf16>
    %96 = arith.truncf %93 : vector<384x128xf32> to vector<384x128xbf16>
    %97 = tpu.concatenate %94, %95, %96 in 1 : vector<384x128xbf16>, vector<384x128xbf16>, vector<384x128xbf16> -> vector<384x384xbf16>
    %c0_41 = arith.constant 0 : index
    %c0_42 = arith.constant 0 : index
    %98 = vector.load %arg9[%c0_41, %c0_42] : memref<384x128xbf16, #tpu.memory_space<vmem>>, vector<384x128xbf16>
    %cst_43 = arith.constant dense<0.000000e+00> : vector<384x128xf32>
    %99 = tpu.matmul %97, %98, %cst_43 {dimension_numbers = #tpu.dot_dimension_numbers<[1], [0], [0], [1], [0, 0, 1, 1], [], []>} : vector<384x384xbf16>, vector<384x128xbf16>, vector<384x128xf32> -> vector<384x128xf32>
    %c0_44 = arith.constant 0 : index
    %c0_45 = arith.constant 0 : index
    %100 = vector.load %arg13[%c0_44, %c0_45] : memref<1x128xf32, #tpu.memory_space<vmem>>, vector<1x128xf32>
    %101 = vector.broadcast %100 : vector<1x128xf32> to vector<384x128xf32>
    %102 = arith.addf %99, %101 : vector<384x128xf32>
    %cst_46 = arith.constant 0.000000e+00 : f32
    %103 = vector.broadcast %cst_46 : f32 to vector<384x128xf32>
    %104 = arith.cmpf oge, %102, %103 : vector<384x128xf32>
    %cst_47 = arith.constant 2.000000e-01 : f32
    %105 = vector.broadcast %cst_47 : f32 to vector<384x128xf32>
    %106 = arith.mulf %105, %102 : vector<384x128xf32>
    %107 = arith.select %104, %102, %106 : vector<384x128xi1>, vector<384x128xf32>
    %cst_48 = arith.constant 0.000000e+00 : f32
    %108 = vector.shape_cast %71 : vector<384x1xi1> to vector<384x1xi1>
    %109 = vector.broadcast %108 : vector<384x1xi1> to vector<384x128xi1>
    %110 = vector.broadcast %cst_48 : f32 to vector<384x128xf32>
    %111 = arith.select %109, %107, %110 : vector<384x128xi1>, vector<384x128xf32>
    %c1_i32_49 = arith.constant 1 : i32
    %112 = tpu.dynamic_rotate %111 by %c1_i32_49 dim 0 : vector<384x128xf32>, i32 -> vector<384x128xf32>
    %c383_i32_50 = arith.constant 383 : i32
    %113 = tpu.dynamic_rotate %111 by %c383_i32_50 dim 0 : vector<384x128xf32>, i32 -> vector<384x128xf32>
    %114 = arith.truncf %112 : vector<384x128xf32> to vector<384x128xbf16>
    %115 = arith.truncf %111 : vector<384x128xf32> to vector<384x128xbf16>
    %116 = arith.truncf %113 : vector<384x128xf32> to vector<384x128xbf16>
    %117 = tpu.concatenate %114, %115, %116 in 1 : vector<384x128xbf16>, vector<384x128xbf16>, vector<384x128xbf16> -> vector<384x384xbf16>
    %c0_51 = arith.constant 0 : index
    %c0_52 = arith.constant 0 : index
    %118 = vector.load %arg10[%c0_51, %c0_52] : memref<384x128xbf16, #tpu.memory_space<vmem>>, vector<384x128xbf16>
    %cst_53 = arith.constant dense<0.000000e+00> : vector<384x128xf32>
    %119 = tpu.matmul %117, %118, %cst_53 {dimension_numbers = #tpu.dot_dimension_numbers<[1], [0], [0], [1], [0, 0, 1, 1], [], []>} : vector<384x384xbf16>, vector<384x128xbf16>, vector<384x128xf32> -> vector<384x128xf32>
    %c0_54 = arith.constant 0 : index
    %c0_55 = arith.constant 0 : index
    %120 = vector.load %arg14[%c0_54, %c0_55] : memref<1x128xf32, #tpu.memory_space<vmem>>, vector<1x128xf32>
    %121 = vector.broadcast %120 : vector<1x128xf32> to vector<384x128xf32>
    %122 = arith.addf %119, %121 : vector<384x128xf32>
    %cst_56 = arith.constant 0.000000e+00 : f32
    %123 = vector.broadcast %cst_56 : f32 to vector<384x128xf32>
    %124 = arith.cmpf oge, %122, %123 : vector<384x128xf32>
    %cst_57 = arith.constant 2.000000e-01 : f32
    %125 = vector.broadcast %cst_57 : f32 to vector<384x128xf32>
    %126 = arith.mulf %125, %122 : vector<384x128xf32>
    %127 = arith.select %124, %122, %126 : vector<384x128xi1>, vector<384x128xf32>
    %cst_58 = arith.constant 0.000000e+00 : f32
    %128 = vector.shape_cast %71 : vector<384x1xi1> to vector<384x1xi1>
    %129 = vector.broadcast %128 : vector<384x1xi1> to vector<384x128xi1>
    %130 = vector.broadcast %cst_58 : f32 to vector<384x128xf32>
    %131 = arith.select %129, %127, %130 : vector<384x128xi1>, vector<384x128xf32>
    %c1_i32_59 = arith.constant 1 : i32
    %132 = tpu.dynamic_rotate %131 by %c1_i32_59 dim 0 : vector<384x128xf32>, i32 -> vector<384x128xf32>
    %c383_i32_60 = arith.constant 383 : i32
    %133 = tpu.dynamic_rotate %131 by %c383_i32_60 dim 0 : vector<384x128xf32>, i32 -> vector<384x128xf32>
    %134 = arith.truncf %132 : vector<384x128xf32> to vector<384x128xbf16>
    %135 = arith.truncf %131 : vector<384x128xf32> to vector<384x128xbf16>
    %136 = arith.truncf %133 : vector<384x128xf32> to vector<384x128xbf16>
    %137 = tpu.concatenate %134, %135, %136 in 1 : vector<384x128xbf16>, vector<384x128xbf16>, vector<384x128xbf16> -> vector<384x384xbf16>
    %c0_61 = arith.constant 0 : index
    %c0_62 = arith.constant 0 : index
    %138 = vector.load %arg11[%c0_61, %c0_62] : memref<384x16xbf16, #tpu.memory_space<vmem>>, vector<384x16xbf16>
    %cst_63 = arith.constant dense<0.000000e+00> : vector<384x16xf32>
    %139 = tpu.matmul %137, %138, %cst_63 {dimension_numbers = #tpu.dot_dimension_numbers<[1], [0], [0], [1], [0, 0, 1, 1], [], []>} : vector<384x384xbf16>, vector<384x16xbf16>, vector<384x16xf32> -> vector<384x16xf32>
    %c0_64 = arith.constant 0 : index
    %c0_65 = arith.constant 0 : index
    %140 = vector.load %arg15[%c0_64, %c0_65] : memref<1x16xf32, #tpu.memory_space<vmem>>, vector<1x16xf32>
    %141 = vector.broadcast %140 : vector<1x16xf32> to vector<384x16xf32>
    %142 = arith.addf %139, %141 : vector<384x16xf32>
    %cst_66 = arith.constant 0.000000e+00 : f32
    %143 = vector.broadcast %cst_66 : f32 to vector<384x16xf32>
    %144 = arith.cmpf oge, %142, %143 : vector<384x16xf32>
    %cst_67 = arith.constant 2.000000e-01 : f32
    %145 = vector.broadcast %cst_67 : f32 to vector<384x16xf32>
    %146 = arith.mulf %145, %142 : vector<384x16xf32>
    %147 = arith.select %144, %142, %146 : vector<384x16xi1>, vector<384x16xf32>
    %cst_68 = arith.constant 0.000000e+00 : f32
    %148 = vector.shape_cast %71 : vector<384x1xi1> to vector<384x1xi1>
    %149 = vector.broadcast %148 : vector<384x1xi1> to vector<384x16xi1>
    %150 = vector.broadcast %cst_68 : f32 to vector<384x16xf32>
    %151 = arith.select %149, %147, %150 : vector<384x16xi1>, vector<384x16xf32>
    %152 = tpu.transpose %151, [1, 0] : vector<384x16xf32> -> vector<16x384xf32>
    %c0_69 = arith.constant 0 : index
    %c0_70 = arith.constant 0 : index
    %153 = vector.load %arg16[%c0_69, %c0_70] : memref<384x38xf32, #tpu.memory_space<vmem>>, vector<384x38xf32>
    %cst_71 = arith.constant dense<0.000000e+00> : vector<16x38xf32>
    %154 = tpu.matmul %152, %153, %cst_71 {dimension_numbers = #tpu.dot_dimension_numbers<[1], [0], [0], [1], [0, 0, 1, 1], [], []>} : vector<16x384xf32>, vector<384x38xf32>, vector<16x38xf32> -> vector<16x38xf32>
    %155 = vector.extract_strided_slice %154 {offsets = [0, 0], sizes = [8, 38], strides = [1, 1]} : vector<16x38xf32> to vector<8x38xf32>
    %cst_72 = arith.constant dense<0.000000e+00> : vector<38xf32>
    %156 = vector.multi_reduction <add>, %155, %cst_72 [0] : vector<8x38xf32> to vector<38xf32>
    %157 = vector.shape_cast %156 : vector<38xf32> to vector<1x38xf32>
    %158 = vector.extract_strided_slice %154 {offsets = [8, 0], sizes = [8, 38], strides = [1, 1]} : vector<16x38xf32> to vector<8x38xf32>
    %cst_73 = arith.constant dense<0.000000e+00> : vector<38xf32>
    %159 = vector.multi_reduction <add>, %158, %cst_73 [0] : vector<8x38xf32> to vector<38xf32>
    %160 = vector.shape_cast %159 : vector<38xf32> to vector<1x38xf32>
    %161 = tpu.concatenate %157, %160 in 0 : vector<1x38xf32>, vector<1x38xf32> -> vector<2x38xf32>
    %c0_74 = arith.constant 0 : index
    %c0_75 = arith.constant 0 : index
    %162 = vector.load %arg17[%c0_74, %c0_75] : memref<1x38xf32, #tpu.memory_space<vmem>>, vector<1x38xf32>
    %163 = vector.broadcast %162 : vector<1x38xf32> to vector<2x38xf32>
    %164 = arith.addf %161, %163 : vector<2x38xf32>
    %cst_76 = arith.constant dense<0xFF800000> : vector<2xf32>
    %165 = vector.multi_reduction <maximumf>, %164, %cst_76 [1] : vector<2x38xf32> to vector<2xf32>
    %166 = vector.shape_cast %165 : vector<2xf32> to vector<2x1xf32>
    %167 = vector.broadcast %166 : vector<2x1xf32> to vector<2x38xf32>
    %168 = arith.subf %164, %167 : vector<2x38xf32>
    %169 = math.exp %168 : vector<2x38xf32>
    %cst_77 = arith.constant dense<0.000000e+00> : vector<2xf32>
    %170 = vector.multi_reduction <add>, %169, %cst_77 [1] : vector<2x38xf32> to vector<2xf32>
    %171 = vector.shape_cast %170 : vector<2xf32> to vector<2x1xf32>
    %172 = vector.broadcast %171 : vector<2x1xf32> to vector<2x38xf32>
    %173 = arith.divf %169, %172 : vector<2x38xf32>
    %174 = vector.extract_strided_slice %30 {offsets = [0, 3], sizes = [1, 5], strides = [1, 1]} : vector<680x8xf32> to vector<1x5xf32>
    %175 = vector.extract_strided_slice %30 {offsets = [340, 3], sizes = [1, 5], strides = [1, 1]} : vector<680x8xf32> to vector<1x5xf32>
    %176 = tpu.concatenate %174, %175 in 0 : vector<1x5xf32>, vector<1x5xf32> -> vector<2x5xf32>
    %c0_78 = arith.constant 0 : index
    %c0_79 = arith.constant 0 : index
    %177 = vector.load %arg18[%c0_78, %c0_79] : memref<5x8xf32, #tpu.memory_space<vmem>>, vector<5x8xf32>
    %cst_80 = arith.constant dense<0.000000e+00> : vector<2x8xf32>
    %178 = tpu.matmul %176, %177, %cst_80 {dimension_numbers = #tpu.dot_dimension_numbers<[1], [0], [0], [1], [0, 0, 1, 1], [], []>} : vector<2x5xf32>, vector<5x8xf32>, vector<2x8xf32> -> vector<2x8xf32>
    %c0_81 = arith.constant 0 : index
    %c0_82 = arith.constant 0 : index
    %179 = vector.load %arg19[%c0_81, %c0_82] : memref<1x8xf32, #tpu.memory_space<vmem>>, vector<1x8xf32>
    %180 = vector.broadcast %179 : vector<1x8xf32> to vector<2x8xf32>
    %181 = arith.addf %178, %180 : vector<2x8xf32>
    %cst_83 = arith.constant 0.000000e+00 : f32
    %182 = vector.broadcast %cst_83 : f32 to vector<2x8xf32>
    %183 = arith.cmpf oge, %181, %182 : vector<2x8xf32>
    %cst_84 = arith.constant 2.000000e-01 : f32
    %184 = vector.broadcast %cst_84 : f32 to vector<2x8xf32>
    %185 = arith.mulf %184, %181 : vector<2x8xf32>
    %186 = arith.select %183, %181, %185 : vector<2x8xi1>, vector<2x8xf32>
    %c0_85 = arith.constant 0 : index
    %c0_86 = arith.constant 0 : index
    %187 = vector.load %arg20[%c0_85, %c0_86] : memref<8x38xf32, #tpu.memory_space<vmem>>, vector<8x38xf32>
    %cst_87 = arith.constant dense<0.000000e+00> : vector<2x38xf32>
    %188 = tpu.matmul %186, %187, %cst_87 {dimension_numbers = #tpu.dot_dimension_numbers<[1], [0], [0], [1], [0, 0, 1, 1], [], []>} : vector<2x8xf32>, vector<8x38xf32>, vector<2x38xf32> -> vector<2x38xf32>
    %c0_88 = arith.constant 0 : index
    %c0_89 = arith.constant 0 : index
    %189 = vector.load %arg21[%c0_88, %c0_89] : memref<1x38xf32, #tpu.memory_space<vmem>>, vector<1x38xf32>
    %190 = vector.broadcast %189 : vector<1x38xf32> to vector<2x38xf32>
    %191 = arith.addf %188, %190 : vector<2x38xf32>
    %192 = math.exp %191 : vector<2x38xf32>
    %193 = arith.mulf %192, %173 : vector<2x38xf32>
    %c0_90 = arith.constant 0 : index
    %c0_91 = arith.constant 0 : index
    %194 = vector.load %arg22[%c0_90, %c0_91] : memref<2x38xf32, #tpu.memory_space<vmem>>, vector<2x38xf32>
    tpu.vector_store %arg22[%c0_90, %c0_91], %193 {strides = array<i32>} : memref<2x38xf32, #tpu.memory_space<vmem>>, vector<2x38xf32>,
    return
  }
}

</mosaic_0001>

<llo_original>
// kernel: tpu_custom_call.1
$region0: #{tpu_custom_call.1}
  #allocation0 [shape = 'u32[]', space=smem, size = 0x4, offset = 0x4, fixed_abs, tag = 'smem constant byte address 0x4 - core index']
  #allocation1 [shape = 'u32[144,128]{1,0:T(1,128)}', space=vmem, size = 0x12000, scoped, tag = 'internal scratch']
  %s0 = inlined_call_operand.vmem [shape: f32[76,4], index: 0, kind: input, shape index: {}]
  %s1 = inlined_call_operand.vmem [shape: f32[680,8], index: 1, kind: input, shape index: {}]
  %s2 = inlined_call_operand.vmem [shape: f32[1,4], index: 2, kind: input, shape index: {}]
  %s3 = inlined_call_operand.vmem [shape: f32[1,4], index: 3, kind: input, shape index: {}]
  %s4 = inlined_call_operand.vmem [shape: f32[1,3], index: 4, kind: input, shape index: {}]
  %s5 = inlined_call_operand.vmem [shape: f32[1,3], index: 5, kind: input, shape index: {}]
  %s6 = inlined_call_operand.vmem [shape: f32[4,8], index: 6, kind: input, shape index: {}]
  %s7 = inlined_call_operand.vmem [shape: f32[3,8], index: 7, kind: input, shape index: {}]
  %s8 = inlined_call_operand.vmem [shape: bf16[48,128], index: 8, kind: input, shape index: {}]
  %s9 = inlined_call_operand.vmem [shape: bf16[384,128], index: 9, kind: input, shape index: {}]
  %s10 = inlined_call_operand.vmem [shape: bf16[384,128], index: 10, kind: input, shape index: {}]
  %s11 = inlined_call_operand.vmem [shape: bf16[384,16], index: 11, kind: input, shape index: {}]
  %s12 = inlined_call_operand.vmem [shape: f32[1,128], index: 12, kind: input, shape index: {}]
  %s13 = inlined_call_operand.vmem [shape: f32[1,128], index: 13, kind: input, shape index: {}]
  %s14 = inlined_call_operand.vmem [shape: f32[1,128], index: 14, kind: input, shape index: {}]
  %s15 = inlined_call_operand.vmem [shape: f32[1,16], index: 15, kind: input, shape index: {}]
  %s16 = inlined_call_operand.vmem [shape: f32[384,38], index: 16, kind: input, shape index: {}]
  %s17 = inlined_call_operand.vmem [shape: f32[1,38], index: 17, kind: input, shape index: {}]
  %s18 = inlined_call_operand.vmem [shape: f32[5,8], index: 18, kind: input, shape index: {}]
  %s19 = inlined_call_operand.vmem [shape: f32[1,8], index: 19, kind: input, shape index: {}]
  %s20 = inlined_call_operand.vmem [shape: f32[8,38], index: 20, kind: input, shape index: {}]
  %s21 = inlined_call_operand.vmem [shape: f32[1,38], index: 21, kind: input, shape index: {}]
  %s22 = inlined_call_operand.hbm [shape: f32[2,38], index: 22, kind: output, shape index: {}]
  %s23 = sld [smem:[#allocation0]]
  $region98: #{tpu_custom_call.1} parent=0
    _
  %s25 = ssub.s32 1, %s23
  %s26 = scalar_select 0, %s25, %s23
  $region1: #{tpu_custom_call.1} parent=0
    #allocation2 [shape = 'u8[1024]{0}', space=vmem, size = 0x400, scoped, tag = 'output window, operand 0, single buffered']
    #allocation3 [shape = 's32[1]{0}', space=sflag, size = 0x4, scoped, tag = 'scoped memory for tpu_custom_call.1']
    %27 = vsyncpa [#allocation3], 0
    // Predicated region
    $region2: #{tpu_custom_call.1} parent=1 // pred_check
      _
    $region3: #{tpu_custom_call.1} parent=1 // pred_check_branch
      %29 = sbr.rel (0) target = $region5
    $region4: #{tpu_custom_call.1} parent=1 // pred_region
      _
    $region5: #{tpu_custom_call.1} parent=1 // pred_fallthru
      _
    // Predicated region
    $region6: #{tpu_custom_call.1} parent=1 // pred_check
      _
    $region7: #{tpu_custom_call.1} parent=1 // pred_check_branch
      %31 = sbr.rel (0) target = $region9
    $region8: #{tpu_custom_call.1} parent=1 // pred_region
      _
    $region9: #{tpu_custom_call.1} parent=1 // pred_fallthru
      _
    // Predicated region
    $region10: #{tpu_custom_call.1} parent=1 // pred_check
      _
    $region11: #{tpu_custom_call.1} parent=1 // pred_check_branch
      %33 = sbr.rel (0) target = $region13
    $region12: #{tpu_custom_call.1} parent=1 // pred_region
      _
    $region13: #{tpu_custom_call.1} parent=1 // pred_fallthru
      _
    // Predicated region
    $region14: #{tpu_custom_call.1} parent=1 // pred_check
      _
    $region15: #{tpu_custom_call.1} parent=1 // pred_check_branch
      %35 = sbr.rel (0) target = $region17
    $region16: #{tpu_custom_call.1} parent=1 // pred_region
      _
    $region17: #{tpu_custom_call.1} parent=1 // pred_fallthru
      _
    // Predicated region
    $region18: #{tpu_custom_call.1} parent=1 // pred_check
      _
    $region19: #{tpu_custom_call.1} parent=1 // pred_check_branch
      %37 = sbr.rel (0) target = $region21
    $region20: #{tpu_custom_call.1} parent=1 // pred_region
      _
    $region21: #{tpu_custom_call.1} parent=1 // pred_fallthru
      _
    // Predicated region
    $region22: #{tpu_custom_call.1} parent=1 // pred_check
      _
    $region23: #{tpu_custom_call.1} parent=1 // pred_check_branch
      %39 = sbr.rel (0) target = $region25
    $region24: #{tpu_custom_call.1} parent=1 // pred_region
      _
    $region25: #{tpu_custom_call.1} parent=1 // pred_fallthru
      _
    // Predicated region
    $region26: #{tpu_custom_call.1} parent=1 // pred_check
      _
    $region27: #{tpu_custom_call.1} parent=1 // pred_check_branch
      %41 = sbr.rel (0) target = $region29
    $region28: #{tpu_custom_call.1} parent=1 // pred_region
      _
    $region29: #{tpu_custom_call.1} parent=1 // pred_fallthru
      _
    // Predicated region
    $region30: #{tpu_custom_call.1} parent=1 // pred_check
      _
    $region31: #{tpu_custom_call.1} parent=1 // pred_check_branch
      %43 = sbr.rel (0) target = $region33
    $region32: #{tpu_custom_call.1} parent=1 // pred_region
      _
    $region33: #{tpu_custom_call.1} parent=1 // pred_fallthru
      _
    // Predicated region
    $region34: #{tpu_custom_call.1} parent=1 // pred_check
      _
    $region35: #{tpu_custom_call.1} parent=1 // pred_check_branch
      %45 = sbr.rel (0) target = $region37
    $region36: #{tpu_custom_call.1} parent=1 // pred_region
      _
    $region37: #{tpu_custom_call.1} parent=1 // pred_fallthru
      _
    // Predicated region
    $region38: #{tpu_custom_call.1} parent=1 // pred_check
      _
    $region39: #{tpu_custom_call.1} parent=1 // pred_check_branch
      %47 = sbr.rel (0) target = $region41
    $region40: #{tpu_custom_call.1} parent=1 // pred_region
      _
    $region41: #{tpu_custom_call.1} parent=1 // pred_fallthru
      _
    // Predicated region
    $region42: #{tpu_custom_call.1} parent=1 // pred_check
      _
    $region43: #{tpu_custom_call.1} parent=1 // pred_check_branch
      %49 = sbr.rel (0) target = $region45
    $region44: #{tpu_custom_call.1} parent=1 // pred_region
      _
    $region45: #{tpu_custom_call.1} parent=1 // pred_fallthru
      _
    // Predicated region
    $region46: #{tpu_custom_call.1} parent=1 // pred_check
      _
    $region47: #{tpu_custom_call.1} parent=1 // pred_check_branch
      %51 = sbr.rel (0) target = $region49
    $region48: #{tpu_custom_call.1} parent=1 // pred_region
      _
    $region49: #{tpu_custom_call.1} parent=1 // pred_fallthru
      _
    // Predicated region
    $region50: #{tpu_custom_call.1} parent=1 // pred_check
      _
    $region51: #{tpu_custom_call.1} parent=1 // pred_check_branch
      %53 = sbr.rel (0) target = $region53
    $region52: #{tpu_custom_call.1} parent=1 // pred_region
      _
    $region53: #{tpu_custom_call.1} parent=1 // pred_fallthru
      _
    // Predicated region
    $region54: #{tpu_custom_call.1} parent=1 // pred_check
      _
    $region55: #{tpu_custom_call.1} parent=1 // pred_check_branch
      %55 = sbr.rel (0) target = $region57
    $region56: #{tpu_custom_call.1} parent=1 // pred_region
      _
    $region57: #{tpu_custom_call.1} parent=1 // pred_fallthru
      _
    // Predicated region
    $region58: #{tpu_custom_call.1} parent=1 // pred_check
      _
    $region59: #{tpu_custom_call.1} parent=1 // pred_check_branch
      %57 = sbr.rel (0) target = $region61
    $region60: #{tpu_custom_call.1} parent=1 // pred_region
      _
    $region61: #{tpu_custom_call.1} parent=1 // pred_fallthru
      _
    // Predicated region
    $region62: #{tpu_custom_call.1} parent=1 // pred_check
      _
    $region63: #{tpu_custom_call.1} parent=1 // pred_check_branch
      %59 = sbr.rel (0) target = $region65
    $region64: #{tpu_custom_call.1} parent=1 // pred_region
      _
    $region65: #{tpu_custom_call.1} parent=1 // pred_fallthru
      _
    // Predicated region
    $region66: #{tpu_custom_call.1} parent=1 // pred_check
      _
    $region67: #{tpu_custom_call.1} parent=1 // pred_check_branch
      %61 = sbr.rel (0) target = $region69
    $region68: #{tpu_custom_call.1} parent=1 // pred_region
      _
    $region69: #{tpu_custom_call.1} parent=1 // pred_fallthru
      _
    // Predicated region
    $region70: #{tpu_custom_call.1} parent=1 // pred_check
      _
    $region71: #{tpu_custom_call.1} parent=1 // pred_check_branch
      %63 = sbr.rel (0) target = $region73
    $region72: #{tpu_custom_call.1} parent=1 // pred_region
      _
    $region73: #{tpu_custom_call.1} parent=1 // pred_fallthru
      _
    // Predicated region
    $region74: #{tpu_custom_call.1} parent=1 // pred_check
      _
    $region75: #{tpu_custom_call.1} parent=1 // pred_check_branch
      %65 = sbr.rel (0) target = $region77
    $region76: #{tpu_custom_call.1} parent=1 // pred_region
      _
    $region77: #{tpu_custom_call.1} parent=1 // pred_fallthru
      _
    // Predicated region
    $region78: #{tpu_custom_call.1} parent=1 // pred_check
      _
    $region79: #{tpu_custom_call.1} parent=1 // pred_check_branch
      %67 = sbr.rel (0) target = $region81
    $region80: #{tpu_custom_call.1} parent=1 // pred_region
      _
    $region81: #{tpu_custom_call.1} parent=1 // pred_fallthru
      _
    // Predicated region
    $region82: #{tpu_custom_call.1} parent=1 // pred_check
      _
    $region83: #{tpu_custom_call.1} parent=1 // pred_check_branch
      %69 = sbr.rel (0) target = $region85
    $region84: #{tpu_custom_call.1} parent=1 // pred_region
      _
    $region85: #{tpu_custom_call.1} parent=1 // pred_fallthru
      _
    // Predicated region
    $region86: #{tpu_custom_call.1} parent=1 // pred_check
      _
    $region87: #{tpu_custom_call.1} parent=1 // pred_check_branch
      %71 = sbr.rel (0) target = $region89
    $region88: #{tpu_custom_call.1} parent=1 // pred_region
      _
    $region89: #{tpu_custom_call.1} parent=1 // pred_fallthru
      _
    %v73 = vld [vmem:[%s0] sm:$0xff]
    %v74 = vld [vmem:[%s0 + $0x8] sm:$0xff]
    %v75 = vld [vmem:[%s0 + $0x10] sm:$0xff]
    %v76 = vld [vmem:[%s0 + $0x18] sm:$0xff]
    %v77 = vld [vmem:[%s0 + $0x20] sm:$0xff]
    %v78 = vld [vmem:[%s0 + $0x28] sm:$0xff]
    %v79 = vld [vmem:[%s0 + $0x30] sm:$0xff]
    %v80 = vld [vmem:[%s0 + $0x38] sm:$0xff]
    %v81 = vld [vmem:[%s0 + $0x40] sm:$0xff]
    %v82 = vld [vmem:[%s0 + $0x48] sm:$0xf]
    %vm83 = vcmask 31744
    %v84 = vsel %vm83, %v73, 0.0
    %v85 = vsel %vm83, %v74, 0.0
    %v86 = vadd.f32 %v84, %v85
    %v87 = vsel %vm83, %v75, 0.0
    %v88 = vadd.f32 %v86, %v87
    %v89 = vsel %vm83, %v76, 0.0
    %v90 = vadd.f32 %v88, %v89
    %v91 = vsel %vm83, %v77, 0.0
    %v92 = vadd.f32 %v90, %v91
    %v93 = vsel %vm83, %v78, 0.0
    %v94 = vadd.f32 %v92, %v93
    %v95 = vsel %vm83, %v79, 0.0
    %v96 = vadd.f32 %v94, %v95
    %v97 = vsel %vm83, %v80, 0.0
    %v98 = vadd.f32 %v96, %v97
    %v99 = vsel %vm83, %v81, 0.0
    %v100 = vadd.f32 %v98, %v99
    %vm101 = vcmask 27648
    %v102 = vsel %vm101, %v82, 0.0
    %v103 = vadd.f32 %v100, %v102
    %v104 = vrot.slane %v103, 4
    %v105 = vadd.f32 %v103, %v104
    %v106 = vrot.slane %v105, 2
    %v107 = vadd.f32 %v105, %v106
    %v108 = vrot.slane %v107, 1
    %v109 = vadd.f32 %v107, %v108
    %v110 = vrcp.pop 76.0
    %v111 = vmul.f32 %v109, %v110
    %v112 = vsub.f32 %v73, %v111
    %v113 = vsub.f32 %v74, %v111
    %v114 = vsub.f32 %v75, %v111
    %v115 = vsub.f32 %v76, %v111
    %v116 = vsub.f32 %v77, %v111
    %v117 = vsub.f32 %v78, %v111
    %v118 = vsub.f32 %v79, %v111
    %v119 = vsub.f32 %v80, %v111
    %v120 = vsub.f32 %v81, %v111
    %v121 = vsub.f32 %v82, %v111
    %v122 = vmul.f32 %v112, %v112
    %v123 = vmul.f32 %v113, %v113
    %v124 = vmul.f32 %v114, %v114
    %v125 = vmul.f32 %v115, %v115
    %v126 = vmul.f32 %v116, %v116
    %v127 = vmul.f32 %v117, %v117
    %v128 = vmul.f32 %v118, %v118
    %v129 = vmul.f32 %v119, %v119
    %v130 = vmul.f32 %v120, %v120
    %v131 = vmul.f32 %v121, %v121
    %v132 = vsel %vm83, %v122, 0.0
    %v133 = vsel %vm83, %v123, 0.0
    %v134 = vadd.f32 %v132, %v133
    %v135 = vsel %vm83, %v124, 0.0
    %v136 = vadd.f32 %v134, %v135
    %v137 = vsel %vm83, %v125, 0.0
    %v138 = vadd.f32 %v136, %v137
    %v139 = vsel %vm83, %v126, 0.0
    %v140 = vadd.f32 %v138, %v139
    %v141 = vsel %vm83, %v127, 0.0
    %v142 = vadd.f32 %v140, %v141
    %v143 = vsel %vm83, %v128, 0.0
    %v144 = vadd.f32 %v142, %v143
    %v145 = vsel %vm83, %v129, 0.0
    %v146 = vadd.f32 %v144, %v145
    %v147 = vsel %vm83, %v130, 0.0
    %v148 = vadd.f32 %v146, %v147
    %v149 = vsel %vm101, %v131, 0.0
    %v150 = vadd.f32 %v148, %v149
    %v151 = vrot.slane %v150, 4
    %v152 = vadd.f32 %v150, %v151
    %v153 = vrot.slane %v152, 2
    %v154 = vadd.f32 %v152, %v153
    %v155 = vrot.slane %v154, 1
    %v156 = vadd.f32 %v154, %v155
    %v157 = vmul.f32 %v156, %v110
    %v158 = vadd.f32 %v157, 1e-05
    %v159 = vrsqrt.pop %v158
    %v160 = vmul.f32 %v112, %v159
    %v161 = vmul.f32 %v113, %v159
    %v162 = vmul.f32 %v114, %v159
    %v163 = vmul.f32 %v115, %v159
    %v164 = vmul.f32 %v116, %v159
    %v165 = vmul.f32 %v117, %v159
    %v166 = vmul.f32 %v118, %v159
    %v167 = vmul.f32 %v119, %v159
    %v168 = vmul.f32 %v120, %v159
    %v169 = vmul.f32 %v121, %v159
    %v170 = vld [vmem:[%s2] sm:$0x1]
    %v172 = vlaneseq
    %v173 = vshrl.u32 %v172, 7
    %v174 = vsub.s32 0, %v173
    %v175 = vrot.slane %v170, %v174
    %v177 = vmul.f32 %v160, %v175
    %v178 = vmul.f32 %v161, %v175
    %v179 = vmul.f32 %v162, %v175
    %v180 = vmul.f32 %v163, %v175
    %v181 = vmul.f32 %v164, %v175
    %v182 = vmul.f32 %v165, %v175
    %v183 = vmul.f32 %v166, %v175
    %v184 = vmul.f32 %v167, %v175
    %v185 = vmul.f32 %v168, %v175
    %v186 = vmul.f32 %v169, %v175
    %v187 = vld [vmem:[%s3] sm:$0x1]
    %v189 = vlaneseq
    %v190 = vshrl.u32 %v189, 7
    %v191 = vsub.s32 0, %v190
    %v192 = vrot.slane %v187, %v191
    %v194 = vadd.f32 %v177, %v192
    %v195 = vadd.f32 %v178, %v192
    %v196 = vadd.f32 %v179, %v192
    %v197 = vadd.f32 %v180, %v192
    %v198 = vadd.f32 %v181, %v192
    %v199 = vadd.f32 %v182, %v192
    %v200 = vadd.f32 %v183, %v192
    %v201 = vadd.f32 %v184, %v192
    %v202 = vadd.f32 %v185, %v192
    %v203 = vadd.f32 %v186, %v192
    %v204 = vld [vmem:[%s6] sm:$0xf]
    %v206 = vsel %vm83, %v194, 0
    %v209 = vsel %vm83, %v195, 0
    %v212 = vsel %vm83, %v196, 0
    %v215 = vsel %vm83, %v197, 0
    %v218 = vsel %vm83, %v198, 0
    %v221 = vsel %vm83, %v199, 0
    %v224 = vsel %vm83, %v200, 0
    %v227 = vsel %vm83, %v201, 0
    %v230 = vsel %vm83, %v202, 0
    %v233 = vsel %vm83, %v203, 0
    %vm235 = vcmask 1043456
    %v237 = vsel %vm235, %v204, 0
    %239 = vmatprep.subr.mxu0 0.0
    %240 = vmatpush1.msra.mxu0 %v237
    %241 = vmatprep.subr.mxu0 0.0
    %242 = vmatpush1.msra.mxu0 0.0
    %243 = vmatprep.subr.mxu0 0.0
    %244 = vmatpush1.msra.mxu0 0.0
    %245 = vmatprep.subr.mxu0 0.0
    %246 = vmatpush1.msra.mxu0 0.0
    %247 = vmatprep.subr.mxu0 0.0
    %248 = vmatpush1.msra.mxu0 0.0
    %249 = vmatprep.subr.mxu0 0.0
    %250 = vmatpush1.msra.mxu0 0.0
    %251 = vmatprep.subr.mxu0 0.0
    %252 = vmatpush1.msra.mxu0 0.0
    %253 = vmatprep.subr.mxu0 0.0
    %254 = vmatpush1.msra.mxu0 0.0
    %255 = vmatprep.subr.mxu0 0.0
    %256 = vmatpush1.msra.mxu0 0.0
    %257 = vmatprep.subr.mxu0 0.0
    %258 = vmatpush1.msra.mxu0 0.0
    %259 = vmatprep.subr.mxu0 0.0
    %260 = vmatpush1.msra.mxu0 0.0
    %261 = vmatprep.subr.mxu0 0.0
    %262 = vmatpush1.msra.mxu0 0.0
    %263 = vmatprep.subr.mxu0 0.0
    %264 = vmatpush1.msra.mxu0 0.0
    %265 = vmatprep.subr.mxu0 0.0
    %266 = vmatpush1.msra.mxu0 0.0
    %267 = vmatprep.subr.mxu0 0.0
    %268 = vmatpush1.msra.mxu0 0.0
    %269 = vmatprep.subr.mxu0 0.0
    %270 = vmatpush1.msra.mxu0 0.0
    %271 = vmatprep.subr.mxu0 0.0
    %272 = vmatpush1.msra.mxu0 0.0
    %273 = vmatprep.subr.mxu0 0.0
    %274 = vmatpush1.msra.mxu0 0.0
    %275 = vmatprep.subr.mxu0 0.0
    %276 = vmatpush1.msra.mxu0 0.0
    %277 = vmatprep.subr.mxu0 0.0
    %278 = vmatpush1.msra.mxu0 0.0
    %279 = vmatprep.subr.mxu0 0.0
    %280 = vmatpush1.msra.mxu0 0.0
    %281 = vmatprep.subr.mxu0 0.0
    %282 = vmatpush1.msra.mxu0 0.0
    %283 = vmatprep.subr.mxu0 0.0
    %284 = vmatpush1.msra.mxu0 0.0
    %285 = vmatprep.subr.mxu0 0.0
    %286 = vmatpush1.msra.mxu0 0.0
    %287 = vmatprep.subr.mxu0 0.0
    %288 = vmatpush1.msra.mxu0 0.0
    %289 = vmatprep.subr.mxu0 0.0
    %290 = vmatpush1.msra.mxu0 0.0
    %291 = vmatprep.subr.mxu0 0.0
    %292 = vmatpush1.msra.mxu0 0.0
    %293 = vmatprep.subr.mxu0 0.0
    %294 = vmatpush1.msra.mxu0 0.0
    %295 = vmatprep.subr.mxu0 0.0
    %296 = vmatpush1.msra.mxu0 0.0
    %297 = vmatprep.subr.mxu0 0.0
    %298 = vmatpush1.msra.mxu0 0.0
    %299 = vmatprep.subr.mxu0 0.0
    %300 = vmatpush1.msra.mxu0 0.0
    %301 = vmatprep.subr.mxu0 0.0
    %302 = vmatpush1.msra.mxu0 0.0
    %303 = vmatprep.mubr.f32.mxu0 0.0
    %304 = vmatmul.mubr.f32.gmra.mrb[0].mxu0 %v206
    %v305 = vpop.f32.mrb[0].mxu0
    %v306 = vadd.f32 0.0, %v305
    %v307 = vpop.f32.mrb[0].mxu0
    %308 = vmatprep.mubr.f32.mxu0 0.0
    %309 = vmatmul.mubr.f32.gmra.mrb[0].mxu0 %v209
    %v310 = vpop.f32.mrb[0].mxu0
    %v311 = vadd.f32 0.0, %v310
    %v312 = vpop.f32.mrb[0].mxu0
    %313 = vmatprep.mubr.f32.mxu0 0.0
    %314 = vmatmul.mubr.f32.gmra.mrb[0].mxu0 %v212
    %v315 = vpop.f32.mrb[0].mxu0
    %v316 = vadd.f32 0.0, %v315
    %v317 = vpop.f32.mrb[0].mxu0
    %318 = vmatprep.mubr.f32.mxu0 0.0
    %319 = vmatmul.mubr.f32.gmra.mrb[0].mxu0 %v215
    %v320 = vpop.f32.mrb[0].mxu0
    %v321 = vadd.f32 0.0, %v320
    %v322 = vpop.f32.mrb[0].mxu0
    %323 = vmatprep.mubr.f32.mxu0 0.0
    %324 = vmatmul.mubr.f32.gmra.mrb[0].mxu0 %v218
    %v325 = vpop.f32.mrb[0].mxu0
    %v326 = vadd.f32 0.0, %v325
    %v327 = vpop.f32.mrb[0].mxu0
    %328 = vmatprep.mubr.f32.mxu0 0.0
    %329 = vmatmul.mubr.f32.gmra.mrb[0].mxu0 %v221
    %v330 = vpop.f32.mrb[0].mxu0
    %v331 = vadd.f32 0.0, %v330
    %v332 = vpop.f32.mrb[0].mxu0
    %333 = vmatprep.mubr.f32.mxu0 0.0
    %334 = vmatmul.mubr.f32.gmra.mrb[0].mxu0 %v224
    %v335 = vpop.f32.mrb[0].mxu0
    %v336 = vadd.f32 0.0, %v335
    %v337 = vpop.f32.mrb[0].mxu0
    %338 = vmatprep.mubr.f32.mxu0 0.0
    %339 = vmatmul.mubr.f32.gmra.mrb[0].mxu0 %v227
    %v340 = vpop.f32.mrb[0].mxu0
    %v341 = vadd.f32 0.0, %v340
    %v342 = vpop.f32.mrb[0].mxu0
    %343 = vmatprep.mubr.f32.mxu0 0.0
    %344 = vmatmul.mubr.f32.gmra.mrb[0].mxu0 %v230
    %v345 = vpop.f32.mrb[0].mxu0
    %v346 = vadd.f32 0.0, %v345
    %v347 = vpop.f32.mrb[0].mxu0
    %348 = vmatprep.mubr.f32.mxu0 0.0
    %349 = vmatmul.mubr.f32.gmra.mrb[0].mxu0 %v233
    %v350 = vpop.f32.mrb[0].mxu0
    %v351 = vadd.f32 0.0, %v350
    %v352 = vpop.f32.mrb[0].mxu0
    %353 = vdwg.mxu0
    %vm354 = vcmp.ge.f32.partialorder %v306, 0.0
    %vm355 = vcmp.ge.f32.partialorder %v311, 0.0
    %vm356 = vcmp.ge.f32.partialorder %v316, 0.0
    %vm357 = vcmp.ge.f32.partialorder %v321, 0.0
    %vm358 = vcmp.ge.f32.partialorder %v326, 0.0
    %vm359 = vcmp.ge.f32.partialorder %v331, 0.0
    %vm360 = vcmp.ge.f32.partialorder %v336, 0.0
    %vm361 = vcmp.ge.f32.partialorder %v341, 0.0
    %vm362 = vcmp.ge.f32.partialorder %v346, 0.0
    %vm363 = vcmp.ge.f32.partialorder %v351, 0.0
    %v364 = vmul.f32 %v306, 0.2
    %v365 = vmul.f32 %v311, 0.2
    %v366 = vmul.f32 %v316, 0.2
    %v367 = vmul.f32 %v321, 0.2
    %v368 = vmul.f32 %v326, 0.2
    %v369 = vmul.f32 %v331, 0.2
    %v370 = vmul.f32 %v336, 0.2
    %v371 = vmul.f32 %v341, 0.2
    %v372 = vmul.f32 %v346, 0.2
    %v373 = vmul.f32 %v351, 0.2
    %v374 = vsel %vm354, %v306, %v364
    %v375 = vsel %vm355, %v311, %v365
    %v376 = vsel %vm356, %v316, %v366
    %v377 = vsel %vm357, %v321, %v367
    %v378 = vsel %vm358, %v326, %v368
    %v379 = vsel %vm359, %v331, %v369
    %v380 = vsel %vm360, %v336, %v370
    %v381 = vsel %vm361, %v341, %v371
    %v382 = vsel %vm362, %v346, %v372
    %v383 = vsel %vm363, %v351, %v373
    %v384 = vld [vmem:[%s1] sm:$0xff]
    %v385 = vld [vmem:[%s1 + $0x8] sm:$0xff]
    %v386 = vld [vmem:[%s1 + $0x10] sm:$0xff]
    %v387 = vld [vmem:[%s1 + $0x18] sm:$0xff]
    %v388 = vld [vmem:[%s1 + $0x20] sm:$0xff]
    %v389 = vld [vmem:[%s1 + $0x28] sm:$0xff]
    %v390 = vld [vmem:[%s1 + $0x30] sm:$0xff]
    %v391 = vld [vmem:[%s1 + $0x38] sm:$0xff]
    %v392 = vld [vmem:[%s1 + $0x40] sm:$0xff]
    %v393 = vld [vmem:[%s1 + $0x48] sm:$0xff]
    %v394 = vld [vmem:[%s1 + $0x50] sm:$0xff]
    %v395 = vld [vmem:[%s1 + $0x58] sm:$0xff]
    %v396 = vld [vmem:[%s1 + $0x60] sm:$0xff]
    %v397 = vld [vmem:[%s1 + $0x68] sm:$0xff]
    %v398 = vld [vmem:[%s1 + $0x70] sm:$0xff]
    %v399 = vld [vmem:[%s1 + $0x78] sm:$0xff]
    %v400 = vld [vmem:[%s1 + $0x80] sm:$0xff]
    %v401 = vld [vmem:[%s1 + $0x88] sm:$0xff]
    %v402 = vld [vmem:[%s1 + $0x90] sm:$0xff]
    %v403 = vld [vmem:[%s1 + $0x98] sm:$0xff]
    %v404 = vld [vmem:[%s1 + $0xa0] sm:$0xff]
    %v405 = vld [vmem:[%s1 + $0xa8] sm:$0xff]
    %v406 = vld [vmem:[%s1 + $0xb0] sm:$0xff]
    %v407 = vld [vmem:[%s1 + $0xb8] sm:$0xff]
    %v408 = vld [vmem:[%s1 + $0xc0] sm:$0xff]
    %v409 = vld [vmem:[%s1 + $0xc8] sm:$0xff]
    %v410 = vld [vmem:[%s1 + $0xd0] sm:$0xff]
    %v411 = vld [vmem:[%s1 + $0xd8] sm:$0xff]
    %v412 = vld [vmem:[%s1 + $0xe0] sm:$0xff]
    %v413 = vld [vmem:[%s1 + $0xe8] sm:$0xff]
    %v414 = vld [vmem:[%s1 + $0xf0] sm:$0xff]
    %v415 = vld [vmem:[%s1 + $0xf8] sm:$0xff]
    %v416 = vld [vmem:[%s1 + $0x100] sm:$0xff]
    %v417 = vld [vmem:[%s1 + $0x108] sm:$0xff]
    %v418 = vld [vmem:[%s1 + $0x110] sm:$0xff]
    %v419 = vld [vmem:[%s1 + $0x118] sm:$0xff]
    %v420 = vld [vmem:[%s1 + $0x120] sm:$0xff]
    %v421 = vld [vmem:[%s1 + $0x128] sm:$0xff]
    %v422 = vld [vmem:[%s1 + $0x130] sm:$0xff]
    %v423 = vld [vmem:[%s1 + $0x138] sm:$0xff]
    %v424 = vld [vmem:[%s1 + $0x140] sm:$0xff]
    %v425 = vld [vmem:[%s1 + $0x148] sm:$0xff]
    %v426 = vld [vmem:[%s1 + $0x150] sm:$0xff]
    %v427 = vld [vmem:[%s1 + $0x158] sm:$0xff]
    %v428 = vld [vmem:[%s1 + $0x160] sm:$0xff]
    %v429 = vld [vmem:[%s1 + $0x168] sm:$0xff]
    %v430 = vld [vmem:[%s1 + $0x170] sm:$0xff]
    %v431 = vld [vmem:[%s1 + $0x178] sm:$0xff]
    %v432 = vld [vmem:[%s1 + $0x180] sm:$0xff]
    %v433 = vld [vmem:[%s1 + $0x188] sm:$0xff]
    %v434 = vld [vmem:[%s1 + $0x190] sm:$0xff]
    %v435 = vld [vmem:[%s1 + $0x198] sm:$0xff]
    %v436 = vld [vmem:[%s1 + $0x1a0] sm:$0xff]
    %v437 = vld [vmem:[%s1 + $0x1a8] sm:$0xff]
    %v438 = vld [vmem:[%s1 + $0x1b0] sm:$0xff]
    %v439 = vld [vmem:[%s1 + $0x1b8] sm:$0xff]
    %v440 = vld [vmem:[%s1 + $0x1c0] sm:$0xff]
    %v441 = vld [vmem:[%s1 + $0x1c8] sm:$0xff]
    %v442 = vld [vmem:[%s1 + $0x1d0] sm:$0xff]
    %v443 = vld [vmem:[%s1 + $0x1d8] sm:$0xff]
    %v444 = vld [vmem:[%s1 + $0x1e0] sm:$0xff]
    %v445 = vld [vmem:[%s1 + $0x1e8] sm:$0xff]
    %v446 = vld [vmem:[%s1 + $0x1f0] sm:$0xff]
    %v447 = vld [vmem:[%s1 + $0x1f8] sm:$0xff]
    %v448 = vld [vmem:[%s1 + $0x200] sm:$0xff]
    %v449 = vld [vmem:[%s1 + $0x208] sm:$0xff]
    %v450 = vld [vmem:[%s1 + $0x210] sm:$0xff]
    %v451 = vld [vmem:[%s1 + $0x218] sm:$0xff]
    %v452 = vld [vmem:[%s1 + $0x220] sm:$0xff]
    %v453 = vld [vmem:[%s1 + $0x228] sm:$0xff]
    %v454 = vld [vmem:[%s1 + $0x230] sm:$0xff]
    %v455 = vld [vmem:[%s1 + $0x238] sm:$0xff]
    %v456 = vld [vmem:[%s1 + $0x240] sm:$0xff]
    %v457 = vld [vmem:[%s1 + $0x248] sm:$0xff]
    %v458 = vld [vmem:[%s1 + $0x250] sm:$0xff]
    %v459 = vld [vmem:[%s1 + $0x258] sm:$0xff]
    %v460 = vld [vmem:[%s1 + $0x260] sm:$0xff]
    %v461 = vld [vmem:[%s1 + $0x268] sm:$0xff]
    %v462 = vld [vmem:[%s1 + $0x270] sm:$0xff]
    %v463 = vld [vmem:[%s1 + $0x278] sm:$0xff]
    %v464 = vld [vmem:[%s1 + $0x280] sm:$0xff]
    %v465 = vld [vmem:[%s1 + $0x288] sm:$0xff]
    %v466 = vld [vmem:[%s1 + $0x290] sm:$0xff]
    %v467 = vld [vmem:[%s1 + $0x298] sm:$0xff]
    %v468 = vld [vmem:[%s1 + $0x2a0] sm:$0xff]
    %vm469 = vcmask 23552
    %v470 = vsel %vm469, %v384, 0.0
    %v471 = vsel %vm469, %v385, 0.0
    %v472 = vadd.f32 %v470, %v471
    %v473 = vsel %vm469, %v386, 0.0
    %v474 = vadd.f32 %v472, %v473
    %v475 = vsel %vm469, %v387, 0.0
    %v476 = vadd.f32 %v474, %v475
    %v477 = vsel %vm469, %v388, 0.0
    %v478 = vadd.f32 %v476, %v477
    %v479 = vsel %vm469, %v389, 0.0
    %v480 = vadd.f32 %v478, %v479
    %v481 = vsel %vm469, %v390, 0.0
    %v482 = vadd.f32 %v480, %v481
    %v483 = vsel %vm469, %v391, 0.0
    %v484 = vadd.f32 %v482, %v483
    %v485 = vsel %vm469, %v392, 0.0
    %v486 = vadd.f32 %v484, %v485
    %v487 = vsel %vm469, %v393, 0.0
    %v488 = vadd.f32 %v486, %v487
    %v489 = vsel %vm469, %v394, 0.0
    %v490 = vadd.f32 %v488, %v489
    %v491 = vsel %vm469, %v395, 0.0
    %v492 = vadd.f32 %v490, %v491
    %v493 = vsel %vm469, %v396, 0.0
    %v494 = vadd.f32 %v492, %v493
    %v495 = vsel %vm469, %v397, 0.0
    %v496 = vadd.f32 %v494, %v495
    %v497 = vsel %vm469, %v398, 0.0
    %v498 = vadd.f32 %v496, %v497
    %v499 = vsel %vm469, %v399, 0.0
    %v500 = vadd.f32 %v498, %v499
    %v501 = vsel %vm469, %v400, 0.0
    %v502 = vadd.f32 %v500, %v501
    %v503 = vsel %vm469, %v401, 0.0
    %v504 = vadd.f32 %v502, %v503
    %v505 = vsel %vm469, %v402, 0.0
    %v506 = vadd.f32 %v504, %v505
    %v507 = vsel %vm469, %v403, 0.0
    %v508 = vadd.f32 %v506, %v507
    %v509 = vsel %vm469, %v404, 0.0
    %v510 = vadd.f32 %v508, %v509
    %v511 = vsel %vm469, %v405, 0.0
    %v512 = vadd.f32 %v510, %v511
    %v513 = vsel %vm469, %v406, 0.0
    %v514 = vadd.f32 %v512, %v513
    %v515 = vsel %vm469, %v407, 0.0
    %v516 = vadd.f32 %v514, %v515
    %v517 = vsel %vm469, %v408, 0.0
    %v518 = vadd.f32 %v516, %v517
    %v519 = vsel %vm469, %v409, 0.0
    %v520 = vadd.f32 %v518, %v519
    %v521 = vsel %vm469, %v410, 0.0
    %v522 = vadd.f32 %v520, %v521
    %v523 = vsel %vm469, %v411, 0.0
    %v524 = vadd.f32 %v522, %v523
    %v525 = vsel %vm469, %v412, 0.0
    %v526 = vadd.f32 %v524, %v525
    %v527 = vsel %vm469, %v413, 0.0
    %v528 = vadd.f32 %v526, %v527
    %v529 = vsel %vm469, %v414, 0.0
    %v530 = vadd.f32 %v528, %v529
    %v531 = vsel %vm469, %v415, 0.0
    %v532 = vadd.f32 %v530, %v531
    %v533 = vsel %vm469, %v416, 0.0
    %v534 = vadd.f32 %v532, %v533
    %v535 = vsel %vm469, %v417, 0.0
    %v536 = vadd.f32 %v534, %v535
    %v537 = vsel %vm469, %v418, 0.0
    %v538 = vadd.f32 %v536, %v537
    %v539 = vsel %vm469, %v419, 0.0
    %v540 = vadd.f32 %v538, %v539
    %v541 = vsel %vm469, %v420, 0.0
    %v542 = vadd.f32 %v540, %v541
    %v543 = vsel %vm469, %v421, 0.0
    %v544 = vadd.f32 %v542, %v543
    %v545 = vsel %vm469, %v422, 0.0
    %v546 = vadd.f32 %v544, %v545
    %v547 = vsel %vm469, %v423, 0.0
    %v548 = vadd.f32 %v546, %v547
    %v549 = vsel %vm469, %v424, 0.0
    %v550 = vadd.f32 %v548, %v549
    %v551 = vsel %vm469, %v425, 0.0
    %v552 = vadd.f32 %v550, %v551
    %v553 = vsel %vm469, %v426, 0.0
    %v554 = vadd.f32 %v552, %v553
    %v555 = vsel %vm469, %v427, 0.0
    %v556 = vadd.f32 %v554, %v555
    %v557 = vsel %vm469, %v428, 0.0
    %v558 = vadd.f32 %v556, %v557
    %v559 = vsel %vm469, %v429, 0.0
    %v560 = vadd.f32 %v558, %v559
    %v561 = vsel %vm469, %v430, 0.0
    %v562 = vadd.f32 %v560, %v561
    %v563 = vsel %vm469, %v431, 0.0
    %v564 = vadd.f32 %v562, %v563
    %v565 = vsel %vm469, %v432, 0.0
    %v566 = vadd.f32 %v564, %v565
    %v567 = vsel %vm469, %v433, 0.0
    %v568 = vadd.f32 %v566, %v567
    %v569 = vsel %vm469, %v434, 0.0
    %v570 = vadd.f32 %v568, %v569
    %v571 = vsel %vm469, %v435, 0.0
    %v572 = vadd.f32 %v570, %v571
    %v573 = vsel %vm469, %v436, 0.0
    %v574 = vadd.f32 %v572, %v573
    %v575 = vsel %vm469, %v437, 0.0
    %v576 = vadd.f32 %v574, %v575
    %v577 = vsel %vm469, %v438, 0.0
    %v578 = vadd.f32 %v576, %v577
    %v579 = vsel %vm469, %v439, 0.0
    %v580 = vadd.f32 %v578, %v579
    %v581 = vsel %vm469, %v440, 0.0
    %v582 = vadd.f32 %v580, %v581
    %v583 = vsel %vm469, %v441, 0.0
    %v584 = vadd.f32 %v582, %v583
    %v585 = vsel %vm469, %v442, 0.0
    %v586 = vadd.f32 %v584, %v585
    %v587 = vsel %vm469, %v443, 0.0
    %v588 = vadd.f32 %v586, %v587
    %v589 = vsel %vm469, %v444, 0.0
    %v590 = vadd.f32 %v588, %v589
    %v591 = vsel %vm469, %v445, 0.0
    %v592 = vadd.f32 %v590, %v591
    %v593 = vsel %vm469, %v446, 0.0
    %v594 = vadd.f32 %v592, %v593
    %v595 = vsel %vm469, %v447, 0.0
    %v596 = vadd.f32 %v594, %v595
    %v597 = vsel %vm469, %v448, 0.0
    %v598 = vadd.f32 %v596, %v597
    %v599 = vsel %vm469, %v449, 0.0
    %v600 = vadd.f32 %v598, %v599
    %v601 = vsel %vm469, %v450, 0.0
    %v602 = vadd.f32 %v600, %v601
    %v603 = vsel %vm469, %v451, 0.0
    %v604 = vadd.f32 %v602, %v603
    %v605 = vsel %vm469, %v452, 0.0
    %v606 = vadd.f32 %v604, %v605
    %v607 = vsel %vm469, %v453, 0.0
    %v608 = vadd.f32 %v606, %v607
    %v609 = vsel %vm469, %v454, 0.0
    %v610 = vadd.f32 %v608, %v609
    %v611 = vsel %vm469, %v455, 0.0
    %v612 = vadd.f32 %v610, %v611
    %v613 = vsel %vm469, %v456, 0.0
    %v614 = vadd.f32 %v612, %v613
    %v615 = vsel %vm469, %v457, 0.0
    %v616 = vadd.f32 %v614, %v615
    %v617 = vsel %vm469, %v458, 0.0
    %v618 = vadd.f32 %v616, %v617
    %v619 = vsel %vm469, %v459, 0.0
    %v620 = vadd.f32 %v618, %v619
    %v621 = vsel %vm469, %v460, 0.0
    %v622 = vadd.f32 %v620, %v621
    %v623 = vsel %vm469, %v461, 0.0
    %v624 = vadd.f32 %v622, %v623
    %v625 = vsel %vm469, %v462, 0.0
    %v626 = vadd.f32 %v624, %v625
    %v627 = vsel %vm469, %v463, 0.0
    %v628 = vadd.f32 %v626, %v627
    %v629 = vsel %vm469, %v464, 0.0
    %v630 = vadd.f32 %v628, %v629
    %v631 = vsel %vm469, %v465, 0.0
    %v632 = vadd.f32 %v630, %v631
    %v633 = vsel %vm469, %v466, 0.0
    %v634 = vadd.f32 %v632, %v633
    %v635 = vsel %vm469, %v467, 0.0
    %v636 = vadd.f32 %v634, %v635
    %v637 = vsel %vm469, %v468, 0.0
    %v638 = vadd.f32 %v636, %v637
    %v639 = vrot.slane %v638, 4
    %v640 = vadd.f32 %v638, %v639
    %v641 = vrot.slane %v640, 2
    %v642 = vadd.f32 %v640, %v641
    %v643 = vrot.slane %v642, 1
    %v644 = vadd.f32 %v642, %v643
    %v645 = vrcp.pop 680.0
    %v646 = vmul.f32 %v644, %v645
    %v647 = vsub.f32 %v384, %v646
    %v648 = vsub.f32 %v385, %v646
    %v649 = vsub.f32 %v386, %v646
    %v650 = vsub.f32 %v387, %v646
    %v651 = vsub.f32 %v388, %v646
    %v652 = vsub.f32 %v389, %v646
    %v653 = vsub.f32 %v390, %v646
    %v654 = vsub.f32 %v391, %v646
    %v655 = vsub.f32 %v392, %v646
    %v656 = vsub.f32 %v393, %v646
    %v657 = vsub.f32 %v394, %v646
    %v658 = vsub.f32 %v395, %v646
    %v659 = vsub.f32 %v396, %v646
    %v660 = vsub.f32 %v397, %v646
    %v661 = vsub.f32 %v398, %v646
    %v662 = vsub.f32 %v399, %v646
    %v663 = vsub.f32 %v400, %v646
    %v664 = vsub.f32 %v401, %v646
    %v665 = vsub.f32 %v402, %v646
    %v666 = vsub.f32 %v403, %v646
    %v667 = vsub.f32 %v404, %v646
    %v668 = vsub.f32 %v405, %v646
    %v669 = vsub.f32 %v406, %v646
    %v670 = vsub.f32 %v407, %v646
    %v671 = vsub.f32 %v408, %v646
    %v672 = vsub.f32 %v409, %v646
    %v673 = vsub.f32 %v410, %v646
    %v674 = vsub.f32 %v411, %v646
    %v675 = vsub.f32 %v412, %v646
    %v676 = vsub.f32 %v413, %v646
    %v677 = vsub.f32 %v414, %v646
    %v678 = vsub.f32 %v415, %v646
    %v679 = vsub.f32 %v416, %v646
    %v680 = vsub.f32 %v417, %v646
    %v681 = vsub.f32 %v418, %v646
    %v682 = vsub.f32 %v419, %v646
    %v683 = vsub.f32 %v420, %v646
    %v684 = vsub.f32 %v421, %v646
    %v685 = vsub.f32 %v422, %v646
    %v686 = vsub.f32 %v423, %v646
    %v687 = vsub.f32 %v424, %v646
    %v688 = vsub.f32 %v425, %v646
    %v689 = vsub.f32 %v426, %v646
    %v690 = vsub.f32 %v427, %v646
    %v691 = vsub.f32 %v428, %v646
    %v692 = vsub.f32 %v429, %v646
    %v693 = vsub.f32 %v430, %v646
    %v694 = vsub.f32 %v431, %v646
    %v695 = vsub.f32 %v432, %v646
    %v696 = vsub.f32 %v433, %v646
    %v697 = vsub.f32 %v434, %v646
    %v698 = vsub.f32 %v435, %v646
    %v699 = vsub.f32 %v436, %v646
    %v700 = vsub.f32 %v437, %v646
    %v701 = vsub.f32 %v438, %v646
    %v702 = vsub.f32 %v439, %v646
    %v703 = vsub.f32 %v440, %v646
    %v704 = vsub.f32 %v441, %v646
    %v705 = vsub.f32 %v442, %v646
    %v706 = vsub.f32 %v443, %v646
    %v707 = vsub.f32 %v444, %v646
    %v708 = vsub.f32 %v445, %v646
    %v709 = vsub.f32 %v446, %v646
    %v710 = vsub.f32 %v447, %v646
    %v711 = vsub.f32 %v448, %v646
    %v712 = vsub.f32 %v449, %v646
    %v713 = vsub.f32 %v450, %v646
    %v714 = vsub.f32 %v451, %v646
    %v715 = vsub.f32 %v452, %v646
    %v716 = vsub.f32 %v453, %v646
    %v717 = vsub.f32 %v454, %v646
    %v718 = vsub.f32 %v455, %v646
    %v719 = vsub.f32 %v456, %v646
    %v720 = vsub.f32 %v457, %v646
    %v721 = vsub.f32 %v458, %v646
    %v722 = vsub.f32 %v459, %v646
    %v723 = vsub.f32 %v460, %v646
    %v724 = vsub.f32 %v461, %v646
    %v725 = vsub.f32 %v462, %v646
    %v726 = vsub.f32 %v463, %v646
    %v727 = vsub.f32 %v464, %v646
    %v728 = vsub.f32 %v465, %v646
    %v729 = vsub.f32 %v466, %v646
    %v730 = vsub.f32 %v467, %v646
    %v731 = vsub.f32 %v468, %v646
    %v732 = vmul.f32 %v647, %v647
    %v733 = vmul.f32 %v648, %v648
    %v734 = vmul.f32 %v649, %v649
    %v735 = vmul.f32 %v650, %v650
    %v736 = vmul.f32 %v651, %v651
    %v737 = vmul.f32 %v652, %v652
    %v738 = vmul.f32 %v653, %v653
    %v739 = vmul.f32 %v654, %v654
    %v740 = vmul.f32 %v655, %v655
    %v741 = vmul.f32 %v656, %v656
    %v742 = vmul.f32 %v657, %v657
    %v743 = vmul.f32 %v658, %v658
    %v744 = vmul.f32 %v659, %v659
    %v745 = vmul.f32 %v660, %v660
    %v746 = vmul.f32 %v661, %v661
    %v747 = vmul.f32 %v662, %v662
    %v748 = vmul.f32 %v663, %v663
    %v749 = vmul.f32 %v664, %v664
    %v750 = vmul.f32 %v665, %v665
    %v751 = vmul.f32 %v666, %v666
    %v752 = vmul.f32 %v667, %v667
    %v753 = vmul.f32 %v668, %v668
    %v754 = vmul.f32 %v669, %v669
    %v755 = vmul.f32 %v670, %v670
    %v756 = vmul.f32 %v671, %v671
    %v757 = vmul.f32 %v672, %v672
    %v758 = vmul.f32 %v673, %v673
    %v759 = vmul.f32 %v674, %v674
    %v760 = vmul.f32 %v675, %v675
    %v761 = vmul.f32 %v676, %v676
    %v762 = vmul.f32 %v677, %v677
    %v763 = vmul.f32 %v678, %v678
    %v764 = vmul.f32 %v679, %v679
    %v765 = vmul.f32 %v680, %v680
    %v766 = vmul.f32 %v681, %v681
    %v767 = vmul.f32 %v682, %v682
    %v768 = vmul.f32 %v683, %v683
    %v769 = vmul.f32 %v684, %v684
    %v770 = vmul.f32 %v685, %v685
    %v771 = vmul.f32 %v686, %v686
    %v772 = vmul.f32 %v687, %v687
    %v773 = vmul.f32 %v688, %v688
    %v774 = vmul.f32 %v689, %v689
    %v775 = vmul.f32 %v690, %v690
    %v776 = vmul.f32 %v691, %v691
    %v777 = vmul.f32 %v692, %v692
    %v778 = vmul.f32 %v693, %v693
    %v779 = vmul.f32 %v694, %v694
    %v780 = vmul.f32 %v695, %v695
    %v781 = vmul.f32 %v696, %v696
    %v782 = vmul.f32 %v697, %v697
    %v783 = vmul.f32 %v698, %v698
    %v784 = vmul.f32 %v699, %v699
    %v785 = vmul.f32 %v700, %v700
    %v786 = vmul.f32 %v701, %v701
    %v787 = vmul.f32 %v702, %v702
    %v788 = vmul.f32 %v703, %v703
    %v789 = vmul.f32 %v704, %v704
    %v790 = vmul.f32 %v705, %v705
    %v791 = vmul.f32 %v706, %v706
    %v792 = vmul.f32 %v707, %v707
    %v793 = vmul.f32 %v708, %v708
    %v794 = vmul.f32 %v709, %v709
    %v795 = vmul.f32 %v710, %v710
    %v796 = vmul.f32 %v711, %v711
    %v797 = vmul.f32 %v712, %v712
    %v798 = vmul.f32 %v713, %v713
    %v799 = vmul.f32 %v714, %v714
    %v800 = vmul.f32 %v715, %v715
    %v801 = vmul.f32 %v716, %v716
    %v802 = vmul.f32 %v717, %v717
    %v803 = vmul.f32 %v718, %v718
    %v804 = vmul.f32 %v719, %v719
    %v805 = vmul.f32 %v720, %v720
    %v806 = vmul.f32 %v721, %v721
    %v807 = vmul.f32 %v722, %v722
    %v808 = vmul.f32 %v723, %v723
    %v809 = vmul.f32 %v724, %v724
    %v810 = vmul.f32 %v725, %v725
    %v811 = vmul.f32 %v726, %v726
    %v812 = vmul.f32 %v727, %v727
    %v813 = vmul.f32 %v728, %v728
    %v814 = vmul.f32 %v729, %v729
    %v815 = vmul.f32 %v730, %v730
    %v816 = vmul.f32 %v731, %v731
    %v817 = vsel %vm469, %v732, 0.0
    %v818 = vsel %vm469, %v733, 0.0
    %v819 = vadd.f32 %v817, %v818
    %v820 = vsel %vm469, %v734, 0.0
    %v821 = vadd.f32 %v819, %v820
    %v822 = vsel %vm469, %v735, 0.0
    %v823 = vadd.f32 %v821, %v822
    %v824 = vsel %vm469, %v736, 0.0
    %v825 = vadd.f32 %v823, %v824
    %v826 = vsel %vm469, %v737, 0.0
    %v827 = vadd.f32 %v825, %v826
    %v828 = vsel %vm469, %v738, 0.0
    %v829 = vadd.f32 %v827, %v828
    %v830 = vsel %vm469, %v739, 0.0
    %v831 = vadd.f32 %v829, %v830
    %v832 = vsel %vm469, %v740, 0.0
    %v833 = vadd.f32 %v831, %v832
    %v834 = vsel %vm469, %v741, 0.0
    %v835 = vadd.f32 %v833, %v834
    %v836 = vsel %vm469, %v742, 0.0
    %v837 = vadd.f32 %v835, %v836
    %v838 = vsel %vm469, %v743, 0.0
    %v839 = vadd.f32 %v837, %v838
    %v840 = vsel %vm469, %v744, 0.0
    %v841 = vadd.f32 %v839, %v840
    %v842 = vsel %vm469, %v745, 0.0
    %v843 = vadd.f32 %v841, %v842
    %v844 = vsel %vm469, %v746, 0.0
    %v845 = vadd.f32 %v843, %v844
    %v846 = vsel %vm469, %v747, 0.0
    %v847 = vadd.f32 %v845, %v846
    %v848 = vsel %vm469, %v748, 0.0
    %v849 = vadd.f32 %v847, %v848
    %v850 = vsel %vm469, %v749, 0.0
    %v851 = vadd.f32 %v849, %v850
    %v852 = vsel %vm469, %v750, 0.0
    %v853 = vadd.f32 %v851, %v852
    %v854 = vsel %vm469, %v751, 0.0
    %v855 = vadd.f32 %v853, %v854
    %v856 = vsel %vm469, %v752, 0.0
    %v857 = vadd.f32 %v855, %v856
    %v858 = vsel %vm469, %v753, 0.0
    %v859 = vadd.f32 %v857, %v858
    %v860 = vsel %vm469, %v754, 0.0
    %v861 = vadd.f32 %v859, %v860
    %v862 = vsel %vm469, %v755, 0.0
    %v863 = vadd.f32 %v861, %v862
    %v864 = vsel %vm469, %v756, 0.0
    %v865 = vadd.f32 %v863, %v864
    %v866 = vsel %vm469, %v757, 0.0
    %v867 = vadd.f32 %v865, %v866
    %v868 = vsel %vm469, %v758, 0.0
    %v869 = vadd.f32 %v867, %v868
    %v870 = vsel %vm469, %v759, 0.0
    %v871 = vadd.f32 %v869, %v870
    %v872 = vsel %vm469, %v760, 0.0
    %v873 = vadd.f32 %v871, %v872
    %v874 = vsel %vm469, %v761, 0.0
    %v875 = vadd.f32 %v873, %v874
    %v876 = vsel %vm469, %v762, 0.0
    %v877 = vadd.f32 %v875, %v876
    %v878 = vsel %vm469, %v763, 0.0
    %v879 = vadd.f32 %v877, %v878
    %v880 = vsel %vm469, %v764, 0.0
    %v881 = vadd.f32 %v879, %v880
    %v882 = vsel %vm469, %v765, 0.0
    %v883 = vadd.f32 %v881, %v882
    %v884 = vsel %vm469, %v766, 0.0
    %v885 = vadd.f32 %v883, %v884
    %v886 = vsel %vm469, %v767, 0.0
    %v887 = vadd.f32 %v885, %v886
    %v888 = vsel %vm469, %v768, 0.0
    %v889 = vadd.f32 %v887, %v888
    %v890 = vsel %vm469, %v769, 0.0
    %v891 = vadd.f32 %v889, %v890
    %v892 = vsel %vm469, %v770, 0.0
    %v893 = vadd.f32 %v891, %v892
    %v894 = vsel %vm469, %v771, 0.0
    %v895 = vadd.f32 %v893, %v894
    %v896 = vsel %vm469, %v772, 0.0
    %v897 = vadd.f32 %v895, %v896
    %v898 = vsel %vm469, %v773, 0.0
    %v899 = vadd.f32 %v897, %v898
    %v900 = vsel %vm469, %v774, 0.0
    %v901 = vadd.f32 %v899, %v900
    %v902 = vsel %vm469, %v775, 0.0
    %v903 = vadd.f32 %v901, %v902
    %v904 = vsel %vm469, %v776, 0.0
    %v905 = vadd.f32 %v903, %v904
    %v906 = vsel %vm469, %v777, 0.0
    %v907 = vadd.f32 %v905, %v906
    %v908 = vsel %vm469, %v778, 0.0
    %v909 = vadd.f32 %v907, %v908
    %v910 = vsel %vm469, %v779, 0.0
    %v911 = vadd.f32 %v909, %v910
    %v912 = vsel %vm469, %v780, 0.0
    %v913 = vadd.f32 %v911, %v912
    %v914 = vsel %vm469, %v781, 0.0
    %v915 = vadd.f32 %v913, %v914
    %v916 = vsel %vm469, %v782, 0.0
    %v917 = vadd.f32 %v915, %v916
    %v918 = vsel %vm469, %v783, 0.0
    %v919 = vadd.f32 %v917, %v918
    %v920 = vsel %vm469, %v784, 0.0
    %v921 = vadd.f32 %v919, %v920
    %v922 = vsel %vm469, %v785, 0.0
    %v923 = vadd.f32 %v921, %v922
    %v924 = vsel %vm469, %v786, 0.0
    %v925 = vadd.f32 %v923, %v924
    %v926 = vsel %vm469, %v787, 0.0
    %v927 = vadd.f32 %v925, %v926
    %v928 = vsel %vm469, %v788, 0.0
    %v929 = vadd.f32 %v927, %v928
    %v930 = vsel %vm469, %v789, 0.0
    %v931 = vadd.f32 %v929, %v930
    %v932 = vsel %vm469, %v790, 0.0
    %v933 = vadd.f32 %v931, %v932
    %v934 = vsel %vm469, %v791, 0.0
    %v935 = vadd.f32 %v933, %v934
    %v936 = vsel %vm469, %v792, 0.0
    %v937 = vadd.f32 %v935, %v936
    %v938 = vsel %vm469, %v793, 0.0
    %v939 = vadd.f32 %v937, %v938
    %v940 = vsel %vm469, %v794, 0.0
    %v941 = vadd.f32 %v939, %v940
    %v942 = vsel %vm469, %v795, 0.0
    %v943 = vadd.f32 %v941, %v942
    %v944 = vsel %vm469, %v796, 0.0
    %v945 = vadd.f32 %v943, %v944
    %v946 = vsel %vm469, %v797, 0.0
    %v947 = vadd.f32 %v945, %v946
    %v948 = vsel %vm469, %v798, 0.0
    %v949 = vadd.f32 %v947, %v948
    %v950 = vsel %vm469, %v799, 0.0
    %v951 = vadd.f32 %v949, %v950
    %v952 = vsel %vm469, %v800, 0.0
    %v953 = vadd.f32 %v951, %v952
    %v954 = vsel %vm469, %v801, 0.0
    %v955 = vadd.f32 %v953, %v954
    %v956 = vsel %vm469, %v802, 0.0
    %v957 = vadd.f32 %v955, %v956
    %v958 = vsel %vm469, %v803, 0.0
    %v959 = vadd.f32 %v957, %v958
    %v960 = vsel %vm469, %v804, 0.0
    %v961 = vadd.f32 %v959, %v960
    %v962 = vsel %vm469, %v805, 0.0
    %v963 = vadd.f32 %v961, %v962
    %v964 = vsel %vm469, %v806, 0.0
    %v965 = vadd.f32 %v963, %v964
    %v966 = vsel %vm469, %v807, 0.0
    %v967 = vadd.f32 %v965, %v966
    %v968 = vsel %vm469, %v808, 0.0
    %v969 = vadd.f32 %v967, %v968
    %v970 = vsel %vm469, %v809, 0.0
    %v971 = vadd.f32 %v969, %v970
    %v972 = vsel %vm469, %v810, 0.0
    %v973 = vadd.f32 %v971, %v972
    %v974 = vsel %vm469, %v811, 0.0
    %v975 = vadd.f32 %v973, %v974
    %v976 = vsel %vm469, %v812, 0.0
    %v977 = vadd.f32 %v975, %v976
    %v978 = vsel %vm469, %v813, 0.0
    %v979 = vadd.f32 %v977, %v978
    %v980 = vsel %vm469, %v814, 0.0
    %v981 = vadd.f32 %v979, %v980
    %v982 = vsel %vm469, %v815, 0.0
    %v983 = vadd.f32 %v981, %v982
    %v984 = vsel %vm469, %v816, 0.0
    %v985 = vadd.f32 %v983, %v984
    %v986 = vrot.slane %v985, 4
    %v987 = vadd.f32 %v985, %v986
    %v988 = vrot.slane %v987, 2
    %v989 = vadd.f32 %v987, %v988
    %v990 = vrot.slane %v989, 1
    %v991 = vadd.f32 %v989, %v990
    %v992 = vmul.f32 %v991, %v645
    %v993 = vadd.f32 %v992, 1e-05
    %v994 = vrsqrt.pop %v993
    %v995 = vmul.f32 %v647, %v994
    %v996 = vmul.f32 %v648, %v994
    %v997 = vmul.f32 %v649, %v994
    %v998 = vmul.f32 %v650, %v994
    %v999 = vmul.f32 %v651, %v994
    %v1000 = vmul.f32 %v652, %v994
    %v1001 = vmul.f32 %v653, %v994
    %v1002 = vmul.f32 %v654, %v994
    %v1003 = vmul.f32 %v655, %v994
    %v1004 = vmul.f32 %v656, %v994
    %v1005 = vmul.f32 %v657, %v994
    %v1006 = vmul.f32 %v658, %v994
    %v1007 = vmul.f32 %v659, %v994
    %v1008 = vmul.f32 %v660, %v994
    %v1009 = vmul.f32 %v661, %v994
    %v1010 = vmul.f32 %v662, %v994
    %v1011 = vmul.f32 %v663, %v994
    %v1012 = vmul.f32 %v664, %v994
    %v1013 = vmul.f32 %v665, %v994
    %v1014 = vmul.f32 %v666, %v994
    %v1015 = vmul.f32 %v667, %v994
    %v1016 = vmul.f32 %v668, %v994
    %v1017 = vmul.f32 %v669, %v994
    %v1018 = vmul.f32 %v670, %v994
    %v1019 = vmul.f32 %v671, %v994
    %v1020 = vmul.f32 %v672, %v994
    %v1021 = vmul.f32 %v673, %v994
    %v1022 = vmul.f32 %v674, %v994
    %v1023 = vmul.f32 %v675, %v994
    %v1024 = vmul.f32 %v676, %v994
    %v1025 = vmul.f32 %v677, %v994
    %v1026 = vmul.f32 %v678, %v994
    %v1027 = vmul.f32 %v679, %v994
    %v1028 = vmul.f32 %v680, %v994
    %v1029 = vmul.f32 %v681, %v994
    %v1030 = vmul.f32 %v682, %v994
    %v1031 = vmul.f32 %v683, %v994
    %v1032 = vmul.f32 %v684, %v994
    %v1033 = vmul.f32 %v685, %v994
    %v1034 = vmul.f32 %v686, %v994
    %v1035 = vmul.f32 %v687, %v994
    %v1036 = vmul.f32 %v688, %v994
    %v1037 = vmul.f32 %v689, %v994
    %v1038 = vmul.f32 %v690, %v994
    %v1039 = vmul.f32 %v691, %v994
    %v1040 = vmul.f32 %v692, %v994
    %v1041 = vmul.f32 %v693, %v994
    %v1042 = vmul.f32 %v694, %v994
    %v1043 = vmul.f32 %v695, %v994
    %v1044 = vmul.f32 %v696, %v994
    %v1045 = vmul.f32 %v697, %v994
    %v1046 = vmul.f32 %v698, %v994
    %v1047 = vmul.f32 %v699, %v994
    %v1048 = vmul.f32 %v700, %v994
    %v1049 = vmul.f32 %v701, %v994
    %v1050 = vmul.f32 %v702, %v994
    %v1051 = vmul.f32 %v703, %v994
    %v1052 = vmul.f32 %v704, %v994
    %v1053 = vmul.f32 %v705, %v994
    %v1054 = vmul.f32 %v706, %v994
    %v1055 = vmul.f32 %v707, %v994
    %v1056 = vmul.f32 %v708, %v994
    %v1057 = vmul.f32 %v709, %v994
    %v1058 = vmul.f32 %v710, %v994
    %v1059 = vmul.f32 %v711, %v994
    %v1060 = vmul.f32 %v712, %v994
    %v1061 = vmul.f32 %v713, %v994
    %v1062 = vmul.f32 %v714, %v994
    %v1063 = vmul.f32 %v715, %v994
    %v1064 = vmul.f32 %v716, %v994
    %v1065 = vmul.f32 %v717, %v994
    %v1066 = vmul.f32 %v718, %v994
    %v1067 = vmul.f32 %v719, %v994
    %v1068 = vmul.f32 %v720, %v994
    %v1069 = vmul.f32 %v721, %v994
    %v1070 = vmul.f32 %v722, %v994
    %v1071 = vmul.f32 %v723, %v994
    %v1072 = vmul.f32 %v724, %v994
    %v1073 = vmul.f32 %v725, %v994
    %v1074 = vmul.f32 %v726, %v994
    %v1075 = vmul.f32 %v727, %v994
    %v1076 = vmul.f32 %v728, %v994
    %v1077 = vmul.f32 %v729, %v994
    %v1078 = vmul.f32 %v730, %v994
    %v1079 = vmul.f32 %v731, %v994
    %v1080 = vld [vmem:[%s4] sm:$0x1]
    %v1082 = vlaneseq
    %v1083 = vshrl.u32 %v1082, 7
    %v1084 = vsub.s32 0, %v1083
    %v1085 = vrot.slane %v1080, %v1084
    %v1087 = vmul.f32 %v995, %v1085
    %v1088 = vmul.f32 %v996, %v1085
    %v1089 = vmul.f32 %v997, %v1085
    %v1090 = vmul.f32 %v998, %v1085
    %v1091 = vmul.f32 %v999, %v1085
    %v1092 = vmul.f32 %v1000, %v1085
    %v1093 = vmul.f32 %v1001, %v1085
    %v1094 = vmul.f32 %v1002, %v1085
    %v1095 = vmul.f32 %v1003, %v1085
    %v1096 = vmul.f32 %v1004, %v1085
    %v1097 = vmul.f32 %v1005, %v1085
    %v1098 = vmul.f32 %v1006, %v1085
    %v1099 = vmul.f32 %v1007, %v1085
    %v1100 = vmul.f32 %v1008, %v1085
    %v1101 = vmul.f32 %v1009, %v1085
    %v1102 = vmul.f32 %v1010, %v1085
    %v1103 = vmul.f32 %v1011, %v1085
    %v1104 = vmul.f32 %v1012, %v1085
    %v1105 = vmul.f32 %v1013, %v1085
    %v1106 = vmul.f32 %v1014, %v1085
    %v1107 = vmul.f32 %v1015, %v1085
    %v1108 = vmul.f32 %v1016, %v1085
    %v1109 = vmul.f32 %v1017, %v1085
    %v1110 = vmul.f32 %v1018, %v1085
    %v1111 = vmul.f32 %v1019, %v1085
    %v1112 = vmul.f32 %v1020, %v1085
    %v1113 = vmul.f32 %v1021, %v1085
    %v1114 = vmul.f32 %v1022, %v1085
    %v1115 = vmul.f32 %v1023, %v1085
    %v1116 = vmul.f32 %v1024, %v1085
    %v1117 = vmul.f32 %v1025, %v1085
    %v1118 = vmul.f32 %v1026, %v1085
    %v1119 = vmul.f32 %v1027, %v1085
    %v1120 = vmul.f32 %v1028, %v1085
    %v1121 = vmul.f32 %v1029, %v1085
    %v1122 = vmul.f32 %v1030, %v1085
    %v1123 = vmul.f32 %v1031, %v1085
    %v1124 = vmul.f32 %v1032, %v1085
    %v1125 = vmul.f32 %v1033, %v1085
    %v1126 = vmul.f32 %v1034, %v1085
    %v1127 = vmul.f32 %v1035, %v1085
    %v1128 = vmul.f32 %v1036, %v1085
    %v1129 = vmul.f32 %v1037, %v1085
    %v1130 = vmul.f32 %v1038, %v1085
    %v1131 = vmul.f32 %v1039, %v1085
    %v1132 = vmul.f32 %v1040, %v1085
    %v1133 = vmul.f32 %v1041, %v1085
    %v1134 = vmul.f32 %v1042, %v1085
    %v1135 = vmul.f32 %v1043, %v1085
    %v1136 = vmul.f32 %v1044, %v1085
    %v1137 = vmul.f32 %v1045, %v1085
    %v1138 = vmul.f32 %v1046, %v1085
    %v1139 = vmul.f32 %v1047, %v1085
    %v1140 = vmul.f32 %v1048, %v1085
    %v1141 = vmul.f32 %v1049, %v1085
    %v1142 = vmul.f32 %v1050, %v1085
    %v1143 = vmul.f32 %v1051, %v1085
    %v1144 = vmul.f32 %v1052, %v1085
    %v1145 = vmul.f32 %v1053, %v1085
    %v1146 = vmul.f32 %v1054, %v1085
    %v1147 = vmul.f32 %v1055, %v1085
    %v1148 = vmul.f32 %v1056, %v1085
    %v1149 = vmul.f32 %v1057, %v1085
    %v1150 = vmul.f32 %v1058, %v1085
    %v1151 = vmul.f32 %v1059, %v1085
    %v1152 = vmul.f32 %v1060, %v1085
    %v1153 = vmul.f32 %v1061, %v1085
    %v1154 = vmul.f32 %v1062, %v1085
    %v1155 = vmul.f32 %v1063, %v1085
    %v1156 = vmul.f32 %v1064, %v1085
    %v1157 = vmul.f32 %v1065, %v1085
    %v1158 = vmul.f32 %v1066, %v1085
    %v1159 = vmul.f32 %v1067, %v1085
    %v1160 = vmul.f32 %v1068, %v1085
    %v1161 = vmul.f32 %v1069, %v1085
    %v1162 = vmul.f32 %v1070, %v1085
    %v1163 = vmul.f32 %v1071, %v1085
    %v1164 = vmul.f32 %v1072, %v1085
    %v1165 = vmul.f32 %v1073, %v1085
    %v1166 = vmul.f32 %v1074, %v1085
    %v1167 = vmul.f32 %v1075, %v1085
    %v1168 = vmul.f32 %v1076, %v1085
    %v1169 = vmul.f32 %v1077, %v1085
    %v1170 = vmul.f32 %v1078, %v1085
    %v1171 = vmul.f32 %v1079, %v1085
    %v1172 = vld [vmem:[%s5] sm:$0x1]
    %v1174 = vlaneseq
    %v1175 = vshrl.u32 %v1174, 7
    %v1176 = vsub.s32 0, %v1175
    %v1177 = vrot.slane %v1172, %v1176
    %v1179 = vadd.f32 %v1087, %v1177
    %v1180 = vadd.f32 %v1088, %v1177
    %v1181 = vadd.f32 %v1089, %v1177
    %v1182 = vadd.f32 %v1090, %v1177
    %v1183 = vadd.f32 %v1091, %v1177
    %v1184 = vadd.f32 %v1092, %v1177
    %v1185 = vadd.f32 %v1093, %v1177
    %v1186 = vadd.f32 %v1094, %v1177
    %v1187 = vadd.f32 %v1095, %v1177
    %v1188 = vadd.f32 %v1096, %v1177
    %v1189 = vadd.f32 %v1097, %v1177
    %v1190 = vadd.f32 %v1098, %v1177
    %v1191 = vadd.f32 %v1099, %v1177
    %v1192 = vadd.f32 %v1100, %v1177
    %v1193 = vadd.f32 %v1101, %v1177
    %v1194 = vadd.f32 %v1102, %v1177
    %v1195 = vadd.f32 %v1103, %v1177
    %v1196 = vadd.f32 %v1104, %v1177
    %v1197 = vadd.f32 %v1105, %v1177
    %v1198 = vadd.f32 %v1106, %v1177
    %v1199 = vadd.f32 %v1107, %v1177
    %v1200 = vadd.f32 %v1108, %v1177
    %v1201 = vadd.f32 %v1109, %v1177
    %v1202 = vadd.f32 %v1110, %v1177
    %v1203 = vadd.f32 %v1111, %v1177
    %v1204 = vadd.f32 %v1112, %v1177
    %v1205 = vadd.f32 %v1113, %v1177
    %v1206 = vadd.f32 %v1114, %v1177
    %v1207 = vadd.f32 %v1115, %v1177
    %v1208 = vadd.f32 %v1116, %v1177
    %v1209 = vadd.f32 %v1117, %v1177
    %v1210 = vadd.f32 %v1118, %v1177
    %v1211 = vadd.f32 %v1119, %v1177
    %v1212 = vadd.f32 %v1120, %v1177
    %v1213 = vadd.f32 %v1121, %v1177
    %v1214 = vadd.f32 %v1122, %v1177
    %v1215 = vadd.f32 %v1123, %v1177
    %v1216 = vadd.f32 %v1124, %v1177
    %v1217 = vadd.f32 %v1125, %v1177
    %v1218 = vadd.f32 %v1126, %v1177
    %v1219 = vadd.f32 %v1127, %v1177
    %v1220 = vadd.f32 %v1128, %v1177
    %v1221 = vadd.f32 %v1129, %v1177
    %v1222 = vadd.f32 %v1130, %v1177
    %v1223 = vadd.f32 %v1131, %v1177
    %v1224 = vadd.f32 %v1132, %v1177
    %v1225 = vadd.f32 %v1133, %v1177
    %v1226 = vadd.f32 %v1134, %v1177
    %v1227 = vadd.f32 %v1135, %v1177
    %v1228 = vadd.f32 %v1136, %v1177
    %v1229 = vadd.f32 %v1137, %v1177
    %v1230 = vadd.f32 %v1138, %v1177
    %v1231 = vadd.f32 %v1139, %v1177
    %v1232 = vadd.f32 %v1140, %v1177
    %v1233 = vadd.f32 %v1141, %v1177
    %v1234 = vadd.f32 %v1142, %v1177
    %v1235 = vadd.f32 %v1143, %v1177
    %v1236 = vadd.f32 %v1144, %v1177
    %v1237 = vadd.f32 %v1145, %v1177
    %v1238 = vadd.f32 %v1146, %v1177
    %v1239 = vadd.f32 %v1147, %v1177
    %v1240 = vadd.f32 %v1148, %v1177
    %v1241 = vadd.f32 %v1149, %v1177
    %v1242 = vadd.f32 %v1150, %v1177
    %v1243 = vadd.f32 %v1151, %v1177
    %v1244 = vadd.f32 %v1152, %v1177
    %v1245 = vadd.f32 %v1153, %v1177
    %v1246 = vadd.f32 %v1154, %v1177
    %v1247 = vadd.f32 %v1155, %v1177
    %v1248 = vadd.f32 %v1156, %v1177
    %v1249 = vadd.f32 %v1157, %v1177
    %v1250 = vadd.f32 %v1158, %v1177
    %v1251 = vadd.f32 %v1159, %v1177
    %v1252 = vadd.f32 %v1160, %v1177
    %v1253 = vadd.f32 %v1161, %v1177
    %v1254 = vadd.f32 %v1162, %v1177
    %v1255 = vadd.f32 %v1163, %v1177
    %v1256 = vadd.f32 %v1164, %v1177
    %v1257 = vadd.f32 %v1165, %v1177
    %v1258 = vadd.f32 %v1166, %v1177
    %v1259 = vadd.f32 %v1167, %v1177
    %v1260 = vadd.f32 %v1168, %v1177
    %v1261 = vadd.f32 %v1169, %v1177
    %v1262 = vadd.f32 %v1170, %v1177
    %v1263 = vadd.f32 %v1171, %v1177
    %v1264 = vld [vmem:[%s7] sm:$0x7]
    %v1266 = vsel %vm469, %v1179, 0
    %v1269 = vsel %vm469, %v1180, 0
    %v1272 = vsel %vm469, %v1181, 0
    %v1275 = vsel %vm469, %v1182, 0
    %v1278 = vsel %vm469, %v1183, 0
    %v1281 = vsel %vm469, %v1184, 0
    %v1284 = vsel %vm469, %v1185, 0
    %v1287 = vsel %vm469, %v1186, 0
    %v1290 = vsel %vm469, %v1187, 0
    %v1293 = vsel %vm469, %v1188, 0
    %v1296 = vsel %vm469, %v1189, 0
    %v1299 = vsel %vm469, %v1190, 0
    %v1302 = vsel %vm469, %v1191, 0
    %v1305 = vsel %vm469, %v1192, 0
    %v1308 = vsel %vm469, %v1193, 0
    %v1311 = vsel %vm469, %v1194, 0
    %v1314 = vsel %vm469, %v1195, 0
    %v1317 = vsel %vm469, %v1196, 0
    %v1320 = vsel %vm469, %v1197, 0
    %v1323 = vsel %vm469, %v1198, 0
    %v1326 = vsel %vm469, %v1199, 0
    %v1329 = vsel %vm469, %v1200, 0
    %v1332 = vsel %vm469, %v1201, 0
    %v1335 = vsel %vm469, %v1202, 0
    %v1338 = vsel %vm469, %v1203, 0
    %v1341 = vsel %vm469, %v1204, 0
    %v1344 = vsel %vm469, %v1205, 0
    %v1347 = vsel %vm469, %v1206, 0
    %v1350 = vsel %vm469, %v1207, 0
    %v1353 = vsel %vm469, %v1208, 0
    %v1356 = vsel %vm469, %v1209, 0
    %v1359 = vsel %vm469, %v1210, 0
    %v1362 = vsel %vm469, %v1211, 0
    %v1365 = vsel %vm469, %v1212, 0
    %v1368 = vsel %vm469, %v1213, 0
    %v1371 = vsel %vm469, %v1214, 0
    %v1374 = vsel %vm469, %v1215, 0
    %v1377 = vsel %vm469, %v1216, 0
    %v1380 = vsel %vm469, %v1217, 0
    %v1383 = vsel %vm469, %v1218, 0
    %v1386 = vsel %vm469, %v1219, 0
    %v1389 = vsel %vm469, %v1220, 0
    %v1392 = vsel %vm469, %v1221, 0
    %v1395 = vsel %vm469, %v1222, 0
    %v1398 = vsel %vm469, %v1223, 0
    %v1401 = vsel %vm469, %v1224, 0
    %v1404 = vsel %vm469, %v1225, 0
    %v1407 = vsel %vm469, %v1226, 0
    %v1410 = vsel %vm469, %v1227, 0
    %v1413 = vsel %vm469, %v1228, 0
    %v1416 = vsel %vm469, %v1229, 0
    %v1419 = vsel %vm469, %v1230, 0
    %v1422 = vsel %vm469, %v1231, 0
    %v1425 = vsel %vm469, %v1232, 0
    %v1428 = vsel %vm469, %v1233, 0
    %v1431 = vsel %vm469, %v1234, 0
    %v1434 = vsel %vm469, %v1235, 0
    %v1437 = vsel %vm469, %v1236, 0
    %v1440 = vsel %vm469, %v1237, 0
    %v1443 = vsel %vm469, %v1238, 0
    %v1446 = vsel %vm469, %v1239, 0
    %v1449 = vsel %vm469, %v1240, 0
    %v1452 = vsel %vm469, %v1241, 0
    %v1455 = vsel %vm469, %v1242, 0
    %v1458 = vsel %vm469, %v1243, 0
    %v1461 = vsel %vm469, %v1244, 0
    %v1464 = vsel %vm469, %v1245, 0
    %v1467 = vsel %vm469, %v1246, 0
    %v1470 = vsel %vm469, %v1247, 0
    %v1473 = vsel %vm469, %v1248, 0
    %v1476 = vsel %vm469, %v1249, 0
    %v1479 = vsel %vm469, %v1250, 0
    %v1482 = vsel %vm469, %v1251, 0
    %v1485 = vsel %vm469, %v1252, 0
    %v1488 = vsel %vm469, %v1253, 0
    %v1491 = vsel %vm469, %v1254, 0
    %v1494 = vsel %vm469, %v1255, 0
    %v1497 = vsel %vm469, %v1256, 0
    %v1500 = vsel %vm469, %v1257, 0
    %v1503 = vsel %vm469, %v1258, 0
    %v1506 = vsel %vm469, %v1259, 0
    %v1509 = vsel %vm469, %v1260, 0
    %v1512 = vsel %vm469, %v1261, 0
    %v1515 = vsel %vm469, %v1262, 0
    %v1518 = vsel %vm469, %v1263, 0
    %vm1520 = vcmask 1042432
    %v1522 = vsel %vm1520, %v1264, 0
    %1524 = vmatprep.subr.mxu0 0.0
    %1525 = vmatpush1.msra.mxu0 %v1522
    %1526 = vmatprep.subr.mxu0 0.0
    %1527 = vmatpush1.msra.mxu0 0.0
    %1528 = vmatprep.subr.mxu0 0.0
    %1529 = vmatpush1.msra.mxu0 0.0
    %1530 = vmatprep.subr.mxu0 0.0
    %1531 = vmatpush1.msra.mxu0 0.0
    %1532 = vmatprep.subr.mxu0 0.0
    %1533 = vmatpush1.msra.mxu0 0.0
    %1534 = vmatprep.subr.mxu0 0.0
    %1535 = vmatpush1.msra.mxu0 0.0
    %1536 = vmatprep.subr.mxu0 0.0
    %1537 = vmatpush1.msra.mxu0 0.0
    %1538 = vmatprep.subr.mxu0 0.0
    %1539 = vmatpush1.msra.mxu0 0.0
    %1540 = vmatprep.subr.mxu0 0.0
    %1541 = vmatpush1.msra.mxu0 0.0
    %1542 = vmatprep.subr.mxu0 0.0
    %1543 = vmatpush1.msra.mxu0 0.0
    %1544 = vmatprep.subr.mxu0 0.0
    %1545 = vmatpush1.msra.mxu0 0.0
    %1546 = vmatprep.subr.mxu0 0.0
    %1547 = vmatpush1.msra.mxu0 0.0
    %1548 = vmatprep.subr.mxu0 0.0
    %1549 = vmatpush1.msra.mxu0 0.0
    %1550 = vmatprep.subr.mxu0 0.0
    %1551 = vmatpush1.msra.mxu0 0.0
    %1552 = vmatprep.subr.mxu0 0.0
    %1553 = vmatpush1.msra.mxu0 0.0
    %1554 = vmatprep.subr.mxu0 0.0
    %1555 = vmatpush1.msra.mxu0 0.0
    %1556 = vmatprep.subr.mxu0 0.0
    %1557 = vmatpush1.msra.mxu0 0.0
    %1558 = vmatprep.subr.mxu0 0.0
    %1559 = vmatpush1.msra.mxu0 0.0
    %1560 = vmatprep.subr.mxu0 0.0
    %1561 = vmatpush1.msra.mxu0 0.0
    %1562 = vmatprep.subr.mxu0 0.0
    %1563 = vmatpush1.msra.mxu0 0.0
    %1564 = vmatprep.subr.mxu0 0.0
    %1565 = vmatpush1.msra.mxu0 0.0
    %1566 = vmatprep.subr.mxu0 0.0
    %1567 = vmatpush1.msra.mxu0 0.0
    %1568 = vmatprep.subr.mxu0 0.0
    %1569 = vmatpush1.msra.mxu0 0.0
    %1570 = vmatprep.subr.mxu0 0.0
    %1571 = vmatpush1.msra.mxu0 0.0
    %1572 = vmatprep.subr.mxu0 0.0
    %1573 = vmatpush1.msra.mxu0 0.0
    %1574 = vmatprep.subr.mxu0 0.0
    %1575 = vmatpush1.msra.mxu0 0.0
    %1576 = vmatprep.subr.mxu0 0.0
    %1577 = vmatpush1.msra.mxu0 0.0
    %1578 = vmatprep.subr.mxu0 0.0
    %1579 = vmatpush1.msra.mxu0 0.0
    %1580 = vmatprep.subr.mxu0 0.0
    %1581 = vmatpush1.msra.mxu0 0.0
    %1582 = vmatprep.subr.mxu0 0.0
    %1583 = vmatpush1.msra.mxu0 0.0
    %1584 = vmatprep.subr.mxu0 0.0
    %1585 = vmatpush1.msra.mxu0 0.0
    %1586 = vmatprep.subr.mxu0 0.0
    %1587 = vmatpush1.msra.mxu0 0.0
    %1588 = vmatprep.mubr.f32.mxu0 0.0
    %1589 = vmatmul.mubr.f32.gmra.mrb[0].mxu0 %v1266
    %v1590 = vpop.f32.mrb[0].mxu0
    %v1591 = vadd.f32 0.0, %v1590
    %v1592 = vpop.f32.mrb[0].mxu0
    %1593 = vmatprep.mubr.f32.mxu0 0.0
    %1594 = vmatmul.mubr.f32.gmra.mrb[0].mxu0 %v1269
    %v1595 = vpop.f32.mrb[0].mxu0
    %v1596 = vadd.f32 0.0, %v1595
    %v1597 = vpop.f32.mrb[0].mxu0
    %1598 = vmatprep.mubr.f32.mxu0 0.0
    %1599 = vmatmul.mubr.f32.gmra.mrb[0].mxu0 %v1272
    %v1600 = vpop.f32.mrb[0].mxu0
    %v1601 = vadd.f32 0.0, %v1600
    %v1602 = vpop.f32.mrb[0].mxu0
    %1603 = vmatprep.mubr.f32.mxu0 0.0
    %1604 = vmatmul.mubr.f32.gmra.mrb[0].mxu0 %v1275
    %v1605 = vpop.f32.mrb[0].mxu0
    %v1606 = vadd.f32 0.0, %v1605
    %v1607 = vpop.f32.mrb[0].mxu0
    %1608 = vmatprep.mubr.f32.mxu0 0.0
    %1609 = vmatmul.mubr.f32.gmra.mrb[0].mxu0 %v1278
    %v1610 = vpop.f32.mrb[0].mxu0
    %v1611 = vadd.f32 0.0, %v1610
    %v1612 = vpop.f32.mrb[0].mxu0
    %1613 = vmatprep.mubr.f32.mxu0 0.0
    %1614 = vmatmul.mubr.f32.gmra.mrb[0].mxu0 %v1281
    %v1615 = vpop.f32.mrb[0].mxu0
    %v1616 = vadd.f32 0.0, %v1615
    %v1617 = vpop.f32.mrb[0].mxu0
    %1618 = vmatprep.mubr.f32.mxu0 0.0
    %1619 = vmatmul.mubr.f32.gmra.mrb[0].mxu0 %v1284
    %v1620 = vpop.f32.mrb[0].mxu0
    %v1621 = vadd.f32 0.0, %v1620
    %v1622 = vpop.f32.mrb[0].mxu0
    %1623 = vmatprep.mubr.f32.mxu0 0.0
    %1624 = vmatmul.mubr.f32.gmra.mrb[0].mxu0 %v1287
    %v1625 = vpop.f32.mrb[0].mxu0
    %v1626 = vadd.f32 0.0, %v1625
    %v1627 = vpop.f32.mrb[0].mxu0
    %1628 = vmatprep.mubr.f32.mxu0 0.0
    %1629 = vmatmul.mubr.f32.gmra.mrb[0].mxu0 %v1290
    %v1630 = vpop.f32.mrb[0].mxu0
    %v1631 = vadd.f32 0.0, %v1630
    %v1632 = vpop.f32.mrb[0].mxu0
    %1633 = vmatprep.mubr.f32.mxu0 0.0
    %1634 = vmatmul.mubr.f32.gmra.mrb[0].mxu0 %v1293
    %v1635 = vpop.f32.mrb[0].mxu0
    %v1636 = vadd.f32 0.0, %v1635
    %v1637 = vpop.f32.mrb[0].mxu0
    %1638 = vmatprep.mubr.f32.mxu0 0.0
    %1639 = vmatmul.mubr.f32.gmra.mrb[0].mxu0 %v1296
    %v1640 = vpop.f32.mrb[0].mxu0
    %v1641 = vadd.f32 0.0, %v1640
    %v1642 = vpop.f32.mrb[0].mxu0
    %1643 = vmatprep.mubr.f32.mxu0 0.0
    %1644 = vmatmul.mubr.f32.gmra.mrb[0].mxu0 %v1299
    %v1645 = vpop.f32.mrb[0].mxu0
    %v1646 = vadd.f32 0.0, %v1645
    %v1647 = vpop.f32.mrb[0].mxu0
    %1648 = vmatprep.mubr.f32.mxu0 0.0
    %1649 = vmatmul.mubr.f32.gmra.mrb[0].mxu0 %v1302
    %v1650 = vpop.f32.mrb[0].mxu0
    %v1651 = vadd.f32 0.0, %v1650
    %v1652 = vpop.f32.mrb[0].mxu0
    %1653 = vmatprep.mubr.f32.mxu0 0.0
    %1654 = vmatmul.mubr.f32.gmra.mrb[0].mxu0 %v1305
    %v1655 = vpop.f32.mrb[0].mxu0
    %v1656 = vadd.f32 0.0, %v1655
    %v1657 = vpop.f32.mrb[0].mxu0
    %1658 = vmatprep.mubr.f32.mxu0 0.0
    %1659 = vmatmul.mubr.f32.gmra.mrb[0].mxu0 %v1308
    %v1660 = vpop.f32.mrb[0].mxu0
    %v1661 = vadd.f32 0.0, %v1660
    %v1662 = vpop.f32.mrb[0].mxu0
    %1663 = vmatprep.mubr.f32.mxu0 0.0
    %1664 = vmatmul.mubr.f32.gmra.mrb[0].mxu0 %v1311
    %v1665 = vpop.f32.mrb[0].mxu0
    %v1666 = vadd.f32 0.0, %v1665
    %v1667 = vpop.f32.mrb[0].mxu0
    %1668 = vmatprep.mubr.f32.mxu0 0.0
    %1669 = vmatmul.mubr.f32.gmra.mrb[0].mxu0 %v1314
    %v1670 = vpop.f32.mrb[0].mxu0
    %v1671 = vadd.f32 0.0, %v1670
    %v1672 = vpop.f32.mrb[0].mxu0
    %1673 = vmatprep.mubr.f32.mxu0 0.0
    %1674 = vmatmul.mubr.f32.gmra.mrb[0].mxu0 %v1317
    %v1675 = vpop.f32.mrb[0].mxu0
    %v1676 = vadd.f32 0.0, %v1675
    %v1677 = vpop.f32.mrb[0].mxu0
    %1678 = vmatprep.mubr.f32.mxu0 0.0
    %1679 = vmatmul.mubr.f32.gmra.mrb[0].mxu0 %v1320
    %v1680 = vpop.f32.mrb[0].mxu0
    %v1681 = vadd.f32 0.0, %v1680
    %v1682 = vpop.f32.mrb[0].mxu0
    %1683 = vmatprep.mubr.f32.mxu0 0.0
    %1684 = vmatmul.mubr.f32.gmra.mrb[0].mxu0 %v1323
    %v1685 = vpop.f32.mrb[0].mxu0
    %v1686 = vadd.f32 0.0, %v1685
    %v1687 = vpop.f32.mrb[0].mxu0
    %1688 = vmatprep.mubr.f32.mxu0 0.0
    %1689 = vmatmul.mubr.f32.gmra.mrb[0].mxu0 %v1326
    %v1690 = vpop.f32.mrb[0].mxu0
    %v1691 = vadd.f32 0.0, %v1690
    %v1692 = vpop.f32.mrb[0].mxu0
    %1693 = vmatprep.mubr.f32.mxu0 0.0
    %1694 = vmatmul.mubr.f32.gmra.mrb[0].mxu0 %v1329
    %v1695 = vpop.f32.mrb[0].mxu0
    %v1696 = vadd.f32 0.0, %v1695
    %v1697 = vpop.f32.mrb[0].mxu0
    %1698 = vmatprep.mubr.f32.mxu0 0.0
    %1699 = vmatmul.mubr.f32.gmra.mrb[0].mxu0 %v1332
    %v1700 = vpop.f32.mrb[0].mxu0
    %v1701 = vadd.f32 0.0, %v1700
    %v1702 = vpop.f32.mrb[0].mxu0
    %1703 = vmatprep.mubr.f32.mxu0 0.0
    %1704 = vmatmul.mubr.f32.gmra.mrb[0].mxu0 %v1335
    %v1705 = vpop.f32.mrb[0].mxu0
    %v1706 = vadd.f32 0.0, %v1705
    %v1707 = vpop.f32.mrb[0].mxu0
    %1708 = vmatprep.mubr.f32.mxu0 0.0
    %1709 = vmatmul.mubr.f32.gmra.mrb[0].mxu0 %v1338
    %v1710 = vpop.f32.mrb[0].mxu0
    %v1711 = vadd.f32 0.0, %v1710
    %v1712 = vpop.f32.mrb[0].mxu0
    %1713 = vmatprep.mubr.f32.mxu0 0.0
    %1714 = vmatmul.mubr.f32.gmra.mrb[0].mxu0 %v1341
    %v1715 = vpop.f32.mrb[0].mxu0
    %v1716 = vadd.f32 0.0, %v1715
    %v1717 = vpop.f32.mrb[0].mxu0
    %1718 = vmatprep.mubr.f32.mxu0 0.0
    %1719 = vmatmul.mubr.f32.gmra.mrb[0].mxu0 %v1344
    %v1720 = vpop.f32.mrb[0].mxu0
    %v1721 = vadd.f32 0.0, %v1720
    %v1722 = vpop.f32.mrb[0].mxu0
    %1723 = vmatprep.mubr.f32.mxu0 0.0
    %1724 = vmatmul.mubr.f32.gmra.mrb[0].mxu0 %v1347
    %v1725 = vpop.f32.mrb[0].mxu0
    %v1726 = vadd.f32 0.0, %v1725
    %v1727 = vpop.f32.mrb[0].mxu0
    %1728 = vmatprep.mubr.f32.mxu0 0.0
    %1729 = vmatmul.mubr.f32.gmra.mrb[0].mxu0 %v1350
    %v1730 = vpop.f32.mrb[0].mxu0
    %v1731 = vadd.f32 0.0, %v1730
    %v1732 = vpop.f32.mrb[0].mxu0
    %1733 = vmatprep.mubr.f32.mxu0 0.0
    %1734 = vmatmul.mubr.f32.gmra.mrb[0].mxu0 %v1353
    %v1735 = vpop.f32.mrb[0].mxu0
    %v1736 = vadd.f32 0.0, %v1735
    %v1737 = vpop.f32.mrb[0].mxu0
    %1738 = vmatprep.mubr.f32.mxu0 0.0
    %1739 = vmatmul.mubr.f32.gmra.mrb[0].mxu0 %v1356
    %v1740 = vpop.f32.mrb[0].mxu0
    %v1741 = vadd.f32 0.0, %v1740
    %v1742 = vpop.f32.mrb[0].mxu0
    %1743 = vmatprep.mubr.f32.mxu0 0.0
    %1744 = vmatmul.mubr.f32.gmra.mrb[0].mxu0 %v1359
    %v1745 = vpop.f32.mrb[0].mxu0
    %v1746 = vadd.f32 0.0, %v1745
    %v1747 = vpop.f32.mrb[0].mxu0
    %1748 = vmatprep.mubr.f32.mxu0 0.0
    %1749 = vmatmul.mubr.f32.gmra.mrb[0].mxu0 %v1362
    %v1750 = vpop.f32.mrb[0].mxu0
    %v1751 = vadd.f32 0.0, %v1750
    %v1752 = vpop.f32.mrb[0].mxu0
    %1753 = vmatprep.mubr.f32.mxu0 0.0
    %1754 = vmatmul.mubr.f32.gmra.mrb[0].mxu0 %v1365
    %v1755 = vpop.f32.mrb[0].mxu0
    %v1756 = vadd.f32 0.0, %v1755
    %v1757 = vpop.f32.mrb[0].mxu0
    %1758 = vmatprep.mubr.f32.mxu0 0.0
    %1759 = vmatmul.mubr.f32.gmra.mrb[0].mxu0 %v1368
    %v1760 = vpop.f32.mrb[0].mxu0
    %v1761 = vadd.f32 0.0, %v1760
    %v1762 = vpop.f32.mrb[0].mxu0
    %1763 = vmatprep.mubr.f32.mxu0 0.0
    %1764 = vmatmul.mubr.f32.gmra.mrb[0].mxu0 %v1371
    %v1765 = vpop.f32.mrb[0].mxu0
    %v1766 = vadd.f32 0.0, %v1765
    %v1767 = vpop.f32.mrb[0].mxu0
    %1768 = vmatprep.mubr.f32.mxu0 0.0
    %1769 = vmatmul.mubr.f32.gmra.mrb[0].mxu0 %v1374
    %v1770 = vpop.f32.mrb[0].mxu0
    %v1771 = vadd.f32 0.0, %v1770
    %v1772 = vpop.f32.mrb[0].mxu0
    %1773 = vmatprep.mubr.f32.mxu0 0.0
    %1774 = vmatmul.mubr.f32.gmra.mrb[0].mxu0 %v1377
    %v1775 = vpop.f32.mrb[0].mxu0
    %v1776 = vadd.f32 0.0, %v1775
    %v1777 = vpop.f32.mrb[0].mxu0
    %1778 = vmatprep.mubr.f32.mxu0 0.0
    %1779 = vmatmul.mubr.f32.gmra.mrb[0].mxu0 %v1380
    %v1780 = vpop.f32.mrb[0].mxu0
    %v1781 = vadd.f32 0.0, %v1780
    %v1782 = vpop.f32.mrb[0].mxu0
    %1783 = vmatprep.mubr.f32.mxu0 0.0
    %1784 = vmatmul.mubr.f32.gmra.mrb[0].mxu0 %v1383
    %v1785 = vpop.f32.mrb[0].mxu0
    %v1786 = vadd.f32 0.0, %v1785
    %v1787 = vpop.f32.mrb[0].mxu0
    %1788 = vmatprep.mubr.f32.mxu0 0.0
    %1789 = vmatmul.mubr.f32.gmra.mrb[0].mxu0 %v1386
    %v1790 = vpop.f32.mrb[0].mxu0
    %v1791 = vadd.f32 0.0, %v1790
    %v1792 = vpop.f32.mrb[0].mxu0
    %1793 = vmatprep.mubr.f32.mxu0 0.0
    %1794 = vmatmul.mubr.f32.gmra.mrb[0].mxu0 %v1389
    %v1795 = vpop.f32.mrb[0].mxu0
    %v1796 = vadd.f32 0.0, %v1795
    %v1797 = vpop.f32.mrb[0].mxu0
    %1798 = vmatprep.mubr.f32.mxu0 0.0
    %1799 = vmatmul.mubr.f32.gmra.mrb[0].mxu0 %v1392
    %v1800 = vpop.f32.mrb[0].mxu0
    %v1801 = vadd.f32 0.0, %v1800
    %v1802 = vpop.f32.mrb[0].mxu0
    %1803 = vmatprep.mubr.f32.mxu0 0.0
    %1804 = vmatmul.mubr.f32.gmra.mrb[0].mxu0 %v1395
    %v1805 = vpop.f32.mrb[0].mxu0
    %v1806 = vadd.f32 0.0, %v1805
    %v1807 = vpop.f32.mrb[0].mxu0
    %1808 = vmatprep.mubr.f32.mxu0 0.0
    %1809 = vmatmul.mubr.f32.gmra.mrb[0].mxu0 %v1398
    %v1810 = vpop.f32.mrb[0].mxu0
    %v1811 = vadd.f32 0.0, %v1810
    %v1812 = vpop.f32.mrb[0].mxu0
    %1813 = vmatprep.mubr.f32.mxu0 0.0
    %1814 = vmatmul.mubr.f32.gmra.mrb[0].mxu0 %v1401
    %v1815 = vpop.f32.mrb[0].mxu0
    %v1816 = vadd.f32 0.0, %v1815
    %v1817 = vpop.f32.mrb[0].mxu0
    %1818 = vmatprep.mubr.f32.mxu0 0.0
    %1819 = vmatmul.mubr.f32.gmra.mrb[0].mxu0 %v1404
    %v1820 = vpop.f32.mrb[0].mxu0
    %v1821 = vadd.f32 0.0, %v1820
    %v1822 = vpop.f32.mrb[0].mxu0
    %1823 = vmatprep.mubr.f32.mxu0 0.0
    %1824 = vmatmul.mubr.f32.gmra.mrb[0].mxu0 %v1407
    %v1825 = vpop.f32.mrb[0].mxu0
    %v1826 = vadd.f32 0.0, %v1825
    %v1827 = vpop.f32.mrb[0].mxu0
    %1828 = vmatprep.mubr.f32.mxu0 0.0
    %1829 = vmatmul.mubr.f32.gmra.mrb[0].mxu0 %v1410
    %v1830 = vpop.f32.mrb[0].mxu0
    %v1831 = vadd.f32 0.0, %v1830
    %v1832 = vpop.f32.mrb[0].mxu0
    %1833 = vmatprep.mubr.f32.mxu0 0.0
    %1834 = vmatmul.mubr.f32.gmra.mrb[0].mxu0 %v1413
    %v1835 = vpop.f32.mrb[0].mxu0
    %v1836 = vadd.f32 0.0, %v1835
    %v1837 = vpop.f32.mrb[0].mxu0
    %1838 = vmatprep.mubr.f32.mxu0 0.0
    %1839 = vmatmul.mubr.f32.gmra.mrb[0].mxu0 %v1416
    %v1840 = vpop.f32.mrb[0].mxu0
    %v1841 = vadd.f32 0.0, %v1840
    %v1842 = vpop.f32.mrb[0].mxu0
    %1843 = vmatprep.mubr.f32.mxu0 0.0
    %1844 = vmatmul.mubr.f32.gmra.mrb[0].mxu0 %v1419
    %v1845 = vpop.f32.mrb[0].mxu0
    %v1846 = vadd.f32 0.0, %v1845
    %v1847 = vpop.f32.mrb[0].mxu0
    %1848 = vmatprep.mubr.f32.mxu0 0.0
    %1849 = vmatmul.mubr.f32.gmra.mrb[0].mxu0 %v1422
    %v1850 = vpop.f32.mrb[0].mxu0
    %v1851 = vadd.f32 0.0, %v1850
    %v1852 = vpop.f32.mrb[0].mxu0
    %1853 = vmatprep.mubr.f32.mxu0 0.0
    %1854 = vmatmul.mubr.f32.gmra.mrb[0].mxu0 %v1425
    %v1855 = vpop.f32.mrb[0].mxu0
    %v1856 = vadd.f32 0.0, %v1855
    %v1857 = vpop.f32.mrb[0].mxu0
    %1858 = vmatprep.mubr.f32.mxu0 0.0
    %1859 = vmatmul.mubr.f32.gmra.mrb[0].mxu0 %v1428
    %v1860 = vpop.f32.mrb[0].mxu0
    %v1861 = vadd.f32 0.0, %v1860
    %v1862 = vpop.f32.mrb[0].mxu0
    %1863 = vmatprep.mubr.f32.mxu0 0.0
    %1864 = vmatmul.mubr.f32.gmra.mrb[0].mxu0 %v1431
    %v1865 = vpop.f32.mrb[0].mxu0
    %v1866 = vadd.f32 0.0, %v1865
    %v1867 = vpop.f32.mrb[0].mxu0
    %1868 = vmatprep.mubr.f32.mxu0 0.0
    %1869 = vmatmul.mubr.f32.gmra.mrb[0].mxu0 %v1434
    %v1870 = vpop.f32.mrb[0].mxu0
    %v1871 = vadd.f32 0.0, %v1870
    %v1872 = vpop.f32.mrb[0].mxu0
    %1873 = vmatprep.mubr.f32.mxu0 0.0
    %1874 = vmatmul.mubr.f32.gmra.mrb[0].mxu0 %v1437
    %v1875 = vpop.f32.mrb[0].mxu0
    %v1876 = vadd.f32 0.0, %v1875
    %v1877 = vpop.f32.mrb[0].mxu0
    %1878 = vmatprep.mubr.f32.mxu0 0.0
    %1879 = vmatmul.mubr.f32.gmra.mrb[0].mxu0 %v1440
    %v1880 = vpop.f32.mrb[0].mxu0
    %v1881 = vadd.f32 0.0, %v1880
    %v1882 = vpop.f32.mrb[0].mxu0
    %1883 = vmatprep.mubr.f32.mxu0 0.0
    %1884 = vmatmul.mubr.f32.gmra.mrb[0].mxu0 %v1443
    %v1885 = vpop.f32.mrb[0].mxu0
    %v1886 = vadd.f32 0.0, %v1885
    %v1887 = vpop.f32.mrb[0].mxu0
    %1888 = vmatprep.mubr.f32.mxu0 0.0
    %1889 = vmatmul.mubr.f32.gmra.mrb[0].mxu0 %v1446
    %v1890 = vpop.f32.mrb[0].mxu0
    %v1891 = vadd.f32 0.0, %v1890
    %v1892 = vpop.f32.mrb[0].mxu0
    %1893 = vmatprep.mubr.f32.mxu0 0.0
    %1894 = vmatmul.mubr.f32.gmra.mrb[0].mxu0 %v1449
    %v1895 = vpop.f32.mrb[0].mxu0
    %v1896 = vadd.f32 0.0, %v1895
    %v1897 = vpop.f32.mrb[0].mxu0
    %1898 = vmatprep.mubr.f32.mxu0 0.0
    %1899 = vmatmul.mubr.f32.gmra.mrb[0].mxu0 %v1452
    %v1900 = vpop.f32.mrb[0].mxu0
    %v1901 = vadd.f32 0.0, %v1900
    %v1902 = vpop.f32.mrb[0].mxu0
    %1903 = vmatprep.mubr.f32.mxu0 0.0
    %1904 = vmatmul.mubr.f32.gmra.mrb[0].mxu0 %v1455
    %v1905 = vpop.f32.mrb[0].mxu0
    %v1906 = vadd.f32 0.0, %v1905
    %v1907 = vpop.f32.mrb[0].mxu0
    %1908 = vmatprep.mubr.f32.mxu0 0.0
    %1909 = vmatmul.mubr.f32.gmra.mrb[0].mxu0 %v1458
    %v1910 = vpop.f32.mrb[0].mxu0
    %v1911 = vadd.f32 0.0, %v1910
    %v1912 = vpop.f32.mrb[0].mxu0
    %1913 = vmatprep.mubr.f32.mxu0 0.0
    %1914 = vmatmul.mubr.f32.gmra.mrb[0].mxu0 %v1461
    %v1915 = vpop.f32.mrb[0].mxu0
    %v1916 = vadd.f32 0.0, %v1915
    %v1917 = vpop.f32.mrb[0].mxu0
    %1918 = vmatprep.mubr.f32.mxu0 0.0
    %1919 = vmatmul.mubr.f32.gmra.mrb[0].mxu0 %v1464
    %v1920 = vpop.f32.mrb[0].mxu0
    %v1921 = vadd.f32 0.0, %v1920
    %v1922 = vpop.f32.mrb[0].mxu0
    %1923 = vmatprep.mubr.f32.mxu0 0.0
    %1924 = vmatmul.mubr.f32.gmra.mrb[0].mxu0 %v1467
    %v1925 = vpop.f32.mrb[0].mxu0
    %v1926 = vadd.f32 0.0, %v1925
    %v1927 = vpop.f32.mrb[0].mxu0
    %1928 = vmatprep.mubr.f32.mxu0 0.0
    %1929 = vmatmul.mubr.f32.gmra.mrb[0].mxu0 %v1470
    %v1930 = vpop.f32.mrb[0].mxu0
    %v1931 = vadd.f32 0.0, %v1930
    %v1932 = vpop.f32.mrb[0].mxu0
    %1933 = vmatprep.mubr.f32.mxu0 0.0
    %1934 = vmatmul.mubr.f32.gmra.mrb[0].mxu0 %v1473
    %v1935 = vpop.f32.mrb[0].mxu0
    %v1936 = vadd.f32 0.0, %v1935
    %v1937 = vpop.f32.mrb[0].mxu0
    %1938 = vmatprep.mubr.f32.mxu0 0.0
    %1939 = vmatmul.mubr.f32.gmra.mrb[0].mxu0 %v1476
    %v1940 = vpop.f32.mrb[0].mxu0
    %v1941 = vadd.f32 0.0, %v1940
    %v1942 = vpop.f32.mrb[0].mxu0
    %1943 = vmatprep.mubr.f32.mxu0 0.0
    %1944 = vmatmul.mubr.f32.gmra.mrb[0].mxu0 %v1479
    %v1945 = vpop.f32.mrb[0].mxu0
    %v1946 = vadd.f32 0.0, %v1945
    %v1947 = vpop.f32.mrb[0].mxu0
    %1948 = vmatprep.mubr.f32.mxu0 0.0
    %1949 = vmatmul.mubr.f32.gmra.mrb[0].mxu0 %v1482
    %v1950 = vpop.f32.mrb[0].mxu0
    %v1951 = vadd.f32 0.0, %v1950
    %v1952 = vpop.f32.mrb[0].mxu0
    %1953 = vmatprep.mubr.f32.mxu0 0.0
    %1954 = vmatmul.mubr.f32.gmra.mrb[0].mxu0 %v1485
    %v1955 = vpop.f32.mrb[0].mxu0
    %v1956 = vadd.f32 0.0, %v1955
    %v1957 = vpop.f32.mrb[0].mxu0
    %1958 = vmatprep.mubr.f32.mxu0 0.0
    %1959 = vmatmul.mubr.f32.gmra.mrb[0].mxu0 %v1488
    %v1960 = vpop.f32.mrb[0].mxu0
    %v1961 = vadd.f32 0.0, %v1960
    %v1962 = vpop.f32.mrb[0].mxu0
    %1963 = vmatprep.mubr.f32.mxu0 0.0
    %1964 = vmatmul.mubr.f32.gmra.mrb[0].mxu0 %v1491
    %v1965 = vpop.f32.mrb[0].mxu0
    %v1966 = vadd.f32 0.0, %v1965
    %v1967 = vpop.f32.mrb[0].mxu0
    %1968 = vmatprep.mubr.f32.mxu0 0.0
    %1969 = vmatmul.mubr.f32.gmra.mrb[0].mxu0 %v1494
    %v1970 = vpop.f32.mrb[0].mxu0
    %v1971 = vadd.f32 0.0, %v1970
    %v1972 = vpop.f32.mrb[0].mxu0
    %1973 = vmatprep.mubr.f32.mxu0 0.0
    %1974 = vmatmul.mubr.f32.gmra.mrb[0].mxu0 %v1497
    %v1975 = vpop.f32.mrb[0].mxu0
    %v1976 = vadd.f32 0.0, %v1975
    %v1977 = vpop.f32.mrb[0].mxu0
    %1978 = vmatprep.mubr.f32.mxu0 0.0
    %1979 = vmatmul.mubr.f32.gmra.mrb[0].mxu0 %v1500
    %v1980 = vpop.f32.mrb[0].mxu0
    %v1981 = vadd.f32 0.0, %v1980
    %v1982 = vpop.f32.mrb[0].mxu0
    %1983 = vmatprep.mubr.f32.mxu0 0.0
    %1984 = vmatmul.mubr.f32.gmra.mrb[0].mxu0 %v1503
    %v1985 = vpop.f32.mrb[0].mxu0
    %v1986 = vadd.f32 0.0, %v1985
    %v1987 = vpop.f32.mrb[0].mxu0
    %1988 = vmatprep.mubr.f32.mxu0 0.0
    %1989 = vmatmul.mubr.f32.gmra.mrb[0].mxu0 %v1506
    %v1990 = vpop.f32.mrb[0].mxu0
    %v1991 = vadd.f32 0.0, %v1990
    %v1992 = vpop.f32.mrb[0].mxu0
    %1993 = vmatprep.mubr.f32.mxu0 0.0
    %1994 = vmatmul.mubr.f32.gmra.mrb[0].mxu0 %v1509
    %v1995 = vpop.f32.mrb[0].mxu0
    %v1996 = vadd.f32 0.0, %v1995
    %v1997 = vpop.f32.mrb[0].mxu0
    %1998 = vmatprep.mubr.f32.mxu0 0.0
    %1999 = vmatmul.mubr.f32.gmra.mrb[0].mxu0 %v1512
    %v2000 = vpop.f32.mrb[0].mxu0
    %v2001 = vadd.f32 0.0, %v2000
    %v2002 = vpop.f32.mrb[0].mxu0
    %2003 = vmatprep.mubr.f32.mxu0 0.0
    %2004 = vmatmul.mubr.f32.gmra.mrb[0].mxu0 %v1515
    %v2005 = vpop.f32.mrb[0].mxu0
    %v2006 = vadd.f32 0.0, %v2005
    %v2007 = vpop.f32.mrb[0].mxu0
    %2008 = vmatprep.mubr.f32.mxu0 0.0
    %2009 = vmatmul.mubr.f32.gmra.mrb[0].mxu0 %v1518
    %v2010 = vpop.f32.mrb[0].mxu0
    %v2011 = vadd.f32 0.0, %v2010
    %v2012 = vpop.f32.mrb[0].mxu0
    %2013 = vdwg.mxu0
    %vm2014 = vcmp.ge.f32.partialorder %v1591, 0.0
    %vm2015 = vcmp.ge.f32.partialorder %v1596, 0.0
    %vm2016 = vcmp.ge.f32.partialorder %v1601, 0.0
    %vm2017 = vcmp.ge.f32.partialorder %v1606, 0.0
    %vm2018 = vcmp.ge.f32.partialorder %v1611, 0.0
    %vm2019 = vcmp.ge.f32.partialorder %v1616, 0.0
    %vm2020 = vcmp.ge.f32.partialorder %v1621, 0.0
    %vm2021 = vcmp.ge.f32.partialorder %v1626, 0.0
    %vm2022 = vcmp.ge.f32.partialorder %v1631, 0.0
    %vm2023 = vcmp.ge.f32.partialorder %v1636, 0.0
    %vm2024 = vcmp.ge.f32.partialorder %v1641, 0.0
    %vm2025 = vcmp.ge.f32.partialorder %v1646, 0.0
    %vm2026 = vcmp.ge.f32.partialorder %v1651, 0.0
    %vm2027 = vcmp.ge.f32.partialorder %v1656, 0.0
    %vm2028 = vcmp.ge.f32.partialorder %v1661, 0.0
    %vm2029 = vcmp.ge.f32.partialorder %v1666, 0.0
    %vm2030 = vcmp.ge.f32.partialorder %v1671, 0.0
    %vm2031 = vcmp.ge.f32.partialorder %v1676, 0.0
    %vm2032 = vcmp.ge.f32.partialorder %v1681, 0.0
    %vm2033 = vcmp.ge.f32.partialorder %v1686, 0.0
    %vm2034 = vcmp.ge.f32.partialorder %v1691, 0.0
    %vm2035 = vcmp.ge.f32.partialorder %v1696, 0.0
    %vm2036 = vcmp.ge.f32.partialorder %v1701, 0.0
    %vm2037 = vcmp.ge.f32.partialorder %v1706, 0.0
    %vm2038 = vcmp.ge.f32.partialorder %v1711, 0.0
    %vm2039 = vcmp.ge.f32.partialorder %v1716, 0.0
    %vm2040 = vcmp.ge.f32.partialorder %v1721, 0.0
    %vm2041 = vcmp.ge.f32.partialorder %v1726, 0.0
    %vm2042 = vcmp.ge.f32.partialorder %v1731, 0.0
    %vm2043 = vcmp.ge.f32.partialorder %v1736, 0.0
    %vm2044 = vcmp.ge.f32.partialorder %v1741, 0.0
    %vm2045 = vcmp.ge.f32.partialorder %v1746, 0.0
    %vm2046 = vcmp.ge.f32.partialorder %v1751, 0.0
    %vm2047 = vcmp.ge.f32.partialorder %v1756, 0.0
    %vm2048 = vcmp.ge.f32.partialorder %v1761, 0.0
    %vm2049 = vcmp.ge.f32.partialorder %v1766, 0.0
    %vm2050 = vcmp.ge.f32.partialorder %v1771, 0.0
    %vm2051 = vcmp.ge.f32.partialorder %v1776, 0.0
    %vm2052 = vcmp.ge.f32.partialorder %v1781, 0.0
    %vm2053 = vcmp.ge.f32.partialorder %v1786, 0.0
    %vm2054 = vcmp.ge.f32.partialorder %v1791, 0.0
    %vm2055 = vcmp.ge.f32.partialorder %v1796, 0.0
    %vm2056 = vcmp.ge.f32.partialorder %v1801, 0.0
    %vm2057 = vcmp.ge.f32.partialorder %v1806, 0.0
    %vm2058 = vcmp.ge.f32.partialorder %v1811, 0.0
    %vm2059 = vcmp.ge.f32.partialorder %v1816, 0.0
    %vm2060 = vcmp.ge.f32.partialorder %v1821, 0.0
    %vm2061 = vcmp.ge.f32.partialorder %v1826, 0.0
    %vm2062 = vcmp.ge.f32.partialorder %v1831, 0.0
    %vm2063 = vcmp.ge.f32.partialorder %v1836, 0.0
    %vm2064 = vcmp.ge.f32.partialorder %v1841, 0.0
    %vm2065 = vcmp.ge.f32.partialorder %v1846, 0.0
    %vm2066 = vcmp.ge.f32.partialorder %v1851, 0.0
    %vm2067 = vcmp.ge.f32.partialorder %v1856, 0.0
    %vm2068 = vcmp.ge.f32.partialorder %v1861, 0.0
    %vm2069 = vcmp.ge.f32.partialorder %v1866, 0.0
    %vm2070 = vcmp.ge.f32.partialorder %v1871, 0.0
    %vm2071 = vcmp.ge.f32.partialorder %v1876, 0.0
    %vm2072 = vcmp.ge.f32.partialorder %v1881, 0.0
    %vm2073 = vcmp.ge.f32.partialorder %v1886, 0.0
    %vm2074 = vcmp.ge.f32.partialorder %v1891, 0.0
    %vm2075 = vcmp.ge.f32.partialorder %v1896, 0.0
    %vm2076 = vcmp.ge.f32.partialorder %v1901, 0.0
    %vm2077 = vcmp.ge.f32.partialorder %v1906, 0.0
    %vm2078 = vcmp.ge.f32.partialorder %v1911, 0.0
    %vm2079 = vcmp.ge.f32.partialorder %v1916, 0.0
    %vm2080 = vcmp.ge.f32.partialorder %v1921, 0.0
    %vm2081 = vcmp.ge.f32.partialorder %v1926, 0.0
    %vm2082 = vcmp.ge.f32.partialorder %v1931, 0.0
    %vm2083 = vcmp.ge.f32.partialorder %v1936, 0.0
    %vm2084 = vcmp.ge.f32.partialorder %v1941, 0.0
    %vm2085 = vcmp.ge.f32.partialorder %v1946, 0.0
    %vm2086 = vcmp.ge.f32.partialorder %v1951, 0.0
    %vm2087 = vcmp.ge.f32.partialorder %v1956, 0.0
    %vm2088 = vcmp.ge.f32.partialorder %v1961, 0.0
    %vm2089 = vcmp.ge.f32.partialorder %v1966, 0.0
    %vm2090 = vcmp.ge.f32.partialorder %v1971, 0.0
    %vm2091 = vcmp.ge.f32.partialorder %v1976, 0.0
    %vm2092 = vcmp.ge.f32.partialorder %v1981, 0.0
    %vm2093 = vcmp.ge.f32.partialorder %v1986, 0.0
    %vm2094 = vcmp.ge.f32.partialorder %v1991, 0.0
    %vm2095 = vcmp.ge.f32.partialorder %v1996, 0.0
    %vm2096 = vcmp.ge.f32.partialorder %v2001, 0.0
    %vm2097 = vcmp.ge.f32.partialorder %v2006, 0.0
    %vm2098 = vcmp.ge.f32.partialorder %v2011, 0.0
    %v2099 = vmul.f32 %v1591, 0.2
    %v2100 = vmul.f32 %v1596, 0.2
    %v2101 = vmul.f32 %v1601, 0.2
    %v2102 = vmul.f32 %v1606, 0.2
    %v2103 = vmul.f32 %v1611, 0.2
    %v2104 = vmul.f32 %v1616, 0.2
    %v2105 = vmul.f32 %v1621, 0.2
    %v2106 = vmul.f32 %v1626, 0.2
    %v2107 = vmul.f32 %v1631, 0.2
    %v2108 = vmul.f32 %v1636, 0.2
    %v2109 = vmul.f32 %v1641, 0.2
    %v2110 = vmul.f32 %v1646, 0.2
    %v2111 = vmul.f32 %v1651, 0.2
    %v2112 = vmul.f32 %v1656, 0.2
    %v2113 = vmul.f32 %v1661, 0.2
    %v2114 = vmul.f32 %v1666, 0.2
    %v2115 = vmul.f32 %v1671, 0.2
    %v2116 = vmul.f32 %v1676, 0.2
    %v2117 = vmul.f32 %v1681, 0.2
    %v2118 = vmul.f32 %v1686, 0.2
    %v2119 = vmul.f32 %v1691, 0.2
    %v2120 = vmul.f32 %v1696, 0.2
    %v2121 = vmul.f32 %v1701, 0.2
    %v2122 = vmul.f32 %v1706, 0.2
    %v2123 = vmul.f32 %v1711, 0.2
    %v2124 = vmul.f32 %v1716, 0.2
    %v2125 = vmul.f32 %v1721, 0.2
    %v2126 = vmul.f32 %v1726, 0.2
    %v2127 = vmul.f32 %v1731, 0.2
    %v2128 = vmul.f32 %v1736, 0.2
    %v2129 = vmul.f32 %v1741, 0.2
    %v2130 = vmul.f32 %v1746, 0.2
    %v2131 = vmul.f32 %v1751, 0.2
    %v2132 = vmul.f32 %v1756, 0.2
    %v2133 = vmul.f32 %v1761, 0.2
    %v2134 = vmul.f32 %v1766, 0.2
    %v2135 = vmul.f32 %v1771, 0.2
    %v2136 = vmul.f32 %v1776, 0.2
    %v2137 = vmul.f32 %v1781, 0.2
    %v2138 = vmul.f32 %v1786, 0.2
    %v2139 = vmul.f32 %v1791, 0.2
    %v2140 = vmul.f32 %v1796, 0.2
    %v2141 = vmul.f32 %v1801, 0.2
    %v2142 = vmul.f32 %v1806, 0.2
    %v2143 = vmul.f32 %v1811, 0.2
    %v2144 = vmul.f32 %v1816, 0.2
    %v2145 = vmul.f32 %v1821, 0.2
    %v2146 = vmul.f32 %v1826, 0.2
    %v2147 = vmul.f32 %v1831, 0.2
    %v2148 = vmul.f32 %v1836, 0.2
    %v2149 = vmul.f32 %v1841, 0.2
    %v2150 = vmul.f32 %v1846, 0.2
    %v2151 = vmul.f32 %v1851, 0.2
    %v2152 = vmul.f32 %v1856, 0.2
    %v2153 = vmul.f32 %v1861, 0.2
    %v2154 = vmul.f32 %v1866, 0.2
    %v2155 = vmul.f32 %v1871, 0.2
    %v2156 = vmul.f32 %v1876, 0.2
    %v2157 = vmul.f32 %v1881, 0.2
    %v2158 = vmul.f32 %v1886, 0.2
    %v2159 = vmul.f32 %v1891, 0.2
    %v2160 = vmul.f32 %v1896, 0.2
    %v2161 = vmul.f32 %v1901, 0.2
    %v2162 = vmul.f32 %v1906, 0.2
    %v2163 = vmul.f32 %v1911, 0.2
    %v2164 = vmul.f32 %v1916, 0.2
    %v2165 = vmul.f32 %v1921, 0.2
    %v2166 = vmul.f32 %v1926, 0.2
    %v2167 = vmul.f32 %v1931, 0.2
    %v2168 = vmul.f32 %v1936, 0.2
    %v2169 = vmul.f32 %v1941, 0.2
    %v2170 = vmul.f32 %v1946, 0.2
    %v2171 = vmul.f32 %v1951, 0.2
    %v2172 = vmul.f32 %v1956, 0.2
    %v2173 = vmul.f32 %v1961, 0.2
    %v2174 = vmul.f32 %v1966, 0.2
    %v2175 = vmul.f32 %v1971, 0.2
    %v2176 = vmul.f32 %v1976, 0.2
    %v2177 = vmul.f32 %v1981, 0.2
    %v2178 = vmul.f32 %v1986, 0.2
    %v2179 = vmul.f32 %v1991, 0.2
    %v2180 = vmul.f32 %v1996, 0.2
    %v2181 = vmul.f32 %v2001, 0.2
    %v2182 = vmul.f32 %v2006, 0.2
    %v2183 = vmul.f32 %v2011, 0.2
    %v2184 = vsel %vm2014, %v1591, %v2099
    %v2185 = vsel %vm2015, %v1596, %v2100
    %v2186 = vsel %vm2016, %v1601, %v2101
    %v2187 = vsel %vm2017, %v1606, %v2102
    %v2188 = vsel %vm2018, %v1611, %v2103
    %v2189 = vsel %vm2019, %v1616, %v2104
    %v2190 = vsel %vm2020, %v1621, %v2105
    %v2191 = vsel %vm2021, %v1626, %v2106
    %v2192 = vsel %vm2022, %v1631, %v2107
    %v2193 = vsel %vm2023, %v1636, %v2108
    %v2194 = vsel %vm2024, %v1641, %v2109
    %v2195 = vsel %vm2025, %v1646, %v2110
    %v2196 = vsel %vm2026, %v1651, %v2111
    %v2197 = vsel %vm2027, %v1656, %v2112
    %v2198 = vsel %vm2028, %v1661, %v2113
    %v2199 = vsel %vm2029, %v1666, %v2114
    %v2200 = vsel %vm2030, %v1671, %v2115
    %v2201 = vsel %vm2031, %v1676, %v2116
    %v2202 = vsel %vm2032, %v1681, %v2117
    %v2203 = vsel %vm2033, %v1686, %v2118
    %v2204 = vsel %vm2034, %v1691, %v2119
    %v2205 = vsel %vm2035, %v1696, %v2120
    %v2206 = vsel %vm2036, %v1701, %v2121
    %v2207 = vsel %vm2037, %v1706, %v2122
    %v2208 = vsel %vm2038, %v1711, %v2123
    %v2209 = vsel %vm2039, %v1716, %v2124
    %v2210 = vsel %vm2040, %v1721, %v2125
    %v2211 = vsel %vm2041, %v1726, %v2126
    %v2212 = vsel %vm2042, %v1731, %v2127
    %v2213 = vsel %vm2043, %v1736, %v2128
    %v2214 = vsel %vm2044, %v1741, %v2129
    %v2215 = vsel %vm2045, %v1746, %v2130
    %v2216 = vsel %vm2046, %v1751, %v2131
    %v2217 = vsel %vm2047, %v1756, %v2132
    %v2218 = vsel %vm2048, %v1761, %v2133
    %v2219 = vsel %vm2049, %v1766, %v2134
    %v2220 = vsel %vm2050, %v1771, %v2135
    %v2221 = vsel %vm2051, %v1776, %v2136
    %v2222 = vsel %vm2052, %v1781, %v2137
    %v2223 = vsel %vm2053, %v1786, %v2138
    %v2224 = vsel %vm2054, %v1791, %v2139
    %v2225 = vsel %vm2055, %v1796, %v2140
    %v2226 = vsel %vm2056, %v1801, %v2141
    %v2227 = vsel %vm2057, %v1806, %v2142
    %v2228 = vsel %vm2058, %v1811, %v2143
    %v2229 = vsel %vm2059, %v1816, %v2144
    %v2230 = vsel %vm2060, %v1821, %v2145
    %v2231 = vsel %vm2061, %v1826, %v2146
    %v2232 = vsel %vm2062, %v1831, %v2147
    %v2233 = vsel %vm2063, %v1836, %v2148
    %v2234 = vsel %vm2064, %v1841, %v2149
    %v2235 = vsel %vm2065, %v1846, %v2150
    %v2236 = vsel %vm2066, %v1851, %v2151
    %v2237 = vsel %vm2067, %v1856, %v2152
    %v2238 = vsel %vm2068, %v1861, %v2153
    %v2239 = vsel %vm2069, %v1866, %v2154
    %v2240 = vsel %vm2070, %v1871, %v2155
    %v2241 = vsel %vm2071, %v1876, %v2156
    %v2242 = vsel %vm2072, %v1881, %v2157
    %v2243 = vsel %vm2073, %v1886, %v2158
    %v2244 = vsel %vm2074, %v1891, %v2159
    %v2245 = vsel %vm2075, %v1896, %v2160
    %v2246 = vsel %vm2076, %v1901, %v2161
    %v2247 = vsel %vm2077, %v1906, %v2162
    %v2248 = vsel %vm2078, %v1911, %v2163
    %v2249 = vsel %vm2079, %v1916, %v2164
    %v2250 = vsel %vm2080, %v1921, %v2165
    %v2251 = vsel %vm2081, %v1926, %v2166
    %v2252 = vsel %vm2082, %v1931, %v2167
    %v2253 = vsel %vm2083, %v1936, %v2168
    %v2254 = vsel %vm2084, %v1941, %v2169
    %v2255 = vsel %vm2085, %v1946, %v2170
    %v2256 = vsel %vm2086, %v1951, %v2171
    %v2257 = vsel %vm2087, %v1956, %v2172
    %v2258 = vsel %vm2088, %v1961, %v2173
    %v2259 = vsel %vm2089, %v1966, %v2174
    %v2260 = vsel %vm2090, %v1971, %v2175
    %v2261 = vsel %vm2091, %v1976, %v2176
    %v2262 = vsel %vm2092, %v1981, %v2177
    %v2263 = vsel %vm2093, %v1986, %v2178
    %v2264 = vsel %vm2094, %v1991, %v2179
    %v2265 = vsel %vm2095, %v1996, %v2180
    %v2266 = vsel %vm2096, %v2001, %v2181
    %v2267 = vsel %vm2097, %v2006, %v2182
    %v2268 = vsel %vm2098, %v2011, %v2183
    %vm2312 = vcmask 1045504
    %v2313 = vrot.slane %v2184, 2
    %v2314 = vrot.slane %v2185, 2
    %v2315 = vsel %vm2312, %v2313, %v2314
    %v2316 = vrot.slane %v2186, 2
    %v2317 = vsel %vm2312, %v2314, %v2316
    %v2318 = vrot.slane %v2187, 2
    %v2319 = vsel %vm2312, %v2316, %v2318
    %v2320 = vrot.slane %v2188, 2
    %v2321 = vsel %vm2312, %v2318, %v2320
    %v2322 = vrot.slane %v2189, 2
    %v2323 = vsel %vm2312, %v2320, %v2322
    %v2324 = vrot.slane %v2190, 2
    %v2325 = vsel %vm2312, %v2322, %v2324
    %v2326 = vrot.slane %v2191, 2
    %v2327 = vsel %vm2312, %v2324, %v2326
    %v2328 = vrot.slane %v2192, 2
    %v2329 = vsel %vm2312, %v2326, %v2328
    %v2330 = vrot.slane %v2193, 2
    %v2331 = vsel %vm2312, %v2328, %v2330
    %v2332 = vrot.slane %v2194, 2
    %v2333 = vsel %vm2312, %v2330, %v2332
    %v2334 = vrot.slane %v2195, 2
    %v2335 = vsel %vm2312, %v2332, %v2334
    %v2336 = vrot.slane %v2196, 2
    %v2337 = vsel %vm2312, %v2334, %v2336
    %v2338 = vrot.slane %v2197, 2
    %v2339 = vsel %vm2312, %v2336, %v2338
    %v2340 = vrot.slane %v2198, 2
    %v2341 = vsel %vm2312, %v2338, %v2340
    %v2342 = vrot.slane %v2199, 2
    %v2343 = vsel %vm2312, %v2340, %v2342
    %v2344 = vrot.slane %v2200, 2
    %v2345 = vsel %vm2312, %v2342, %v2344
    %v2346 = vrot.slane %v2201, 2
    %v2347 = vsel %vm2312, %v2344, %v2346
    %v2348 = vrot.slane %v2202, 2
    %v2349 = vsel %vm2312, %v2346, %v2348
    %v2350 = vrot.slane %v2203, 2
    %v2351 = vsel %vm2312, %v2348, %v2350
    %v2352 = vrot.slane %v2204, 2
    %v2353 = vsel %vm2312, %v2350, %v2352
    %v2354 = vrot.slane %v2205, 2
    %v2355 = vsel %vm2312, %v2352, %v2354
    %v2356 = vrot.slane %v2206, 2
    %v2357 = vsel %vm2312, %v2354, %v2356
    %v2358 = vrot.slane %v2207, 2
    %v2359 = vsel %vm2312, %v2356, %v2358
    %v2360 = vrot.slane %v2208, 2
    %v2361 = vsel %vm2312, %v2358, %v2360
    %v2362 = vrot.slane %v2209, 2
    %v2363 = vsel %vm2312, %v2360, %v2362
    %v2364 = vrot.slane %v2210, 2
    %v2365 = vsel %vm2312, %v2362, %v2364
    %v2366 = vrot.slane %v2211, 2
    %v2367 = vsel %vm2312, %v2364, %v2366
    %v2368 = vrot.slane %v2212, 2
    %v2369 = vsel %vm2312, %v2366, %v2368
    %v2370 = vrot.slane %v2213, 2
    %v2371 = vsel %vm2312, %v2368, %v2370
    %v2372 = vrot.slane %v2214, 2
    %v2373 = vsel %vm2312, %v2370, %v2372
    %v2374 = vrot.slane %v2215, 2
    %v2375 = vsel %vm2312, %v2372, %v2374
    %v2376 = vrot.slane %v2216, 2
    %v2377 = vsel %vm2312, %v2374, %v2376
    %v2378 = vrot.slane %v2217, 2
    %v2379 = vsel %vm2312, %v2376, %v2378
    %v2380 = vrot.slane %v2218, 2
    %v2381 = vsel %vm2312, %v2378, %v2380
    %v2382 = vrot.slane %v2219, 2
    %v2383 = vsel %vm2312, %v2380, %v2382
    %v2384 = vrot.slane %v2220, 2
    %v2385 = vsel %vm2312, %v2382, %v2384
    %v2386 = vrot.slane %v2221, 2
    %v2387 = vsel %vm2312, %v2384, %v2386
    %v2388 = vrot.slane %v2222, 2
    %v2389 = vsel %vm2312, %v2386, %v2388
    %v2390 = vrot.slane %v2223, 2
    %v2391 = vsel %vm2312, %v2388, %v2390
    %v2392 = vrot.slane %v2224, 2
    %v2393 = vsel %vm2312, %v2390, %v2392
    %v2394 = vrot.slane %v2225, 2
    %v2395 = vsel %vm2312, %v2392, %v2394
    %v2396 = vrot.slane %v2226, 2
    %v2397 = vsel %vm2312, %v2394, %v2396
    %v2442 = vsel %vm2312, %v378, %v2313
    %vm2443 = vcmask 1041408
    %v2444 = vsel %vm2443, %v2396, 0.0
    %v2451 = vrot.slane %v378, 6
    %v2452 = vrot.slane %v379, 6
    %v2453 = vsel %vm2443, %v2451, %v2452
    %v2454 = vrot.slane %v380, 6
    %v2455 = vsel %vm2443, %v2452, %v2454
    %v2456 = vrot.slane %v381, 6
    %v2457 = vsel %vm2443, %v2454, %v2456
    %v2458 = vrot.slane %v382, 6
    %v2459 = vsel %vm2443, %v2456, %v2458
    %v2460 = vrot.slane %v383, 6
    %v2461 = vsel %vm2443, %v2458, %v2460
    %v2505 = vrot.slane %v2226, 6
    %v2506 = vrot.slane %v2227, 6
    %v2507 = vsel %vm2443, %v2505, %v2506
    %v2508 = vrot.slane %v2228, 6
    %v2509 = vsel %vm2443, %v2506, %v2508
    %v2510 = vrot.slane %v2229, 6
    %v2511 = vsel %vm2443, %v2508, %v2510
    %v2512 = vrot.slane %v2230, 6
    %v2513 = vsel %vm2443, %v2510, %v2512
    %v2514 = vrot.slane %v2231, 6
    %v2515 = vsel %vm2443, %v2512, %v2514
    %v2516 = vrot.slane %v2232, 6
    %v2517 = vsel %vm2443, %v2514, %v2516
    %v2518 = vrot.slane %v2233, 6
    %v2519 = vsel %vm2443, %v2516, %v2518
    %v2520 = vrot.slane %v2234, 6
    %v2521 = vsel %vm2443, %v2518, %v2520
    %v2522 = vrot.slane %v2235, 6
    %v2523 = vsel %vm2443, %v2520, %v2522
    %v2524 = vrot.slane %v2236, 6
    %v2525 = vsel %vm2443, %v2522, %v2524
    %v2526 = vrot.slane %v2237, 6
    %v2527 = vsel %vm2443, %v2524, %v2526
    %v2528 = vrot.slane %v2238, 6
    %v2529 = vsel %vm2443, %v2526, %v2528
    %v2530 = vrot.slane %v2239, 6
    %v2531 = vsel %vm2443, %v2528, %v2530
    %v2532 = vrot.slane %v2240, 6
    %v2533 = vsel %vm2443, %v2530, %v2532
    %v2534 = vrot.slane %v2241, 6
    %v2535 = vsel %vm2443, %v2532, %v2534
    %v2536 = vrot.slane %v2242, 6
    %v2537 = vsel %vm2443, %v2534, %v2536
    %v2538 = vrot.slane %v2243, 6
    %v2539 = vsel %vm2443, %v2536, %v2538
    %v2540 = vrot.slane %v2244, 6
    %v2541 = vsel %vm2443, %v2538, %v2540
    %v2542 = vrot.slane %v2245, 6
    %v2543 = vsel %vm2443, %v2540, %v2542
    %v2544 = vrot.slane %v2246, 6
    %v2545 = vsel %vm2443, %v2542, %v2544
    %v2546 = vrot.slane %v2247, 6
    %v2547 = vsel %vm2443, %v2544, %v2546
    %v2548 = vrot.slane %v2248, 6
    %v2549 = vsel %vm2443, %v2546, %v2548
    %v2550 = vrot.slane %v2249, 6
    %v2551 = vsel %vm2443, %v2548, %v2550
    %v2552 = vrot.slane %v2250, 6
    %v2553 = vsel %vm2443, %v2550, %v2552
    %v2554 = vrot.slane %v2251, 6
    %v2555 = vsel %vm2443, %v2552, %v2554
    %v2556 = vrot.slane %v2252, 6
    %v2557 = vsel %vm2443, %v2554, %v2556
    %v2558 = vrot.slane %v2253, 6
    %v2559 = vsel %vm2443, %v2556, %v2558
    %v2560 = vrot.slane %v2254, 6
    %v2561 = vsel %vm2443, %v2558, %v2560
    %v2562 = vrot.slane %v2255, 6
    %v2563 = vsel %vm2443, %v2560, %v2562
    %v2564 = vrot.slane %v2256, 6
    %v2565 = vsel %vm2443, %v2562, %v2564
    %v2566 = vrot.slane %v2257, 6
    %v2567 = vsel %vm2443, %v2564, %v2566
    %v2568 = vrot.slane %v2258, 6
    %v2569 = vsel %vm2443, %v2566, %v2568
    %v2570 = vrot.slane %v2259, 6
    %v2571 = vsel %vm2443, %v2568, %v2570
    %v2572 = vrot.slane %v2260, 6
    %v2573 = vsel %vm2443, %v2570, %v2572
    %v2574 = vrot.slane %v2261, 6
    %v2575 = vsel %vm2443, %v2572, %v2574
    %v2576 = vrot.slane %v2262, 6
    %v2577 = vsel %vm2443, %v2574, %v2576
    %v2578 = vrot.slane %v2263, 6
    %v2579 = vsel %vm2443, %v2576, %v2578
    %v2580 = vrot.slane %v2264, 6
    %v2581 = vsel %vm2443, %v2578, %v2580
    %v2582 = vrot.slane %v2265, 6
    %v2583 = vsel %vm2443, %v2580, %v2582
    %v2584 = vrot.slane %v2266, 6
    %v2585 = vsel %vm2443, %v2582, %v2584
    %v2586 = vrot.slane %v2267, 6
    %v2587 = vsel %vm2443, %v2584, %v2586
    %v2588 = vrot.slane %v2268, 6
    %v2589 = vsel %vm2443, %v2586, %v2588
    %v2592 = vsel %vm2312, %v2461, %v2505
    %v2593 = vsel %vm2443, %v2588, 0.0
    %2596 = vrot.lane.b32.xlu0 %v2453, 8
    %v2597 = vpop.permute.xlu0 %2596
    %2598 = vrot.lane.b32.xlu0 %v2455, 8
    %v2599 = vpop.permute.xlu0 %2598
    %2600 = vrot.lane.b32.xlu0 %v2457, 8
    %v2601 = vpop.permute.xlu0 %2600
    %2602 = vrot.lane.b32.xlu0 %v2459, 8
    %v2603 = vpop.permute.xlu0 %2602
    %2604 = vrot.lane.b32.xlu0 %v2592, 8
    %v2605 = vpop.permute.xlu0 %2604
    %2606 = vrot.lane.b32.xlu0 %v2507, 8
    %v2607 = vpop.permute.xlu0 %2606
    %2608 = vrot.lane.b32.xlu0 %v2509, 8
    %v2609 = vpop.permute.xlu0 %2608
    %2610 = vrot.lane.b32.xlu0 %v2511, 8
    %v2611 = vpop.permute.xlu0 %2610
    %2612 = vrot.lane.b32.xlu0 %v2513, 8
    %v2613 = vpop.permute.xlu0 %2612
    %2614 = vrot.lane.b32.xlu0 %v2515, 8
    %v2615 = vpop.permute.xlu0 %2614
    %2616 = vrot.lane.b32.xlu0 %v2517, 8
    %v2617 = vpop.permute.xlu0 %2616
    %2618 = vrot.lane.b32.xlu0 %v2519, 8
    %v2619 = vpop.permute.xlu0 %2618
    %2620 = vrot.lane.b32.xlu0 %v2521, 8
    %v2621 = vpop.permute.xlu0 %2620
    %2622 = vrot.lane.b32.xlu0 %v2523, 8
    %v2623 = vpop.permute.xlu0 %2622
    %2624 = vrot.lane.b32.xlu0 %v2525, 8
    %v2625 = vpop.permute.xlu0 %2624
    %2626 = vrot.lane.b32.xlu0 %v2527, 8
    %v2627 = vpop.permute.xlu0 %2626
    %2628 = vrot.lane.b32.xlu0 %v2529, 8
    %v2629 = vpop.permute.xlu0 %2628
    %2630 = vrot.lane.b32.xlu0 %v2531, 8
    %v2631 = vpop.permute.xlu0 %2630
    %2632 = vrot.lane.b32.xlu0 %v2533, 8
    %v2633 = vpop.permute.xlu0 %2632
    %2634 = vrot.lane.b32.xlu0 %v2535, 8
    %v2635 = vpop.permute.xlu0 %2634
    %2636 = vrot.lane.b32.xlu0 %v2537, 8
    %v2637 = vpop.permute.xlu0 %2636
    %2638 = vrot.lane.b32.xlu0 %v2539, 8
    %v2639 = vpop.permute.xlu0 %2638
    %2640 = vrot.lane.b32.xlu0 %v2541, 8
    %v2641 = vpop.permute.xlu0 %2640
    %2642 = vrot.lane.b32.xlu0 %v2543, 8
    %v2643 = vpop.permute.xlu0 %2642
    %2644 = vrot.lane.b32.xlu0 %v2545, 8
    %v2645 = vpop.permute.xlu0 %2644
    %2646 = vrot.lane.b32.xlu0 %v2547, 8
    %v2647 = vpop.permute.xlu0 %2646
    %2648 = vrot.lane.b32.xlu0 %v2549, 8
    %v2649 = vpop.permute.xlu0 %2648
    %2650 = vrot.lane.b32.xlu0 %v2551, 8
    %v2651 = vpop.permute.xlu0 %2650
    %2652 = vrot.lane.b32.xlu0 %v2553, 8
    %v2653 = vpop.permute.xlu0 %2652
    %2654 = vrot.lane.b32.xlu0 %v2555, 8
    %v2655 = vpop.permute.xlu0 %2654
    %2656 = vrot.lane.b32.xlu0 %v2557, 8
    %v2657 = vpop.permute.xlu0 %2656
    %2658 = vrot.lane.b32.xlu0 %v2559, 8
    %v2659 = vpop.permute.xlu0 %2658
    %2660 = vrot.lane.b32.xlu0 %v2561, 8
    %v2661 = vpop.permute.xlu0 %2660
    %2662 = vrot.lane.b32.xlu0 %v2563, 8
    %v2663 = vpop.permute.xlu0 %2662
    %2664 = vrot.lane.b32.xlu0 %v2565, 8
    %v2665 = vpop.permute.xlu0 %2664
    %2666 = vrot.lane.b32.xlu0 %v2567, 8
    %v2667 = vpop.permute.xlu0 %2666
    %2668 = vrot.lane.b32.xlu0 %v2569, 8
    %v2669 = vpop.permute.xlu0 %2668
    %2670 = vrot.lane.b32.xlu0 %v2571, 8
    %v2671 = vpop.permute.xlu0 %2670
    %2672 = vrot.lane.b32.xlu0 %v2573, 8
    %v2673 = vpop.permute.xlu0 %2672
    %2674 = vrot.lane.b32.xlu0 %v2575, 8
    %v2675 = vpop.permute.xlu0 %2674
    %2676 = vrot.lane.b32.xlu0 %v2577, 8
    %v2677 = vpop.permute.xlu0 %2676
    %2678 = vrot.lane.b32.xlu0 %v2579, 8
    %v2679 = vpop.permute.xlu0 %2678
    %2680 = vrot.lane.b32.xlu0 %v2581, 8
    %v2681 = vpop.permute.xlu0 %2680
    %2682 = vrot.lane.b32.xlu0 %v2583, 8
    %v2683 = vpop.permute.xlu0 %2682
    %2684 = vrot.lane.b32.xlu0 %v2585, 8
    %v2685 = vpop.permute.xlu0 %2684
    %2686 = vrot.lane.b32.xlu0 %v2587, 8
    %v2687 = vpop.permute.xlu0 %2686
    %2688 = vrot.lane.b32.xlu0 %v2589, 8
    %v2689 = vpop.permute.xlu0 %2688
    %2690 = vrot.lane.b32.xlu0 %v2593, 8
    %v2691 = vpop.permute.xlu0 %2690
    %vm2740 = vcmask 64512
    %v2741 = vsel %vm2740, %v374, %v2597
    %v2742 = vsel %vm2740, %v375, %v2599
    %v2743 = vsel %vm2740, %v376, %v2601
    %v2744 = vsel %vm2740, %v377, %v2603
    %v2745 = vsel %vm2740, %v2442, %v2605
    %v2746 = vsel %vm2740, %v2315, %v2607
    %v2747 = vsel %vm2740, %v2317, %v2609
    %v2748 = vsel %vm2740, %v2319, %v2611
    %v2749 = vsel %vm2740, %v2321, %v2613
    %v2750 = vsel %vm2740, %v2323, %v2615
    %v2751 = vsel %vm2740, %v2325, %v2617
    %v2752 = vsel %vm2740, %v2327, %v2619
    %v2753 = vsel %vm2740, %v2329, %v2621
    %v2754 = vsel %vm2740, %v2331, %v2623
    %v2755 = vsel %vm2740, %v2333, %v2625
    %v2756 = vsel %vm2740, %v2335, %v2627
    %v2757 = vsel %vm2740, %v2337, %v2629
    %v2758 = vsel %vm2740, %v2339, %v2631
    %v2759 = vsel %vm2740, %v2341, %v2633
    %v2760 = vsel %vm2740, %v2343, %v2635
    %v2761 = vsel %vm2740, %v2345, %v2637
    %v2762 = vsel %vm2740, %v2347, %v2639
    %v2763 = vsel %vm2740, %v2349, %v2641
    %v2764 = vsel %vm2740, %v2351, %v2643
    %v2765 = vsel %vm2740, %v2353, %v2645
    %v2766 = vsel %vm2740, %v2355, %v2647
    %v2767 = vsel %vm2740, %v2357, %v2649
    %v2768 = vsel %vm2740, %v2359, %v2651
    %v2769 = vsel %vm2740, %v2361, %v2653
    %v2770 = vsel %vm2740, %v2363, %v2655
    %v2771 = vsel %vm2740, %v2365, %v2657
    %v2772 = vsel %vm2740, %v2367, %v2659
    %v2773 = vsel %vm2740, %v2369, %v2661
    %v2774 = vsel %vm2740, %v2371, %v2663
    %v2775 = vsel %vm2740, %v2373, %v2665
    %v2776 = vsel %vm2740, %v2375, %v2667
    %v2777 = vsel %vm2740, %v2377, %v2669
    %v2778 = vsel %vm2740, %v2379, %v2671
    %v2779 = vsel %vm2740, %v2381, %v2673
    %v2780 = vsel %vm2740, %v2383, %v2675
    %v2781 = vsel %vm2740, %v2385, %v2677
    %v2782 = vsel %vm2740, %v2387, %v2679
    %v2783 = vsel %vm2740, %v2389, %v2681
    %v2784 = vsel %vm2740, %v2391, %v2683
    %v2785 = vsel %vm2740, %v2393, %v2685
    %v2786 = vsel %vm2740, %v2395, %v2687
    %v2787 = vsel %vm2740, %v2397, %v2689
    %v2788 = vsel %vm2740, %v2444, %v2691
    %v2789 = vlaneseq
    %v2790 = vshrl.u32 %v2789, 7
    %v2791 = vadd.s32 %v2790, 8
    %v2792 = vadd.s32 %v2790, 16
    %v2793 = vadd.s32 %v2790, 24
    %v2794 = vadd.s32 %v2790, 32
    %v2795 = vadd.s32 %v2790, 40
    %v2796 = vadd.s32 %v2790, 48
    %v2797 = vadd.s32 %v2790, 56
    %v2798 = vadd.s32 %v2790, 64
    %v2799 = vadd.s32 %v2790, 72
    %v2800 = vadd.s32 %v2790, 80
    %v2801 = vadd.s32 %v2790, 88
    %v2802 = vadd.s32 %v2790, 96
    %v2803 = vadd.s32 %v2790, 104
    %v2804 = vadd.s32 %v2790, 112
    %v2805 = vadd.s32 %v2790, 120
    %v2806 = vadd.s32 %v2790, 128
    %v2807 = vadd.s32 %v2790, 136
    %v2808 = vadd.s32 %v2790, 144
    %v2809 = vadd.s32 %v2790, 152
    %v2810 = vadd.s32 %v2790, 160
    %v2811 = vadd.s32 %v2790, 168
    %v2812 = vadd.s32 %v2790, 176
    %v2813 = vadd.s32 %v2790, 184
    %v2814 = vadd.s32 %v2790, 192
    %v2815 = vadd.s32 %v2790, 200
    %v2816 = vadd.s32 %v2790, 208
    %v2817 = vadd.s32 %v2790, 216
    %v2818 = vadd.s32 %v2790, 224
    %v2819 = vadd.s32 %v2790, 232
    %v2820 = vadd.s32 %v2790, 240
    %v2821 = vadd.s32 %v2790, 248
    %v2822 = vadd.s32 %v2790, 256
    %v2823 = vadd.s32 %v2790, 264
    %v2824 = vadd.s32 %v2790, 272
    %v2825 = vadd.s32 %v2790, 280
    %v2826 = vadd.s32 %v2790, 288
    %v2827 = vadd.s32 %v2790, 296
    %v2828 = vadd.s32 %v2790, 304
    %v2829 = vadd.s32 %v2790, 312
    %v2830 = vadd.s32 %v2790, 320
    %v2831 = vadd.s32 %v2790, 328
    %v2832 = vadd.s32 %v2790, 336
    %v2833 = vadd.s32 %v2790, 344
    %v2834 = vadd.s32 %v2790, 352
    %v2835 = vadd.s32 %v2790, 360
    %v2836 = vadd.s32 %v2790, 368
    %v2837 = vadd.s32 %v2790, 376
    %vm2838 = vcmp.lt.s32.totalorder %v2790, 378
    %vm2839 = vcmp.lt.s32.totalorder %v2791, 378
    %vm2840 = vcmp.lt.s32.totalorder %v2792, 378
    %vm2841 = vcmp.lt.s32.totalorder %v2793, 378
    %vm2842 = vcmp.lt.s32.totalorder %v2794, 378
    %vm2843 = vcmp.lt.s32.totalorder %v2795, 378
    %vm2844 = vcmp.lt.s32.totalorder %v2796, 378
    %vm2845 = vcmp.lt.s32.totalorder %v2797, 378
    %vm2846 = vcmp.lt.s32.totalorder %v2798, 378
    %vm2847 = vcmp.lt.s32.totalorder %v2799, 378
    %vm2848 = vcmp.lt.s32.totalorder %v2800, 378
    %vm2849 = vcmp.lt.s32.totalorder %v2801, 378
    %vm2850 = vcmp.lt.s32.totalorder %v2802, 378
    %vm2851 = vcmp.lt.s32.totalorder %v2803, 378
    %vm2852 = vcmp.lt.s32.totalorder %v2804, 378
    %vm2853 = vcmp.lt.s32.totalorder %v2805, 378
    %vm2854 = vcmp.lt.s32.totalorder %v2806, 378
    %vm2855 = vcmp.lt.s32.totalorder %v2807, 378
    %vm2856 = vcmp.lt.s32.totalorder %v2808, 378
    %vm2857 = vcmp.lt.s32.totalorder %v2809, 378
    %vm2858 = vcmp.lt.s32.totalorder %v2810, 378
    %vm2859 = vcmp.lt.s32.totalorder %v2811, 378
    %vm2860 = vcmp.lt.s32.totalorder %v2812, 378
    %vm2861 = vcmp.lt.s32.totalorder %v2813, 378
    %vm2862 = vcmp.lt.s32.totalorder %v2814, 378
    %vm2863 = vcmp.lt.s32.totalorder %v2815, 378
    %vm2864 = vcmp.lt.s32.totalorder %v2816, 378
    %vm2865 = vcmp.lt.s32.totalorder %v2817, 378
    %vm2866 = vcmp.lt.s32.totalorder %v2818, 378
    %vm2867 = vcmp.lt.s32.totalorder %v2819, 378
    %vm2868 = vcmp.lt.s32.totalorder %v2820, 378
    %vm2869 = vcmp.lt.s32.totalorder %v2821, 378
    %vm2870 = vcmp.lt.s32.totalorder %v2822, 378
    %vm2871 = vcmp.lt.s32.totalorder %v2823, 378
    %vm2872 = vcmp.lt.s32.totalorder %v2824, 378
    %vm2873 = vcmp.lt.s32.totalorder %v2825, 378
    %vm2874 = vcmp.lt.s32.totalorder %v2826, 378
    %vm2875 = vcmp.lt.s32.totalorder %v2827, 378
    %vm2876 = vcmp.lt.s32.totalorder %v2828, 378
    %vm2877 = vcmp.lt.s32.totalorder %v2829, 378
    %vm2878 = vcmp.lt.s32.totalorder %v2830, 378
    %vm2879 = vcmp.lt.s32.totalorder %v2831, 378
    %vm2880 = vcmp.lt.s32.totalorder %v2832, 378
    %vm2881 = vcmp.lt.s32.totalorder %v2833, 378
    %vm2882 = vcmp.lt.s32.totalorder %v2834, 378
    %vm2883 = vcmp.lt.s32.totalorder %v2835, 378
    %vm2884 = vcmp.lt.s32.totalorder %v2836, 378
    %vm2885 = vcmp.lt.s32.totalorder %v2837, 378
    %v2886 = vrot.slane %v2741, 7
    %v2887 = vrot.slane %v2742, 7
    %v2888 = vrot.slane %v2743, 7
    %v2889 = vrot.slane %v2744, 7
    %v2890 = vrot.slane %v2745, 7
    %v2891 = vrot.slane %v2746, 7
    %v2892 = vrot.slane %v2747, 7
    %v2893 = vrot.slane %v2748, 7
    %v2894 = vrot.slane %v2749, 7
    %v2895 = vrot.slane %v2750, 7
    %v2896 = vrot.slane %v2751, 7
    %v2897 = vrot.slane %v2752, 7
    %v2898 = vrot.slane %v2753, 7
    %v2899 = vrot.slane %v2754, 7
    %v2900 = vrot.slane %v2755, 7
    %v2901 = vrot.slane %v2756, 7
    %v2902 = vrot.slane %v2757, 7
    %v2903 = vrot.slane %v2758, 7
    %v2904 = vrot.slane %v2759, 7
    %v2905 = vrot.slane %v2760, 7
    %v2906 = vrot.slane %v2761, 7
    %v2907 = vrot.slane %v2762, 7
    %v2908 = vrot.slane %v2763, 7
    %v2909 = vrot.slane %v2764, 7
    %v2910 = vrot.slane %v2765, 7
    %v2911 = vrot.slane %v2766, 7
    %v2912 = vrot.slane %v2767, 7
    %v2913 = vrot.slane %v2768, 7
    %v2914 = vrot.slane %v2769, 7
    %v2915 = vrot.slane %v2770, 7
    %v2916 = vrot.slane %v2771, 7
    %v2917 = vrot.slane %v2772, 7
    %v2918 = vrot.slane %v2773, 7
    %v2919 = vrot.slane %v2774, 7
    %v2920 = vrot.slane %v2775, 7
    %v2921 = vrot.slane %v2776, 7
    %v2922 = vrot.slane %v2777, 7
    %v2923 = vrot.slane %v2778, 7
    %v2924 = vrot.slane %v2779, 7
    %v2925 = vrot.slane %v2780, 7
    %v2926 = vrot.slane %v2781, 7
    %v2927 = vrot.slane %v2782, 7
    %v2928 = vrot.slane %v2783, 7
    %v2929 = vrot.slane %v2784, 7
    %v2930 = vrot.slane %v2785, 7
    %v2931 = vrot.slane %v2786, 7
    %v2932 = vrot.slane %v2787, 7
    %v2933 = vrot.slane %v2788, 7
    %vm2934 = vcmp.lt.s32.totalorder %v2790, 1
    %v2935 = vsel %vm2934, %v2932, %v2933
    %v2936 = vsel %vm2934, %v2931, %v2932
    %v2937 = vsel %vm2934, %v2930, %v2931
    %v2938 = vsel %vm2934, %v2929, %v2930
    %v2939 = vsel %vm2934, %v2928, %v2929
    %v2940 = vsel %vm2934, %v2927, %v2928
    %v2941 = vsel %vm2934, %v2926, %v2927
    %v2942 = vsel %vm2934, %v2925, %v2926
    %v2943 = vsel %vm2934, %v2924, %v2925
    %v2944 = vsel %vm2934, %v2923, %v2924
    %v2945 = vsel %vm2934, %v2922, %v2923
    %v2946 = vsel %vm2934, %v2921, %v2922
    %v2947 = vsel %vm2934, %v2920, %v2921
    %v2948 = vsel %vm2934, %v2919, %v2920
    %v2949 = vsel %vm2934, %v2918, %v2919
    %v2950 = vsel %vm2934, %v2917, %v2918
    %v2951 = vsel %vm2934, %v2916, %v2917
    %v2952 = vsel %vm2934, %v2915, %v2916
    %v2953 = vsel %vm2934, %v2914, %v2915
    %v2954 = vsel %vm2934, %v2913, %v2914
    %v2955 = vsel %vm2934, %v2912, %v2913
    %v2956 = vsel %vm2934, %v2911, %v2912
    %v2957 = vsel %vm2934, %v2910, %v2911
    %v2958 = vsel %vm2934, %v2909, %v2910
    %v2959 = vsel %vm2934, %v2908, %v2909
    %v2960 = vsel %vm2934, %v2907, %v2908
    %v2961 = vsel %vm2934, %v2906, %v2907
    %v2962 = vsel %vm2934, %v2905, %v2906
    %v2963 = vsel %vm2934, %v2904, %v2905
    %v2964 = vsel %vm2934, %v2903, %v2904
    %v2965 = vsel %vm2934, %v2902, %v2903
    %v2966 = vsel %vm2934, %v2901, %v2902
    %v2967 = vsel %vm2934, %v2900, %v2901
    %v2968 = vsel %vm2934, %v2899, %v2900
    %v2969 = vsel %vm2934, %v2898, %v2899
    %v2970 = vsel %vm2934, %v2897, %v2898
    %v2971 = vsel %vm2934, %v2896, %v2897
    %v2972 = vsel %vm2934, %v2895, %v2896
    %v2973 = vsel %vm2934, %v2894, %v2895
    %v2974 = vsel %vm2934, %v2893, %v2894
    %v2975 = vsel %vm2934, %v2892, %v2893
    %v2976 = vsel %vm2934, %v2891, %v2892
    %v2977 = vsel %vm2934, %v2890, %v2891
    %v2978 = vsel %vm2934, %v2889, %v2890
    %v2979 = vsel %vm2934, %v2888, %v2889
    %v2980 = vsel %vm2934, %v2887, %v2888
    %v2981 = vsel %vm2934, %v2886, %v2887
    %v2982 = vsel %vm2934, %v2933, %v2886
    %v2983 = vrot.slane %v2741, 1
    %v2984 = vrot.slane %v2742, 1
    %v2985 = vrot.slane %v2743, 1
    %v2986 = vrot.slane %v2744, 1
    %v2987 = vrot.slane %v2745, 1
    %v2988 = vrot.slane %v2746, 1
    %v2989 = vrot.slane %v2747, 1
    %v2990 = vrot.slane %v2748, 1
    %v2991 = vrot.slane %v2749, 1
    %v2992 = vrot.slane %v2750, 1
    %v2993 = vrot.slane %v2751, 1
    %v2994 = vrot.slane %v2752, 1
    %v2995 = vrot.slane %v2753, 1
    %v2996 = vrot.slane %v2754, 1
    %v2997 = vrot.slane %v2755, 1
    %v2998 = vrot.slane %v2756, 1
    %v2999 = vrot.slane %v2757, 1
    %v3000 = vrot.slane %v2758, 1
    %v3001 = vrot.slane %v2759, 1
    %v3002 = vrot.slane %v2760, 1
    %v3003 = vrot.slane %v2761, 1
    %v3004 = vrot.slane %v2762, 1
    %v3005 = vrot.slane %v2763, 1
    %v3006 = vrot.slane %v2764, 1
    %v3007 = vrot.slane %v2765, 1
    %v3008 = vrot.slane %v2766, 1
    %v3009 = vrot.slane %v2767, 1
    %v3010 = vrot.slane %v2768, 1
    %v3011 = vrot.slane %v2769, 1
    %v3012 = vrot.slane %v2770, 1
    %v3013 = vrot.slane %v2771, 1
    %v3014 = vrot.slane %v2772, 1
    %v3015 = vrot.slane %v2773, 1
    %v3016 = vrot.slane %v2774, 1
    %v3017 = vrot.slane %v2775, 1
    %v3018 = vrot.slane %v2776, 1
    %v3019 = vrot.slane %v2777, 1
    %v3020 = vrot.slane %v2778, 1
    %v3021 = vrot.slane %v2779, 1
    %v3022 = vrot.slane %v2780, 1
    %v3023 = vrot.slane %v2781, 1
    %v3024 = vrot.slane %v2782, 1
    %v3025 = vrot.slane %v2783, 1
    %v3026 = vrot.slane %v2784, 1
    %v3027 = vrot.slane %v2785, 1
    %v3028 = vrot.slane %v2786, 1
    %v3029 = vrot.slane %v2787, 1
    %v3030 = vrot.slane %v2788, 1
    %vm3031 = vcmp.lt.s32.totalorder %v2790, 7
    %v3032 = vsel %vm3031, %v3029, %v3030
    %v3033 = vsel %vm3031, %v3028, %v3029
    %v3034 = vsel %vm3031, %v3027, %v3028
    %v3035 = vsel %vm3031, %v3026, %v3027
    %v3036 = vsel %vm3031, %v3025, %v3026
    %v3037 = vsel %vm3031, %v3024, %v3025
    %v3038 = vsel %vm3031, %v3023, %v3024
    %v3039 = vsel %vm3031, %v3022, %v3023
    %v3040 = vsel %vm3031, %v3021, %v3022
    %v3041 = vsel %vm3031, %v3020, %v3021
    %v3042 = vsel %vm3031, %v3019, %v3020
    %v3043 = vsel %vm3031, %v3018, %v3019
    %v3044 = vsel %vm3031, %v3017, %v3018
    %v3045 = vsel %vm3031, %v3016, %v3017
    %v3046 = vsel %vm3031, %v3015, %v3016
    %v3047 = vsel %vm3031, %v3014, %v3015
    %v3048 = vsel %vm3031, %v3013, %v3014
    %v3049 = vsel %vm3031, %v3012, %v3013
    %v3050 = vsel %vm3031, %v3011, %v3012
    %v3051 = vsel %vm3031, %v3010, %v3011
    %v3052 = vsel %vm3031, %v3009, %v3010
    %v3053 = vsel %vm3031, %v3008, %v3009
    %v3054 = vsel %vm3031, %v3007, %v3008
    %v3055 = vsel %vm3031, %v3006, %v3007
    %v3056 = vsel %vm3031, %v3005, %v3006
    %v3057 = vsel %vm3031, %v3004, %v3005
    %v3058 = vsel %vm3031, %v3003, %v3004
    %v3059 = vsel %vm3031, %v3002, %v3003
    %v3060 = vsel %vm3031, %v3001, %v3002
    %v3061 = vsel %vm3031, %v3000, %v3001
    %v3062 = vsel %vm3031, %v2999, %v3000
    %v3063 = vsel %vm3031, %v2998, %v2999
    %v3064 = vsel %vm3031, %v2997, %v2998
    %v3065 = vsel %vm3031, %v2996, %v2997
    %v3066 = vsel %vm3031, %v2995, %v2996
    %v3067 = vsel %vm3031, %v2994, %v2995
    %v3068 = vsel %vm3031, %v2993, %v2994
    %v3069 = vsel %vm3031, %v2992, %v2993
    %v3070 = vsel %vm3031, %v2991, %v2992
    %v3071 = vsel %vm3031, %v2990, %v2991
    %v3072 = vsel %vm3031, %v2989, %v2990
    %v3073 = vsel %vm3031, %v2988, %v2989
    %v3074 = vsel %vm3031, %v2987, %v2988
    %v3075 = vsel %vm3031, %v2986, %v2987
    %v3076 = vsel %vm3031, %v2985, %v2986
    %v3077 = vsel %vm3031, %v2984, %v2985
    %v3078 = vsel %vm3031, %v2983, %v2984
    %v3079 = vsel %vm3031, %v3030, %v2983
    %v3080 = vpack.c.bf16 %v2981, %v2982
    %v3081 = vpack.c.bf16 %v2979, %v2980
    %v3082 = vpack.c.bf16 %v2977, %v2978
    %v3083 = vpack.c.bf16 %v2975, %v2976
    %v3084 = vpack.c.bf16 %v2973, %v2974
    %v3085 = vpack.c.bf16 %v2971, %v2972
    %v3086 = vpack.c.bf16 %v2969, %v2970
    %v3087 = vpack.c.bf16 %v2967, %v2968
    %v3088 = vpack.c.bf16 %v2965, %v2966
    %v3089 = vpack.c.bf16 %v2963, %v2964
    %v3090 = vpack.c.bf16 %v2961, %v2962
    %v3091 = vpack.c.bf16 %v2959, %v2960
    %v3092 = vpack.c.bf16 %v2957, %v2958
    %v3093 = vpack.c.bf16 %v2955, %v2956
    %v3094 = vpack.c.bf16 %v2953, %v2954
    %v3095 = vpack.c.bf16 %v2951, %v2952
    %v3096 = vpack.c.bf16 %v2949, %v2950
    %v3097 = vpack.c.bf16 %v2947, %v2948
    %v3098 = vpack.c.bf16 %v2945, %v2946
    %v3099 = vpack.c.bf16 %v2943, %v2944
    %v3100 = vpack.c.bf16 %v2941, %v2942
    %v3101 = vpack.c.bf16 %v2939, %v2940
    %v3102 = vpack.c.bf16 %v2937, %v2938
    %v3103 = vpack.c.bf16 %v2935, %v2936
    %v3104 = vpack.c.bf16 %v2742, %v2741
    %v3105 = vpack.c.bf16 %v2744, %v2743
    %v3106 = vpack.c.bf16 %v2746, %v2745
    %v3107 = vpack.c.bf16 %v2748, %v2747
    %v3108 = vpack.c.bf16 %v2750, %v2749
    %v3109 = vpack.c.bf16 %v2752, %v2751
    %v3110 = vpack.c.bf16 %v2754, %v2753
    %v3111 = vpack.c.bf16 %v2756, %v2755
    %v3112 = vpack.c.bf16 %v2758, %v2757
    %v3113 = vpack.c.bf16 %v2760, %v2759
    %v3114 = vpack.c.bf16 %v2762, %v2761
    %v3115 = vpack.c.bf16 %v2764, %v2763
    %v3116 = vpack.c.bf16 %v2766, %v2765
    %v3117 = vpack.c.bf16 %v2768, %v2767
    %v3118 = vpack.c.bf16 %v2770, %v2769
    %v3119 = vpack.c.bf16 %v2772, %v2771
    %v3120 = vpack.c.bf16 %v2774, %v2773
    %v3121 = vpack.c.bf16 %v2776, %v2775
    %v3122 = vpack.c.bf16 %v2778, %v2777
    %v3123 = vpack.c.bf16 %v2780, %v2779
    %v3124 = vpack.c.bf16 %v2782, %v2781
    %v3125 = vpack.c.bf16 %v2784, %v2783
    %v3126 = vpack.c.bf16 %v2786, %v2785
    %v3127 = vpack.c.bf16 %v2788, %v2787
    %v3128 = vpack.c.bf16 %v3077, %v3078
    %v3129 = vpack.c.bf16 %v3075, %v3076
    %v3130 = vpack.c.bf16 %v3073, %v3074
    %v3131 = vpack.c.bf16 %v3071, %v3072
    %v3132 = vpack.c.bf16 %v3069, %v3070
    %v3133 = vpack.c.bf16 %v3067, %v3068
    %v3134 = vpack.c.bf16 %v3065, %v3066
    %v3135 = vpack.c.bf16 %v3063, %v3064
    %v3136 = vpack.c.bf16 %v3061, %v3062
    %v3137 = vpack.c.bf16 %v3059, %v3060
    %v3138 = vpack.c.bf16 %v3057, %v3058
    %v3139 = vpack.c.bf16 %v3055, %v3056
    %v3140 = vpack.c.bf16 %v3053, %v3054
    %v3141 = vpack.c.bf16 %v3051, %v3052
    %v3142 = vpack.c.bf16 %v3049, %v3050
    %v3143 = vpack.c.bf16 %v3047, %v3048
    %v3144 = vpack.c.bf16 %v3045, %v3046
    %v3145 = vpack.c.bf16 %v3043, %v3044
    %v3146 = vpack.c.bf16 %v3041, %v3042
    %v3147 = vpack.c.bf16 %v3039, %v3040
    %v3148 = vpack.c.bf16 %v3037, %v3038
    %v3149 = vpack.c.bf16 %v3035, %v3036
    %v3150 = vpack.c.bf16 %v3033, %v3034
    %v3151 = vpack.c.bf16 %v3079, %v3032
    %3176 = vrot.lane.b32.xlu0 %v3104, 16
    %v3177 = vpop.permute.xlu0 %3176
    %3178 = vrot.lane.b32.xlu0 %v3105, 16
    %v3179 = vpop.permute.xlu0 %3178
    %3180 = vrot.lane.b32.xlu0 %v3106, 16
    %v3181 = vpop.permute.xlu0 %3180
    %3182 = vrot.lane.b32.xlu0 %v3107, 16
    %v3183 = vpop.permute.xlu0 %3182
    %3184 = vrot.lane.b32.xlu0 %v3108, 16
    %v3185 = vpop.permute.xlu0 %3184
    %3186 = vrot.lane.b32.xlu0 %v3109, 16
    %v3187 = vpop.permute.xlu0 %3186
    %3188 = vrot.lane.b32.xlu0 %v3110, 16
    %v3189 = vpop.permute.xlu0 %3188
    %3190 = vrot.lane.b32.xlu0 %v3111, 16
    %v3191 = vpop.permute.xlu0 %3190
    %3192 = vrot.lane.b32.xlu0 %v3112, 16
    %v3193 = vpop.permute.xlu0 %3192
    %3194 = vrot.lane.b32.xlu0 %v3113, 16
    %v3195 = vpop.permute.xlu0 %3194
    %3196 = vrot.lane.b32.xlu0 %v3114, 16
    %v3197 = vpop.permute.xlu0 %3196
    %3198 = vrot.lane.b32.xlu0 %v3115, 16
    %v3199 = vpop.permute.xlu0 %3198
    %3200 = vrot.lane.b32.xlu0 %v3116, 16
    %v3201 = vpop.permute.xlu0 %3200
    %3202 = vrot.lane.b32.xlu0 %v3117, 16
    %v3203 = vpop.permute.xlu0 %3202
    %3204 = vrot.lane.b32.xlu0 %v3118, 16
    %v3205 = vpop.permute.xlu0 %3204
    %3206 = vrot.lane.b32.xlu0 %v3119, 16
    %v3207 = vpop.permute.xlu0 %3206
    %3208 = vrot.lane.b32.xlu0 %v3120, 16
    %v3209 = vpop.permute.xlu0 %3208
    %3210 = vrot.lane.b32.xlu0 %v3121, 16
    %v3211 = vpop.permute.xlu0 %3210
    %3212 = vrot.lane.b32.xlu0 %v3122, 16
    %v3213 = vpop.permute.xlu0 %3212
    %3214 = vrot.lane.b32.xlu0 %v3123, 16
    %v3215 = vpop.permute.xlu0 %3214
    %3216 = vrot.lane.b32.xlu0 %v3124, 16
    %v3217 = vpop.permute.xlu0 %3216
    %3218 = vrot.lane.b32.xlu0 %v3125, 16
    %v3219 = vpop.permute.xlu0 %3218
    %3220 = vrot.lane.b32.xlu0 %v3126, 16
    %v3221 = vpop.permute.xlu0 %3220
    %3222 = vrot.lane.b32.xlu0 %v3127, 16
    %v3223 = vpop.permute.xlu0 %3222
    %3248 = vrot.lane.b32.xlu0 %v3128, 32
    %v3249 = vpop.permute.xlu0 %3248
    %3250 = vrot.lane.b32.xlu0 %v3129, 32
    %v3251 = vpop.permute.xlu0 %3250
    %3252 = vrot.lane.b32.xlu0 %v3130, 32
    %v3253 = vpop.permute.xlu0 %3252
    %3254 = vrot.lane.b32.xlu0 %v3131, 32
    %v3255 = vpop.permute.xlu0 %3254
    %3256 = vrot.lane.b32.xlu0 %v3132, 32
    %v3257 = vpop.permute.xlu0 %3256
    %3258 = vrot.lane.b32.xlu0 %v3133, 32
    %v3259 = vpop.permute.xlu0 %3258
    %3260 = vrot.lane.b32.xlu0 %v3134, 32
    %v3261 = vpop.permute.xlu0 %3260
    %3262 = vrot.lane.b32.xlu0 %v3135, 32
    %v3263 = vpop.permute.xlu0 %3262
    %3264 = vrot.lane.b32.xlu0 %v3136, 32
    %v3265 = vpop.permute.xlu0 %3264
    %3266 = vrot.lane.b32.xlu0 %v3137, 32
    %v3267 = vpop.permute.xlu0 %3266
    %3268 = vrot.lane.b32.xlu0 %v3138, 32
    %v3269 = vpop.permute.xlu0 %3268
    %3270 = vrot.lane.b32.xlu0 %v3139, 32
    %v3271 = vpop.permute.xlu0 %3270
    %3272 = vrot.lane.b32.xlu0 %v3140, 32
    %v3273 = vpop.permute.xlu0 %3272
    %3274 = vrot.lane.b32.xlu0 %v3141, 32
    %v3275 = vpop.permute.xlu0 %3274
    %3276 = vrot.lane.b32.xlu0 %v3142, 32
    %v3277 = vpop.permute.xlu0 %3276
    %3278 = vrot.lane.b32.xlu0 %v3143, 32
    %v3279 = vpop.permute.xlu0 %3278
    %3280 = vrot.lane.b32.xlu0 %v3144, 32
    %v3281 = vpop.permute.xlu0 %3280
    %3282 = vrot.lane.b32.xlu0 %v3145, 32
    %v3283 = vpop.permute.xlu0 %3282
    %3284 = vrot.lane.b32.xlu0 %v3146, 32
    %v3285 = vpop.permute.xlu0 %3284
    %3286 = vrot.lane.b32.xlu0 %v3147, 32
    %v3287 = vpop.permute.xlu0 %3286
    %3288 = vrot.lane.b32.xlu0 %v3148, 32
    %v3289 = vpop.permute.xlu0 %3288
    %3290 = vrot.lane.b32.xlu0 %v3149, 32
    %v3291 = vpop.permute.xlu0 %3290
    %3292 = vrot.lane.b32.xlu0 %v3150, 32
    %v3293 = vpop.permute.xlu0 %3292
    %3294 = vrot.lane.b32.xlu0 %v3151, 32
    %v3295 = vpop.permute.xlu0 %3294
    %vm3296 = vcmask 130048
    %v3299 = vsel %vm3296, %v3080, %v3177
    %v3302 = vsel %vm3296, %v3081, %v3179
    %v3305 = vsel %vm3296, %v3082, %v3181
    %v3308 = vsel %vm3296, %v3083, %v3183
    %v3311 = vsel %vm3296, %v3084, %v3185
    %v3314 = vsel %vm3296, %v3085, %v3187
    %v3317 = vsel %vm3296, %v3086, %v3189
    %v3320 = vsel %vm3296, %v3087, %v3191
    %v3323 = vsel %vm3296, %v3088, %v3193
    %v3326 = vsel %vm3296, %v3089, %v3195
    %v3329 = vsel %vm3296, %v3090, %v3197
    %v3332 = vsel %vm3296, %v3091, %v3199
    %v3335 = vsel %vm3296, %v3092, %v3201
    %v3338 = vsel %vm3296, %v3093, %v3203
    %v3341 = vsel %vm3296, %v3094, %v3205
    %v3344 = vsel %vm3296, %v3095, %v3207
    %v3347 = vsel %vm3296, %v3096, %v3209
    %v3350 = vsel %vm3296, %v3097, %v3211
    %v3353 = vsel %vm3296, %v3098, %v3213
    %v3356 = vsel %vm3296, %v3099, %v3215
    %v3359 = vsel %vm3296, %v3100, %v3217
    %v3362 = vsel %vm3296, %v3101, %v3219
    %v3365 = vsel %vm3296, %v3102, %v3221
    %v3368 = vsel %vm3296, %v3103, %v3223
    %vm3369 = vcmask 261120
    %v3371 = vsel %vm3369, %v3299, %v3249
    %v3373 = vsel %vm3369, %v3302, %v3251
    %v3375 = vsel %vm3369, %v3305, %v3253
    %v3377 = vsel %vm3369, %v3308, %v3255
    %v3379 = vsel %vm3369, %v3311, %v3257
    %v3381 = vsel %vm3369, %v3314, %v3259
    %v3383 = vsel %vm3369, %v3317, %v3261
    %v3385 = vsel %vm3369, %v3320, %v3263
    %v3387 = vsel %vm3369, %v3323, %v3265
    %v3389 = vsel %vm3369, %v3326, %v3267
    %v3391 = vsel %vm3369, %v3329, %v3269
    %v3393 = vsel %vm3369, %v3332, %v3271
    %v3395 = vsel %vm3369, %v3335, %v3273
    %v3397 = vsel %vm3369, %v3338, %v3275
    %v3399 = vsel %vm3369, %v3341, %v3277
    %v3401 = vsel %vm3369, %v3344, %v3279
    %v3403 = vsel %vm3369, %v3347, %v3281
    %v3405 = vsel %vm3369, %v3350, %v3283
    %v3407 = vsel %vm3369, %v3353, %v3285
    %v3409 = vsel %vm3369, %v3356, %v3287
    %v3411 = vsel %vm3369, %v3359, %v3289
    %v3413 = vsel %vm3369, %v3362, %v3291
    %v3415 = vsel %vm3369, %v3365, %v3293
    %v3417 = vsel %vm3369, %v3368, %v3295
    %v3418 = vld [vmem:[%s8] sm:$0xf]
    %v3419 = vld [vmem:[%s8 + $0x4] sm:$0xf]
    %v3420 = vld [vmem:[%s8 + $0x8] sm:$0xf]
    %v3421 = vld [vmem:[%s8 + $0xc] sm:$0xf]
    %v3422 = vld [vmem:[%s8 + $0x10] sm:$0xf]
    %v3423 = vld [vmem:[%s8 + $0x14] sm:$0xf]
    %v3424 = vld [vmem:[%s12] sm:$0x1]
    %v3426 = vlaneseq
    %v3427 = vshrl.u32 %v3426, 7
    %v3428 = vsub.s32 0, %v3427
    %v3429 = vrot.slane %v3424, %v3428
    %v3437 = vunpack.c.l.b16 %v3418
    %v3438 = vunpack.c.l.b16 %v3419
    %v3439 = vunpack.c.l.b16 %v3420
    %v3440 = vunpack.c.l.b16 %v3421
    %v3441 = vunpack.c.l.b16 %v3422
    %v3442 = vunpack.c.l.b16 %v3423
    %v3443 = vpack.c.b16 %v3438, %v3437
    %v3444 = vpack.c.b16 %v3440, %v3439
    %v3445 = vpack.c.b16 %v3442, %v3441
    %vm3449 = vcmask 392192
    %v3450 = vsel %vm3449, %v3371, 0
    %v3452 = vsel %vm3449, %v3373, 0
    %v3454 = vsel %vm3449, %v3375, 0
    %v3456 = vsel %vm3449, %v3377, 0
    %v3458 = vsel %vm3449, %v3379, 0
    %v3460 = vsel %vm3449, %v3381, 0
    %v3462 = vsel %vm3449, %v3383, 0
    %v3464 = vsel %vm3449, %v3385, 0
    %v3466 = vsel %vm3449, %v3387, 0
    %v3468 = vsel %vm3449, %v3389, 0
    %v3470 = vsel %vm3449, %v3391, 0
    %v3472 = vsel %vm3449, %v3393, 0
    %v3474 = vsel %vm3449, %v3395, 0
    %v3476 = vsel %vm3449, %v3397, 0
    %v3478 = vsel %vm3449, %v3399, 0
    %v3480 = vsel %vm3449, %v3401, 0
    %v3482 = vsel %vm3449, %v3403, 0
    %v3484 = vsel %vm3449, %v3405, 0
    %v3486 = vsel %vm3449, %v3407, 0
    %v3488 = vsel %vm3449, %v3409, 0
    %v3490 = vsel %vm3449, %v3411, 0
    %v3492 = vsel %vm3449, %v3413, 0
    %v3494 = vsel %vm3449, %v3415, 0
    %v3496 = vsel %vm3449, %v3417, 0
    %3498 = vmatprep.subr.bf16.mxu0 0
    %3499 = vmatpush1.bf16.msra.mxu0 %v3443
    %3500 = vmatprep.subr.bf16.mxu0 0
    %3501 = vmatpush1.bf16.msra.mxu0 %v3444
    %3502 = vmatprep.subr.bf16.mxu0 0
    %3503 = vmatpush1.bf16.msra.mxu0 %v3445
    %3504 = vmatprep.subr.bf16.mxu0 0
    %3505 = vmatpush1.bf16.msra.mxu0 0
    %3506 = vmatprep.subr.bf16.mxu0 0
    %3507 = vmatpush1.bf16.msra.mxu0 0
    %3508 = vmatprep.subr.bf16.mxu0 0
    %3509 = vmatpush1.bf16.msra.mxu0 0
    %3510 = vmatprep.subr.bf16.mxu0 0
    %3511 = vmatpush1.bf16.msra.mxu0 0
    %3512 = vmatprep.subr.bf16.mxu0 0
    %3513 = vmatpush1.bf16.msra.mxu0 0
    %3514 = vmatprep.subr.bf16.mxu0 0
    %3515 = vmatpush1.bf16.msra.mxu0 0
    %3516 = vmatprep.subr.bf16.mxu0 0
    %3517 = vmatpush1.bf16.msra.mxu0 0
    %3518 = vmatprep.subr.bf16.mxu0 0
    %3519 = vmatpush1.bf16.msra.mxu0 0
    %3520 = vmatprep.subr.bf16.mxu0 0
    %3521 = vmatpush1.bf16.msra.mxu0 0
    %3522 = vmatprep.subr.bf16.mxu0 0
    %3523 = vmatpush1.bf16.msra.mxu0 0
    %3524 = vmatprep.subr.bf16.mxu0 0
    %3525 = vmatpush1.bf16.msra.mxu0 0
    %3526 = vmatprep.subr.bf16.mxu0 0
    %3527 = vmatpush1.bf16.msra.mxu0 0
    %3528 = vmatprep.subr.bf16.mxu0 0
    %3529 = vmatpush1.bf16.msra.mxu0 0
    %3530 = vmatprep.mubr.bf16.mxu0 0
    %3531 = vmatmul.mubr.bf16.gmra.mrb[0].mxu0 %v3450
    %v3532 = vpop.f32.mrb[0].mxu0
    %v3533 = vadd.f32 %v3429, %v3532
    %v3534 = vpop.f32.mrb[0].mxu0
    %v3535 = vpop.f32.mrb[0].mxu0
    %v3536 = vadd.f32 %v3429, %v3535
    %v3537 = vpop.f32.mrb[0].mxu0
    %3538 = vmatprep.mubr.bf16.mxu0 0
    %3539 = vmatmul.mubr.bf16.gmra.mrb[0].mxu0 %v3452
    %v3540 = vpop.f32.mrb[0].mxu0
    %v3541 = vadd.f32 %v3429, %v3540
    %v3542 = vpop.f32.mrb[0].mxu0
    %v3543 = vpop.f32.mrb[0].mxu0
    %v3544 = vadd.f32 %v3429, %v3543
    %v3545 = vpop.f32.mrb[0].mxu0
    %3546 = vmatprep.mubr.bf16.mxu0 0
    %3547 = vmatmul.mubr.bf16.gmra.mrb[0].mxu0 %v3454
    %v3548 = vpop.f32.mrb[0].mxu0
    %v3549 = vadd.f32 %v3429, %v3548
    %v3550 = vpop.f32.mrb[0].mxu0
    %v3551 = vpop.f32.mrb[0].mxu0
    %v3552 = vadd.f32 %v3429, %v3551
    %v3553 = vpop.f32.mrb[0].mxu0
    %3554 = vmatprep.mubr.bf16.mxu0 0
    %3555 = vmatmul.mubr.bf16.gmra.mrb[0].mxu0 %v3456
    %v3556 = vpop.f32.mrb[0].mxu0
    %v3557 = vadd.f32 %v3429, %v3556
    %v3558 = vpop.f32.mrb[0].mxu0
    %v3559 = vpop.f32.mrb[0].mxu0
    %v3560 = vadd.f32 %v3429, %v3559
    %v3561 = vpop.f32.mrb[0].mxu0
    %3562 = vmatprep.mubr.bf16.mxu0 0
    %3563 = vmatmul.mubr.bf16.gmra.mrb[0].mxu0 %v3458
    %v3564 = vpop.f32.mrb[0].mxu0
    %v3565 = vadd.f32 %v3429, %v3564
    %v3566 = vpop.f32.mrb[0].mxu0
    %v3567 = vpop.f32.mrb[0].mxu0
    %v3568 = vadd.f32 %v3429, %v3567
    %v3569 = vpop.f32.mrb[0].mxu0
    %3570 = vmatprep.mubr.bf16.mxu0 0
    %3571 = vmatmul.mubr.bf16.gmra.mrb[0].mxu0 %v3460
    %v3572 = vpop.f32.mrb[0].mxu0
    %v3573 = vadd.f32 %v3429, %v3572
    %v3574 = vpop.f32.mrb[0].mxu0
    %v3575 = vpop.f32.mrb[0].mxu0
    %v3576 = vadd.f32 %v3429, %v3575
    %v3577 = vpop.f32.mrb[0].mxu0
    %3578 = vmatprep.mubr.bf16.mxu0 0
    %3579 = vmatmul.mubr.bf16.gmra.mrb[0].mxu0 %v3462
    %v3580 = vpop.f32.mrb[0].mxu0
    %v3581 = vadd.f32 %v3429, %v3580
    %v3582 = vpop.f32.mrb[0].mxu0
    %v3583 = vpop.f32.mrb[0].mxu0
    %v3584 = vadd.f32 %v3429, %v3583
    %v3585 = vpop.f32.mrb[0].mxu0
    %3586 = vmatprep.mubr.bf16.mxu0 0
    %3587 = vmatmul.mubr.bf16.gmra.mrb[0].mxu0 %v3464
    %v3588 = vpop.f32.mrb[0].mxu0
    %v3589 = vadd.f32 %v3429, %v3588
    %v3590 = vpop.f32.mrb[0].mxu0
    %v3591 = vpop.f32.mrb[0].mxu0
    %v3592 = vadd.f32 %v3429, %v3591
    %v3593 = vpop.f32.mrb[0].mxu0
    %3594 = vmatprep.mubr.bf16.mxu0 0
    %3595 = vmatmul.mubr.bf16.gmra.mrb[0].mxu0 %v3466
    %v3596 = vpop.f32.mrb[0].mxu0
    %v3597 = vadd.f32 %v3429, %v3596
    %v3598 = vpop.f32.mrb[0].mxu0
    %v3599 = vpop.f32.mrb[0].mxu0
    %v3600 = vadd.f32 %v3429, %v3599
    %v3601 = vpop.f32.mrb[0].mxu0
    %3602 = vmatprep.mubr.bf16.mxu0 0
    %3603 = vmatmul.mubr.bf16.gmra.mrb[0].mxu0 %v3468
    %v3604 = vpop.f32.mrb[0].mxu0
    %v3605 = vadd.f32 %v3429, %v3604
    %v3606 = vpop.f32.mrb[0].mxu0
    %v3607 = vpop.f32.mrb[0].mxu0
    %v3608 = vadd.f32 %v3429, %v3607
    %v3609 = vpop.f32.mrb[0].mxu0
    %3610 = vmatprep.mubr.bf16.mxu0 0
    %3611 = vmatmul.mubr.bf16.gmra.mrb[0].mxu0 %v3470
    %v3612 = vpop.f32.mrb[0].mxu0
    %v3613 = vadd.f32 %v3429, %v3612
    %v3614 = vpop.f32.mrb[0].mxu0
    %v3615 = vpop.f32.mrb[0].mxu0
    %v3616 = vadd.f32 %v3429, %v3615
    %v3617 = vpop.f32.mrb[0].mxu0
    %3618 = vmatprep.mubr.bf16.mxu0 0
    %3619 = vmatmul.mubr.bf16.gmra.mrb[0].mxu0 %v3472
    %v3620 = vpop.f32.mrb[0].mxu0
    %v3621 = vadd.f32 %v3429, %v3620
    %v3622 = vpop.f32.mrb[0].mxu0
    %v3623 = vpop.f32.mrb[0].mxu0
    %v3624 = vadd.f32 %v3429, %v3623
    %v3625 = vpop.f32.mrb[0].mxu0
    %3626 = vmatprep.mubr.bf16.mxu0 0
    %3627 = vmatmul.mubr.bf16.gmra.mrb[0].mxu0 %v3474
    %v3628 = vpop.f32.mrb[0].mxu0
    %v3629 = vadd.f32 %v3429, %v3628
    %v3630 = vpop.f32.mrb[0].mxu0
    %v3631 = vpop.f32.mrb[0].mxu0
    %v3632 = vadd.f32 %v3429, %v3631
    %v3633 = vpop.f32.mrb[0].mxu0
    %3634 = vmatprep.mubr.bf16.mxu0 0
    %3635 = vmatmul.mubr.bf16.gmra.mrb[0].mxu0 %v3476
    %v3636 = vpop.f32.mrb[0].mxu0
    %v3637 = vadd.f32 %v3429, %v3636
    %v3638 = vpop.f32.mrb[0].mxu0
    %v3639 = vpop.f32.mrb[0].mxu0
    %v3640 = vadd.f32 %v3429, %v3639
    %v3641 = vpop.f32.mrb[0].mxu0
    %3642 = vmatprep.mubr.bf16.mxu0 0
    %3643 = vmatmul.mubr.bf16.gmra.mrb[0].mxu0 %v3478
    %v3644 = vpop.f32.mrb[0].mxu0
    %v3645 = vadd.f32 %v3429, %v3644
    %v3646 = vpop.f32.mrb[0].mxu0
    %v3647 = vpop.f32.mrb[0].mxu0
    %v3648 = vadd.f32 %v3429, %v3647
    %v3649 = vpop.f32.mrb[0].mxu0
    %3650 = vmatprep.mubr.bf16.mxu0 0
    %3651 = vmatmul.mubr.bf16.gmra.mrb[0].mxu0 %v3480
    %v3652 = vpop.f32.mrb[0].mxu0
    %v3653 = vadd.f32 %v3429, %v3652
    %v3654 = vpop.f32.mrb[0].mxu0
    %v3655 = vpop.f32.mrb[0].mxu0
    %v3656 = vadd.f32 %v3429, %v3655
    %v3657 = vpop.f32.mrb[0].mxu0
    %3658 = vmatprep.mubr.bf16.mxu0 0
    %3659 = vmatmul.mubr.bf16.gmra.mrb[0].mxu0 %v3482
    %v3660 = vpop.f32.mrb[0].mxu0
    %v3661 = vadd.f32 %v3429, %v3660
    %v3662 = vpop.f32.mrb[0].mxu0
    %v3663 = vpop.f32.mrb[0].mxu0
    %v3664 = vadd.f32 %v3429, %v3663
    %v3665 = vpop.f32.mrb[0].mxu0
    %3666 = vmatprep.mubr.bf16.mxu0 0
    %3667 = vmatmul.mubr.bf16.gmra.mrb[0].mxu0 %v3484
    %v3668 = vpop.f32.mrb[0].mxu0
    %v3669 = vadd.f32 %v3429, %v3668
    %v3670 = vpop.f32.mrb[0].mxu0
    %v3671 = vpop.f32.mrb[0].mxu0
    %v3672 = vadd.f32 %v3429, %v3671
    %v3673 = vpop.f32.mrb[0].mxu0
    %3674 = vmatprep.mubr.bf16.mxu0 0
    %3675 = vmatmul.mubr.bf16.gmra.mrb[0].mxu0 %v3486
    %v3676 = vpop.f32.mrb[0].mxu0
    %v3677 = vadd.f32 %v3429, %v3676
    %v3678 = vpop.f32.mrb[0].mxu0
    %v3679 = vpop.f32.mrb[0].mxu0
    %v3680 = vadd.f32 %v3429, %v3679
    %v3681 = vpop.f32.mrb[0].mxu0
    %3682 = vmatprep.mubr.bf16.mxu0 0
    %3683 = vmatmul.mubr.bf16.gmra.mrb[0].mxu0 %v3488
    %v3684 = vpop.f32.mrb[0].mxu0
    %v3685 = vadd.f32 %v3429, %v3684
    %v3686 = vpop.f32.mrb[0].mxu0
    %v3687 = vpop.f32.mrb[0].mxu0
    %v3688 = vadd.f32 %v3429, %v3687
    %v3689 = vpop.f32.mrb[0].mxu0
    %3690 = vmatprep.mubr.bf16.mxu0 0
    %3691 = vmatmul.mubr.bf16.gmra.mrb[0].mxu0 %v3490
    %v3692 = vpop.f32.mrb[0].mxu0
    %v3693 = vadd.f32 %v3429, %v3692
    %v3694 = vpop.f32.mrb[0].mxu0
    %v3695 = vpop.f32.mrb[0].mxu0
    %v3696 = vadd.f32 %v3429, %v3695
    %v3697 = vpop.f32.mrb[0].mxu0
    %3698 = vmatprep.mubr.bf16.mxu0 0
    %3699 = vmatmul.mubr.bf16.gmra.mrb[0].mxu0 %v3492
    %v3700 = vpop.f32.mrb[0].mxu0
    %v3701 = vadd.f32 %v3429, %v3700
    %v3702 = vpop.f32.mrb[0].mxu0
    %v3703 = vpop.f32.mrb[0].mxu0
    %v3704 = vadd.f32 %v3429, %v3703
    %v3705 = vpop.f32.mrb[0].mxu0
    %3706 = vmatprep.mubr.bf16.mxu0 0
    %3707 = vmatmul.mubr.bf16.gmra.mrb[0].mxu0 %v3494
    %v3708 = vpop.f32.mrb[0].mxu0
    %v3709 = vadd.f32 %v3429, %v3708
    %v3710 = vpop.f32.mrb[0].mxu0
    %v3711 = vpop.f32.mrb[0].mxu0
    %v3712 = vadd.f32 %v3429, %v3711
    %v3713 = vpop.f32.mrb[0].mxu0
    %3714 = vmatprep.mubr.bf16.mxu0 0
    %3715 = vmatmul.mubr.bf16.gmra.mrb[0].mxu0 %v3496
    %v3716 = vpop.f32.mrb[0].mxu0
    %v3717 = vadd.f32 %v3429, %v3716
    %v3718 = vpop.f32.mrb[0].mxu0
    %v3719 = vpop.f32.mrb[0].mxu0
    %v3720 = vadd.f32 %v3429, %v3719
    %v3721 = vpop.f32.mrb[0].mxu0
    %3722 = vdwg.mxu0
    %vm3723 = vcmp.ge.f32.partialorder %v3533, 0.0
    %vm3724 = vcmp.ge.f32.partialorder %v3536, 0.0
    %vm3725 = vcmp.ge.f32.partialorder %v3541, 0.0
    %vm3726 = vcmp.ge.f32.partialorder %v3544, 0.0
    %vm3727 = vcmp.ge.f32.partialorder %v3549, 0.0
    %vm3728 = vcmp.ge.f32.partialorder %v3552, 0.0
    %vm3729 = vcmp.ge.f32.partialorder %v3557, 0.0
    %vm3730 = vcmp.ge.f32.partialorder %v3560, 0.0
    %vm3731 = vcmp.ge.f32.partialorder %v3565, 0.0
    %vm3732 = vcmp.ge.f32.partialorder %v3568, 0.0
    %vm3733 = vcmp.ge.f32.partialorder %v3573, 0.0
    %vm3734 = vcmp.ge.f32.partialorder %v3576, 0.0
    %vm3735 = vcmp.ge.f32.partialorder %v3581, 0.0
    %vm3736 = vcmp.ge.f32.partialorder %v3584, 0.0
    %vm3737 = vcmp.ge.f32.partialorder %v3589, 0.0
    %vm3738 = vcmp.ge.f32.partialorder %v3592, 0.0
    %vm3739 = vcmp.ge.f32.partialorder %v3597, 0.0
    %vm3740 = vcmp.ge.f32.partialorder %v3600, 0.0
    %vm3741 = vcmp.ge.f32.partialorder %v3605, 0.0
    %vm3742 = vcmp.ge.f32.partialorder %v3608, 0.0
    %vm3743 = vcmp.ge.f32.partialorder %v3613, 0.0
    %vm3744 = vcmp.ge.f32.partialorder %v3616, 0.0
    %vm3745 = vcmp.ge.f32.partialorder %v3621, 0.0
    %vm3746 = vcmp.ge.f32.partialorder %v3624, 0.0
    %vm3747 = vcmp.ge.f32.partialorder %v3629, 0.0
    %vm3748 = vcmp.ge.f32.partialorder %v3632, 0.0
    %vm3749 = vcmp.ge.f32.partialorder %v3637, 0.0
    %vm3750 = vcmp.ge.f32.partialorder %v3640, 0.0
    %vm3751 = vcmp.ge.f32.partialorder %v3645, 0.0
    %vm3752 = vcmp.ge.f32.partialorder %v3648, 0.0
    %vm3753 = vcmp.ge.f32.partialorder %v3653, 0.0
    %vm3754 = vcmp.ge.f32.partialorder %v3656, 0.0
    %vm3755 = vcmp.ge.f32.partialorder %v3661, 0.0
    %vm3756 = vcmp.ge.f32.partialorder %v3664, 0.0
    %vm3757 = vcmp.ge.f32.partialorder %v3669, 0.0
    %vm3758 = vcmp.ge.f32.partialorder %v3672, 0.0
    %vm3759 = vcmp.ge.f32.partialorder %v3677, 0.0
    %vm3760 = vcmp.ge.f32.partialorder %v3680, 0.0
    %vm3761 = vcmp.ge.f32.partialorder %v3685, 0.0
    %vm3762 = vcmp.ge.f32.partialorder %v3688, 0.0
    %vm3763 = vcmp.ge.f32.partialorder %v3693, 0.0
    %vm3764 = vcmp.ge.f32.partialorder %v3696, 0.0
    %vm3765 = vcmp.ge.f32.partialorder %v3701, 0.0
    %vm3766 = vcmp.ge.f32.partialorder %v3704, 0.0
    %vm3767 = vcmp.ge.f32.partialorder %v3709, 0.0
    %vm3768 = vcmp.ge.f32.partialorder %v3712, 0.0
    %vm3769 = vcmp.ge.f32.partialorder %v3717, 0.0
    %vm3770 = vcmp.ge.f32.partialorder %v3720, 0.0
    %v3771 = vmul.f32 %v3533, 0.2
    %v3772 = vmul.f32 %v3536, 0.2
    %v3773 = vmul.f32 %v3541, 0.2
    %v3774 = vmul.f32 %v3544, 0.2
    %v3775 = vmul.f32 %v3549, 0.2
    %v3776 = vmul.f32 %v3552, 0.2
    %v3777 = vmul.f32 %v3557, 0.2
    %v3778 = vmul.f32 %v3560, 0.2
    %v3779 = vmul.f32 %v3565, 0.2
    %v3780 = vmul.f32 %v3568, 0.2
    %v3781 = vmul.f32 %v3573, 0.2
    %v3782 = vmul.f32 %v3576, 0.2
    %v3783 = vmul.f32 %v3581, 0.2
    %v3784 = vmul.f32 %v3584, 0.2
    %v3785 = vmul.f32 %v3589, 0.2
    %v3786 = vmul.f32 %v3592, 0.2
    %v3787 = vmul.f32 %v3597, 0.2
    %v3788 = vmul.f32 %v3600, 0.2
    %v3789 = vmul.f32 %v3605, 0.2
    %v3790 = vmul.f32 %v3608, 0.2
    %v3791 = vmul.f32 %v3613, 0.2
    %v3792 = vmul.f32 %v3616, 0.2
    %v3793 = vmul.f32 %v3621, 0.2
    %v3794 = vmul.f32 %v3624, 0.2
    %v3795 = vmul.f32 %v3629, 0.2
    %v3796 = vmul.f32 %v3632, 0.2
    %v3797 = vmul.f32 %v3637, 0.2
    %v3798 = vmul.f32 %v3640, 0.2
    %v3799 = vmul.f32 %v3645, 0.2
    %v3800 = vmul.f32 %v3648, 0.2
    %v3801 = vmul.f32 %v3653, 0.2
    %v3802 = vmul.f32 %v3656, 0.2
    %v3803 = vmul.f32 %v3661, 0.2
    %v3804 = vmul.f32 %v3664, 0.2
    %v3805 = vmul.f32 %v3669, 0.2
    %v3806 = vmul.f32 %v3672, 0.2
    %v3807 = vmul.f32 %v3677, 0.2
    %v3808 = vmul.f32 %v3680, 0.2
    %v3809 = vmul.f32 %v3685, 0.2
    %v3810 = vmul.f32 %v3688, 0.2
    %v3811 = vmul.f32 %v3693, 0.2
    %v3812 = vmul.f32 %v3696, 0.2
    %v3813 = vmul.f32 %v3701, 0.2
    %v3814 = vmul.f32 %v3704, 0.2
    %v3815 = vmul.f32 %v3709, 0.2
    %v3816 = vmul.f32 %v3712, 0.2
    %v3817 = vmul.f32 %v3717, 0.2
    %v3818 = vmul.f32 %v3720, 0.2
    %v3819 = vsel %vm3723, %v3533, %v3771
    %v3820 = vsel %vm3724, %v3536, %v3772
    %v3821 = vsel %vm3725, %v3541, %v3773
    %v3822 = vsel %vm3726, %v3544, %v3774
    %v3823 = vsel %vm3727, %v3549, %v3775
    %v3824 = vsel %vm3728, %v3552, %v3776
    %v3825 = vsel %vm3729, %v3557, %v3777
    %v3826 = vsel %vm3730, %v3560, %v3778
    %v3827 = vsel %vm3731, %v3565, %v3779
    %v3828 = vsel %vm3732, %v3568, %v3780
    %v3829 = vsel %vm3733, %v3573, %v3781
    %v3830 = vsel %vm3734, %v3576, %v3782
    %v3831 = vsel %vm3735, %v3581, %v3783
    %v3832 = vsel %vm3736, %v3584, %v3784
    %v3833 = vsel %vm3737, %v3589, %v3785
    %v3834 = vsel %vm3738, %v3592, %v3786
    %v3835 = vsel %vm3739, %v3597, %v3787
    %v3836 = vsel %vm3740, %v3600, %v3788
    %v3837 = vsel %vm3741, %v3605, %v3789
    %v3838 = vsel %vm3742, %v3608, %v3790
    %v3839 = vsel %vm3743, %v3613, %v3791
    %v3840 = vsel %vm3744, %v3616, %v3792
    %v3841 = vsel %vm3745, %v3621, %v3793
    %v3842 = vsel %vm3746, %v3624, %v3794
    %v3843 = vsel %vm3747, %v3629, %v3795
    %v3844 = vsel %vm3748, %v3632, %v3796
    %v3845 = vsel %vm3749, %v3637, %v3797
    %v3846 = vsel %vm3750, %v3640, %v3798
    %v3847 = vsel %vm3751, %v3645, %v3799
    %v3848 = vsel %vm3752, %v3648, %v3800
    %v3849 = vsel %vm3753, %v3653, %v3801
    %v3850 = vsel %vm3754, %v3656, %v3802
    %v3851 = vsel %vm3755, %v3661, %v3803
    %v3852 = vsel %vm3756, %v3664, %v3804
    %v3853 = vsel %vm3757, %v3669, %v3805
    %v3854 = vsel %vm3758, %v3672, %v3806
    %v3855 = vsel %vm3759, %v3677, %v3807
    %v3856 = vsel %vm3760, %v3680, %v3808
    %v3857 = vsel %vm3761, %v3685, %v3809
    %v3858 = vsel %vm3762, %v3688, %v3810
    %v3859 = vsel %vm3763, %v3693, %v3811
    %v3860 = vsel %vm3764, %v3696, %v3812
    %v3861 = vsel %vm3765, %v3701, %v3813
    %v3862 = vsel %vm3766, %v3704, %v3814
    %v3863 = vsel %vm3767, %v3709, %v3815
    %v3864 = vsel %vm3768, %v3712, %v3816
    %v3865 = vsel %vm3769, %v3717, %v3817
    %v3866 = vsel %vm3770, %v3720, %v3818
    %v3867 = vsel %vm2838, 1, 0
    %v3868 = vsel %vm2839, 1, 0
    %v3869 = vsel %vm2840, 1, 0
    %v3870 = vsel %vm2841, 1, 0
    %v3871 = vsel %vm2842, 1, 0
    %v3872 = vsel %vm2843, 1, 0
    %v3873 = vsel %vm2844, 1, 0
    %v3874 = vsel %vm2845, 1, 0
    %v3875 = vsel %vm2846, 1, 0
    %v3876 = vsel %vm2847, 1, 0
    %v3877 = vsel %vm2848, 1, 0
    %v3878 = vsel %vm2849, 1, 0
    %v3879 = vsel %vm2850, 1, 0
    %v3880 = vsel %vm2851, 1, 0
    %v3881 = vsel %vm2852, 1, 0
    %v3882 = vsel %vm2853, 1, 0
    %v3883 = vsel %vm2854, 1, 0
    %v3884 = vsel %vm2855, 1, 0
    %v3885 = vsel %vm2856, 1, 0
    %v3886 = vsel %vm2857, 1, 0
    %v3887 = vsel %vm2858, 1, 0
    %v3888 = vsel %vm2859, 1, 0
    %v3889 = vsel %vm2860, 1, 0
    %v3890 = vsel %vm2861, 1, 0
    %v3891 = vsel %vm2862, 1, 0
    %v3892 = vsel %vm2863, 1, 0
    %v3893 = vsel %vm2864, 1, 0
    %v3894 = vsel %vm2865, 1, 0
    %v3895 = vsel %vm2866, 1, 0
    %v3896 = vsel %vm2867, 1, 0
    %v3897 = vsel %vm2868, 1, 0
    %v3898 = vsel %vm2869, 1, 0
    %v3899 = vsel %vm2870, 1, 0
    %v3900 = vsel %vm2871, 1, 0
    %v3901 = vsel %vm2872, 1, 0
    %v3902 = vsel %vm2873, 1, 0
    %v3903 = vsel %vm2874, 1, 0
    %v3904 = vsel %vm2875, 1, 0
    %v3905 = vsel %vm2876, 1, 0
    %v3906 = vsel %vm2877, 1, 0
    %v3907 = vsel %vm2878, 1, 0
    %v3908 = vsel %vm2879, 1, 0
    %v3909 = vsel %vm2880, 1, 0
    %v3910 = vsel %vm2881, 1, 0
    %v3911 = vsel %vm2882, 1, 0
    %v3912 = vsel %vm2883, 1, 0
    %v3913 = vsel %vm2884, 1, 0
    %v3914 = vsel %vm2885, 1, 0
    %vm3915 = vcmp.eq.s32.totalorder %v3867, 1
    %vm3916 = vcmp.eq.s32.totalorder %v3868, 1
    %vm3917 = vcmp.eq.s32.totalorder %v3869, 1
    %vm3918 = vcmp.eq.s32.totalorder %v3870, 1
    %vm3919 = vcmp.eq.s32.totalorder %v3871, 1
    %vm3920 = vcmp.eq.s32.totalorder %v3872, 1
    %vm3921 = vcmp.eq.s32.totalorder %v3873, 1
    %vm3922 = vcmp.eq.s32.totalorder %v3874, 1
    %vm3923 = vcmp.eq.s32.totalorder %v3875, 1
    %vm3924 = vcmp.eq.s32.totalorder %v3876, 1
    %vm3925 = vcmp.eq.s32.totalorder %v3877, 1
    %vm3926 = vcmp.eq.s32.totalorder %v3878, 1
    %vm3927 = vcmp.eq.s32.totalorder %v3879, 1
    %vm3928 = vcmp.eq.s32.totalorder %v3880, 1
    %vm3929 = vcmp.eq.s32.totalorder %v3881, 1
    %vm3930 = vcmp.eq.s32.totalorder %v3882, 1
    %vm3931 = vcmp.eq.s32.totalorder %v3883, 1
    %vm3932 = vcmp.eq.s32.totalorder %v3884, 1
    %vm3933 = vcmp.eq.s32.totalorder %v3885, 1
    %vm3934 = vcmp.eq.s32.totalorder %v3886, 1
    %vm3935 = vcmp.eq.s32.totalorder %v3887, 1
    %vm3936 = vcmp.eq.s32.totalorder %v3888, 1
    %vm3937 = vcmp.eq.s32.totalorder %v3889, 1
    %vm3938 = vcmp.eq.s32.totalorder %v3890, 1
    %vm3939 = vcmp.eq.s32.totalorder %v3891, 1
    %vm3940 = vcmp.eq.s32.totalorder %v3892, 1
    %vm3941 = vcmp.eq.s32.totalorder %v3893, 1
    %vm3942 = vcmp.eq.s32.totalorder %v3894, 1
    %vm3943 = vcmp.eq.s32.totalorder %v3895, 1
    %vm3944 = vcmp.eq.s32.totalorder %v3896, 1
    %vm3945 = vcmp.eq.s32.totalorder %v3897, 1
    %vm3946 = vcmp.eq.s32.totalorder %v3898, 1
    %vm3947 = vcmp.eq.s32.totalorder %v3899, 1
    %vm3948 = vcmp.eq.s32.totalorder %v3900, 1
    %vm3949 = vcmp.eq.s32.totalorder %v3901, 1
    %vm3950 = vcmp.eq.s32.totalorder %v3902, 1
    %vm3951 = vcmp.eq.s32.totalorder %v3903, 1
    %vm3952 = vcmp.eq.s32.totalorder %v3904, 1
    %vm3953 = vcmp.eq.s32.totalorder %v3905, 1
    %vm3954 = vcmp.eq.s32.totalorder %v3906, 1
    %vm3955 = vcmp.eq.s32.totalorder %v3907, 1
    %vm3956 = vcmp.eq.s32.totalorder %v3908, 1
    %vm3957 = vcmp.eq.s32.totalorder %v3909, 1
    %vm3958 = vcmp.eq.s32.totalorder %v3910, 1
    %vm3959 = vcmp.eq.s32.totalorder %v3911, 1
    %vm3960 = vcmp.eq.s32.totalorder %v3912, 1
    %vm3961 = vcmp.eq.s32.totalorder %v3913, 1
    %vm3962 = vcmp.eq.s32.totalorder %v3914, 1
    %v3963 = vsel %vm3915, %v3819, 0.0
    %v3964 = vsel %vm3916, %v3820, 0.0
    %v3965 = vsel %vm3917, %v3821, 0.0
    %v3966 = vsel %vm3918, %v3822, 0.0
    %v3967 = vsel %vm3919, %v3823, 0.0
    %v3968 = vsel %vm3920, %v3824, 0.0
    %v3969 = vsel %vm3921, %v3825, 0.0
    %v3970 = vsel %vm3922, %v3826, 0.0
    %v3971 = vsel %vm3923, %v3827, 0.0
    %v3972 = vsel %vm3924, %v3828, 0.0
    %v3973 = vsel %vm3925, %v3829, 0.0
    %v3974 = vsel %vm3926, %v3830, 0.0
    %v3975 = vsel %vm3927, %v3831, 0.0
    %v3976 = vsel %vm3928, %v3832, 0.0
    %v3977 = vsel %vm3929, %v3833, 0.0
    %v3978 = vsel %vm3930, %v3834, 0.0
    %v3979 = vsel %vm3931, %v3835, 0.0
    %v3980 = vsel %vm3932, %v3836, 0.0
    %v3981 = vsel %vm3933, %v3837, 0.0
    %v3982 = vsel %vm3934, %v3838, 0.0
    %v3983 = vsel %vm3935, %v3839, 0.0
    %v3984 = vsel %vm3936, %v3840, 0.0
    %v3985 = vsel %vm3937, %v3841, 0.0
    %v3986 = vsel %vm3938, %v3842, 0.0
    %v3987 = vsel %vm3939, %v3843, 0.0
    %v3988 = vsel %vm3940, %v3844, 0.0
    %v3989 = vsel %vm3941, %v3845, 0.0
    %v3990 = vsel %vm3942, %v3846, 0.0
    %v3991 = vsel %vm3943, %v3847, 0.0
    %v3992 = vsel %vm3944, %v3848, 0.0
    %v3993 = vsel %vm3945, %v3849, 0.0
    %v3994 = vsel %vm3946, %v3850, 0.0
    %v3995 = vsel %vm3947, %v3851, 0.0
    %v3996 = vsel %vm3948, %v3852, 0.0
    %v3997 = vsel %vm3949, %v3853, 0.0
    %v3998 = vsel %vm3950, %v3854, 0.0
    %v3999 = vsel %vm3951, %v3855, 0.0
    %v4000 = vsel %vm3952, %v3856, 0.0
    %v4001 = vsel %vm3953, %v3857, 0.0
    %v4002 = vsel %vm3954, %v3858, 0.0
    %v4003 = vsel %vm3955, %v3859, 0.0
    %v4004 = vsel %vm3956, %v3860, 0.0
    %v4005 = vsel %vm3957, %v3861, 0.0
    %v4006 = vsel %vm3958, %v3862, 0.0
    %v4007 = vsel %vm3959, %v3863, 0.0
    %v4008 = vsel %vm3960, %v3864, 0.0
    %v4009 = vsel %vm3961, %v3865, 0.0
    %v4010 = vsel %vm3962, %v3866, 0.0
    %v4011 = vrot.slane %v3963, 7
    %v4012 = vrot.slane %v3964, 7
    %v4013 = vrot.slane %v3965, 7
    %v4014 = vrot.slane %v3966, 7
    %v4015 = vrot.slane %v3967, 7
    %v4016 = vrot.slane %v3968, 7
    %v4017 = vrot.slane %v3969, 7
    %v4018 = vrot.slane %v3970, 7
    %v4019 = vrot.slane %v3971, 7
    %v4020 = vrot.slane %v3972, 7
    %v4021 = vrot.slane %v3973, 7
    %v4022 = vrot.slane %v3974, 7
    %v4023 = vrot.slane %v3975, 7
    %v4024 = vrot.slane %v3976, 7
    %v4025 = vrot.slane %v3977, 7
    %v4026 = vrot.slane %v3978, 7
    %v4027 = vrot.slane %v3979, 7
    %v4028 = vrot.slane %v3980, 7
    %v4029 = vrot.slane %v3981, 7
    %v4030 = vrot.slane %v3982, 7
    %v4031 = vrot.slane %v3983, 7
    %v4032 = vrot.slane %v3984, 7
    %v4033 = vrot.slane %v3985, 7
    %v4034 = vrot.slane %v3986, 7
    %v4035 = vrot.slane %v3987, 7
    %v4036 = vrot.slane %v3988, 7
    %v4037 = vrot.slane %v3989, 7
    %v4038 = vrot.slane %v3990, 7
    %v4039 = vrot.slane %v3991, 7
    %v4040 = vrot.slane %v3992, 7
    %v4041 = vrot.slane %v3993, 7
    %v4042 = vrot.slane %v3994, 7
    %v4043 = vrot.slane %v3995, 7
    %v4044 = vrot.slane %v3996, 7
    %v4045 = vrot.slane %v3997, 7
    %v4046 = vrot.slane %v3998, 7
    %v4047 = vrot.slane %v3999, 7
    %v4048 = vrot.slane %v4000, 7
    %v4049 = vrot.slane %v4001, 7
    %v4050 = vrot.slane %v4002, 7
    %v4051 = vrot.slane %v4003, 7
    %v4052 = vrot.slane %v4004, 7
    %v4053 = vrot.slane %v4005, 7
    %v4054 = vrot.slane %v4006, 7
    %v4055 = vrot.slane %v4007, 7
    %v4056 = vrot.slane %v4008, 7
    %v4057 = vrot.slane %v4009, 7
    %v4058 = vrot.slane %v4010, 7
    %v4059 = vsel %vm2934, %v4057, %v4058
    %v4060 = vsel %vm2934, %v4056, %v4057
    %v4061 = vsel %vm2934, %v4055, %v4056
    %v4062 = vsel %vm2934, %v4054, %v4055
    %v4063 = vsel %vm2934, %v4053, %v4054
    %v4064 = vsel %vm2934, %v4052, %v4053
    %v4065 = vsel %vm2934, %v4051, %v4052
    %v4066 = vsel %vm2934, %v4050, %v4051
    %v4067 = vsel %vm2934, %v4049, %v4050
    %v4068 = vsel %vm2934, %v4048, %v4049
    %v4069 = vsel %vm2934, %v4047, %v4048
    %v4070 = vsel %vm2934, %v4046, %v4047
    %v4071 = vsel %vm2934, %v4045, %v4046
    %v4072 = vsel %vm2934, %v4044, %v4045
    %v4073 = vsel %vm2934, %v4043, %v4044
    %v4074 = vsel %vm2934, %v4042, %v4043
    %v4075 = vsel %vm2934, %v4041, %v4042
    %v4076 = vsel %vm2934, %v4040, %v4041
    %v4077 = vsel %vm2934, %v4039, %v4040
    %v4078 = vsel %vm2934, %v4038, %v4039
    %v4079 = vsel %vm2934, %v4037, %v4038
    %v4080 = vsel %vm2934, %v4036, %v4037
    %v4081 = vsel %vm2934, %v4035, %v4036
    %v4082 = vsel %vm2934, %v4034, %v4035
    %v4083 = vsel %vm2934, %v4033, %v4034
    %v4084 = vsel %vm2934, %v4032, %v4033
    %v4085 = vsel %vm2934, %v4031, %v4032
    %v4086 = vsel %vm2934, %v4030, %v4031
    %v4087 = vsel %vm2934, %v4029, %v4030
    %v4088 = vsel %vm2934, %v4028, %v4029
    %v4089 = vsel %vm2934, %v4027, %v4028
    %v4090 = vsel %vm2934, %v4026, %v4027
    %v4091 = vsel %vm2934, %v4025, %v4026
    %v4092 = vsel %vm2934, %v4024, %v4025
    %v4093 = vsel %vm2934, %v4023, %v4024
    %v4094 = vsel %vm2934, %v4022, %v4023
    %v4095 = vsel %vm2934, %v4021, %v4022
    %v4096 = vsel %vm2934, %v4020, %v4021
    %v4097 = vsel %vm2934, %v4019, %v4020
    %v4098 = vsel %vm2934, %v4018, %v4019
    %v4099 = vsel %vm2934, %v4017, %v4018
    %v4100 = vsel %vm2934, %v4016, %v4017
    %v4101 = vsel %vm2934, %v4015, %v4016
    %v4102 = vsel %vm2934, %v4014, %v4015
    %v4103 = vsel %vm2934, %v4013, %v4014
    %v4104 = vsel %vm2934, %v4012, %v4013
    %v4105 = vsel %vm2934, %v4011, %v4012
    %v4106 = vsel %vm2934, %v4058, %v4011
    %v4107 = vrot.slane %v3963, 1
    %v4108 = vrot.slane %v3964, 1
    %v4109 = vrot.slane %v3965, 1
    %v4110 = vrot.slane %v3966, 1
    %v4111 = vrot.slane %v3967, 1
    %v4112 = vrot.slane %v3968, 1
    %v4113 = vrot.slane %v3969, 1
    %v4114 = vrot.slane %v3970, 1
    %v4115 = vrot.slane %v3971, 1
    %v4116 = vrot.slane %v3972, 1
    %v4117 = vrot.slane %v3973, 1
    %v4118 = vrot.slane %v3974, 1
    %v4119 = vrot.slane %v3975, 1
    %v4120 = vrot.slane %v3976, 1
    %v4121 = vrot.slane %v3977, 1
    %v4122 = vrot.slane %v3978, 1
    %v4123 = vrot.slane %v3979, 1
    %v4124 = vrot.slane %v3980, 1
    %v4125 = vrot.slane %v3981, 1
    %v4126 = vrot.slane %v3982, 1
    %v4127 = vrot.slane %v3983, 1
    %v4128 = vrot.slane %v3984, 1
    %v4129 = vrot.slane %v3985, 1
    %v4130 = vrot.slane %v3986, 1
    %v4131 = vrot.slane %v3987, 1
    %v4132 = vrot.slane %v3988, 1
    %v4133 = vrot.slane %v3989, 1
    %v4134 = vrot.slane %v3990, 1
    %v4135 = vrot.slane %v3991, 1
    %v4136 = vrot.slane %v3992, 1
    %v4137 = vrot.slane %v3993, 1
    %v4138 = vrot.slane %v3994, 1
    %v4139 = vrot.slane %v3995, 1
    %v4140 = vrot.slane %v3996, 1
    %v4141 = vrot.slane %v3997, 1
    %v4142 = vrot.slane %v3998, 1
    %v4143 = vrot.slane %v3999, 1
    %v4144 = vrot.slane %v4000, 1
    %v4145 = vrot.slane %v4001, 1
    %v4146 = vrot.slane %v4002, 1
    %v4147 = vrot.slane %v4003, 1
    %v4148 = vrot.slane %v4004, 1
    %v4149 = vrot.slane %v4005, 1
    %v4150 = vrot.slane %v4006, 1
    %v4151 = vrot.slane %v4007, 1
    %v4152 = vrot.slane %v4008, 1
    %v4153 = vrot.slane %v4009, 1
    %v4154 = vrot.slane %v4010, 1
    %v4155 = vsel %vm3031, %v4153, %v4154
    %v4156 = vsel %vm3031, %v4152, %v4153
    %v4157 = vsel %vm3031, %v4151, %v4152
    %v4158 = vsel %vm3031, %v4150, %v4151
    %v4159 = vsel %vm3031, %v4149, %v4150
    %v4160 = vsel %vm3031, %v4148, %v4149
    %v4161 = vsel %vm3031, %v4147, %v4148
    %v4162 = vsel %vm3031, %v4146, %v4147
    %v4163 = vsel %vm3031, %v4145, %v4146
    %v4164 = vsel %vm3031, %v4144, %v4145
    %v4165 = vsel %vm3031, %v4143, %v4144
    %v4166 = vsel %vm3031, %v4142, %v4143
    %v4167 = vsel %vm3031, %v4141, %v4142
    %v4168 = vsel %vm3031, %v4140, %v4141
    %v4169 = vsel %vm3031, %v4139, %v4140
    %v4170 = vsel %vm3031, %v4138, %v4139
    %v4171 = vsel %vm3031, %v4137, %v4138
    %v4172 = vsel %vm3031, %v4136, %v4137
    %v4173 = vsel %vm3031, %v4135, %v4136
    %v4174 = vsel %vm3031, %v4134, %v4135
    %v4175 = vsel %vm3031, %v4133, %v4134
    %v4176 = vsel %vm3031, %v4132, %v4133
    %v4177 = vsel %vm3031, %v4131, %v4132
    %v4178 = vsel %vm3031, %v4130, %v4131
    %v4179 = vsel %vm3031, %v4129, %v4130
    %v4180 = vsel %vm3031, %v4128, %v4129
    %v4181 = vsel %vm3031, %v4127, %v4128
    %v4182 = vsel %vm3031, %v4126, %v4127
    %v4183 = vsel %vm3031, %v4125, %v4126
    %v4184 = vsel %vm3031, %v4124, %v4125
    %v4185 = vsel %vm3031, %v4123, %v4124
    %v4186 = vsel %vm3031, %v4122, %v4123
    %v4187 = vsel %vm3031, %v4121, %v4122
    %v4188 = vsel %vm3031, %v4120, %v4121
    %v4189 = vsel %vm3031, %v4119, %v4120
    %v4190 = vsel %vm3031, %v4118, %v4119
    %v4191 = vsel %vm3031, %v4117, %v4118
    %v4192 = vsel %vm3031, %v4116, %v4117
    %v4193 = vsel %vm3031, %v4115, %v4116
    %v4194 = vsel %vm3031, %v4114, %v4115
    %v4195 = vsel %vm3031, %v4113, %v4114
    %v4196 = vsel %vm3031, %v4112, %v4113
    %v4197 = vsel %vm3031, %v4111, %v4112
    %v4198 = vsel %vm3031, %v4110, %v4111
    %v4199 = vsel %vm3031, %v4109, %v4110
    %v4200 = vsel %vm3031, %v4108, %v4109
    %v4201 = vsel %vm3031, %v4107, %v4108
    %v4202 = vsel %vm3031, %v4154, %v4107
    %v4203 = vpack.c.bf16 %v4105, %v4106
    %v4204 = vpack.c.bf16 %v4103, %v4104
    %v4205 = vpack.c.bf16 %v4101, %v4102
    %v4206 = vpack.c.bf16 %v4099, %v4100
    %v4207 = vpack.c.bf16 %v4097, %v4098
    %v4208 = vpack.c.bf16 %v4095, %v4096
    %v4209 = vpack.c.bf16 %v4093, %v4094
    %v4210 = vpack.c.bf16 %v4091, %v4092
    %v4211 = vpack.c.bf16 %v4089, %v4090
    %v4212 = vpack.c.bf16 %v4087, %v4088
    %v4213 = vpack.c.bf16 %v4085, %v4086
    %v4214 = vpack.c.bf16 %v4083, %v4084
    %v4215 = vpack.c.bf16 %v4081, %v4082
    %v4216 = vpack.c.bf16 %v4079, %v4080
    %v4217 = vpack.c.bf16 %v4077, %v4078
    %v4218 = vpack.c.bf16 %v4075, %v4076
    %v4219 = vpack.c.bf16 %v4073, %v4074
    %v4220 = vpack.c.bf16 %v4071, %v4072
    %v4221 = vpack.c.bf16 %v4069, %v4070
    %v4222 = vpack.c.bf16 %v4067, %v4068
    %v4223 = vpack.c.bf16 %v4065, %v4066
    %v4224 = vpack.c.bf16 %v4063, %v4064
    %v4225 = vpack.c.bf16 %v4061, %v4062
    %v4226 = vpack.c.bf16 %v4059, %v4060
    %v4227 = vpack.c.bf16 %v3964, %v3963
    %v4228 = vpack.c.bf16 %v3966, %v3965
    %v4229 = vpack.c.bf16 %v3968, %v3967
    %v4230 = vpack.c.bf16 %v3970, %v3969
    %v4231 = vpack.c.bf16 %v3972, %v3971
    %v4232 = vpack.c.bf16 %v3974, %v3973
    %v4233 = vpack.c.bf16 %v3976, %v3975
    %v4234 = vpack.c.bf16 %v3978, %v3977
    %v4235 = vpack.c.bf16 %v3980, %v3979
    %v4236 = vpack.c.bf16 %v3982, %v3981
    %v4237 = vpack.c.bf16 %v3984, %v3983
    %v4238 = vpack.c.bf16 %v3986, %v3985
    %v4239 = vpack.c.bf16 %v3988, %v3987
    %v4240 = vpack.c.bf16 %v3990, %v3989
    %v4241 = vpack.c.bf16 %v3992, %v3991
    %v4242 = vpack.c.bf16 %v3994, %v3993
    %v4243 = vpack.c.bf16 %v3996, %v3995
    %v4244 = vpack.c.bf16 %v3998, %v3997
    %v4245 = vpack.c.bf16 %v4000, %v3999
    %v4246 = vpack.c.bf16 %v4002, %v4001
    %v4247 = vpack.c.bf16 %v4004, %v4003
    %v4248 = vpack.c.bf16 %v4006, %v4005
    %v4249 = vpack.c.bf16 %v4008, %v4007
    %v4250 = vpack.c.bf16 %v4010, %v4009
    %v4251 = vpack.c.bf16 %v4200, %v4201
    %v4252 = vpack.c.bf16 %v4198, %v4199
    %v4253 = vpack.c.bf16 %v4196, %v4197
    %v4254 = vpack.c.bf16 %v4194, %v4195
    %v4255 = vpack.c.bf16 %v4192, %v4193
    %v4256 = vpack.c.bf16 %v4190, %v4191
    %v4257 = vpack.c.bf16 %v4188, %v4189
    %v4258 = vpack.c.bf16 %v4186, %v4187
    %v4259 = vpack.c.bf16 %v4184, %v4185
    %v4260 = vpack.c.bf16 %v4182, %v4183
    %v4261 = vpack.c.bf16 %v4180, %v4181
    %v4262 = vpack.c.bf16 %v4178, %v4179
    %v4263 = vpack.c.bf16 %v4176, %v4177
    %v4264 = vpack.c.bf16 %v4174, %v4175
    %v4265 = vpack.c.bf16 %v4172, %v4173
    %v4266 = vpack.c.bf16 %v4170, %v4171
    %v4267 = vpack.c.bf16 %v4168, %v4169
    %v4268 = vpack.c.bf16 %v4166, %v4167
    %v4269 = vpack.c.bf16 %v4164, %v4165
    %v4270 = vpack.c.bf16 %v4162, %v4163
    %v4271 = vpack.c.bf16 %v4160, %v4161
    %v4272 = vpack.c.bf16 %v4158, %v4159
    %v4273 = vpack.c.bf16 %v4156, %v4157
    %v4274 = vpack.c.bf16 %v4202, %v4155
    %v4275 = vld [vmem:[%s9] sm:$0xf]
    %v4276 = vld [vmem:[%s9 + $0x4] sm:$0xf]
    %v4277 = vld [vmem:[%s9 + $0x8] sm:$0xf]
    %v4278 = vld [vmem:[%s9 + $0xc] sm:$0xf]
    %v4279 = vld [vmem:[%s9 + $0x10] sm:$0xf]
    %v4280 = vld [vmem:[%s9 + $0x14] sm:$0xf]
    %v4281 = vld [vmem:[%s9 + $0x18] sm:$0xf]
    %v4282 = vld [vmem:[%s9 + $0x1c] sm:$0xf]
    %v4283 = vld [vmem:[%s9 + $0x20] sm:$0xf]
    %v4284 = vld [vmem:[%s9 + $0x24] sm:$0xf]
    %v4285 = vld [vmem:[%s9 + $0x28] sm:$0xf]
    %v4286 = vld [vmem:[%s9 + $0x2c] sm:$0xf]
    %v4287 = vld [vmem:[%s9 + $0x30] sm:$0xf]
    %v4288 = vld [vmem:[%s9 + $0x34] sm:$0xf]
    %v4289 = vld [vmem:[%s9 + $0x38] sm:$0xf]
    %v4290 = vld [vmem:[%s9 + $0x3c] sm:$0xf]
    %v4291 = vld [vmem:[%s9 + $0x40] sm:$0xf]
    %v4292 = vld [vmem:[%s9 + $0x44] sm:$0xf]
    %v4293 = vld [vmem:[%s9 + $0x48] sm:$0xf]
    %v4294 = vld [vmem:[%s9 + $0x4c] sm:$0xf]
    %v4295 = vld [vmem:[%s9 + $0x50] sm:$0xf]
    %v4296 = vld [vmem:[%s9 + $0x54] sm:$0xf]
    %v4297 = vld [vmem:[%s9 + $0x58] sm:$0xf]
    %v4298 = vld [vmem:[%s9 + $0x5c] sm:$0xf]
    %v4299 = vld [vmem:[%s9 + $0x60] sm:$0xf]
    %v4300 = vld [vmem:[%s9 + $0x64] sm:$0xf]
    %v4301 = vld [vmem:[%s9 + $0x68] sm:$0xf]
    %v4302 = vld [vmem:[%s9 + $0x6c] sm:$0xf]
    %v4303 = vld [vmem:[%s9 + $0x70] sm:$0xf]
    %v4304 = vld [vmem:[%s9 + $0x74] sm:$0xf]
    %v4305 = vld [vmem:[%s9 + $0x78] sm:$0xf]
    %v4306 = vld [vmem:[%s9 + $0x7c] sm:$0xf]
    %v4307 = vld [vmem:[%s9 + $0x80] sm:$0xf]
    %v4308 = vld [vmem:[%s9 + $0x84] sm:$0xf]
    %v4309 = vld [vmem:[%s9 + $0x88] sm:$0xf]
    %v4310 = vld [vmem:[%s9 + $0x8c] sm:$0xf]
    %v4311 = vld [vmem:[%s9 + $0x90] sm:$0xf]
    %v4312 = vld [vmem:[%s9 + $0x94] sm:$0xf]
    %v4313 = vld [vmem:[%s9 + $0x98] sm:$0xf]
    %v4314 = vld [vmem:[%s9 + $0x9c] sm:$0xf]
    %v4315 = vld [vmem:[%s9 + $0xa0] sm:$0xf]
    %v4316 = vld [vmem:[%s9 + $0xa4] sm:$0xf]
    %v4317 = vld [vmem:[%s9 + $0xa8] sm:$0xf]
    %v4318 = vld [vmem:[%s9 + $0xac] sm:$0xf]
    %v4319 = vld [vmem:[%s9 + $0xb0] sm:$0xf]
    %v4320 = vld [vmem:[%s9 + $0xb4] sm:$0xf]
    %v4321 = vld [vmem:[%s9 + $0xb8] sm:$0xf]
    %v4322 = vld [vmem:[%s9 + $0xbc] sm:$0xf]
    %v4323 = vld [vmem:[%s13] sm:$0x1]
    %v4325 = vlaneseq
    %v4326 = vshrl.u32 %v4325, 7
    %v4327 = vsub.s32 0, %v4326
    %v4328 = vrot.slane %v4323, %v4327
    %v4378 = vunpack.c.l.b16 %v4275
    %v4379 = vunpack.c.l.b16 %v4276
    %v4380 = vunpack.c.l.b16 %v4277
    %v4381 = vunpack.c.l.b16 %v4278
    %v4382 = vunpack.c.l.b16 %v4279
    %v4383 = vunpack.c.l.b16 %v4280
    %v4384 = vunpack.c.l.b16 %v4281
    %v4385 = vunpack.c.l.b16 %v4282
    %v4386 = vunpack.c.l.b16 %v4283
    %v4387 = vunpack.c.l.b16 %v4284
    %v4388 = vunpack.c.l.b16 %v4285
    %v4389 = vunpack.c.l.b16 %v4286
    %v4390 = vunpack.c.l.b16 %v4287
    %v4391 = vunpack.c.l.b16 %v4288
    %v4392 = vunpack.c.l.b16 %v4289
    %v4393 = vunpack.c.l.b16 %v4290
    %v4394 = vunpack.c.l.b16 %v4291
    %v4395 = vunpack.c.l.b16 %v4292
    %v4396 = vunpack.c.l.b16 %v4293
    %v4397 = vunpack.c.l.b16 %v4294
    %v4398 = vunpack.c.l.b16 %v4295
    %v4399 = vunpack.c.l.b16 %v4296
    %v4400 = vunpack.c.l.b16 %v4297
    %v4401 = vunpack.c.l.b16 %v4298
    %v4402 = vunpack.c.l.b16 %v4299
    %v4403 = vunpack.c.l.b16 %v4300
    %v4404 = vunpack.c.l.b16 %v4301
    %v4405 = vunpack.c.l.b16 %v4302
    %v4406 = vunpack.c.l.b16 %v4303
    %v4407 = vunpack.c.l.b16 %v4304
    %v4408 = vunpack.c.l.b16 %v4305
    %v4409 = vunpack.c.l.b16 %v4306
    %v4410 = vunpack.c.l.b16 %v4307
    %v4411 = vunpack.c.l.b16 %v4308
    %v4412 = vunpack.c.l.b16 %v4309
    %v4413 = vunpack.c.l.b16 %v4310
    %v4414 = vunpack.c.l.b16 %v4311
    %v4415 = vunpack.c.l.b16 %v4312
    %v4416 = vunpack.c.l.b16 %v4313
    %v4417 = vunpack.c.l.b16 %v4314
    %v4418 = vunpack.c.l.b16 %v4315
    %v4419 = vunpack.c.l.b16 %v4316
    %v4420 = vunpack.c.l.b16 %v4317
    %v4421 = vunpack.c.l.b16 %v4318
    %v4422 = vunpack.c.l.b16 %v4319
    %v4423 = vunpack.c.l.b16 %v4320
    %v4424 = vunpack.c.l.b16 %v4321
    %v4425 = vunpack.c.l.b16 %v4322
    %v4426 = vpack.c.b16 %v4379, %v4378
    %v4427 = vpack.c.b16 %v4381, %v4380
    %v4428 = vpack.c.b16 %v4383, %v4382
    %v4429 = vpack.c.b16 %v4385, %v4384
    %v4430 = vpack.c.b16 %v4387, %v4386
    %v4431 = vpack.c.b16 %v4389, %v4388
    %v4432 = vpack.c.b16 %v4391, %v4390
    %v4433 = vpack.c.b16 %v4393, %v4392
    %v4434 = vpack.c.b16 %v4395, %v4394
    %v4435 = vpack.c.b16 %v4397, %v4396
    %v4436 = vpack.c.b16 %v4399, %v4398
    %v4437 = vpack.c.b16 %v4401, %v4400
    %v4438 = vpack.c.b16 %v4403, %v4402
    %v4439 = vpack.c.b16 %v4405, %v4404
    %v4440 = vpack.c.b16 %v4407, %v4406
    %v4441 = vpack.c.b16 %v4409, %v4408
    %v4442 = vpack.c.b16 %v4411, %v4410
    %v4443 = vpack.c.b16 %v4413, %v4412
    %v4444 = vpack.c.b16 %v4415, %v4414
    %v4445 = vpack.c.b16 %v4417, %v4416
    %v4446 = vpack.c.b16 %v4419, %v4418
    %v4447 = vpack.c.b16 %v4421, %v4420
    %v4448 = vpack.c.b16 %v4423, %v4422
    %v4449 = vpack.c.b16 %v4425, %v4424
    %4474 = vmatprep.subr.bf16.mxu0 0
    %4475 = vmatpush1.bf16.msra.mxu0 %v4426
    %4476 = vmatprep.subr.bf16.mxu0 0
    %4477 = vmatpush1.bf16.msra.mxu0 %v4427
    %4478 = vmatprep.subr.bf16.mxu0 0
    %4479 = vmatpush1.bf16.msra.mxu0 %v4428
    %4480 = vmatprep.subr.bf16.mxu0 0
    %4481 = vmatpush1.bf16.msra.mxu0 %v4429
    %4482 = vmatprep.subr.bf16.mxu0 0
    %4483 = vmatpush1.bf16.msra.mxu0 %v4430
    %4484 = vmatprep.subr.bf16.mxu0 0
    %4485 = vmatpush1.bf16.msra.mxu0 %v4431
    %4486 = vmatprep.subr.bf16.mxu0 0
    %4487 = vmatpush1.bf16.msra.mxu0 %v4432
    %4488 = vmatprep.subr.bf16.mxu0 0
    %4489 = vmatpush1.bf16.msra.mxu0 %v4433
    %4490 = vmatprep.subr.bf16.mxu0 0
    %4491 = vmatpush1.bf16.msra.mxu0 %v4434
    %4492 = vmatprep.subr.bf16.mxu0 0
    %4493 = vmatpush1.bf16.msra.mxu0 %v4435
    %4494 = vmatprep.subr.bf16.mxu0 0
    %4495 = vmatpush1.bf16.msra.mxu0 %v4436
    %4496 = vmatprep.subr.bf16.mxu0 0
    %4497 = vmatpush1.bf16.msra.mxu0 %v4437
    %4498 = vmatprep.subr.bf16.mxu0 0
    %4499 = vmatpush1.bf16.msra.mxu0 %v4438
    %4500 = vmatprep.subr.bf16.mxu0 0
    %4501 = vmatpush1.bf16.msra.mxu0 %v4439
    %4502 = vmatprep.subr.bf16.mxu0 0
    %4503 = vmatpush1.bf16.msra.mxu0 %v4440
    %4504 = vmatprep.subr.bf16.mxu0 0
    %4505 = vmatpush1.bf16.msra.mxu0 %v4441
    %4506 = vmatprep.mubr.bf16.mxu0 %v4227
    %4507 = vmatmul.mubr.bf16.gmra.mrb[0].mxu0 %v4203
    %v4508 = vpop.f32.mrb[0].mxu0
    %v4509 = vadd.f32 %v4328, %v4508
    %v4510 = vpop.f32.mrb[0].mxu0
    %v4511 = vpop.f32.mrb[0].mxu0
    %v4512 = vadd.f32 %v4328, %v4511
    %v4513 = vpop.f32.mrb[0].mxu0
    %4514 = vmatprep.mubr.bf16.mxu0 %v4228
    %4515 = vmatmul.mubr.bf16.gmra.mrb[0].mxu0 %v4204
    %v4516 = vpop.f32.mrb[0].mxu0
    %v4517 = vadd.f32 %v4328, %v4516
    %v4518 = vpop.f32.mrb[0].mxu0
    %v4519 = vpop.f32.mrb[0].mxu0
    %v4520 = vadd.f32 %v4328, %v4519
    %v4521 = vpop.f32.mrb[0].mxu0
    %4522 = vmatprep.mubr.bf16.mxu0 %v4229
    %4523 = vmatmul.mubr.bf16.gmra.mrb[0].mxu0 %v4205
    %v4524 = vpop.f32.mrb[0].mxu0
    %v4525 = vadd.f32 %v4328, %v4524
    %v4526 = vpop.f32.mrb[0].mxu0
    %v4527 = vpop.f32.mrb[0].mxu0
    %v4528 = vadd.f32 %v4328, %v4527
    %v4529 = vpop.f32.mrb[0].mxu0
    %4530 = vmatprep.mubr.bf16.mxu0 %v4230
    %4531 = vmatmul.mubr.bf16.gmra.mrb[0].mxu0 %v4206
    %v4532 = vpop.f32.mrb[0].mxu0
    %v4533 = vadd.f32 %v4328, %v4532
    %v4534 = vpop.f32.mrb[0].mxu0
    %v4535 = vpop.f32.mrb[0].mxu0
    %v4536 = vadd.f32 %v4328, %v4535
    %v4537 = vpop.f32.mrb[0].mxu0
    %4538 = vmatprep.mubr.bf16.mxu0 %v4231
    %4539 = vmatmul.mubr.bf16.gmra.mrb[0].mxu0 %v4207
    %v4540 = vpop.f32.mrb[0].mxu0
    %v4541 = vadd.f32 %v4328, %v4540
    %v4542 = vpop.f32.mrb[0].mxu0
    %v4543 = vpop.f32.mrb[0].mxu0
    %v4544 = vadd.f32 %v4328, %v4543
    %v4545 = vpop.f32.mrb[0].mxu0
    %4546 = vmatprep.mubr.bf16.mxu0 %v4232
    %4547 = vmatmul.mubr.bf16.gmra.mrb[0].mxu0 %v4208
    %v4548 = vpop.f32.mrb[0].mxu0
    %v4549 = vadd.f32 %v4328, %v4548
    %v4550 = vpop.f32.mrb[0].mxu0
    %v4551 = vpop.f32.mrb[0].mxu0
    %v4552 = vadd.f32 %v4328, %v4551
    %v4553 = vpop.f32.mrb[0].mxu0
    %4554 = vmatprep.mubr.bf16.mxu0 %v4233
    %4555 = vmatmul.mubr.bf16.gmra.mrb[0].mxu0 %v4209
    %v4556 = vpop.f32.mrb[0].mxu0
    %v4557 = vadd.f32 %v4328, %v4556
    %v4558 = vpop.f32.mrb[0].mxu0
    %v4559 = vpop.f32.mrb[0].mxu0
    %v4560 = vadd.f32 %v4328, %v4559
    %v4561 = vpop.f32.mrb[0].mxu0
    %4562 = vmatprep.mubr.bf16.mxu0 %v4234
    %4563 = vmatmul.mubr.bf16.gmra.mrb[0].mxu0 %v4210
    %v4564 = vpop.f32.mrb[0].mxu0
    %v4565 = vadd.f32 %v4328, %v4564
    %v4566 = vpop.f32.mrb[0].mxu0
    %v4567 = vpop.f32.mrb[0].mxu0
    %v4568 = vadd.f32 %v4328, %v4567
    %v4569 = vpop.f32.mrb[0].mxu0
    %4570 = vmatprep.mubr.bf16.mxu0 %v4235
    %4571 = vmatmul.mubr.bf16.gmra.mrb[0].mxu0 %v4211
    %v4572 = vpop.f32.mrb[0].mxu0
    %v4573 = vadd.f32 %v4328, %v4572
    %v4574 = vpop.f32.mrb[0].mxu0
    %v4575 = vpop.f32.mrb[0].mxu0
    %v4576 = vadd.f32 %v4328, %v4575
    %v4577 = vpop.f32.mrb[0].mxu0
    %4578 = vmatprep.mubr.bf16.mxu0 %v4236
    %4579 = vmatmul.mubr.bf16.gmra.mrb[0].mxu0 %v4212
    %v4580 = vpop.f32.mrb[0].mxu0
    %v4581 = vadd.f32 %v4328, %v4580
    %v4582 = vpop.f32.mrb[0].mxu0
    %v4583 = vpop.f32.mrb[0].mxu0
    %v4584 = vadd.f32 %v4328, %v4583
    %v4585 = vpop.f32.mrb[0].mxu0
    %4586 = vmatprep.mubr.bf16.mxu0 %v4237
    %4587 = vmatmul.mubr.bf16.gmra.mrb[0].mxu0 %v4213
    %v4588 = vpop.f32.mrb[0].mxu0
    %v4589 = vadd.f32 %v4328, %v4588
    %v4590 = vpop.f32.mrb[0].mxu0
    %v4591 = vpop.f32.mrb[0].mxu0
    %v4592 = vadd.f32 %v4328, %v4591
    %v4593 = vpop.f32.mrb[0].mxu0
    %4594 = vmatprep.mubr.bf16.mxu0 %v4238
    %4595 = vmatmul.mubr.bf16.gmra.mrb[0].mxu0 %v4214
    %v4596 = vpop.f32.mrb[0].mxu0
    %v4597 = vadd.f32 %v4328, %v4596
    %v4598 = vpop.f32.mrb[0].mxu0
    %v4599 = vpop.f32.mrb[0].mxu0
    %v4600 = vadd.f32 %v4328, %v4599
    %v4601 = vpop.f32.mrb[0].mxu0
    %4602 = vmatprep.mubr.bf16.mxu0 %v4239
    %4603 = vmatmul.mubr.bf16.gmra.mrb[0].mxu0 %v4215
    %v4604 = vpop.f32.mrb[0].mxu0
    %v4605 = vadd.f32 %v4328, %v4604
    %v4606 = vpop.f32.mrb[0].mxu0
    %v4607 = vpop.f32.mrb[0].mxu0
    %v4608 = vadd.f32 %v4328, %v4607
    %v4609 = vpop.f32.mrb[0].mxu0
    %4610 = vmatprep.mubr.bf16.mxu0 %v4240
    %4611 = vmatmul.mubr.bf16.gmra.mrb[0].mxu0 %v4216
    %v4612 = vpop.f32.mrb[0].mxu0
    %v4613 = vadd.f32 %v4328, %v4612
    %v4614 = vpop.f32.mrb[0].mxu0
    %v4615 = vpop.f32.mrb[0].mxu0
    %v4616 = vadd.f32 %v4328, %v4615
    %v4617 = vpop.f32.mrb[0].mxu0
    %4618 = vmatprep.mubr.bf16.mxu0 %v4241
    %4619 = vmatmul.mubr.bf16.gmra.mrb[0].mxu0 %v4217
    %v4620 = vpop.f32.mrb[0].mxu0
    %v4621 = vadd.f32 %v4328, %v4620
    %v4622 = vpop.f32.mrb[0].mxu0
    %v4623 = vpop.f32.mrb[0].mxu0
    %v4624 = vadd.f32 %v4328, %v4623
    %v4625 = vpop.f32.mrb[0].mxu0
    %4626 = vmatprep.mubr.bf16.mxu0 %v4242
    %4627 = vmatmul.mubr.bf16.gmra.mrb[0].mxu0 %v4218
    %v4628 = vpop.f32.mrb[0].mxu0
    %v4629 = vadd.f32 %v4328, %v4628
    %v4630 = vpop.f32.mrb[0].mxu0
    %v4631 = vpop.f32.mrb[0].mxu0
    %v4632 = vadd.f32 %v4328, %v4631
    %v4633 = vpop.f32.mrb[0].mxu0
    %4634 = vmatprep.mubr.bf16.mxu0 %v4243
    %4635 = vmatmul.mubr.bf16.gmra.mrb[0].mxu0 %v4219
    %v4636 = vpop.f32.mrb[0].mxu0
    %v4637 = vadd.f32 %v4328, %v4636
    %v4638 = vpop.f32.mrb[0].mxu0
    %v4639 = vpop.f32.mrb[0].mxu0
    %v4640 = vadd.f32 %v4328, %v4639
    %v4641 = vpop.f32.mrb[0].mxu0
    %4642 = vmatprep.mubr.bf16.mxu0 %v4244
    %4643 = vmatmul.mubr.bf16.gmra.mrb[0].mxu0 %v4220
    %v4644 = vpop.f32.mrb[0].mxu0
    %v4645 = vadd.f32 %v4328, %v4644
    %v4646 = vpop.f32.mrb[0].mxu0
    %v4647 = vpop.f32.mrb[0].mxu0
    %v4648 = vadd.f32 %v4328, %v4647
    %v4649 = vpop.f32.mrb[0].mxu0
    %4650 = vmatprep.mubr.bf16.mxu0 %v4245
    %4651 = vmatmul.mubr.bf16.gmra.mrb[0].mxu0 %v4221
    %v4652 = vpop.f32.mrb[0].mxu0
    %v4653 = vadd.f32 %v4328, %v4652
    %v4654 = vpop.f32.mrb[0].mxu0
    %v4655 = vpop.f32.mrb[0].mxu0
    %v4656 = vadd.f32 %v4328, %v4655
    %v4657 = vpop.f32.mrb[0].mxu0
    %4658 = vmatprep.mubr.bf16.mxu0 %v4246
    %4659 = vmatmul.mubr.bf16.gmra.mrb[0].mxu0 %v4222
    %v4660 = vpop.f32.mrb[0].mxu0
    %v4661 = vadd.f32 %v4328, %v4660
    %v4662 = vpop.f32.mrb[0].mxu0
    %v4663 = vpop.f32.mrb[0].mxu0
    %v4664 = vadd.f32 %v4328, %v4663
    %v4665 = vpop.f32.mrb[0].mxu0
    %4666 = vmatprep.mubr.bf16.mxu0 %v4247
    %4667 = vmatmul.mubr.bf16.gmra.mrb[0].mxu0 %v4223
    %v4668 = vpop.f32.mrb[0].mxu0
    %v4669 = vadd.f32 %v4328, %v4668
    %v4670 = vpop.f32.mrb[0].mxu0
    %v4671 = vpop.f32.mrb[0].mxu0
    %v4672 = vadd.f32 %v4328, %v4671
    %v4673 = vpop.f32.mrb[0].mxu0
    %4674 = vmatprep.mubr.bf16.mxu0 %v4248
    %4675 = vmatmul.mubr.bf16.gmra.mrb[0].mxu0 %v4224
    %v4676 = vpop.f32.mrb[0].mxu0
    %v4677 = vadd.f32 %v4328, %v4676
    %v4678 = vpop.f32.mrb[0].mxu0
    %v4679 = vpop.f32.mrb[0].mxu0
    %v4680 = vadd.f32 %v4328, %v4679
    %v4681 = vpop.f32.mrb[0].mxu0
    %4682 = vmatprep.mubr.bf16.mxu0 %v4249
    %4683 = vmatmul.mubr.bf16.gmra.mrb[0].mxu0 %v4225
    %v4684 = vpop.f32.mrb[0].mxu0
    %v4685 = vadd.f32 %v4328, %v4684
    %v4686 = vpop.f32.mrb[0].mxu0
    %v4687 = vpop.f32.mrb[0].mxu0
    %v4688 = vadd.f32 %v4328, %v4687
    %v4689 = vpop.f32.mrb[0].mxu0
    %4690 = vmatprep.mubr.bf16.mxu0 %v4250
    %4691 = vmatmul.mubr.bf16.gmra.mrb[0].mxu0 %v4226
    %v4692 = vpop.f32.mrb[0].mxu0
    %v4693 = vadd.f32 %v4328, %v4692
    %v4694 = vpop.f32.mrb[0].mxu0
    %v4695 = vpop.f32.mrb[0].mxu0
    %v4696 = vadd.f32 %v4328, %v4695
    %v4697 = vpop.f32.mrb[0].mxu0
    %4698 = vdwg.mxu0
    %4699 = vmatprep.subr.bf16.mxu0 0
    %4700 = vmatpush1.bf16.msra.mxu0 %v4442
    %4701 = vmatprep.subr.bf16.mxu0 0
    %4702 = vmatpush1.bf16.msra.mxu0 %v4443
    %4703 = vmatprep.subr.bf16.mxu0 0
    %4704 = vmatpush1.bf16.msra.mxu0 %v4444
    %4705 = vmatprep.subr.bf16.mxu0 0
    %4706 = vmatpush1.bf16.msra.mxu0 %v4445
    %4707 = vmatprep.subr.bf16.mxu0 0
    %4708 = vmatpush1.bf16.msra.mxu0 %v4446
    %4709 = vmatprep.subr.bf16.mxu0 0
    %4710 = vmatpush1.bf16.msra.mxu0 %v4447
    %4711 = vmatprep.subr.bf16.mxu0 0
    %4712 = vmatpush1.bf16.msra.mxu0 %v4448
    %4713 = vmatprep.subr.bf16.mxu0 0
    %4714 = vmatpush1.bf16.msra.mxu0 %v4449
    %4715 = vmatprep.subr.bf16.mxu0 0
    %4716 = vmatpush1.bf16.msra.mxu0 0
    %4717 = vmatprep.subr.bf16.mxu0 0
    %4718 = vmatpush1.bf16.msra.mxu0 0
    %4719 = vmatprep.subr.bf16.mxu0 0
    %4720 = vmatpush1.bf16.msra.mxu0 0
    %4721 = vmatprep.subr.bf16.mxu0 0
    %4722 = vmatpush1.bf16.msra.mxu0 0
    %4723 = vmatprep.subr.bf16.mxu0 0
    %4724 = vmatpush1.bf16.msra.mxu0 0
    %4725 = vmatprep.subr.bf16.mxu0 0
    %4726 = vmatpush1.bf16.msra.mxu0 0
    %4727 = vmatprep.subr.bf16.mxu0 0
    %4728 = vmatpush1.bf16.msra.mxu0 0
    %4729 = vmatprep.subr.bf16.mxu0 0
    %4730 = vmatpush1.bf16.msra.mxu0 0
    %4731 = vmatprep.mubr.bf16.mxu0 0
    %4732 = vmatmul.mubr.bf16.gmra.mrb[0].mxu0 %v4251
    %v4733 = vpop.f32.mrb[0].mxu0
    %v4734 = vadd.f32 %v4509, %v4733
    %v4735 = vpop.f32.mrb[0].mxu0
    %v4736 = vpop.f32.mrb[0].mxu0
    %v4737 = vadd.f32 %v4512, %v4736
    %v4738 = vpop.f32.mrb[0].mxu0
    %4739 = vmatprep.mubr.bf16.mxu0 0
    %4740 = vmatmul.mubr.bf16.gmra.mrb[0].mxu0 %v4252
    %v4741 = vpop.f32.mrb[0].mxu0
    %v4742 = vadd.f32 %v4517, %v4741
    %v4743 = vpop.f32.mrb[0].mxu0
    %v4744 = vpop.f32.mrb[0].mxu0
    %v4745 = vadd.f32 %v4520, %v4744
    %v4746 = vpop.f32.mrb[0].mxu0
    %4747 = vmatprep.mubr.bf16.mxu0 0
    %4748 = vmatmul.mubr.bf16.gmra.mrb[0].mxu0 %v4253
    %v4749 = vpop.f32.mrb[0].mxu0
    %v4750 = vadd.f32 %v4525, %v4749
    %v4751 = vpop.f32.mrb[0].mxu0
    %v4752 = vpop.f32.mrb[0].mxu0
    %v4753 = vadd.f32 %v4528, %v4752
    %v4754 = vpop.f32.mrb[0].mxu0
    %4755 = vmatprep.mubr.bf16.mxu0 0
    %4756 = vmatmul.mubr.bf16.gmra.mrb[0].mxu0 %v4254
    %v4757 = vpop.f32.mrb[0].mxu0
    %v4758 = vadd.f32 %v4533, %v4757
    %v4759 = vpop.f32.mrb[0].mxu0
    %v4760 = vpop.f32.mrb[0].mxu0
    %v4761 = vadd.f32 %v4536, %v4760
    %v4762 = vpop.f32.mrb[0].mxu0
    %4763 = vmatprep.mubr.bf16.mxu0 0
    %4764 = vmatmul.mubr.bf16.gmra.mrb[0].mxu0 %v4255
    %v4765 = vpop.f32.mrb[0].mxu0
    %v4766 = vadd.f32 %v4541, %v4765
    %v4767 = vpop.f32.mrb[0].mxu0
    %v4768 = vpop.f32.mrb[0].mxu0
    %v4769 = vadd.f32 %v4544, %v4768
    %v4770 = vpop.f32.mrb[0].mxu0
    %4771 = vmatprep.mubr.bf16.mxu0 0
    %4772 = vmatmul.mubr.bf16.gmra.mrb[0].mxu0 %v4256
    %v4773 = vpop.f32.mrb[0].mxu0
    %v4774 = vadd.f32 %v4549, %v4773
    %v4775 = vpop.f32.mrb[0].mxu0
    %v4776 = vpop.f32.mrb[0].mxu0
    %v4777 = vadd.f32 %v4552, %v4776
    %v4778 = vpop.f32.mrb[0].mxu0
    %4779 = vmatprep.mubr.bf16.mxu0 0
    %4780 = vmatmul.mubr.bf16.gmra.mrb[0].mxu0 %v4257
    %v4781 = vpop.f32.mrb[0].mxu0
    %v4782 = vadd.f32 %v4557, %v4781
    %v4783 = vpop.f32.mrb[0].mxu0
    %v4784 = vpop.f32.mrb[0].mxu0
    %v4785 = vadd.f32 %v4560, %v4784
    %v4786 = vpop.f32.mrb[0].mxu0
    %4787 = vmatprep.mubr.bf16.mxu0 0
    %4788 = vmatmul.mubr.bf16.gmra.mrb[0].mxu0 %v4258
    %v4789 = vpop.f32.mrb[0].mxu0
    %v4790 = vadd.f32 %v4565, %v4789
    %v4791 = vpop.f32.mrb[0].mxu0
    %v4792 = vpop.f32.mrb[0].mxu0
    %v4793 = vadd.f32 %v4568, %v4792
    %v4794 = vpop.f32.mrb[0].mxu0
    %4795 = vmatprep.mubr.bf16.mxu0 0
    %4796 = vmatmul.mubr.bf16.gmra.mrb[0].mxu0 %v4259
    %v4797 = vpop.f32.mrb[0].mxu0
    %v4798 = vadd.f32 %v4573, %v4797
    %v4799 = vpop.f32.mrb[0].mxu0
    %v4800 = vpop.f32.mrb[0].mxu0
    %v4801 = vadd.f32 %v4576, %v4800
    %v4802 = vpop.f32.mrb[0].mxu0
    %4803 = vmatprep.mubr.bf16.mxu0 0
    %4804 = vmatmul.mubr.bf16.gmra.mrb[0].mxu0 %v4260
    %v4805 = vpop.f32.mrb[0].mxu0
    %v4806 = vadd.f32 %v4581, %v4805
    %v4807 = vpop.f32.mrb[0].mxu0
    %v4808 = vpop.f32.mrb[0].mxu0
    %v4809 = vadd.f32 %v4584, %v4808
    %v4810 = vpop.f32.mrb[0].mxu0
    %4811 = vmatprep.mubr.bf16.mxu0 0
    %4812 = vmatmul.mubr.bf16.gmra.mrb[0].mxu0 %v4261
    %v4813 = vpop.f32.mrb[0].mxu0
    %v4814 = vadd.f32 %v4589, %v4813
    %v4815 = vpop.f32.mrb[0].mxu0
    %v4816 = vpop.f32.mrb[0].mxu0
    %v4817 = vadd.f32 %v4592, %v4816
    %v4818 = vpop.f32.mrb[0].mxu0
    %4819 = vmatprep.mubr.bf16.mxu0 0
    %4820 = vmatmul.mubr.bf16.gmra.mrb[0].mxu0 %v4262
    %v4821 = vpop.f32.mrb[0].mxu0
    %v4822 = vadd.f32 %v4597, %v4821
    %v4823 = vpop.f32.mrb[0].mxu0
    %v4824 = vpop.f32.mrb[0].mxu0
    %v4825 = vadd.f32 %v4600, %v4824
    %v4826 = vpop.f32.mrb[0].mxu0
    %4827 = vmatprep.mubr.bf16.mxu0 0
    %4828 = vmatmul.mubr.bf16.gmra.mrb[0].mxu0 %v4263
    %v4829 = vpop.f32.mrb[0].mxu0
    %v4830 = vadd.f32 %v4605, %v4829
    %v4831 = vpop.f32.mrb[0].mxu0
    %v4832 = vpop.f32.mrb[0].mxu0
    %v4833 = vadd.f32 %v4608, %v4832
    %v4834 = vpop.f32.mrb[0].mxu0
    %4835 = vmatprep.mubr.bf16.mxu0 0
    %4836 = vmatmul.mubr.bf16.gmra.mrb[0].mxu0 %v4264
    %v4837 = vpop.f32.mrb[0].mxu0
    %v4838 = vadd.f32 %v4613, %v4837
    %v4839 = vpop.f32.mrb[0].mxu0
    %v4840 = vpop.f32.mrb[0].mxu0
    %v4841 = vadd.f32 %v4616, %v4840
    %v4842 = vpop.f32.mrb[0].mxu0
    %4843 = vmatprep.mubr.bf16.mxu0 0
    %4844 = vmatmul.mubr.bf16.gmra.mrb[0].mxu0 %v4265
    %v4845 = vpop.f32.mrb[0].mxu0
    %v4846 = vadd.f32 %v4621, %v4845
    %v4847 = vpop.f32.mrb[0].mxu0
    %v4848 = vpop.f32.mrb[0].mxu0
    %v4849 = vadd.f32 %v4624, %v4848
    %v4850 = vpop.f32.mrb[0].mxu0
    %4851 = vmatprep.mubr.bf16.mxu0 0
    %4852 = vmatmul.mubr.bf16.gmra.mrb[0].mxu0 %v4266
    %v4853 = vpop.f32.mrb[0].mxu0
    %v4854 = vadd.f32 %v4629, %v4853
    %v4855 = vpop.f32.mrb[0].mxu0
    %v4856 = vpop.f32.mrb[0].mxu0
    %v4857 = vadd.f32 %v4632, %v4856
    %v4858 = vpop.f32.mrb[0].mxu0
    %4859 = vmatprep.mubr.bf16.mxu0 0
    %4860 = vmatmul.mubr.bf16.gmra.mrb[0].mxu0 %v4267
    %v4861 = vpop.f32.mrb[0].mxu0
    %v4862 = vadd.f32 %v4637, %v4861
    %v4863 = vpop.f32.mrb[0].mxu0
    %v4864 = vpop.f32.mrb[0].mxu0
    %v4865 = vadd.f32 %v4640, %v4864
    %v4866 = vpop.f32.mrb[0].mxu0
    %4867 = vmatprep.mubr.bf16.mxu0 0
    %4868 = vmatmul.mubr.bf16.gmra.mrb[0].mxu0 %v4268
    %v4869 = vpop.f32.mrb[0].mxu0
    %v4870 = vadd.f32 %v4645, %v4869
    %v4871 = vpop.f32.mrb[0].mxu0
    %v4872 = vpop.f32.mrb[0].mxu0
    %v4873 = vadd.f32 %v4648, %v4872
    %v4874 = vpop.f32.mrb[0].mxu0
    %4875 = vmatprep.mubr.bf16.mxu0 0
    %4876 = vmatmul.mubr.bf16.gmra.mrb[0].mxu0 %v4269
    %v4877 = vpop.f32.mrb[0].mxu0
    %v4878 = vadd.f32 %v4653, %v4877
    %v4879 = vpop.f32.mrb[0].mxu0
    %v4880 = vpop.f32.mrb[0].mxu0
    %v4881 = vadd.f32 %v4656, %v4880
    %v4882 = vpop.f32.mrb[0].mxu0
    %4883 = vmatprep.mubr.bf16.mxu0 0
    %4884 = vmatmul.mubr.bf16.gmra.mrb[0].mxu0 %v4270
    %v4885 = vpop.f32.mrb[0].mxu0
    %v4886 = vadd.f32 %v4661, %v4885
    %v4887 = vpop.f32.mrb[0].mxu0
    %v4888 = vpop.f32.mrb[0].mxu0
    %v4889 = vadd.f32 %v4664, %v4888
    %v4890 = vpop.f32.mrb[0].mxu0
    %4891 = vmatprep.mubr.bf16.mxu0 0
    %4892 = vmatmul.mubr.bf16.gmra.mrb[0].mxu0 %v4271
    %v4893 = vpop.f32.mrb[0].mxu0
    %v4894 = vadd.f32 %v4669, %v4893
    %v4895 = vpop.f32.mrb[0].mxu0
    %v4896 = vpop.f32.mrb[0].mxu0
    %v4897 = vadd.f32 %v4672, %v4896
    %v4898 = vpop.f32.mrb[0].mxu0
    %4899 = vmatprep.mubr.bf16.mxu0 0
    %4900 = vmatmul.mubr.bf16.gmra.mrb[0].mxu0 %v4272
    %v4901 = vpop.f32.mrb[0].mxu0
    %v4902 = vadd.f32 %v4677, %v4901
    %v4903 = vpop.f32.mrb[0].mxu0
    %v4904 = vpop.f32.mrb[0].mxu0
    %v4905 = vadd.f32 %v4680, %v4904
    %v4906 = vpop.f32.mrb[0].mxu0
    %4907 = vmatprep.mubr.bf16.mxu0 0
    %4908 = vmatmul.mubr.bf16.gmra.mrb[0].mxu0 %v4273
    %v4909 = vpop.f32.mrb[0].mxu0
    %v4910 = vadd.f32 %v4685, %v4909
    %v4911 = vpop.f32.mrb[0].mxu0
    %v4912 = vpop.f32.mrb[0].mxu0
    %v4913 = vadd.f32 %v4688, %v4912
    %v4914 = vpop.f32.mrb[0].mxu0
    %4915 = vmatprep.mubr.bf16.mxu0 0
    %4916 = vmatmul.mubr.bf16.gmra.mrb[0].mxu0 %v4274
    %v4917 = vpop.f32.mrb[0].mxu0
    %v4918 = vadd.f32 %v4693, %v4917
    %v4919 = vpop.f32.mrb[0].mxu0
    %v4920 = vpop.f32.mrb[0].mxu0
    %v4921 = vadd.f32 %v4696, %v4920
    %v4922 = vpop.f32.mrb[0].mxu0
    %4923 = vdwg.mxu0
    %vm4924 = vcmp.ge.f32.partialorder %v4734, 0.0
    %vm4925 = vcmp.ge.f32.partialorder %v4737, 0.0
    %vm4926 = vcmp.ge.f32.partialorder %v4742, 0.0
    %vm4927 = vcmp.ge.f32.partialorder %v4745, 0.0
    %vm4928 = vcmp.ge.f32.partialorder %v4750, 0.0
    %vm4929 = vcmp.ge.f32.partialorder %v4753, 0.0
    %vm4930 = vcmp.ge.f32.partialorder %v4758, 0.0
    %vm4931 = vcmp.ge.f32.partialorder %v4761, 0.0
    %vm4932 = vcmp.ge.f32.partialorder %v4766, 0.0
    %vm4933 = vcmp.ge.f32.partialorder %v4769, 0.0
    %vm4934 = vcmp.ge.f32.partialorder %v4774, 0.0
    %vm4935 = vcmp.ge.f32.partialorder %v4777, 0.0
    %vm4936 = vcmp.ge.f32.partialorder %v4782, 0.0
    %vm4937 = vcmp.ge.f32.partialorder %v4785, 0.0
    %vm4938 = vcmp.ge.f32.partialorder %v4790, 0.0
    %vm4939 = vcmp.ge.f32.partialorder %v4793, 0.0
    %vm4940 = vcmp.ge.f32.partialorder %v4798, 0.0
    %vm4941 = vcmp.ge.f32.partialorder %v4801, 0.0
    %vm4942 = vcmp.ge.f32.partialorder %v4806, 0.0
    %vm4943 = vcmp.ge.f32.partialorder %v4809, 0.0
    %vm4944 = vcmp.ge.f32.partialorder %v4814, 0.0
    %vm4945 = vcmp.ge.f32.partialorder %v4817, 0.0
    %vm4946 = vcmp.ge.f32.partialorder %v4822, 0.0
    %vm4947 = vcmp.ge.f32.partialorder %v4825, 0.0
    %vm4948 = vcmp.ge.f32.partialorder %v4830, 0.0
    %vm4949 = vcmp.ge.f32.partialorder %v4833, 0.0
    %vm4950 = vcmp.ge.f32.partialorder %v4838, 0.0
    %vm4951 = vcmp.ge.f32.partialorder %v4841, 0.0
    %vm4952 = vcmp.ge.f32.partialorder %v4846, 0.0
    %vm4953 = vcmp.ge.f32.partialorder %v4849, 0.0
    %vm4954 = vcmp.ge.f32.partialorder %v4854, 0.0
    %vm4955 = vcmp.ge.f32.partialorder %v4857, 0.0
    %vm4956 = vcmp.ge.f32.partialorder %v4862, 0.0
    %vm4957 = vcmp.ge.f32.partialorder %v4865, 0.0
    %vm4958 = vcmp.ge.f32.partialorder %v4870, 0.0
    %vm4959 = vcmp.ge.f32.partialorder %v4873, 0.0
    %vm4960 = vcmp.ge.f32.partialorder %v4878, 0.0
    %vm4961 = vcmp.ge.f32.partialorder %v4881, 0.0
    %vm4962 = vcmp.ge.f32.partialorder %v4886, 0.0
    %vm4963 = vcmp.ge.f32.partialorder %v4889, 0.0
    %vm4964 = vcmp.ge.f32.partialorder %v4894, 0.0
    %vm4965 = vcmp.ge.f32.partialorder %v4897, 0.0
    %vm4966 = vcmp.ge.f32.partialorder %v4902, 0.0
    %vm4967 = vcmp.ge.f32.partialorder %v4905, 0.0
    %vm4968 = vcmp.ge.f32.partialorder %v4910, 0.0
    %vm4969 = vcmp.ge.f32.partialorder %v4913, 0.0
    %vm4970 = vcmp.ge.f32.partialorder %v4918, 0.0
    %vm4971 = vcmp.ge.f32.partialorder %v4921, 0.0
    %v4972 = vmul.f32 %v4734, 0.2
    %v4973 = vmul.f32 %v4737, 0.2
    %v4974 = vmul.f32 %v4742, 0.2
    %v4975 = vmul.f32 %v4745, 0.2
    %v4976 = vmul.f32 %v4750, 0.2
    %v4977 = vmul.f32 %v4753, 0.2
    %v4978 = vmul.f32 %v4758, 0.2
    %v4979 = vmul.f32 %v4761, 0.2
    %v4980 = vmul.f32 %v4766, 0.2
    %v4981 = vmul.f32 %v4769, 0.2
    %v4982 = vmul.f32 %v4774, 0.2
    %v4983 = vmul.f32 %v4777, 0.2
    %v4984 = vmul.f32 %v4782, 0.2
    %v4985 = vmul.f32 %v4785, 0.2
    %v4986 = vmul.f32 %v4790, 0.2
    %v4987 = vmul.f32 %v4793, 0.2
    %v4988 = vmul.f32 %v4798, 0.2
    %v4989 = vmul.f32 %v4801, 0.2
    %v4990 = vmul.f32 %v4806, 0.2
    %v4991 = vmul.f32 %v4809, 0.2
    %v4992 = vmul.f32 %v4814, 0.2
    %v4993 = vmul.f32 %v4817, 0.2
    %v4994 = vmul.f32 %v4822, 0.2
    %v4995 = vmul.f32 %v4825, 0.2
    %v4996 = vmul.f32 %v4830, 0.2
    %v4997 = vmul.f32 %v4833, 0.2
    %v4998 = vmul.f32 %v4838, 0.2
    %v4999 = vmul.f32 %v4841, 0.2
    %v5000 = vmul.f32 %v4846, 0.2
    %v5001 = vmul.f32 %v4849, 0.2
    %v5002 = vmul.f32 %v4854, 0.2
    %v5003 = vmul.f32 %v4857, 0.2
    %v5004 = vmul.f32 %v4862, 0.2
    %v5005 = vmul.f32 %v4865, 0.2
    %v5006 = vmul.f32 %v4870, 0.2
    %v5007 = vmul.f32 %v4873, 0.2
    %v5008 = vmul.f32 %v4878, 0.2
    %v5009 = vmul.f32 %v4881, 0.2
    %v5010 = vmul.f32 %v4886, 0.2
    %v5011 = vmul.f32 %v4889, 0.2
    %v5012 = vmul.f32 %v4894, 0.2
    %v5013 = vmul.f32 %v4897, 0.2
    %v5014 = vmul.f32 %v4902, 0.2
    %v5015 = vmul.f32 %v4905, 0.2
    %v5016 = vmul.f32 %v4910, 0.2
    %v5017 = vmul.f32 %v4913, 0.2
    %v5018 = vmul.f32 %v4918, 0.2
    %v5019 = vmul.f32 %v4921, 0.2
    %v5020 = vsel %vm4924, %v4734, %v4972
    %v5021 = vsel %vm4925, %v4737, %v4973
    %v5022 = vsel %vm4926, %v4742, %v4974
    %v5023 = vsel %vm4927, %v4745, %v4975
    %v5024 = vsel %vm4928, %v4750, %v4976
    %v5025 = vsel %vm4929, %v4753, %v4977
    %v5026 = vsel %vm4930, %v4758, %v4978
    %v5027 = vsel %vm4931, %v4761, %v4979
    %v5028 = vsel %vm4932, %v4766, %v4980
    %v5029 = vsel %vm4933, %v4769, %v4981
    %v5030 = vsel %vm4934, %v4774, %v4982
    %v5031 = vsel %vm4935, %v4777, %v4983
    %v5032 = vsel %vm4936, %v4782, %v4984
    %v5033 = vsel %vm4937, %v4785, %v4985
    %v5034 = vsel %vm4938, %v4790, %v4986
    %v5035 = vsel %vm4939, %v4793, %v4987
    %v5036 = vsel %vm4940, %v4798, %v4988
    %v5037 = vsel %vm4941, %v4801, %v4989
    %v5038 = vsel %vm4942, %v4806, %v4990
    %v5039 = vsel %vm4943, %v4809, %v4991
    %v5040 = vsel %vm4944, %v4814, %v4992
    %v5041 = vsel %vm4945, %v4817, %v4993
    %v5042 = vsel %vm4946, %v4822, %v4994
    %v5043 = vsel %vm4947, %v4825, %v4995
    %v5044 = vsel %vm4948, %v4830, %v4996
    %v5045 = vsel %vm4949, %v4833, %v4997
    %v5046 = vsel %vm4950, %v4838, %v4998
    %v5047 = vsel %vm4951, %v4841, %v4999
    %v5048 = vsel %vm4952, %v4846, %v5000
    %v5049 = vsel %vm4953, %v4849, %v5001
    %v5050 = vsel %vm4954, %v4854, %v5002
    %v5051 = vsel %vm4955, %v4857, %v5003
    %v5052 = vsel %vm4956, %v4862, %v5004
    %v5053 = vsel %vm4957, %v4865, %v5005
    %v5054 = vsel %vm4958, %v4870, %v5006
    %v5055 = vsel %vm4959, %v4873, %v5007
    %v5056 = vsel %vm4960, %v4878, %v5008
    %v5057 = vsel %vm4961, %v4881, %v5009
    %v5058 = vsel %vm4962, %v4886, %v5010
    %v5059 = vsel %vm4963, %v4889, %v5011
    %v5060 = vsel %vm4964, %v4894, %v5012
    %v5061 = vsel %vm4965, %v4897, %v5013
    %v5062 = vsel %vm4966, %v4902, %v5014
    %v5063 = vsel %vm4967, %v4905, %v5015
    %v5064 = vsel %vm4968, %v4910, %v5016
    %v5065 = vsel %vm4969, %v4913, %v5017
    %v5066 = vsel %vm4970, %v4918, %v5018
    %v5067 = vsel %vm4971, %v4921, %v5019
    %v5068 = vsel %vm3915, %v5020, 0.0
    %v5069 = vsel %vm3916, %v5021, 0.0
    %v5070 = vsel %vm3917, %v5022, 0.0
    %v5071 = vsel %vm3918, %v5023, 0.0
    %v5072 = vsel %vm3919, %v5024, 0.0
    %v5073 = vsel %vm3920, %v5025, 0.0
    %v5074 = vsel %vm3921, %v5026, 0.0
    %v5075 = vsel %vm3922, %v5027, 0.0
    %v5076 = vsel %vm3923, %v5028, 0.0
    %v5077 = vsel %vm3924, %v5029, 0.0
    %v5078 = vsel %vm3925, %v5030, 0.0
    %v5079 = vsel %vm3926, %v5031, 0.0
    %v5080 = vsel %vm3927, %v5032, 0.0
    %v5081 = vsel %vm3928, %v5033, 0.0
    %v5082 = vsel %vm3929, %v5034, 0.0
    %v5083 = vsel %vm3930, %v5035, 0.0
    %v5084 = vsel %vm3931, %v5036, 0.0
    %v5085 = vsel %vm3932, %v5037, 0.0
    %v5086 = vsel %vm3933, %v5038, 0.0
    %v5087 = vsel %vm3934, %v5039, 0.0
    %v5088 = vsel %vm3935, %v5040, 0.0
    %v5089 = vsel %vm3936, %v5041, 0.0
    %v5090 = vsel %vm3937, %v5042, 0.0
    %v5091 = vsel %vm3938, %v5043, 0.0
    %v5092 = vsel %vm3939, %v5044, 0.0
    %v5093 = vsel %vm3940, %v5045, 0.0
    %v5094 = vsel %vm3941, %v5046, 0.0
    %v5095 = vsel %vm3942, %v5047, 0.0
    %v5096 = vsel %vm3943, %v5048, 0.0
    %v5097 = vsel %vm3944, %v5049, 0.0
    %v5098 = vsel %vm3945, %v5050, 0.0
    %v5099 = vsel %vm3946, %v5051, 0.0
    %v5100 = vsel %vm3947, %v5052, 0.0
    %v5101 = vsel %vm3948, %v5053, 0.0
    %v5102 = vsel %vm3949, %v5054, 0.0
    %v5103 = vsel %vm3950, %v5055, 0.0
    %v5104 = vsel %vm3951, %v5056, 0.0
    %v5105 = vsel %vm3952, %v5057, 0.0
    %v5106 = vsel %vm3953, %v5058, 0.0
    %v5107 = vsel %vm3954, %v5059, 0.0
    %v5108 = vsel %vm3955, %v5060, 0.0
    %v5109 = vsel %vm3956, %v5061, 0.0
    %v5110 = vsel %vm3957, %v5062, 0.0
    %v5111 = vsel %vm3958, %v5063, 0.0
    %v5112 = vsel %vm3959, %v5064, 0.0
    %v5113 = vsel %vm3960, %v5065, 0.0
    %v5114 = vsel %vm3961, %v5066, 0.0
    %v5115 = vsel %vm3962, %v5067, 0.0
    %v5116 = vrot.slane %v5068, 7
    %v5117 = vrot.slane %v5069, 7
    %v5118 = vrot.slane %v5070, 7
    %v5119 = vrot.slane %v5071, 7
    %v5120 = vrot.slane %v5072, 7
    %v5121 = vrot.slane %v5073, 7
    %v5122 = vrot.slane %v5074, 7
    %v5123 = vrot.slane %v5075, 7
    %v5124 = vrot.slane %v5076, 7
    %v5125 = vrot.slane %v5077, 7
    %v5126 = vrot.slane %v5078, 7
    %v5127 = vrot.slane %v5079, 7
    %v5128 = vrot.slane %v5080, 7
    %v5129 = vrot.slane %v5081, 7
    %v5130 = vrot.slane %v5082, 7
    %v5131 = vrot.slane %v5083, 7
    %v5132 = vrot.slane %v5084, 7
    %v5133 = vrot.slane %v5085, 7
    %v5134 = vrot.slane %v5086, 7
    %v5135 = vrot.slane %v5087, 7
    %v5136 = vrot.slane %v5088, 7
    %v5137 = vrot.slane %v5089, 7
    %v5138 = vrot.slane %v5090, 7
    %v5139 = vrot.slane %v5091, 7
    %v5140 = vrot.slane %v5092, 7
    %v5141 = vrot.slane %v5093, 7
    %v5142 = vrot.slane %v5094, 7
    %v5143 = vrot.slane %v5095, 7
    %v5144 = vrot.slane %v5096, 7
    %v5145 = vrot.slane %v5097, 7
    %v5146 = vrot.slane %v5098, 7
    %v5147 = vrot.slane %v5099, 7
    %v5148 = vrot.slane %v5100, 7
    %v5149 = vrot.slane %v5101, 7
    %v5150 = vrot.slane %v5102, 7
    %v5151 = vrot.slane %v5103, 7
    %v5152 = vrot.slane %v5104, 7
    %v5153 = vrot.slane %v5105, 7
    %v5154 = vrot.slane %v5106, 7
    %v5155 = vrot.slane %v5107, 7
    %v5156 = vrot.slane %v5108, 7
    %v5157 = vrot.slane %v5109, 7
    %v5158 = vrot.slane %v5110, 7
    %v5159 = vrot.slane %v5111, 7
    %v5160 = vrot.slane %v5112, 7
    %v5161 = vrot.slane %v5113, 7
    %v5162 = vrot.slane %v5114, 7
    %v5163 = vrot.slane %v5115, 7
    %v5164 = vsel %vm2934, %v5162, %v5163
    %v5165 = vsel %vm2934, %v5161, %v5162
    %v5166 = vsel %vm2934, %v5160, %v5161
    %v5167 = vsel %vm2934, %v5159, %v5160
    %v5168 = vsel %vm2934, %v5158, %v5159
    %v5169 = vsel %vm2934, %v5157, %v5158
    %v5170 = vsel %vm2934, %v5156, %v5157
    %v5171 = vsel %vm2934, %v5155, %v5156
    %v5172 = vsel %vm2934, %v5154, %v5155
    %v5173 = vsel %vm2934, %v5153, %v5154
    %v5174 = vsel %vm2934, %v5152, %v5153
    %v5175 = vsel %vm2934, %v5151, %v5152
    %v5176 = vsel %vm2934, %v5150, %v5151
    %v5177 = vsel %vm2934, %v5149, %v5150
    %v5178 = vsel %vm2934, %v5148, %v5149
    %v5179 = vsel %vm2934, %v5147, %v5148
    %v5180 = vsel %vm2934, %v5146, %v5147
    %v5181 = vsel %vm2934, %v5145, %v5146
    %v5182 = vsel %vm2934, %v5144, %v5145
    %v5183 = vsel %vm2934, %v5143, %v5144
    %v5184 = vsel %vm2934, %v5142, %v5143
    %v5185 = vsel %vm2934, %v5141, %v5142
    %v5186 = vsel %vm2934, %v5140, %v5141
    %v5187 = vsel %vm2934, %v5139, %v5140
    %v5188 = vsel %vm2934, %v5138, %v5139
    %v5189 = vsel %vm2934, %v5137, %v5138
    %v5190 = vsel %vm2934, %v5136, %v5137
    %v5191 = vsel %vm2934, %v5135, %v5136
    %v5192 = vsel %vm2934, %v5134, %v5135
    %v5193 = vsel %vm2934, %v5133, %v5134
    %v5194 = vsel %vm2934, %v5132, %v5133
    %v5195 = vsel %vm2934, %v5131, %v5132
    %v5196 = vsel %vm2934, %v5130, %v5131
    %v5197 = vsel %vm2934, %v5129, %v5130
    %v5198 = vsel %vm2934, %v5128, %v5129
    %v5199 = vsel %vm2934, %v5127, %v5128
    %v5200 = vsel %vm2934, %v5126, %v5127
    %v5201 = vsel %vm2934, %v5125, %v5126
    %v5202 = vsel %vm2934, %v5124, %v5125
    %v5203 = vsel %vm2934, %v5123, %v5124
    %v5204 = vsel %vm2934, %v5122, %v5123
    %v5205 = vsel %vm2934, %v5121, %v5122
    %v5206 = vsel %vm2934, %v5120, %v5121
    %v5207 = vsel %vm2934, %v5119, %v5120
    %v5208 = vsel %vm2934, %v5118, %v5119
    %v5209 = vsel %vm2934, %v5117, %v5118
    %v5210 = vsel %vm2934, %v5116, %v5117
    %v5211 = vsel %vm2934, %v5163, %v5116
    %v5212 = vrot.slane %v5068, 1
    %v5213 = vrot.slane %v5069, 1
    %v5214 = vrot.slane %v5070, 1
    %v5215 = vrot.slane %v5071, 1
    %v5216 = vrot.slane %v5072, 1
    %v5217 = vrot.slane %v5073, 1
    %v5218 = vrot.slane %v5074, 1
    %v5219 = vrot.slane %v5075, 1
    %v5220 = vrot.slane %v5076, 1
    %v5221 = vrot.slane %v5077, 1
    %v5222 = vrot.slane %v5078, 1
    %v5223 = vrot.slane %v5079, 1
    %v5224 = vrot.slane %v5080, 1
    %v5225 = vrot.slane %v5081, 1
    %v5226 = vrot.slane %v5082, 1
    %v5227 = vrot.slane %v5083, 1
    %v5228 = vrot.slane %v5084, 1
    %v5229 = vrot.slane %v5085, 1
    %v5230 = vrot.slane %v5086, 1
    %v5231 = vrot.slane %v5087, 1
    %v5232 = vrot.slane %v5088, 1
    %v5233 = vrot.slane %v5089, 1
    %v5234 = vrot.slane %v5090, 1
    %v5235 = vrot.slane %v5091, 1
    %v5236 = vrot.slane %v5092, 1
    %v5237 = vrot.slane %v5093, 1
    %v5238 = vrot.slane %v5094, 1
    %v5239 = vrot.slane %v5095, 1
    %v5240 = vrot.slane %v5096, 1
    %v5241 = vrot.slane %v5097, 1
    %v5242 = vrot.slane %v5098, 1
    %v5243 = vrot.slane %v5099, 1
    %v5244 = vrot.slane %v5100, 1
    %v5245 = vrot.slane %v5101, 1
    %v5246 = vrot.slane %v5102, 1
    %v5247 = vrot.slane %v5103, 1
    %v5248 = vrot.slane %v5104, 1
    %v5249 = vrot.slane %v5105, 1
    %v5250 = vrot.slane %v5106, 1
    %v5251 = vrot.slane %v5107, 1
    %v5252 = vrot.slane %v5108, 1
    %v5253 = vrot.slane %v5109, 1
    %v5254 = vrot.slane %v5110, 1
    %v5255 = vrot.slane %v5111, 1
    %v5256 = vrot.slane %v5112, 1
    %v5257 = vrot.slane %v5113, 1
    %v5258 = vrot.slane %v5114, 1
    %v5259 = vrot.slane %v5115, 1
    %v5260 = vsel %vm3031, %v5258, %v5259
    %v5261 = vsel %vm3031, %v5257, %v5258
    %v5262 = vsel %vm3031, %v5256, %v5257
    %v5263 = vsel %vm3031, %v5255, %v5256
    %v5264 = vsel %vm3031, %v5254, %v5255
    %v5265 = vsel %vm3031, %v5253, %v5254
    %v5266 = vsel %vm3031, %v5252, %v5253
    %v5267 = vsel %vm3031, %v5251, %v5252
    %v5268 = vsel %vm3031, %v5250, %v5251
    %v5269 = vsel %vm3031, %v5249, %v5250
    %v5270 = vsel %vm3031, %v5248, %v5249
    %v5271 = vsel %vm3031, %v5247, %v5248
    %v5272 = vsel %vm3031, %v5246, %v5247
    %v5273 = vsel %vm3031, %v5245, %v5246
    %v5274 = vsel %vm3031, %v5244, %v5245
    %v5275 = vsel %vm3031, %v5243, %v5244
    %v5276 = vsel %vm3031, %v5242, %v5243
    %v5277 = vsel %vm3031, %v5241, %v5242
    %v5278 = vsel %vm3031, %v5240, %v5241
    %v5279 = vsel %vm3031, %v5239, %v5240
    %v5280 = vsel %vm3031, %v5238, %v5239
    %v5281 = vsel %vm3031, %v5237, %v5238
    %v5282 = vsel %vm3031, %v5236, %v5237
    %v5283 = vsel %vm3031, %v5235, %v5236
    %v5284 = vsel %vm3031, %v5234, %v5235
    %v5285 = vsel %vm3031, %v5233, %v5234
    %v5286 = vsel %vm3031, %v5232, %v5233
    %v5287 = vsel %vm3031, %v5231, %v5232
    %v5288 = vsel %vm3031, %v5230, %v5231
    %v5289 = vsel %vm3031, %v5229, %v5230
    %v5290 = vsel %vm3031, %v5228, %v5229
    %v5291 = vsel %vm3031, %v5227, %v5228
    %v5292 = vsel %vm3031, %v5226, %v5227
    %v5293 = vsel %vm3031, %v5225, %v5226
    %v5294 = vsel %vm3031, %v5224, %v5225
    %v5295 = vsel %vm3031, %v5223, %v5224
    %v5296 = vsel %vm3031, %v5222, %v5223
    %v5297 = vsel %vm3031, %v5221, %v5222
    %v5298 = vsel %vm3031, %v5220, %v5221
    %v5299 = vsel %vm3031, %v5219, %v5220
    %v5300 = vsel %vm3031, %v5218, %v5219
    %v5301 = vsel %vm3031, %v5217, %v5218
    %v5302 = vsel %vm3031, %v5216, %v5217
    %v5303 = vsel %vm3031, %v5215, %v5216
    %v5304 = vsel %vm3031, %v5214, %v5215
    %v5305 = vsel %vm3031, %v5213, %v5214
    %v5306 = vsel %vm3031, %v5212, %v5213
    %v5307 = vsel %vm3031, %v5259, %v5212
    %v5308 = vpack.c.bf16 %v5210, %v5211
    %v5309 = vpack.c.bf16 %v5208, %v5209
    %v5310 = vpack.c.bf16 %v5206, %v5207
    %v5311 = vpack.c.bf16 %v5204, %v5205
    %v5312 = vpack.c.bf16 %v5202, %v5203
    %v5313 = vpack.c.bf16 %v5200, %v5201
    %v5314 = vpack.c.bf16 %v5198, %v5199
    %v5315 = vpack.c.bf16 %v5196, %v5197
    %v5316 = vpack.c.bf16 %v5194, %v5195
    %v5317 = vpack.c.bf16 %v5192, %v5193
    %v5318 = vpack.c.bf16 %v5190, %v5191
    %v5319 = vpack.c.bf16 %v5188, %v5189
    %v5320 = vpack.c.bf16 %v5186, %v5187
    %v5321 = vpack.c.bf16 %v5184, %v5185
    %v5322 = vpack.c.bf16 %v5182, %v5183
    %v5323 = vpack.c.bf16 %v5180, %v5181
    %v5324 = vpack.c.bf16 %v5178, %v5179
    %v5325 = vpack.c.bf16 %v5176, %v5177
    %v5326 = vpack.c.bf16 %v5174, %v5175
    %v5327 = vpack.c.bf16 %v5172, %v5173
    %v5328 = vpack.c.bf16 %v5170, %v5171
    %v5329 = vpack.c.bf16 %v5168, %v5169
    %v5330 = vpack.c.bf16 %v5166, %v5167
    %v5331 = vpack.c.bf16 %v5164, %v5165
    %v5332 = vpack.c.bf16 %v5069, %v5068
    %v5333 = vpack.c.bf16 %v5071, %v5070
    %v5334 = vpack.c.bf16 %v5073, %v5072
    %v5335 = vpack.c.bf16 %v5075, %v5074
    %v5336 = vpack.c.bf16 %v5077, %v5076
    %v5337 = vpack.c.bf16 %v5079, %v5078
    %v5338 = vpack.c.bf16 %v5081, %v5080
    %v5339 = vpack.c.bf16 %v5083, %v5082
    %v5340 = vpack.c.bf16 %v5085, %v5084
    %v5341 = vpack.c.bf16 %v5087, %v5086
    %v5342 = vpack.c.bf16 %v5089, %v5088
    %v5343 = vpack.c.bf16 %v5091, %v5090
    %v5344 = vpack.c.bf16 %v5093, %v5092
    %v5345 = vpack.c.bf16 %v5095, %v5094
    %v5346 = vpack.c.bf16 %v5097, %v5096
    %v5347 = vpack.c.bf16 %v5099, %v5098
    %v5348 = vpack.c.bf16 %v5101, %v5100
    %v5349 = vpack.c.bf16 %v5103, %v5102
    %v5350 = vpack.c.bf16 %v5105, %v5104
    %v5351 = vpack.c.bf16 %v5107, %v5106
    %v5352 = vpack.c.bf16 %v5109, %v5108
    %v5353 = vpack.c.bf16 %v5111, %v5110
    %v5354 = vpack.c.bf16 %v5113, %v5112
    %v5355 = vpack.c.bf16 %v5115, %v5114
    %v5356 = vpack.c.bf16 %v5305, %v5306
    %v5357 = vpack.c.bf16 %v5303, %v5304
    %v5358 = vpack.c.bf16 %v5301, %v5302
    %v5359 = vpack.c.bf16 %v5299, %v5300
    %v5360 = vpack.c.bf16 %v5297, %v5298
    %v5361 = vpack.c.bf16 %v5295, %v5296
    %v5362 = vpack.c.bf16 %v5293, %v5294
    %v5363 = vpack.c.bf16 %v5291, %v5292
    %v5364 = vpack.c.bf16 %v5289, %v5290
    %v5365 = vpack.c.bf16 %v5287, %v5288
    %v5366 = vpack.c.bf16 %v5285, %v5286
    %v5367 = vpack.c.bf16 %v5283, %v5284
    %v5368 = vpack.c.bf16 %v5281, %v5282
    %v5369 = vpack.c.bf16 %v5279, %v5280
    %v5370 = vpack.c.bf16 %v5277, %v5278
    %v5371 = vpack.c.bf16 %v5275, %v5276
    %v5372 = vpack.c.bf16 %v5273, %v5274
    %v5373 = vpack.c.bf16 %v5271, %v5272
    %v5374 = vpack.c.bf16 %v5269, %v5270
    %v5375 = vpack.c.bf16 %v5267, %v5268
    %v5376 = vpack.c.bf16 %v5265, %v5266
    %v5377 = vpack.c.bf16 %v5263, %v5264
    %v5378 = vpack.c.bf16 %v5261, %v5262
    %v5379 = vpack.c.bf16 %v5307, %v5260
    %v5380 = vld [vmem:[%s10] sm:$0xf]
    %v5381 = vld [vmem:[%s10 + $0x4] sm:$0xf]
    %v5382 = vld [vmem:[%s10 + $0x8] sm:$0xf]
    %v5383 = vld [vmem:[%s10 + $0xc] sm:$0xf]
    %v5384 = vld [vmem:[%s10 + $0x10] sm:$0xf]
    %v5385 = vld [vmem:[%s10 + $0x14] sm:$0xf]
    %v5386 = vld [vmem:[%s10 + $0x18] sm:$0xf]
    %v5387 = vld [vmem:[%s10 + $0x1c] sm:$0xf]
    %v5388 = vld [vmem:[%s10 + $0x20] sm:$0xf]
    %v5389 = vld [vmem:[%s10 + $0x24] sm:$0xf]
    %v5390 = vld [vmem:[%s10 + $0x28] sm:$0xf]
    %v5391 = vld [vmem:[%s10 + $0x2c] sm:$0xf]
    %v5392 = vld [vmem:[%s10 + $0x30] sm:$0xf]
    %v5393 = vld [vmem:[%s10 + $0x34] sm:$0xf]
    %v5394 = vld [vmem:[%s10 + $0x38] sm:$0xf]
    %v5395 = vld [vmem:[%s10 + $0x3c] sm:$0xf]
    %v5396 = vld [vmem:[%s10 + $0x40] sm:$0xf]
    %v5397 = vld [vmem:[%s10 + $0x44] sm:$0xf]
    %v5398 = vld [vmem:[%s10 + $0x48] sm:$0xf]
    %v5399 = vld [vmem:[%s10 + $0x4c] sm:$0xf]
    %v5400 = vld [vmem:[%s10 + $0x50] sm:$0xf]
    %v5401 = vld [vmem:[%s10 + $0x54] sm:$0xf]
    %v5402 = vld [vmem:[%s10 + $0x58] sm:$0xf]
    %v5403 = vld [vmem:[%s10 + $0x5c] sm:$0xf]
    %v5404 = vld [vmem:[%s10 + $0x60] sm:$0xf]
    %v5405 = vld [vmem:[%s10 + $0x64] sm:$0xf]
    %v5406 = vld [vmem:[%s10 + $0x68] sm:$0xf]
    %v5407 = vld [vmem:[%s10 + $0x6c] sm:$0xf]
    %v5408 = vld [vmem:[%s10 + $0x70] sm:$0xf]
    %v5409 = vld [vmem:[%s10 + $0x74] sm:$0xf]
    %v5410 = vld [vmem:[%s10 + $0x78] sm:$0xf]
    %v5411 = vld [vmem:[%s10 + $0x7c] sm:$0xf]
    %v5412 = vld [vmem:[%s10 + $0x80] sm:$0xf]
    %v5413 = vld [vmem:[%s10 + $0x84] sm:$0xf]
    %v5414 = vld [vmem:[%s10 + $0x88] sm:$0xf]
    %v5415 = vld [vmem:[%s10 + $0x8c] sm:$0xf]
    %v5416 = vld [vmem:[%s10 + $0x90] sm:$0xf]
    %v5417 = vld [vmem:[%s10 + $0x94] sm:$0xf]
    %v5418 = vld [vmem:[%s10 + $0x98] sm:$0xf]
    %v5419 = vld [vmem:[%s10 + $0x9c] sm:$0xf]
    %v5420 = vld [vmem:[%s10 + $0xa0] sm:$0xf]
    %v5421 = vld [vmem:[%s10 + $0xa4] sm:$0xf]
    %v5422 = vld [vmem:[%s10 + $0xa8] sm:$0xf]
    %v5423 = vld [vmem:[%s10 + $0xac] sm:$0xf]
    %v5424 = vld [vmem:[%s10 + $0xb0] sm:$0xf]
    %v5425 = vld [vmem:[%s10 + $0xb4] sm:$0xf]
    %v5426 = vld [vmem:[%s10 + $0xb8] sm:$0xf]
    %v5427 = vld [vmem:[%s10 + $0xbc] sm:$0xf]
    %v5428 = vld [vmem:[%s14] sm:$0x1]
    %v5430 = vlaneseq
    %v5431 = vshrl.u32 %v5430, 7
    %v5432 = vsub.s32 0, %v5431
    %v5433 = vrot.slane %v5428, %v5432
    %v5483 = vunpack.c.l.b16 %v5380
    %v5484 = vunpack.c.l.b16 %v5381
    %v5485 = vunpack.c.l.b16 %v5382
    %v5486 = vunpack.c.l.b16 %v5383
    %v5487 = vunpack.c.l.b16 %v5384
    %v5488 = vunpack.c.l.b16 %v5385
    %v5489 = vunpack.c.l.b16 %v5386
    %v5490 = vunpack.c.l.b16 %v5387
    %v5491 = vunpack.c.l.b16 %v5388
    %v5492 = vunpack.c.l.b16 %v5389
    %v5493 = vunpack.c.l.b16 %v5390
    %v5494 = vunpack.c.l.b16 %v5391
    %v5495 = vunpack.c.l.b16 %v5392
    %v5496 = vunpack.c.l.b16 %v5393
    %v5497 = vunpack.c.l.b16 %v5394
    %v5498 = vunpack.c.l.b16 %v5395
    %v5499 = vunpack.c.l.b16 %v5396
    %v5500 = vunpack.c.l.b16 %v5397
    %v5501 = vunpack.c.l.b16 %v5398
    %v5502 = vunpack.c.l.b16 %v5399
    %v5503 = vunpack.c.l.b16 %v5400
    %v5504 = vunpack.c.l.b16 %v5401
    %v5505 = vunpack.c.l.b16 %v5402
    %v5506 = vunpack.c.l.b16 %v5403
    %v5507 = vunpack.c.l.b16 %v5404
    %v5508 = vunpack.c.l.b16 %v5405
    %v5509 = vunpack.c.l.b16 %v5406
    %v5510 = vunpack.c.l.b16 %v5407
    %v5511 = vunpack.c.l.b16 %v5408
    %v5512 = vunpack.c.l.b16 %v5409
    %v5513 = vunpack.c.l.b16 %v5410
    %v5514 = vunpack.c.l.b16 %v5411
    %v5515 = vunpack.c.l.b16 %v5412
    %v5516 = vunpack.c.l.b16 %v5413
    %v5517 = vunpack.c.l.b16 %v5414
    %v5518 = vunpack.c.l.b16 %v5415
    %v5519 = vunpack.c.l.b16 %v5416
    %v5520 = vunpack.c.l.b16 %v5417
    %v5521 = vunpack.c.l.b16 %v5418
    %v5522 = vunpack.c.l.b16 %v5419
    %v5523 = vunpack.c.l.b16 %v5420
    %v5524 = vunpack.c.l.b16 %v5421
    %v5525 = vunpack.c.l.b16 %v5422
    %v5526 = vunpack.c.l.b16 %v5423
    %v5527 = vunpack.c.l.b16 %v5424
    %v5528 = vunpack.c.l.b16 %v5425
    %v5529 = vunpack.c.l.b16 %v5426
    %v5530 = vunpack.c.l.b16 %v5427
    %v5531 = vpack.c.b16 %v5484, %v5483
    %v5532 = vpack.c.b16 %v5486, %v5485
    %v5533 = vpack.c.b16 %v5488, %v5487
    %v5534 = vpack.c.b16 %v5490, %v5489
    %v5535 = vpack.c.b16 %v5492, %v5491
    %v5536 = vpack.c.b16 %v5494, %v5493
    %v5537 = vpack.c.b16 %v5496, %v5495
    %v5538 = vpack.c.b16 %v5498, %v5497
    %v5539 = vpack.c.b16 %v5500, %v5499
    %v5540 = vpack.c.b16 %v5502, %v5501
    %v5541 = vpack.c.b16 %v5504, %v5503
    %v5542 = vpack.c.b16 %v5506, %v5505
    %v5543 = vpack.c.b16 %v5508, %v5507
    %v5544 = vpack.c.b16 %v5510, %v5509
    %v5545 = vpack.c.b16 %v5512, %v5511
    %v5546 = vpack.c.b16 %v5514, %v5513
    %v5547 = vpack.c.b16 %v5516, %v5515
    %v5548 = vpack.c.b16 %v5518, %v5517
    %v5549 = vpack.c.b16 %v5520, %v5519
    %v5550 = vpack.c.b16 %v5522, %v5521
    %v5551 = vpack.c.b16 %v5524, %v5523
    %v5552 = vpack.c.b16 %v5526, %v5525
    %v5553 = vpack.c.b16 %v5528, %v5527
    %v5554 = vpack.c.b16 %v5530, %v5529
    %5579 = vmatprep.subr.bf16.mxu0 0
    %5580 = vmatpush1.bf16.msra.mxu0 %v5531
    %5581 = vmatprep.subr.bf16.mxu0 0
    %5582 = vmatpush1.bf16.msra.mxu0 %v5532
    %5583 = vmatprep.subr.bf16.mxu0 0
    %5584 = vmatpush1.bf16.msra.mxu0 %v5533
    %5585 = vmatprep.subr.bf16.mxu0 0
    %5586 = vmatpush1.bf16.msra.mxu0 %v5534
    %5587 = vmatprep.subr.bf16.mxu0 0
    %5588 = vmatpush1.bf16.msra.mxu0 %v5535
    %5589 = vmatprep.subr.bf16.mxu0 0
    %5590 = vmatpush1.bf16.msra.mxu0 %v5536
    %5591 = vmatprep.subr.bf16.mxu0 0
    %5592 = vmatpush1.bf16.msra.mxu0 %v5537
    %5593 = vmatprep.subr.bf16.mxu0 0
    %5594 = vmatpush1.bf16.msra.mxu0 %v5538
    %5595 = vmatprep.subr.bf16.mxu0 0
    %5596 = vmatpush1.bf16.msra.mxu0 %v5539
    %5597 = vmatprep.subr.bf16.mxu0 0
    %5598 = vmatpush1.bf16.msra.mxu0 %v5540
    %5599 = vmatprep.subr.bf16.mxu0 0
    %5600 = vmatpush1.bf16.msra.mxu0 %v5541
    %5601 = vmatprep.subr.bf16.mxu0 0
    %5602 = vmatpush1.bf16.msra.mxu0 %v5542
    %5603 = vmatprep.subr.bf16.mxu0 0
    %5604 = vmatpush1.bf16.msra.mxu0 %v5543
    %5605 = vmatprep.subr.bf16.mxu0 0
    %5606 = vmatpush1.bf16.msra.mxu0 %v5544
    %5607 = vmatprep.subr.bf16.mxu0 0
    %5608 = vmatpush1.bf16.msra.mxu0 %v5545
    %5609 = vmatprep.subr.bf16.mxu0 0
    %5610 = vmatpush1.bf16.msra.mxu0 %v5546
    %5611 = vmatprep.mubr.bf16.mxu0 %v5332
    %5612 = vmatmul.mubr.bf16.gmra.mrb[0].mxu0 %v5308
    %v5613 = vpop.f32.mrb[0].mxu0
    %v5614 = vadd.f32 %v5433, %v5613
    %v5615 = vpop.f32.mrb[0].mxu0
    %v5616 = vpop.f32.mrb[0].mxu0
    %v5617 = vadd.f32 %v5433, %v5616
    %v5618 = vpop.f32.mrb[0].mxu0
    %5619 = vmatprep.mubr.bf16.mxu0 %v5333
    %5620 = vmatmul.mubr.bf16.gmra.mrb[0].mxu0 %v5309
    %v5621 = vpop.f32.mrb[0].mxu0
    %v5622 = vadd.f32 %v5433, %v5621
    %v5623 = vpop.f32.mrb[0].mxu0
    %v5624 = vpop.f32.mrb[0].mxu0
    %v5625 = vadd.f32 %v5433, %v5624
    %v5626 = vpop.f32.mrb[0].mxu0
    %5627 = vmatprep.mubr.bf16.mxu0 %v5334
    %5628 = vmatmul.mubr.bf16.gmra.mrb[0].mxu0 %v5310
    %v5629 = vpop.f32.mrb[0].mxu0
    %v5630 = vadd.f32 %v5433, %v5629
    %v5631 = vpop.f32.mrb[0].mxu0
    %v5632 = vpop.f32.mrb[0].mxu0
    %v5633 = vadd.f32 %v5433, %v5632
    %v5634 = vpop.f32.mrb[0].mxu0
    %5635 = vmatprep.mubr.bf16.mxu0 %v5335
    %5636 = vmatmul.mubr.bf16.gmra.mrb[0].mxu0 %v5311
    %v5637 = vpop.f32.mrb[0].mxu0
    %v5638 = vadd.f32 %v5433, %v5637
    %v5639 = vpop.f32.mrb[0].mxu0
    %v5640 = vpop.f32.mrb[0].mxu0
    %v5641 = vadd.f32 %v5433, %v5640
    %v5642 = vpop.f32.mrb[0].mxu0
    %5643 = vmatprep.mubr.bf16.mxu0 %v5336
    %5644 = vmatmul.mubr.bf16.gmra.mrb[0].mxu0 %v5312
    %v5645 = vpop.f32.mrb[0].mxu0
    %v5646 = vadd.f32 %v5433, %v5645
    %v5647 = vpop.f32.mrb[0].mxu0
    %v5648 = vpop.f32.mrb[0].mxu0
    %v5649 = vadd.f32 %v5433, %v5648
    %v5650 = vpop.f32.mrb[0].mxu0
    %5651 = vmatprep.mubr.bf16.mxu0 %v5337
    %5652 = vmatmul.mubr.bf16.gmra.mrb[0].mxu0 %v5313
    %v5653 = vpop.f32.mrb[0].mxu0
    %v5654 = vadd.f32 %v5433, %v5653
    %v5655 = vpop.f32.mrb[0].mxu0
    %v5656 = vpop.f32.mrb[0].mxu0
    %v5657 = vadd.f32 %v5433, %v5656
    %v5658 = vpop.f32.mrb[0].mxu0
    %5659 = vmatprep.mubr.bf16.mxu0 %v5338
    %5660 = vmatmul.mubr.bf16.gmra.mrb[0].mxu0 %v5314
    %v5661 = vpop.f32.mrb[0].mxu0
    %v5662 = vadd.f32 %v5433, %v5661
    %v5663 = vpop.f32.mrb[0].mxu0
    %v5664 = vpop.f32.mrb[0].mxu0
    %v5665 = vadd.f32 %v5433, %v5664
    %v5666 = vpop.f32.mrb[0].mxu0
    %5667 = vmatprep.mubr.bf16.mxu0 %v5339
    %5668 = vmatmul.mubr.bf16.gmra.mrb[0].mxu0 %v5315
    %v5669 = vpop.f32.mrb[0].mxu0
    %v5670 = vadd.f32 %v5433, %v5669
    %v5671 = vpop.f32.mrb[0].mxu0
    %v5672 = vpop.f32.mrb[0].mxu0
    %v5673 = vadd.f32 %v5433, %v5672
    %v5674 = vpop.f32.mrb[0].mxu0
    %5675 = vmatprep.mubr.bf16.mxu0 %v5340
    %5676 = vmatmul.mubr.bf16.gmra.mrb[0].mxu0 %v5316
    %v5677 = vpop.f32.mrb[0].mxu0
    %v5678 = vadd.f32 %v5433, %v5677
    %v5679 = vpop.f32.mrb[0].mxu0
    %v5680 = vpop.f32.mrb[0].mxu0
    %v5681 = vadd.f32 %v5433, %v5680
    %v5682 = vpop.f32.mrb[0].mxu0
    %5683 = vmatprep.mubr.bf16.mxu0 %v5341
    %5684 = vmatmul.mubr.bf16.gmra.mrb[0].mxu0 %v5317
    %v5685 = vpop.f32.mrb[0].mxu0
    %v5686 = vadd.f32 %v5433, %v5685
    %v5687 = vpop.f32.mrb[0].mxu0
    %v5688 = vpop.f32.mrb[0].mxu0
    %v5689 = vadd.f32 %v5433, %v5688
    %v5690 = vpop.f32.mrb[0].mxu0
    %5691 = vmatprep.mubr.bf16.mxu0 %v5342
    %5692 = vmatmul.mubr.bf16.gmra.mrb[0].mxu0 %v5318
    %v5693 = vpop.f32.mrb[0].mxu0
    %v5694 = vadd.f32 %v5433, %v5693
    %v5695 = vpop.f32.mrb[0].mxu0
    %v5696 = vpop.f32.mrb[0].mxu0
    %v5697 = vadd.f32 %v5433, %v5696
    %v5698 = vpop.f32.mrb[0].mxu0
    %5699 = vmatprep.mubr.bf16.mxu0 %v5343
    %5700 = vmatmul.mubr.bf16.gmra.mrb[0].mxu0 %v5319
    %v5701 = vpop.f32.mrb[0].mxu0
    %v5702 = vadd.f32 %v5433, %v5701
    %v5703 = vpop.f32.mrb[0].mxu0
    %v5704 = vpop.f32.mrb[0].mxu0
    %v5705 = vadd.f32 %v5433, %v5704
    %v5706 = vpop.f32.mrb[0].mxu0
    %5707 = vmatprep.mubr.bf16.mxu0 %v5344
    %5708 = vmatmul.mubr.bf16.gmra.mrb[0].mxu0 %v5320
    %v5709 = vpop.f32.mrb[0].mxu0
    %v5710 = vadd.f32 %v5433, %v5709
    %v5711 = vpop.f32.mrb[0].mxu0
    %v5712 = vpop.f32.mrb[0].mxu0
    %v5713 = vadd.f32 %v5433, %v5712
    %v5714 = vpop.f32.mrb[0].mxu0
    %5715 = vmatprep.mubr.bf16.mxu0 %v5345
    %5716 = vmatmul.mubr.bf16.gmra.mrb[0].mxu0 %v5321
    %v5717 = vpop.f32.mrb[0].mxu0
    %v5718 = vadd.f32 %v5433, %v5717
    %v5719 = vpop.f32.mrb[0].mxu0
    %v5720 = vpop.f32.mrb[0].mxu0
    %v5721 = vadd.f32 %v5433, %v5720
    %v5722 = vpop.f32.mrb[0].mxu0
    %5723 = vmatprep.mubr.bf16.mxu0 %v5346
    %5724 = vmatmul.mubr.bf16.gmra.mrb[0].mxu0 %v5322
    %v5725 = vpop.f32.mrb[0].mxu0
    %v5726 = vadd.f32 %v5433, %v5725
    %v5727 = vpop.f32.mrb[0].mxu0
    %v5728 = vpop.f32.mrb[0].mxu0
    %v5729 = vadd.f32 %v5433, %v5728
    %v5730 = vpop.f32.mrb[0].mxu0
    %5731 = vmatprep.mubr.bf16.mxu0 %v5347
    %5732 = vmatmul.mubr.bf16.gmra.mrb[0].mxu0 %v5323
    %v5733 = vpop.f32.mrb[0].mxu0
    %v5734 = vadd.f32 %v5433, %v5733
    %v5735 = vpop.f32.mrb[0].mxu0
    %v5736 = vpop.f32.mrb[0].mxu0
    %v5737 = vadd.f32 %v5433, %v5736
    %v5738 = vpop.f32.mrb[0].mxu0
    %5739 = vmatprep.mubr.bf16.mxu0 %v5348
    %5740 = vmatmul.mubr.bf16.gmra.mrb[0].mxu0 %v5324
    %v5741 = vpop.f32.mrb[0].mxu0
    %v5742 = vadd.f32 %v5433, %v5741
    %v5743 = vpop.f32.mrb[0].mxu0
    %v5744 = vpop.f32.mrb[0].mxu0
    %v5745 = vadd.f32 %v5433, %v5744
    %v5746 = vpop.f32.mrb[0].mxu0
    %5747 = vmatprep.mubr.bf16.mxu0 %v5349
    %5748 = vmatmul.mubr.bf16.gmra.mrb[0].mxu0 %v5325
    %v5749 = vpop.f32.mrb[0].mxu0
    %v5750 = vadd.f32 %v5433, %v5749
    %v5751 = vpop.f32.mrb[0].mxu0
    %v5752 = vpop.f32.mrb[0].mxu0
    %v5753 = vadd.f32 %v5433, %v5752
    %v5754 = vpop.f32.mrb[0].mxu0
    %5755 = vmatprep.mubr.bf16.mxu0 %v5350
    %5756 = vmatmul.mubr.bf16.gmra.mrb[0].mxu0 %v5326
    %v5757 = vpop.f32.mrb[0].mxu0
    %v5758 = vadd.f32 %v5433, %v5757
    %v5759 = vpop.f32.mrb[0].mxu0
    %v5760 = vpop.f32.mrb[0].mxu0
    %v5761 = vadd.f32 %v5433, %v5760
    %v5762 = vpop.f32.mrb[0].mxu0
    %5763 = vmatprep.mubr.bf16.mxu0 %v5351
    %5764 = vmatmul.mubr.bf16.gmra.mrb[0].mxu0 %v5327
    %v5765 = vpop.f32.mrb[0].mxu0
    %v5766 = vadd.f32 %v5433, %v5765
    %v5767 = vpop.f32.mrb[0].mxu0
    %v5768 = vpop.f32.mrb[0].mxu0
    %v5769 = vadd.f32 %v5433, %v5768
    %v5770 = vpop.f32.mrb[0].mxu0
    %5771 = vmatprep.mubr.bf16.mxu0 %v5352
    %5772 = vmatmul.mubr.bf16.gmra.mrb[0].mxu0 %v5328
    %v5773 = vpop.f32.mrb[0].mxu0
    %v5774 = vadd.f32 %v5433, %v5773
    %v5775 = vpop.f32.mrb[0].mxu0
    %v5776 = vpop.f32.mrb[0].mxu0
    %v5777 = vadd.f32 %v5433, %v5776
    %v5778 = vpop.f32.mrb[0].mxu0
    %5779 = vmatprep.mubr.bf16.mxu0 %v5353
    %5780 = vmatmul.mubr.bf16.gmra.mrb[0].mxu0 %v5329
    %v5781 = vpop.f32.mrb[0].mxu0
    %v5782 = vadd.f32 %v5433, %v5781
    %v5783 = vpop.f32.mrb[0].mxu0
    %v5784 = vpop.f32.mrb[0].mxu0
    %v5785 = vadd.f32 %v5433, %v5784
    %v5786 = vpop.f32.mrb[0].mxu0
    %5787 = vmatprep.mubr.bf16.mxu0 %v5354
    %5788 = vmatmul.mubr.bf16.gmra.mrb[0].mxu0 %v5330
    %v5789 = vpop.f32.mrb[0].mxu0
    %v5790 = vadd.f32 %v5433, %v5789
    %v5791 = vpop.f32.mrb[0].mxu0
    %v5792 = vpop.f32.mrb[0].mxu0
    %v5793 = vadd.f32 %v5433, %v5792
    %v5794 = vpop.f32.mrb[0].mxu0
    %5795 = vmatprep.mubr.bf16.mxu0 %v5355
    %5796 = vmatmul.mubr.bf16.gmra.mrb[0].mxu0 %v5331
    %v5797 = vpop.f32.mrb[0].mxu0
    %v5798 = vadd.f32 %v5433, %v5797
    %v5799 = vpop.f32.mrb[0].mxu0
    %v5800 = vpop.f32.mrb[0].mxu0
    %v5801 = vadd.f32 %v5433, %v5800
    %v5802 = vpop.f32.mrb[0].mxu0
    %5803 = vdwg.mxu0
    %5804 = vmatprep.subr.bf16.mxu0 0
    %5805 = vmatpush1.bf16.msra.mxu0 %v5547
    %5806 = vmatprep.subr.bf16.mxu0 0
    %5807 = vmatpush1.bf16.msra.mxu0 %v5548
    %5808 = vmatprep.subr.bf16.mxu0 0
    %5809 = vmatpush1.bf16.msra.mxu0 %v5549
    %5810 = vmatprep.subr.bf16.mxu0 0
    %5811 = vmatpush1.bf16.msra.mxu0 %v5550
    %5812 = vmatprep.subr.bf16.mxu0 0
    %5813 = vmatpush1.bf16.msra.mxu0 %v5551
    %5814 = vmatprep.subr.bf16.mxu0 0
    %5815 = vmatpush1.bf16.msra.mxu0 %v5552
    %5816 = vmatprep.subr.bf16.mxu0 0
    %5817 = vmatpush1.bf16.msra.mxu0 %v5553
    %5818 = vmatprep.subr.bf16.mxu0 0
    %5819 = vmatpush1.bf16.msra.mxu0 %v5554
    %5820 = vmatprep.subr.bf16.mxu0 0
    %5821 = vmatpush1.bf16.msra.mxu0 0
    %5822 = vmatprep.subr.bf16.mxu0 0
    %5823 = vmatpush1.bf16.msra.mxu0 0
    %5824 = vmatprep.subr.bf16.mxu0 0
    %5825 = vmatpush1.bf16.msra.mxu0 0
    %5826 = vmatprep.subr.bf16.mxu0 0
    %5827 = vmatpush1.bf16.msra.mxu0 0
    %5828 = vmatprep.subr.bf16.mxu0 0
    %5829 = vmatpush1.bf16.msra.mxu0 0
    %5830 = vmatprep.subr.bf16.mxu0 0
    %5831 = vmatpush1.bf16.msra.mxu0 0
    %5832 = vmatprep.subr.bf16.mxu0 0
    %5833 = vmatpush1.bf16.msra.mxu0 0
    %5834 = vmatprep.subr.bf16.mxu0 0
    %5835 = vmatpush1.bf16.msra.mxu0 0
    %5836 = vmatprep.mubr.bf16.mxu0 0
    %5837 = vmatmul.mubr.bf16.gmra.mrb[0].mxu0 %v5356
    %v5838 = vpop.f32.mrb[0].mxu0
    %v5839 = vadd.f32 %v5614, %v5838
    %v5840 = vpop.f32.mrb[0].mxu0
    %v5841 = vpop.f32.mrb[0].mxu0
    %v5842 = vadd.f32 %v5617, %v5841
    %v5843 = vpop.f32.mrb[0].mxu0
    %5844 = vmatprep.mubr.bf16.mxu0 0
    %5845 = vmatmul.mubr.bf16.gmra.mrb[0].mxu0 %v5357
    %v5846 = vpop.f32.mrb[0].mxu0
    %v5847 = vadd.f32 %v5622, %v5846
    %v5848 = vpop.f32.mrb[0].mxu0
    %v5849 = vpop.f32.mrb[0].mxu0
    %v5850 = vadd.f32 %v5625, %v5849
    %v5851 = vpop.f32.mrb[0].mxu0
    %5852 = vmatprep.mubr.bf16.mxu0 0
    %5853 = vmatmul.mubr.bf16.gmra.mrb[0].mxu0 %v5358
    %v5854 = vpop.f32.mrb[0].mxu0
    %v5855 = vadd.f32 %v5630, %v5854
    %v5856 = vpop.f32.mrb[0].mxu0
    %v5857 = vpop.f32.mrb[0].mxu0
    %v5858 = vadd.f32 %v5633, %v5857
    %v5859 = vpop.f32.mrb[0].mxu0
    %5860 = vmatprep.mubr.bf16.mxu0 0
    %5861 = vmatmul.mubr.bf16.gmra.mrb[0].mxu0 %v5359
    %v5862 = vpop.f32.mrb[0].mxu0
    %v5863 = vadd.f32 %v5638, %v5862
    %v5864 = vpop.f32.mrb[0].mxu0
    %v5865 = vpop.f32.mrb[0].mxu0
    %v5866 = vadd.f32 %v5641, %v5865
    %v5867 = vpop.f32.mrb[0].mxu0
    %5868 = vmatprep.mubr.bf16.mxu0 0
    %5869 = vmatmul.mubr.bf16.gmra.mrb[0].mxu0 %v5360
    %v5870 = vpop.f32.mrb[0].mxu0
    %v5871 = vadd.f32 %v5646, %v5870
    %v5872 = vpop.f32.mrb[0].mxu0
    %v5873 = vpop.f32.mrb[0].mxu0
    %v5874 = vadd.f32 %v5649, %v5873
    %v5875 = vpop.f32.mrb[0].mxu0
    %5876 = vmatprep.mubr.bf16.mxu0 0
    %5877 = vmatmul.mubr.bf16.gmra.mrb[0].mxu0 %v5361
    %v5878 = vpop.f32.mrb[0].mxu0
    %v5879 = vadd.f32 %v5654, %v5878
    %v5880 = vpop.f32.mrb[0].mxu0
    %v5881 = vpop.f32.mrb[0].mxu0
    %v5882 = vadd.f32 %v5657, %v5881
    %v5883 = vpop.f32.mrb[0].mxu0
    %5884 = vmatprep.mubr.bf16.mxu0 0
    %5885 = vmatmul.mubr.bf16.gmra.mrb[0].mxu0 %v5362
    %v5886 = vpop.f32.mrb[0].mxu0
    %v5887 = vadd.f32 %v5662, %v5886
    %v5888 = vpop.f32.mrb[0].mxu0
    %v5889 = vpop.f32.mrb[0].mxu0
    %v5890 = vadd.f32 %v5665, %v5889
    %v5891 = vpop.f32.mrb[0].mxu0
    %5892 = vmatprep.mubr.bf16.mxu0 0
    %5893 = vmatmul.mubr.bf16.gmra.mrb[0].mxu0 %v5363
    %v5894 = vpop.f32.mrb[0].mxu0
    %v5895 = vadd.f32 %v5670, %v5894
    %v5896 = vpop.f32.mrb[0].mxu0
    %v5897 = vpop.f32.mrb[0].mxu0
    %v5898 = vadd.f32 %v5673, %v5897
    %v5899 = vpop.f32.mrb[0].mxu0
    %5900 = vmatprep.mubr.bf16.mxu0 0
    %5901 = vmatmul.mubr.bf16.gmra.mrb[0].mxu0 %v5364
    %v5902 = vpop.f32.mrb[0].mxu0
    %v5903 = vadd.f32 %v5678, %v5902
    %v5904 = vpop.f32.mrb[0].mxu0
    %v5905 = vpop.f32.mrb[0].mxu0
    %v5906 = vadd.f32 %v5681, %v5905
    %v5907 = vpop.f32.mrb[0].mxu0
    %5908 = vmatprep.mubr.bf16.mxu0 0
    %5909 = vmatmul.mubr.bf16.gmra.mrb[0].mxu0 %v5365
    %v5910 = vpop.f32.mrb[0].mxu0
    %v5911 = vadd.f32 %v5686, %v5910
    %v5912 = vpop.f32.mrb[0].mxu0
    %v5913 = vpop.f32.mrb[0].mxu0
    %v5914 = vadd.f32 %v5689, %v5913
    %v5915 = vpop.f32.mrb[0].mxu0
    %5916 = vmatprep.mubr.bf16.mxu0 0
    %5917 = vmatmul.mubr.bf16.gmra.mrb[0].mxu0 %v5366
    %v5918 = vpop.f32.mrb[0].mxu0
    %v5919 = vadd.f32 %v5694, %v5918
    %v5920 = vpop.f32.mrb[0].mxu0
    %v5921 = vpop.f32.mrb[0].mxu0
    %v5922 = vadd.f32 %v5697, %v5921
    %v5923 = vpop.f32.mrb[0].mxu0
    %5924 = vmatprep.mubr.bf16.mxu0 0
    %5925 = vmatmul.mubr.bf16.gmra.mrb[0].mxu0 %v5367
    %v5926 = vpop.f32.mrb[0].mxu0
    %v5927 = vadd.f32 %v5702, %v5926
    %v5928 = vpop.f32.mrb[0].mxu0
    %v5929 = vpop.f32.mrb[0].mxu0
    %v5930 = vadd.f32 %v5705, %v5929
    %v5931 = vpop.f32.mrb[0].mxu0
    %5932 = vmatprep.mubr.bf16.mxu0 0
    %5933 = vmatmul.mubr.bf16.gmra.mrb[0].mxu0 %v5368
    %v5934 = vpop.f32.mrb[0].mxu0
    %v5935 = vadd.f32 %v5710, %v5934
    %v5936 = vpop.f32.mrb[0].mxu0
    %v5937 = vpop.f32.mrb[0].mxu0
    %v5938 = vadd.f32 %v5713, %v5937
    %v5939 = vpop.f32.mrb[0].mxu0
    %5940 = vmatprep.mubr.bf16.mxu0 0
    %5941 = vmatmul.mubr.bf16.gmra.mrb[0].mxu0 %v5369
    %v5942 = vpop.f32.mrb[0].mxu0
    %v5943 = vadd.f32 %v5718, %v5942
    %v5944 = vpop.f32.mrb[0].mxu0
    %v5945 = vpop.f32.mrb[0].mxu0
    %v5946 = vadd.f32 %v5721, %v5945
    %v5947 = vpop.f32.mrb[0].mxu0
    %5948 = vmatprep.mubr.bf16.mxu0 0
    %5949 = vmatmul.mubr.bf16.gmra.mrb[0].mxu0 %v5370
    %v5950 = vpop.f32.mrb[0].mxu0
    %v5951 = vadd.f32 %v5726, %v5950
    %v5952 = vpop.f32.mrb[0].mxu0
    %v5953 = vpop.f32.mrb[0].mxu0
    %v5954 = vadd.f32 %v5729, %v5953
    %v5955 = vpop.f32.mrb[0].mxu0
    %5956 = vmatprep.mubr.bf16.mxu0 0
    %5957 = vmatmul.mubr.bf16.gmra.mrb[0].mxu0 %v5371
    %v5958 = vpop.f32.mrb[0].mxu0
    %v5959 = vadd.f32 %v5734, %v5958
    %v5960 = vpop.f32.mrb[0].mxu0
    %v5961 = vpop.f32.mrb[0].mxu0
    %v5962 = vadd.f32 %v5737, %v5961
    %v5963 = vpop.f32.mrb[0].mxu0
    %5964 = vmatprep.mubr.bf16.mxu0 0
    %5965 = vmatmul.mubr.bf16.gmra.mrb[0].mxu0 %v5372
    %v5966 = vpop.f32.mrb[0].mxu0
    %v5967 = vadd.f32 %v5742, %v5966
    %v5968 = vpop.f32.mrb[0].mxu0
    %v5969 = vpop.f32.mrb[0].mxu0
    %v5970 = vadd.f32 %v5745, %v5969
    %v5971 = vpop.f32.mrb[0].mxu0
    %5972 = vmatprep.mubr.bf16.mxu0 0
    %5973 = vmatmul.mubr.bf16.gmra.mrb[0].mxu0 %v5373
    %v5974 = vpop.f32.mrb[0].mxu0
    %v5975 = vadd.f32 %v5750, %v5974
    %v5976 = vpop.f32.mrb[0].mxu0
    %v5977 = vpop.f32.mrb[0].mxu0
    %v5978 = vadd.f32 %v5753, %v5977
    %v5979 = vpop.f32.mrb[0].mxu0
    %5980 = vmatprep.mubr.bf16.mxu0 0
    %5981 = vmatmul.mubr.bf16.gmra.mrb[0].mxu0 %v5374
    %v5982 = vpop.f32.mrb[0].mxu0
    %v5983 = vadd.f32 %v5758, %v5982
    %v5984 = vpop.f32.mrb[0].mxu0
    %v5985 = vpop.f32.mrb[0].mxu0
    %v5986 = vadd.f32 %v5761, %v5985
    %v5987 = vpop.f32.mrb[0].mxu0
    %5988 = vmatprep.mubr.bf16.mxu0 0
    %5989 = vmatmul.mubr.bf16.gmra.mrb[0].mxu0 %v5375
    %v5990 = vpop.f32.mrb[0].mxu0
    %v5991 = vadd.f32 %v5766, %v5990
    %v5992 = vpop.f32.mrb[0].mxu0
    %v5993 = vpop.f32.mrb[0].mxu0
    %v5994 = vadd.f32 %v5769, %v5993
    %v5995 = vpop.f32.mrb[0].mxu0
    %5996 = vmatprep.mubr.bf16.mxu0 0
    %5997 = vmatmul.mubr.bf16.gmra.mrb[0].mxu0 %v5376
    %v5998 = vpop.f32.mrb[0].mxu0
    %v5999 = vadd.f32 %v5774, %v5998
    %v6000 = vpop.f32.mrb[0].mxu0
    %v6001 = vpop.f32.mrb[0].mxu0
    %v6002 = vadd.f32 %v5777, %v6001
    %v6003 = vpop.f32.mrb[0].mxu0
    %6004 = vmatprep.mubr.bf16.mxu0 0
    %6005 = vmatmul.mubr.bf16.gmra.mrb[0].mxu0 %v5377
    %v6006 = vpop.f32.mrb[0].mxu0
    %v6007 = vadd.f32 %v5782, %v6006
    %v6008 = vpop.f32.mrb[0].mxu0
    %v6009 = vpop.f32.mrb[0].mxu0
    %v6010 = vadd.f32 %v5785, %v6009
    %v6011 = vpop.f32.mrb[0].mxu0
    %6012 = vmatprep.mubr.bf16.mxu0 0
    %6013 = vmatmul.mubr.bf16.gmra.mrb[0].mxu0 %v5378
    %v6014 = vpop.f32.mrb[0].mxu0
    %v6015 = vadd.f32 %v5790, %v6014
    %v6016 = vpop.f32.mrb[0].mxu0
    %v6017 = vpop.f32.mrb[0].mxu0
    %v6018 = vadd.f32 %v5793, %v6017
    %v6019 = vpop.f32.mrb[0].mxu0
    %6020 = vmatprep.mubr.bf16.mxu0 0
    %6021 = vmatmul.mubr.bf16.gmra.mrb[0].mxu0 %v5379
    %v6022 = vpop.f32.mrb[0].mxu0
    %v6023 = vadd.f32 %v5798, %v6022
    %v6024 = vpop.f32.mrb[0].mxu0
    %v6025 = vpop.f32.mrb[0].mxu0
    %v6026 = vadd.f32 %v5801, %v6025
    %v6027 = vpop.f32.mrb[0].mxu0
    %6028 = vdwg.mxu0
    %vm6029 = vcmp.ge.f32.partialorder %v5839, 0.0
    %vm6030 = vcmp.ge.f32.partialorder %v5842, 0.0
    %vm6031 = vcmp.ge.f32.partialorder %v5847, 0.0
    %vm6032 = vcmp.ge.f32.partialorder %v5850, 0.0
    %vm6033 = vcmp.ge.f32.partialorder %v5855, 0.0
    %vm6034 = vcmp.ge.f32.partialorder %v5858, 0.0
    %vm6035 = vcmp.ge.f32.partialorder %v5863, 0.0
    %vm6036 = vcmp.ge.f32.partialorder %v5866, 0.0
    %vm6037 = vcmp.ge.f32.partialorder %v5871, 0.0
    %vm6038 = vcmp.ge.f32.partialorder %v5874, 0.0
    %vm6039 = vcmp.ge.f32.partialorder %v5879, 0.0
    %vm6040 = vcmp.ge.f32.partialorder %v5882, 0.0
    %vm6041 = vcmp.ge.f32.partialorder %v5887, 0.0
    %vm6042 = vcmp.ge.f32.partialorder %v5890, 0.0
    %vm6043 = vcmp.ge.f32.partialorder %v5895, 0.0
    %vm6044 = vcmp.ge.f32.partialorder %v5898, 0.0
    %vm6045 = vcmp.ge.f32.partialorder %v5903, 0.0
    %vm6046 = vcmp.ge.f32.partialorder %v5906, 0.0
    %vm6047 = vcmp.ge.f32.partialorder %v5911, 0.0
    %vm6048 = vcmp.ge.f32.partialorder %v5914, 0.0
    %vm6049 = vcmp.ge.f32.partialorder %v5919, 0.0
    %vm6050 = vcmp.ge.f32.partialorder %v5922, 0.0
    %vm6051 = vcmp.ge.f32.partialorder %v5927, 0.0
    %vm6052 = vcmp.ge.f32.partialorder %v5930, 0.0
    %vm6053 = vcmp.ge.f32.partialorder %v5935, 0.0
    %vm6054 = vcmp.ge.f32.partialorder %v5938, 0.0
    %vm6055 = vcmp.ge.f32.partialorder %v5943, 0.0
    %vm6056 = vcmp.ge.f32.partialorder %v5946, 0.0
    %vm6057 = vcmp.ge.f32.partialorder %v5951, 0.0
    %vm6058 = vcmp.ge.f32.partialorder %v5954, 0.0
    %vm6059 = vcmp.ge.f32.partialorder %v5959, 0.0
    %vm6060 = vcmp.ge.f32.partialorder %v5962, 0.0
    %vm6061 = vcmp.ge.f32.partialorder %v5967, 0.0
    %vm6062 = vcmp.ge.f32.partialorder %v5970, 0.0
    %vm6063 = vcmp.ge.f32.partialorder %v5975, 0.0
    %vm6064 = vcmp.ge.f32.partialorder %v5978, 0.0
    %vm6065 = vcmp.ge.f32.partialorder %v5983, 0.0
    %vm6066 = vcmp.ge.f32.partialorder %v5986, 0.0
    %vm6067 = vcmp.ge.f32.partialorder %v5991, 0.0
    %vm6068 = vcmp.ge.f32.partialorder %v5994, 0.0
    %vm6069 = vcmp.ge.f32.partialorder %v5999, 0.0
    %vm6070 = vcmp.ge.f32.partialorder %v6002, 0.0
    %vm6071 = vcmp.ge.f32.partialorder %v6007, 0.0
    %vm6072 = vcmp.ge.f32.partialorder %v6010, 0.0
    %vm6073 = vcmp.ge.f32.partialorder %v6015, 0.0
    %vm6074 = vcmp.ge.f32.partialorder %v6018, 0.0
    %vm6075 = vcmp.ge.f32.partialorder %v6023, 0.0
    %vm6076 = vcmp.ge.f32.partialorder %v6026, 0.0
    %v6077 = vmul.f32 %v5839, 0.2
    %v6078 = vmul.f32 %v5842, 0.2
    %v6079 = vmul.f32 %v5847, 0.2
    %v6080 = vmul.f32 %v5850, 0.2
    %v6081 = vmul.f32 %v5855, 0.2
    %v6082 = vmul.f32 %v5858, 0.2
    %v6083 = vmul.f32 %v5863, 0.2
    %v6084 = vmul.f32 %v5866, 0.2
    %v6085 = vmul.f32 %v5871, 0.2
    %v6086 = vmul.f32 %v5874, 0.2
    %v6087 = vmul.f32 %v5879, 0.2
    %v6088 = vmul.f32 %v5882, 0.2
    %v6089 = vmul.f32 %v5887, 0.2
    %v6090 = vmul.f32 %v5890, 0.2
    %v6091 = vmul.f32 %v5895, 0.2
    %v6092 = vmul.f32 %v5898, 0.2
    %v6093 = vmul.f32 %v5903, 0.2
    %v6094 = vmul.f32 %v5906, 0.2
    %v6095 = vmul.f32 %v5911, 0.2
    %v6096 = vmul.f32 %v5914, 0.2
    %v6097 = vmul.f32 %v5919, 0.2
    %v6098 = vmul.f32 %v5922, 0.2
    %v6099 = vmul.f32 %v5927, 0.2
    %v6100 = vmul.f32 %v5930, 0.2
    %v6101 = vmul.f32 %v5935, 0.2
    %v6102 = vmul.f32 %v5938, 0.2
    %v6103 = vmul.f32 %v5943, 0.2
    %v6104 = vmul.f32 %v5946, 0.2
    %v6105 = vmul.f32 %v5951, 0.2
    %v6106 = vmul.f32 %v5954, 0.2
    %v6107 = vmul.f32 %v5959, 0.2
    %v6108 = vmul.f32 %v5962, 0.2
    %v6109 = vmul.f32 %v5967, 0.2
    %v6110 = vmul.f32 %v5970, 0.2
    %v6111 = vmul.f32 %v5975, 0.2
    %v6112 = vmul.f32 %v5978, 0.2
    %v6113 = vmul.f32 %v5983, 0.2
    %v6114 = vmul.f32 %v5986, 0.2
    %v6115 = vmul.f32 %v5991, 0.2
    %v6116 = vmul.f32 %v5994, 0.2
    %v6117 = vmul.f32 %v5999, 0.2
    %v6118 = vmul.f32 %v6002, 0.2
    %v6119 = vmul.f32 %v6007, 0.2
    %v6120 = vmul.f32 %v6010, 0.2
    %v6121 = vmul.f32 %v6015, 0.2
    %v6122 = vmul.f32 %v6018, 0.2
    %v6123 = vmul.f32 %v6023, 0.2
    %v6124 = vmul.f32 %v6026, 0.2
    %v6125 = vsel %vm6029, %v5839, %v6077
    %v6126 = vsel %vm6030, %v5842, %v6078
    %v6127 = vsel %vm6031, %v5847, %v6079
    %v6128 = vsel %vm6032, %v5850, %v6080
    %v6129 = vsel %vm6033, %v5855, %v6081
    %v6130 = vsel %vm6034, %v5858, %v6082
    %v6131 = vsel %vm6035, %v5863, %v6083
    %v6132 = vsel %vm6036, %v5866, %v6084
    %v6133 = vsel %vm6037, %v5871, %v6085
    %v6134 = vsel %vm6038, %v5874, %v6086
    %v6135 = vsel %vm6039, %v5879, %v6087
    %v6136 = vsel %vm6040, %v5882, %v6088
    %v6137 = vsel %vm6041, %v5887, %v6089
    %v6138 = vsel %vm6042, %v5890, %v6090
    %v6139 = vsel %vm6043, %v5895, %v6091
    %v6140 = vsel %vm6044, %v5898, %v6092
    %v6141 = vsel %vm6045, %v5903, %v6093
    %v6142 = vsel %vm6046, %v5906, %v6094
    %v6143 = vsel %vm6047, %v5911, %v6095
    %v6144 = vsel %vm6048, %v5914, %v6096
    %v6145 = vsel %vm6049, %v5919, %v6097
    %v6146 = vsel %vm6050, %v5922, %v6098
    %v6147 = vsel %vm6051, %v5927, %v6099
    %v6148 = vsel %vm6052, %v5930, %v6100
    %v6149 = vsel %vm6053, %v5935, %v6101
    %v6150 = vsel %vm6054, %v5938, %v6102
    %v6151 = vsel %vm6055, %v5943, %v6103
    %v6152 = vsel %vm6056, %v5946, %v6104
    %v6153 = vsel %vm6057, %v5951, %v6105
    %v6154 = vsel %vm6058, %v5954, %v6106
    %v6155 = vsel %vm6059, %v5959, %v6107
    %v6156 = vsel %vm6060, %v5962, %v6108
    %v6157 = vsel %vm6061, %v5967, %v6109
    %v6158 = vsel %vm6062, %v5970, %v6110
    %v6159 = vsel %vm6063, %v5975, %v6111
    %v6160 = vsel %vm6064, %v5978, %v6112
    %v6161 = vsel %vm6065, %v5983, %v6113
    %v6162 = vsel %vm6066, %v5986, %v6114
    %v6163 = vsel %vm6067, %v5991, %v6115
    %v6164 = vsel %vm6068, %v5994, %v6116
    %v6165 = vsel %vm6069, %v5999, %v6117
    %v6166 = vsel %vm6070, %v6002, %v6118
    %v6167 = vsel %vm6071, %v6007, %v6119
    %v6168 = vsel %vm6072, %v6010, %v6120
    %v6169 = vsel %vm6073, %v6015, %v6121
    %v6170 = vsel %vm6074, %v6018, %v6122
    %v6171 = vsel %vm6075, %v6023, %v6123
    %v6172 = vsel %vm6076, %v6026, %v6124
    %v6173 = vsel %vm3915, %v6125, 0.0
    %v6174 = vsel %vm3916, %v6126, 0.0
    %v6175 = vsel %vm3917, %v6127, 0.0
    %v6176 = vsel %vm3918, %v6128, 0.0
    %v6177 = vsel %vm3919, %v6129, 0.0
    %v6178 = vsel %vm3920, %v6130, 0.0
    %v6179 = vsel %vm3921, %v6131, 0.0
    %v6180 = vsel %vm3922, %v6132, 0.0
    %v6181 = vsel %vm3923, %v6133, 0.0
    %v6182 = vsel %vm3924, %v6134, 0.0
    %v6183 = vsel %vm3925, %v6135, 0.0
    %v6184 = vsel %vm3926, %v6136, 0.0
    %v6185 = vsel %vm3927, %v6137, 0.0
    %v6186 = vsel %vm3928, %v6138, 0.0
    %v6187 = vsel %vm3929, %v6139, 0.0
    %v6188 = vsel %vm3930, %v6140, 0.0
    %v6189 = vsel %vm3931, %v6141, 0.0
    %v6190 = vsel %vm3932, %v6142, 0.0
    %v6191 = vsel %vm3933, %v6143, 0.0
    %v6192 = vsel %vm3934, %v6144, 0.0
    %v6193 = vsel %vm3935, %v6145, 0.0
    %v6194 = vsel %vm3936, %v6146, 0.0
    %v6195 = vsel %vm3937, %v6147, 0.0
    %v6196 = vsel %vm3938, %v6148, 0.0
    %v6197 = vsel %vm3939, %v6149, 0.0
    %v6198 = vsel %vm3940, %v6150, 0.0
    %v6199 = vsel %vm3941, %v6151, 0.0
    %v6200 = vsel %vm3942, %v6152, 0.0
    %v6201 = vsel %vm3943, %v6153, 0.0
    %v6202 = vsel %vm3944, %v6154, 0.0
    %v6203 = vsel %vm3945, %v6155, 0.0
    %v6204 = vsel %vm3946, %v6156, 0.0
    %v6205 = vsel %vm3947, %v6157, 0.0
    %v6206 = vsel %vm3948, %v6158, 0.0
    %v6207 = vsel %vm3949, %v6159, 0.0
    %v6208 = vsel %vm3950, %v6160, 0.0
    %v6209 = vsel %vm3951, %v6161, 0.0
    %v6210 = vsel %vm3952, %v6162, 0.0
    %v6211 = vsel %vm3953, %v6163, 0.0
    %v6212 = vsel %vm3954, %v6164, 0.0
    %v6213 = vsel %vm3955, %v6165, 0.0
    %v6214 = vsel %vm3956, %v6166, 0.0
    %v6215 = vsel %vm3957, %v6167, 0.0
    %v6216 = vsel %vm3958, %v6168, 0.0
    %v6217 = vsel %vm3959, %v6169, 0.0
    %v6218 = vsel %vm3960, %v6170, 0.0
    %v6219 = vsel %vm3961, %v6171, 0.0
    %v6220 = vsel %vm3962, %v6172, 0.0
    %v6221 = vrot.slane %v6173, 7
    %v6222 = vrot.slane %v6174, 7
    %v6223 = vrot.slane %v6175, 7
    %v6224 = vrot.slane %v6176, 7
    %v6225 = vrot.slane %v6177, 7
    %v6226 = vrot.slane %v6178, 7
    %v6227 = vrot.slane %v6179, 7
    %v6228 = vrot.slane %v6180, 7
    %v6229 = vrot.slane %v6181, 7
    %v6230 = vrot.slane %v6182, 7
    %v6231 = vrot.slane %v6183, 7
    %v6232 = vrot.slane %v6184, 7
    %v6233 = vrot.slane %v6185, 7
    %v6234 = vrot.slane %v6186, 7
    %v6235 = vrot.slane %v6187, 7
    %v6236 = vrot.slane %v6188, 7
    %v6237 = vrot.slane %v6189, 7
    %v6238 = vrot.slane %v6190, 7
    %v6239 = vrot.slane %v6191, 7
    %v6240 = vrot.slane %v6192, 7
    %v6241 = vrot.slane %v6193, 7
    %v6242 = vrot.slane %v6194, 7
    %v6243 = vrot.slane %v6195, 7
    %v6244 = vrot.slane %v6196, 7
    %v6245 = vrot.slane %v6197, 7
    %v6246 = vrot.slane %v6198, 7
    %v6247 = vrot.slane %v6199, 7
    %v6248 = vrot.slane %v6200, 7
    %v6249 = vrot.slane %v6201, 7
    %v6250 = vrot.slane %v6202, 7
    %v6251 = vrot.slane %v6203, 7
    %v6252 = vrot.slane %v6204, 7
    %v6253 = vrot.slane %v6205, 7
    %v6254 = vrot.slane %v6206, 7
    %v6255 = vrot.slane %v6207, 7
    %v6256 = vrot.slane %v6208, 7
    %v6257 = vrot.slane %v6209, 7
    %v6258 = vrot.slane %v6210, 7
    %v6259 = vrot.slane %v6211, 7
    %v6260 = vrot.slane %v6212, 7
    %v6261 = vrot.slane %v6213, 7
    %v6262 = vrot.slane %v6214, 7
    %v6263 = vrot.slane %v6215, 7
    %v6264 = vrot.slane %v6216, 7
    %v6265 = vrot.slane %v6217, 7
    %v6266 = vrot.slane %v6218, 7
    %v6267 = vrot.slane %v6219, 7
    %v6268 = vrot.slane %v6220, 7
    %v6269 = vsel %vm2934, %v6267, %v6268
    %v6270 = vsel %vm2934, %v6266, %v6267
    %v6271 = vsel %vm2934, %v6265, %v6266
    %v6272 = vsel %vm2934, %v6264, %v6265
    %v6273 = vsel %vm2934, %v6263, %v6264
    %v6274 = vsel %vm2934, %v6262, %v6263
    %v6275 = vsel %vm2934, %v6261, %v6262
    %v6276 = vsel %vm2934, %v6260, %v6261
    %v6277 = vsel %vm2934, %v6259, %v6260
    %v6278 = vsel %vm2934, %v6258, %v6259
    %v6279 = vsel %vm2934, %v6257, %v6258
    %v6280 = vsel %vm2934, %v6256, %v6257
    %v6281 = vsel %vm2934, %v6255, %v6256
    %v6282 = vsel %vm2934, %v6254, %v6255
    %v6283 = vsel %vm2934, %v6253, %v6254
    %v6284 = vsel %vm2934, %v6252, %v6253
    %v6285 = vsel %vm2934, %v6251, %v6252
    %v6286 = vsel %vm2934, %v6250, %v6251
    %v6287 = vsel %vm2934, %v6249, %v6250
    %v6288 = vsel %vm2934, %v6248, %v6249
    %v6289 = vsel %vm2934, %v6247, %v6248
    %v6290 = vsel %vm2934, %v6246, %v6247
    %v6291 = vsel %vm2934, %v6245, %v6246
    %v6292 = vsel %vm2934, %v6244, %v6245
    %v6293 = vsel %vm2934, %v6243, %v6244
    %v6294 = vsel %vm2934, %v6242, %v6243
    %v6295 = vsel %vm2934, %v6241, %v6242
    %v6296 = vsel %vm2934, %v6240, %v6241
    %v6297 = vsel %vm2934, %v6239, %v6240
    %v6298 = vsel %vm2934, %v6238, %v6239
    %v6299 = vsel %vm2934, %v6237, %v6238
    %v6300 = vsel %vm2934, %v6236, %v6237
    %v6301 = vsel %vm2934, %v6235, %v6236
    %v6302 = vsel %vm2934, %v6234, %v6235
    %v6303 = vsel %vm2934, %v6233, %v6234
    %v6304 = vsel %vm2934, %v6232, %v6233
    %v6305 = vsel %vm2934, %v6231, %v6232
    %v6306 = vsel %vm2934, %v6230, %v6231
    %v6307 = vsel %vm2934, %v6229, %v6230
    %v6308 = vsel %vm2934, %v6228, %v6229
    %v6309 = vsel %vm2934, %v6227, %v6228
    %v6310 = vsel %vm2934, %v6226, %v6227
    %v6311 = vsel %vm2934, %v6225, %v6226
    %v6312 = vsel %vm2934, %v6224, %v6225
    %v6313 = vsel %vm2934, %v6223, %v6224
    %v6314 = vsel %vm2934, %v6222, %v6223
    %v6315 = vsel %vm2934, %v6221, %v6222
    %v6316 = vsel %vm2934, %v6268, %v6221
    %v6317 = vrot.slane %v6173, 1
    %v6318 = vrot.slane %v6174, 1
    %v6319 = vrot.slane %v6175, 1
    %v6320 = vrot.slane %v6176, 1
    %v6321 = vrot.slane %v6177, 1
    %v6322 = vrot.slane %v6178, 1
    %v6323 = vrot.slane %v6179, 1
    %v6324 = vrot.slane %v6180, 1
    %v6325 = vrot.slane %v6181, 1
    %v6326 = vrot.slane %v6182, 1
    %v6327 = vrot.slane %v6183, 1
    %v6328 = vrot.slane %v6184, 1
    %v6329 = vrot.slane %v6185, 1
    %v6330 = vrot.slane %v6186, 1
    %v6331 = vrot.slane %v6187, 1
    %v6332 = vrot.slane %v6188, 1
    %v6333 = vrot.slane %v6189, 1
    %v6334 = vrot.slane %v6190, 1
    %v6335 = vrot.slane %v6191, 1
    %v6336 = vrot.slane %v6192, 1
    %v6337 = vrot.slane %v6193, 1
    %v6338 = vrot.slane %v6194, 1
    %v6339 = vrot.slane %v6195, 1
    %v6340 = vrot.slane %v6196, 1
    %v6341 = vrot.slane %v6197, 1
    %v6342 = vrot.slane %v6198, 1
    %v6343 = vrot.slane %v6199, 1
    %v6344 = vrot.slane %v6200, 1
    %v6345 = vrot.slane %v6201, 1
    %v6346 = vrot.slane %v6202, 1
    %v6347 = vrot.slane %v6203, 1
    %v6348 = vrot.slane %v6204, 1
    %v6349 = vrot.slane %v6205, 1
    %v6350 = vrot.slane %v6206, 1
    %v6351 = vrot.slane %v6207, 1
    %v6352 = vrot.slane %v6208, 1
    %v6353 = vrot.slane %v6209, 1
    %v6354 = vrot.slane %v6210, 1
    %v6355 = vrot.slane %v6211, 1
    %v6356 = vrot.slane %v6212, 1
    %v6357 = vrot.slane %v6213, 1
    %v6358 = vrot.slane %v6214, 1
    %v6359 = vrot.slane %v6215, 1
    %v6360 = vrot.slane %v6216, 1
    %v6361 = vrot.slane %v6217, 1
    %v6362 = vrot.slane %v6218, 1
    %v6363 = vrot.slane %v6219, 1
    %v6364 = vrot.slane %v6220, 1
    %v6365 = vsel %vm3031, %v6363, %v6364
    %v6366 = vsel %vm3031, %v6362, %v6363
    %v6367 = vsel %vm3031, %v6361, %v6362
    %v6368 = vsel %vm3031, %v6360, %v6361
    %v6369 = vsel %vm3031, %v6359, %v6360
    %v6370 = vsel %vm3031, %v6358, %v6359
    %v6371 = vsel %vm3031, %v6357, %v6358
    %v6372 = vsel %vm3031, %v6356, %v6357
    %v6373 = vsel %vm3031, %v6355, %v6356
    %v6374 = vsel %vm3031, %v6354, %v6355
    %v6375 = vsel %vm3031, %v6353, %v6354
    %v6376 = vsel %vm3031, %v6352, %v6353
    %v6377 = vsel %vm3031, %v6351, %v6352
    %v6378 = vsel %vm3031, %v6350, %v6351
    %v6379 = vsel %vm3031, %v6349, %v6350
    %v6380 = vsel %vm3031, %v6348, %v6349
    %v6381 = vsel %vm3031, %v6347, %v6348
    %v6382 = vsel %vm3031, %v6346, %v6347
    %v6383 = vsel %vm3031, %v6345, %v6346
    %v6384 = vsel %vm3031, %v6344, %v6345
    %v6385 = vsel %vm3031, %v6343, %v6344
    %v6386 = vsel %vm3031, %v6342, %v6343
    %v6387 = vsel %vm3031, %v6341, %v6342
    %v6388 = vsel %vm3031, %v6340, %v6341
    %v6389 = vsel %vm3031, %v6339, %v6340
    %v6390 = vsel %vm3031, %v6338, %v6339
    %v6391 = vsel %vm3031, %v6337, %v6338
    %v6392 = vsel %vm3031, %v6336, %v6337
    %v6393 = vsel %vm3031, %v6335, %v6336
    %v6394 = vsel %vm3031, %v6334, %v6335
    %v6395 = vsel %vm3031, %v6333, %v6334
    %v6396 = vsel %vm3031, %v6332, %v6333
    %v6397 = vsel %vm3031, %v6331, %v6332
    %v6398 = vsel %vm3031, %v6330, %v6331
    %v6399 = vsel %vm3031, %v6329, %v6330
    %v6400 = vsel %vm3031, %v6328, %v6329
    %v6401 = vsel %vm3031, %v6327, %v6328
    %v6402 = vsel %vm3031, %v6326, %v6327
    %v6403 = vsel %vm3031, %v6325, %v6326
    %v6404 = vsel %vm3031, %v6324, %v6325
    %v6405 = vsel %vm3031, %v6323, %v6324
    %v6406 = vsel %vm3031, %v6322, %v6323
    %v6407 = vsel %vm3031, %v6321, %v6322
    %v6408 = vsel %vm3031, %v6320, %v6321
    %v6409 = vsel %vm3031, %v6319, %v6320
    %v6410 = vsel %vm3031, %v6318, %v6319
    %v6411 = vsel %vm3031, %v6317, %v6318
    %v6412 = vsel %vm3031, %v6364, %v6317
    %v6413 = vpack.c.bf16 %v6315, %v6316
    %v6414 = vpack.c.bf16 %v6313, %v6314
    %v6415 = vpack.c.bf16 %v6311, %v6312
    %v6416 = vpack.c.bf16 %v6309, %v6310
    %v6417 = vpack.c.bf16 %v6307, %v6308
    %v6418 = vpack.c.bf16 %v6305, %v6306
    %v6419 = vpack.c.bf16 %v6303, %v6304
    %v6420 = vpack.c.bf16 %v6301, %v6302
    %v6421 = vpack.c.bf16 %v6299, %v6300
    %v6422 = vpack.c.bf16 %v6297, %v6298
    %v6423 = vpack.c.bf16 %v6295, %v6296
    %v6424 = vpack.c.bf16 %v6293, %v6294
    %v6425 = vpack.c.bf16 %v6291, %v6292
    %v6426 = vpack.c.bf16 %v6289, %v6290
    %v6427 = vpack.c.bf16 %v6287, %v6288
    %v6428 = vpack.c.bf16 %v6285, %v6286
    %v6429 = vpack.c.bf16 %v6283, %v6284
    %v6430 = vpack.c.bf16 %v6281, %v6282
    %v6431 = vpack.c.bf16 %v6279, %v6280
    %v6432 = vpack.c.bf16 %v6277, %v6278
    %v6433 = vpack.c.bf16 %v6275, %v6276
    %v6434 = vpack.c.bf16 %v6273, %v6274
    %v6435 = vpack.c.bf16 %v6271, %v6272
    %v6436 = vpack.c.bf16 %v6269, %v6270
    %v6437 = vpack.c.bf16 %v6174, %v6173
    %v6438 = vpack.c.bf16 %v6176, %v6175
    %v6439 = vpack.c.bf16 %v6178, %v6177
    %v6440 = vpack.c.bf16 %v6180, %v6179
    %v6441 = vpack.c.bf16 %v6182, %v6181
    %v6442 = vpack.c.bf16 %v6184, %v6183
    %v6443 = vpack.c.bf16 %v6186, %v6185
    %v6444 = vpack.c.bf16 %v6188, %v6187
    %v6445 = vpack.c.bf16 %v6190, %v6189
    %v6446 = vpack.c.bf16 %v6192, %v6191
    %v6447 = vpack.c.bf16 %v6194, %v6193
    %v6448 = vpack.c.bf16 %v6196, %v6195
    %v6449 = vpack.c.bf16 %v6198, %v6197
    %v6450 = vpack.c.bf16 %v6200, %v6199
    %v6451 = vpack.c.bf16 %v6202, %v6201
    %v6452 = vpack.c.bf16 %v6204, %v6203
    %v6453 = vpack.c.bf16 %v6206, %v6205
    %v6454 = vpack.c.bf16 %v6208, %v6207
    %v6455 = vpack.c.bf16 %v6210, %v6209
    %v6456 = vpack.c.bf16 %v6212, %v6211
    %v6457 = vpack.c.bf16 %v6214, %v6213
    %v6458 = vpack.c.bf16 %v6216, %v6215
    %v6459 = vpack.c.bf16 %v6218, %v6217
    %v6460 = vpack.c.bf16 %v6220, %v6219
    %v6461 = vpack.c.bf16 %v6410, %v6411
    %v6462 = vpack.c.bf16 %v6408, %v6409
    %v6463 = vpack.c.bf16 %v6406, %v6407
    %v6464 = vpack.c.bf16 %v6404, %v6405
    %v6465 = vpack.c.bf16 %v6402, %v6403
    %v6466 = vpack.c.bf16 %v6400, %v6401
    %v6467 = vpack.c.bf16 %v6398, %v6399
    %v6468 = vpack.c.bf16 %v6396, %v6397
    %v6469 = vpack.c.bf16 %v6394, %v6395
    %v6470 = vpack.c.bf16 %v6392, %v6393
    %v6471 = vpack.c.bf16 %v6390, %v6391
    %v6472 = vpack.c.bf16 %v6388, %v6389
    %v6473 = vpack.c.bf16 %v6386, %v6387
    %v6474 = vpack.c.bf16 %v6384, %v6385
    %v6475 = vpack.c.bf16 %v6382, %v6383
    %v6476 = vpack.c.bf16 %v6380, %v6381
    %v6477 = vpack.c.bf16 %v6378, %v6379
    %v6478 = vpack.c.bf16 %v6376, %v6377
    %v6479 = vpack.c.bf16 %v6374, %v6375
    %v6480 = vpack.c.bf16 %v6372, %v6373
    %v6481 = vpack.c.bf16 %v6370, %v6371
    %v6482 = vpack.c.bf16 %v6368, %v6369
    %v6483 = vpack.c.bf16 %v6366, %v6367
    %v6484 = vpack.c.bf16 %v6412, %v6365
    %v6485 = vld [vmem:[%s11] sm:$0xf]
    %v6486 = vld [vmem:[%s11 + $0x4] sm:$0xf]
    %v6487 = vld [vmem:[%s11 + $0x8] sm:$0xf]
    %v6488 = vld [vmem:[%s11 + $0xc] sm:$0xf]
    %v6489 = vld [vmem:[%s11 + $0x10] sm:$0xf]
    %v6490 = vld [vmem:[%s11 + $0x14] sm:$0xf]
    %v6491 = vld [vmem:[%s11 + $0x18] sm:$0xf]
    %v6492 = vld [vmem:[%s11 + $0x1c] sm:$0xf]
    %v6493 = vld [vmem:[%s11 + $0x20] sm:$0xf]
    %v6494 = vld [vmem:[%s11 + $0x24] sm:$0xf]
    %v6495 = vld [vmem:[%s11 + $0x28] sm:$0xf]
    %v6496 = vld [vmem:[%s11 + $0x2c] sm:$0xf]
    %v6497 = vld [vmem:[%s11 + $0x30] sm:$0xf]
    %v6498 = vld [vmem:[%s11 + $0x34] sm:$0xf]
    %v6499 = vld [vmem:[%s11 + $0x38] sm:$0xf]
    %v6500 = vld [vmem:[%s11 + $0x3c] sm:$0xf]
    %v6501 = vld [vmem:[%s11 + $0x40] sm:$0xf]
    %v6502 = vld [vmem:[%s11 + $0x44] sm:$0xf]
    %v6503 = vld [vmem:[%s11 + $0x48] sm:$0xf]
    %v6504 = vld [vmem:[%s11 + $0x4c] sm:$0xf]
    %v6505 = vld [vmem:[%s11 + $0x50] sm:$0xf]
    %v6506 = vld [vmem:[%s11 + $0x54] sm:$0xf]
    %v6507 = vld [vmem:[%s11 + $0x58] sm:$0xf]
    %v6508 = vld [vmem:[%s11 + $0x5c] sm:$0xf]
    %v6509 = vld [vmem:[%s11 + $0x60] sm:$0xf]
    %v6510 = vld [vmem:[%s11 + $0x64] sm:$0xf]
    %v6511 = vld [vmem:[%s11 + $0x68] sm:$0xf]
    %v6512 = vld [vmem:[%s11 + $0x6c] sm:$0xf]
    %v6513 = vld [vmem:[%s11 + $0x70] sm:$0xf]
    %v6514 = vld [vmem:[%s11 + $0x74] sm:$0xf]
    %v6515 = vld [vmem:[%s11 + $0x78] sm:$0xf]
    %v6516 = vld [vmem:[%s11 + $0x7c] sm:$0xf]
    %v6517 = vld [vmem:[%s11 + $0x80] sm:$0xf]
    %v6518 = vld [vmem:[%s11 + $0x84] sm:$0xf]
    %v6519 = vld [vmem:[%s11 + $0x88] sm:$0xf]
    %v6520 = vld [vmem:[%s11 + $0x8c] sm:$0xf]
    %v6521 = vld [vmem:[%s11 + $0x90] sm:$0xf]
    %v6522 = vld [vmem:[%s11 + $0x94] sm:$0xf]
    %v6523 = vld [vmem:[%s11 + $0x98] sm:$0xf]
    %v6524 = vld [vmem:[%s11 + $0x9c] sm:$0xf]
    %v6525 = vld [vmem:[%s11 + $0xa0] sm:$0xf]
    %v6526 = vld [vmem:[%s11 + $0xa4] sm:$0xf]
    %v6527 = vld [vmem:[%s11 + $0xa8] sm:$0xf]
    %v6528 = vld [vmem:[%s11 + $0xac] sm:$0xf]
    %v6529 = vld [vmem:[%s11 + $0xb0] sm:$0xf]
    %v6530 = vld [vmem:[%s11 + $0xb4] sm:$0xf]
    %v6531 = vld [vmem:[%s11 + $0xb8] sm:$0xf]
    %v6532 = vld [vmem:[%s11 + $0xbc] sm:$0xf]
    %v6533 = vld [vmem:[%s15] sm:$0x1]
    %v6535 = vlaneseq
    %v6536 = vshrl.u32 %v6535, 7
    %v6537 = vsub.s32 0, %v6536
    %v6538 = vrot.slane %v6533, %v6537
    %v6588 = vunpack.c.l.b16 %v6485
    %v6589 = vunpack.c.l.b16 %v6486
    %v6590 = vunpack.c.l.b16 %v6487
    %v6591 = vunpack.c.l.b16 %v6488
    %v6592 = vunpack.c.l.b16 %v6489
    %v6593 = vunpack.c.l.b16 %v6490
    %v6594 = vunpack.c.l.b16 %v6491
    %v6595 = vunpack.c.l.b16 %v6492
    %v6596 = vunpack.c.l.b16 %v6493
    %v6597 = vunpack.c.l.b16 %v6494
    %v6598 = vunpack.c.l.b16 %v6495
    %v6599 = vunpack.c.l.b16 %v6496
    %v6600 = vunpack.c.l.b16 %v6497
    %v6601 = vunpack.c.l.b16 %v6498
    %v6602 = vunpack.c.l.b16 %v6499
    %v6603 = vunpack.c.l.b16 %v6500
    %v6604 = vunpack.c.l.b16 %v6501
    %v6605 = vunpack.c.l.b16 %v6502
    %v6606 = vunpack.c.l.b16 %v6503
    %v6607 = vunpack.c.l.b16 %v6504
    %v6608 = vunpack.c.l.b16 %v6505
    %v6609 = vunpack.c.l.b16 %v6506
    %v6610 = vunpack.c.l.b16 %v6507
    %v6611 = vunpack.c.l.b16 %v6508
    %v6612 = vunpack.c.l.b16 %v6509
    %v6613 = vunpack.c.l.b16 %v6510
    %v6614 = vunpack.c.l.b16 %v6511
    %v6615 = vunpack.c.l.b16 %v6512
    %v6616 = vunpack.c.l.b16 %v6513
    %v6617 = vunpack.c.l.b16 %v6514
    %v6618 = vunpack.c.l.b16 %v6515
    %v6619 = vunpack.c.l.b16 %v6516
    %v6620 = vunpack.c.l.b16 %v6517
    %v6621 = vunpack.c.l.b16 %v6518
    %v6622 = vunpack.c.l.b16 %v6519
    %v6623 = vunpack.c.l.b16 %v6520
    %v6624 = vunpack.c.l.b16 %v6521
    %v6625 = vunpack.c.l.b16 %v6522
    %v6626 = vunpack.c.l.b16 %v6523
    %v6627 = vunpack.c.l.b16 %v6524
    %v6628 = vunpack.c.l.b16 %v6525
    %v6629 = vunpack.c.l.b16 %v6526
    %v6630 = vunpack.c.l.b16 %v6527
    %v6631 = vunpack.c.l.b16 %v6528
    %v6632 = vunpack.c.l.b16 %v6529
    %v6633 = vunpack.c.l.b16 %v6530
    %v6634 = vunpack.c.l.b16 %v6531
    %v6635 = vunpack.c.l.b16 %v6532
    %v6636 = vpack.c.b16 %v6589, %v6588
    %v6637 = vpack.c.b16 %v6591, %v6590
    %v6638 = vpack.c.b16 %v6593, %v6592
    %v6639 = vpack.c.b16 %v6595, %v6594
    %v6640 = vpack.c.b16 %v6597, %v6596
    %v6641 = vpack.c.b16 %v6599, %v6598
    %v6642 = vpack.c.b16 %v6601, %v6600
    %v6643 = vpack.c.b16 %v6603, %v6602
    %v6644 = vpack.c.b16 %v6605, %v6604
    %v6645 = vpack.c.b16 %v6607, %v6606
    %v6646 = vpack.c.b16 %v6609, %v6608
    %v6647 = vpack.c.b16 %v6611, %v6610
    %v6648 = vpack.c.b16 %v6613, %v6612
    %v6649 = vpack.c.b16 %v6615, %v6614
    %v6650 = vpack.c.b16 %v6617, %v6616
    %v6651 = vpack.c.b16 %v6619, %v6618
    %v6652 = vpack.c.b16 %v6621, %v6620
    %v6653 = vpack.c.b16 %v6623, %v6622
    %v6654 = vpack.c.b16 %v6625, %v6624
    %v6655 = vpack.c.b16 %v6627, %v6626
    %v6656 = vpack.c.b16 %v6629, %v6628
    %v6657 = vpack.c.b16 %v6631, %v6630
    %v6658 = vpack.c.b16 %v6633, %v6632
    %v6659 = vpack.c.b16 %v6635, %v6634
    %6684 = vmatprep.subr.bf16.mxu0 0
    %6685 = vmatpush1.bf16.msra.mxu0 %v6636
    %6686 = vmatprep.subr.bf16.mxu0 0
    %6687 = vmatpush1.bf16.msra.mxu0 %v6637
    %6688 = vmatprep.subr.bf16.mxu0 0
    %6689 = vmatpush1.bf16.msra.mxu0 %v6638
    %6690 = vmatprep.subr.bf16.mxu0 0
    %6691 = vmatpush1.bf16.msra.mxu0 %v6639
    %6692 = vmatprep.subr.bf16.mxu0 0
    %6693 = vmatpush1.bf16.msra.mxu0 %v6640
    %6694 = vmatprep.subr.bf16.mxu0 0
    %6695 = vmatpush1.bf16.msra.mxu0 %v6641
    %6696 = vmatprep.subr.bf16.mxu0 0
    %6697 = vmatpush1.bf16.msra.mxu0 %v6642
    %6698 = vmatprep.subr.bf16.mxu0 0
    %6699 = vmatpush1.bf16.msra.mxu0 %v6643
    %6700 = vmatprep.subr.bf16.mxu0 0
    %6701 = vmatpush1.bf16.msra.mxu0 %v6644
    %6702 = vmatprep.subr.bf16.mxu0 0
    %6703 = vmatpush1.bf16.msra.mxu0 %v6645
    %6704 = vmatprep.subr.bf16.mxu0 0
    %6705 = vmatpush1.bf16.msra.mxu0 %v6646
    %6706 = vmatprep.subr.bf16.mxu0 0
    %6707 = vmatpush1.bf16.msra.mxu0 %v6647
    %6708 = vmatprep.subr.bf16.mxu0 0
    %6709 = vmatpush1.bf16.msra.mxu0 %v6648
    %6710 = vmatprep.subr.bf16.mxu0 0
    %6711 = vmatpush1.bf16.msra.mxu0 %v6649
    %6712 = vmatprep.subr.bf16.mxu0 0
    %6713 = vmatpush1.bf16.msra.mxu0 %v6650
    %6714 = vmatprep.subr.bf16.mxu0 0
    %6715 = vmatpush1.bf16.msra.mxu0 %v6651
    %6716 = vmatprep.mubr.bf16.mxu0 %v6437
    %6717 = vmatmul.mubr.bf16.gmra.mrb[0].mxu0 %v6413
    %v6718 = vpop.f32.mrb[0].mxu0
    %v6719 = vadd.f32 %v6538, %v6718
    %v6720 = vpop.f32.mrb[0].mxu0
    %v6721 = vpop.f32.mrb[0].mxu0
    %v6722 = vadd.f32 %v6538, %v6721
    %v6723 = vpop.f32.mrb[0].mxu0
    %6724 = vmatprep.mubr.bf16.mxu0 %v6438
    %6725 = vmatmul.mubr.bf16.gmra.mrb[0].mxu0 %v6414
    %v6726 = vpop.f32.mrb[0].mxu0
    %v6727 = vadd.f32 %v6538, %v6726
    %v6728 = vpop.f32.mrb[0].mxu0
    %v6729 = vpop.f32.mrb[0].mxu0
    %v6730 = vadd.f32 %v6538, %v6729
    %v6731 = vpop.f32.mrb[0].mxu0
    %6732 = vmatprep.mubr.bf16.mxu0 %v6439
    %6733 = vmatmul.mubr.bf16.gmra.mrb[0].mxu0 %v6415
    %v6734 = vpop.f32.mrb[0].mxu0
    %v6735 = vadd.f32 %v6538, %v6734
    %v6736 = vpop.f32.mrb[0].mxu0
    %v6737 = vpop.f32.mrb[0].mxu0
    %v6738 = vadd.f32 %v6538, %v6737
    %v6739 = vpop.f32.mrb[0].mxu0
    %6740 = vmatprep.mubr.bf16.mxu0 %v6440
    %6741 = vmatmul.mubr.bf16.gmra.mrb[0].mxu0 %v6416
    %v6742 = vpop.f32.mrb[0].mxu0
    %v6743 = vadd.f32 %v6538, %v6742
    %v6744 = vpop.f32.mrb[0].mxu0
    %v6745 = vpop.f32.mrb[0].mxu0
    %v6746 = vadd.f32 %v6538, %v6745
    %v6747 = vpop.f32.mrb[0].mxu0
    %6748 = vmatprep.mubr.bf16.mxu0 %v6441
    %6749 = vmatmul.mubr.bf16.gmra.mrb[0].mxu0 %v6417
    %v6750 = vpop.f32.mrb[0].mxu0
    %v6751 = vadd.f32 %v6538, %v6750
    %v6752 = vpop.f32.mrb[0].mxu0
    %v6753 = vpop.f32.mrb[0].mxu0
    %v6754 = vadd.f32 %v6538, %v6753
    %v6755 = vpop.f32.mrb[0].mxu0
    %6756 = vmatprep.mubr.bf16.mxu0 %v6442
    %6757 = vmatmul.mubr.bf16.gmra.mrb[0].mxu0 %v6418
    %v6758 = vpop.f32.mrb[0].mxu0
    %v6759 = vadd.f32 %v6538, %v6758
    %v6760 = vpop.f32.mrb[0].mxu0
    %v6761 = vpop.f32.mrb[0].mxu0
    %v6762 = vadd.f32 %v6538, %v6761
    %v6763 = vpop.f32.mrb[0].mxu0
    %6764 = vmatprep.mubr.bf16.mxu0 %v6443
    %6765 = vmatmul.mubr.bf16.gmra.mrb[0].mxu0 %v6419
    %v6766 = vpop.f32.mrb[0].mxu0
    %v6767 = vadd.f32 %v6538, %v6766
    %v6768 = vpop.f32.mrb[0].mxu0
    %v6769 = vpop.f32.mrb[0].mxu0
    %v6770 = vadd.f32 %v6538, %v6769
    %v6771 = vpop.f32.mrb[0].mxu0
    %6772 = vmatprep.mubr.bf16.mxu0 %v6444
    %6773 = vmatmul.mubr.bf16.gmra.mrb[0].mxu0 %v6420
    %v6774 = vpop.f32.mrb[0].mxu0
    %v6775 = vadd.f32 %v6538, %v6774
    %v6776 = vpop.f32.mrb[0].mxu0
    %v6777 = vpop.f32.mrb[0].mxu0
    %v6778 = vadd.f32 %v6538, %v6777
    %v6779 = vpop.f32.mrb[0].mxu0
    %6780 = vmatprep.mubr.bf16.mxu0 %v6445
    %6781 = vmatmul.mubr.bf16.gmra.mrb[0].mxu0 %v6421
    %v6782 = vpop.f32.mrb[0].mxu0
    %v6783 = vadd.f32 %v6538, %v6782
    %v6784 = vpop.f32.mrb[0].mxu0
    %v6785 = vpop.f32.mrb[0].mxu0
    %v6786 = vadd.f32 %v6538, %v6785
    %v6787 = vpop.f32.mrb[0].mxu0
    %6788 = vmatprep.mubr.bf16.mxu0 %v6446
    %6789 = vmatmul.mubr.bf16.gmra.mrb[0].mxu0 %v6422
    %v6790 = vpop.f32.mrb[0].mxu0
    %v6791 = vadd.f32 %v6538, %v6790
    %v6792 = vpop.f32.mrb[0].mxu0
    %v6793 = vpop.f32.mrb[0].mxu0
    %v6794 = vadd.f32 %v6538, %v6793
    %v6795 = vpop.f32.mrb[0].mxu0
    %6796 = vmatprep.mubr.bf16.mxu0 %v6447
    %6797 = vmatmul.mubr.bf16.gmra.mrb[0].mxu0 %v6423
    %v6798 = vpop.f32.mrb[0].mxu0
    %v6799 = vadd.f32 %v6538, %v6798
    %v6800 = vpop.f32.mrb[0].mxu0
    %v6801 = vpop.f32.mrb[0].mxu0
    %v6802 = vadd.f32 %v6538, %v6801
    %v6803 = vpop.f32.mrb[0].mxu0
    %6804 = vmatprep.mubr.bf16.mxu0 %v6448
    %6805 = vmatmul.mubr.bf16.gmra.mrb[0].mxu0 %v6424
    %v6806 = vpop.f32.mrb[0].mxu0
    %v6807 = vadd.f32 %v6538, %v6806
    %v6808 = vpop.f32.mrb[0].mxu0
    %v6809 = vpop.f32.mrb[0].mxu0
    %v6810 = vadd.f32 %v6538, %v6809
    %v6811 = vpop.f32.mrb[0].mxu0
    %6812 = vmatprep.mubr.bf16.mxu0 %v6449
    %6813 = vmatmul.mubr.bf16.gmra.mrb[0].mxu0 %v6425
    %v6814 = vpop.f32.mrb[0].mxu0
    %v6815 = vadd.f32 %v6538, %v6814
    %v6816 = vpop.f32.mrb[0].mxu0
    %v6817 = vpop.f32.mrb[0].mxu0
    %v6818 = vadd.f32 %v6538, %v6817
    %v6819 = vpop.f32.mrb[0].mxu0
    %6820 = vmatprep.mubr.bf16.mxu0 %v6450
    %6821 = vmatmul.mubr.bf16.gmra.mrb[0].mxu0 %v6426
    %v6822 = vpop.f32.mrb[0].mxu0
    %v6823 = vadd.f32 %v6538, %v6822
    %v6824 = vpop.f32.mrb[0].mxu0
    %v6825 = vpop.f32.mrb[0].mxu0
    %v6826 = vadd.f32 %v6538, %v6825
    %v6827 = vpop.f32.mrb[0].mxu0
    %6828 = vmatprep.mubr.bf16.mxu0 %v6451
    %6829 = vmatmul.mubr.bf16.gmra.mrb[0].mxu0 %v6427
    %v6830 = vpop.f32.mrb[0].mxu0
    %v6831 = vadd.f32 %v6538, %v6830
    %v6832 = vpop.f32.mrb[0].mxu0
    %v6833 = vpop.f32.mrb[0].mxu0
    %v6834 = vadd.f32 %v6538, %v6833
    %v6835 = vpop.f32.mrb[0].mxu0
    %6836 = vmatprep.mubr.bf16.mxu0 %v6452
    %6837 = vmatmul.mubr.bf16.gmra.mrb[0].mxu0 %v6428
    %v6838 = vpop.f32.mrb[0].mxu0
    %v6839 = vadd.f32 %v6538, %v6838
    %v6840 = vpop.f32.mrb[0].mxu0
    %v6841 = vpop.f32.mrb[0].mxu0
    %v6842 = vadd.f32 %v6538, %v6841
    %v6843 = vpop.f32.mrb[0].mxu0
    %6844 = vmatprep.mubr.bf16.mxu0 %v6453
    %6845 = vmatmul.mubr.bf16.gmra.mrb[0].mxu0 %v6429
    %v6846 = vpop.f32.mrb[0].mxu0
    %v6847 = vadd.f32 %v6538, %v6846
    %v6848 = vpop.f32.mrb[0].mxu0
    %v6849 = vpop.f32.mrb[0].mxu0
    %v6850 = vadd.f32 %v6538, %v6849
    %v6851 = vpop.f32.mrb[0].mxu0
    %6852 = vmatprep.mubr.bf16.mxu0 %v6454
    %6853 = vmatmul.mubr.bf16.gmra.mrb[0].mxu0 %v6430
    %v6854 = vpop.f32.mrb[0].mxu0
    %v6855 = vadd.f32 %v6538, %v6854
    %v6856 = vpop.f32.mrb[0].mxu0
    %v6857 = vpop.f32.mrb[0].mxu0
    %v6858 = vadd.f32 %v6538, %v6857
    %v6859 = vpop.f32.mrb[0].mxu0
    %6860 = vmatprep.mubr.bf16.mxu0 %v6455
    %6861 = vmatmul.mubr.bf16.gmra.mrb[0].mxu0 %v6431
    %v6862 = vpop.f32.mrb[0].mxu0
    %v6863 = vadd.f32 %v6538, %v6862
    %v6864 = vpop.f32.mrb[0].mxu0
    %v6865 = vpop.f32.mrb[0].mxu0
    %v6866 = vadd.f32 %v6538, %v6865
    %v6867 = vpop.f32.mrb[0].mxu0
    %6868 = vmatprep.mubr.bf16.mxu0 %v6456
    %6869 = vmatmul.mubr.bf16.gmra.mrb[0].mxu0 %v6432
    %v6870 = vpop.f32.mrb[0].mxu0
    %v6871 = vadd.f32 %v6538, %v6870
    %v6872 = vpop.f32.mrb[0].mxu0
    %v6873 = vpop.f32.mrb[0].mxu0
    %v6874 = vadd.f32 %v6538, %v6873
    %v6875 = vpop.f32.mrb[0].mxu0
    %6876 = vmatprep.mubr.bf16.mxu0 %v6457
    %6877 = vmatmul.mubr.bf16.gmra.mrb[0].mxu0 %v6433
    %v6878 = vpop.f32.mrb[0].mxu0
    %v6879 = vadd.f32 %v6538, %v6878
    %v6880 = vpop.f32.mrb[0].mxu0
    %v6881 = vpop.f32.mrb[0].mxu0
    %v6882 = vadd.f32 %v6538, %v6881
    %v6883 = vpop.f32.mrb[0].mxu0
    %6884 = vmatprep.mubr.bf16.mxu0 %v6458
    %6885 = vmatmul.mubr.bf16.gmra.mrb[0].mxu0 %v6434
    %v6886 = vpop.f32.mrb[0].mxu0
    %v6887 = vadd.f32 %v6538, %v6886
    %v6888 = vpop.f32.mrb[0].mxu0
    %v6889 = vpop.f32.mrb[0].mxu0
    %v6890 = vadd.f32 %v6538, %v6889
    %v6891 = vpop.f32.mrb[0].mxu0
    %6892 = vmatprep.mubr.bf16.mxu0 %v6459
    %6893 = vmatmul.mubr.bf16.gmra.mrb[0].mxu0 %v6435
    %v6894 = vpop.f32.mrb[0].mxu0
    %v6895 = vadd.f32 %v6538, %v6894
    %v6896 = vpop.f32.mrb[0].mxu0
    %v6897 = vpop.f32.mrb[0].mxu0
    %v6898 = vadd.f32 %v6538, %v6897
    %v6899 = vpop.f32.mrb[0].mxu0
    %6900 = vmatprep.mubr.bf16.mxu0 %v6460
    %6901 = vmatmul.mubr.bf16.gmra.mrb[0].mxu0 %v6436
    %v6902 = vpop.f32.mrb[0].mxu0
    %v6903 = vadd.f32 %v6538, %v6902
    %v6904 = vpop.f32.mrb[0].mxu0
    %v6905 = vpop.f32.mrb[0].mxu0
    %v6906 = vadd.f32 %v6538, %v6905
    %v6907 = vpop.f32.mrb[0].mxu0
    %6908 = vdwg.mxu0
    %6909 = vmatprep.subr.bf16.mxu0 0
    %6910 = vmatpush1.bf16.msra.mxu0 %v6652
    %6911 = vmatprep.subr.bf16.mxu0 0
    %6912 = vmatpush1.bf16.msra.mxu0 %v6653
    %6913 = vmatprep.subr.bf16.mxu0 0
    %6914 = vmatpush1.bf16.msra.mxu0 %v6654
    %6915 = vmatprep.subr.bf16.mxu0 0
    %6916 = vmatpush1.bf16.msra.mxu0 %v6655
    %6917 = vmatprep.subr.bf16.mxu0 0
    %6918 = vmatpush1.bf16.msra.mxu0 %v6656
    %6919 = vmatprep.subr.bf16.mxu0 0
    %6920 = vmatpush1.bf16.msra.mxu0 %v6657
    %6921 = vmatprep.subr.bf16.mxu0 0
    %6922 = vmatpush1.bf16.msra.mxu0 %v6658
    %6923 = vmatprep.subr.bf16.mxu0 0
    %6924 = vmatpush1.bf16.msra.mxu0 %v6659
    %6925 = vmatprep.subr.bf16.mxu0 0
    %6926 = vmatpush1.bf16.msra.mxu0 0
    %6927 = vmatprep.subr.bf16.mxu0 0
    %6928 = vmatpush1.bf16.msra.mxu0 0
    %6929 = vmatprep.subr.bf16.mxu0 0
    %6930 = vmatpush1.bf16.msra.mxu0 0
    %6931 = vmatprep.subr.bf16.mxu0 0
    %6932 = vmatpush1.bf16.msra.mxu0 0
    %6933 = vmatprep.subr.bf16.mxu0 0
    %6934 = vmatpush1.bf16.msra.mxu0 0
    %6935 = vmatprep.subr.bf16.mxu0 0
    %6936 = vmatpush1.bf16.msra.mxu0 0
    %6937 = vmatprep.subr.bf16.mxu0 0
    %6938 = vmatpush1.bf16.msra.mxu0 0
    %6939 = vmatprep.subr.bf16.mxu0 0
    %6940 = vmatpush1.bf16.msra.mxu0 0
    %6941 = vmatprep.mubr.bf16.mxu0 0
    %6942 = vmatmul.mubr.bf16.gmra.mrb[0].mxu0 %v6461
    %v6943 = vpop.f32.mrb[0].mxu0
    %v6944 = vadd.f32 %v6719, %v6943
    %v6945 = vpop.f32.mrb[0].mxu0
    %v6946 = vpop.f32.mrb[0].mxu0
    %v6947 = vadd.f32 %v6722, %v6946
    %v6948 = vpop.f32.mrb[0].mxu0
    %6949 = vmatprep.mubr.bf16.mxu0 0
    %6950 = vmatmul.mubr.bf16.gmra.mrb[0].mxu0 %v6462
    %v6951 = vpop.f32.mrb[0].mxu0
    %v6952 = vadd.f32 %v6727, %v6951
    %v6953 = vpop.f32.mrb[0].mxu0
    %v6954 = vpop.f32.mrb[0].mxu0
    %v6955 = vadd.f32 %v6730, %v6954
    %v6956 = vpop.f32.mrb[0].mxu0
    %6957 = vmatprep.mubr.bf16.mxu0 0
    %6958 = vmatmul.mubr.bf16.gmra.mrb[0].mxu0 %v6463
    %v6959 = vpop.f32.mrb[0].mxu0
    %v6960 = vadd.f32 %v6735, %v6959
    %v6961 = vpop.f32.mrb[0].mxu0
    %v6962 = vpop.f32.mrb[0].mxu0
    %v6963 = vadd.f32 %v6738, %v6962
    %v6964 = vpop.f32.mrb[0].mxu0
    %6965 = vmatprep.mubr.bf16.mxu0 0
    %6966 = vmatmul.mubr.bf16.gmra.mrb[0].mxu0 %v6464
    %v6967 = vpop.f32.mrb[0].mxu0
    %v6968 = vadd.f32 %v6743, %v6967
    %v6969 = vpop.f32.mrb[0].mxu0
    %v6970 = vpop.f32.mrb[0].mxu0
    %v6971 = vadd.f32 %v6746, %v6970
    %v6972 = vpop.f32.mrb[0].mxu0
    %6973 = vmatprep.mubr.bf16.mxu0 0
    %6974 = vmatmul.mubr.bf16.gmra.mrb[0].mxu0 %v6465
    %v6975 = vpop.f32.mrb[0].mxu0
    %v6976 = vadd.f32 %v6751, %v6975
    %v6977 = vpop.f32.mrb[0].mxu0
    %v6978 = vpop.f32.mrb[0].mxu0
    %v6979 = vadd.f32 %v6754, %v6978
    %v6980 = vpop.f32.mrb[0].mxu0
    %6981 = vmatprep.mubr.bf16.mxu0 0
    %6982 = vmatmul.mubr.bf16.gmra.mrb[0].mxu0 %v6466
    %v6983 = vpop.f32.mrb[0].mxu0
    %v6984 = vadd.f32 %v6759, %v6983
    %v6985 = vpop.f32.mrb[0].mxu0
    %v6986 = vpop.f32.mrb[0].mxu0
    %v6987 = vadd.f32 %v6762, %v6986
    %v6988 = vpop.f32.mrb[0].mxu0
    %6989 = vmatprep.mubr.bf16.mxu0 0
    %6990 = vmatmul.mubr.bf16.gmra.mrb[0].mxu0 %v6467
    %v6991 = vpop.f32.mrb[0].mxu0
    %v6992 = vadd.f32 %v6767, %v6991
    %v6993 = vpop.f32.mrb[0].mxu0
    %v6994 = vpop.f32.mrb[0].mxu0
    %v6995 = vadd.f32 %v6770, %v6994
    %v6996 = vpop.f32.mrb[0].mxu0
    %6997 = vmatprep.mubr.bf16.mxu0 0
    %6998 = vmatmul.mubr.bf16.gmra.mrb[0].mxu0 %v6468
    %v6999 = vpop.f32.mrb[0].mxu0
    %v7000 = vadd.f32 %v6775, %v6999
    %v7001 = vpop.f32.mrb[0].mxu0
    %v7002 = vpop.f32.mrb[0].mxu0
    %v7003 = vadd.f32 %v6778, %v7002
    %v7004 = vpop.f32.mrb[0].mxu0
    %7005 = vmatprep.mubr.bf16.mxu0 0
    %7006 = vmatmul.mubr.bf16.gmra.mrb[0].mxu0 %v6469
    %v7007 = vpop.f32.mrb[0].mxu0
    %v7008 = vadd.f32 %v6783, %v7007
    %v7009 = vpop.f32.mrb[0].mxu0
    %v7010 = vpop.f32.mrb[0].mxu0
    %v7011 = vadd.f32 %v6786, %v7010
    %v7012 = vpop.f32.mrb[0].mxu0
    %7013 = vmatprep.mubr.bf16.mxu0 0
    %7014 = vmatmul.mubr.bf16.gmra.mrb[0].mxu0 %v6470
    %v7015 = vpop.f32.mrb[0].mxu0
    %v7016 = vadd.f32 %v6791, %v7015
    %v7017 = vpop.f32.mrb[0].mxu0
    %v7018 = vpop.f32.mrb[0].mxu0
    %v7019 = vadd.f32 %v6794, %v7018
    %v7020 = vpop.f32.mrb[0].mxu0
    %7021 = vmatprep.mubr.bf16.mxu0 0
    %7022 = vmatmul.mubr.bf16.gmra.mrb[0].mxu0 %v6471
    %v7023 = vpop.f32.mrb[0].mxu0
    %v7024 = vadd.f32 %v6799, %v7023
    %v7025 = vpop.f32.mrb[0].mxu0
    %v7026 = vpop.f32.mrb[0].mxu0
    %v7027 = vadd.f32 %v6802, %v7026
    %v7028 = vpop.f32.mrb[0].mxu0
    %7029 = vmatprep.mubr.bf16.mxu0 0
    %7030 = vmatmul.mubr.bf16.gmra.mrb[0].mxu0 %v6472
    %v7031 = vpop.f32.mrb[0].mxu0
    %v7032 = vadd.f32 %v6807, %v7031
    %v7033 = vpop.f32.mrb[0].mxu0
    %v7034 = vpop.f32.mrb[0].mxu0
    %v7035 = vadd.f32 %v6810, %v7034
    %v7036 = vpop.f32.mrb[0].mxu0
    %7037 = vmatprep.mubr.bf16.mxu0 0
    %7038 = vmatmul.mubr.bf16.gmra.mrb[0].mxu0 %v6473
    %v7039 = vpop.f32.mrb[0].mxu0
    %v7040 = vadd.f32 %v6815, %v7039
    %v7041 = vpop.f32.mrb[0].mxu0
    %v7042 = vpop.f32.mrb[0].mxu0
    %v7043 = vadd.f32 %v6818, %v7042
    %v7044 = vpop.f32.mrb[0].mxu0
    %7045 = vmatprep.mubr.bf16.mxu0 0
    %7046 = vmatmul.mubr.bf16.gmra.mrb[0].mxu0 %v6474
    %v7047 = vpop.f32.mrb[0].mxu0
    %v7048 = vadd.f32 %v6823, %v7047
    %v7049 = vpop.f32.mrb[0].mxu0
    %v7050 = vpop.f32.mrb[0].mxu0
    %v7051 = vadd.f32 %v6826, %v7050
    %v7052 = vpop.f32.mrb[0].mxu0
    %7053 = vmatprep.mubr.bf16.mxu0 0
    %7054 = vmatmul.mubr.bf16.gmra.mrb[0].mxu0 %v6475
    %v7055 = vpop.f32.mrb[0].mxu0
    %v7056 = vadd.f32 %v6831, %v7055
    %v7057 = vpop.f32.mrb[0].mxu0
    %v7058 = vpop.f32.mrb[0].mxu0
    %v7059 = vadd.f32 %v6834, %v7058
    %v7060 = vpop.f32.mrb[0].mxu0
    %7061 = vmatprep.mubr.bf16.mxu0 0
    %7062 = vmatmul.mubr.bf16.gmra.mrb[0].mxu0 %v6476
    %v7063 = vpop.f32.mrb[0].mxu0
    %v7064 = vadd.f32 %v6839, %v7063
    %v7065 = vpop.f32.mrb[0].mxu0
    %v7066 = vpop.f32.mrb[0].mxu0
    %v7067 = vadd.f32 %v6842, %v7066
    %v7068 = vpop.f32.mrb[0].mxu0
    %7069 = vmatprep.mubr.bf16.mxu0 0
    %7070 = vmatmul.mubr.bf16.gmra.mrb[0].mxu0 %v6477
    %v7071 = vpop.f32.mrb[0].mxu0
    %v7072 = vadd.f32 %v6847, %v7071
    %v7073 = vpop.f32.mrb[0].mxu0
    %v7074 = vpop.f32.mrb[0].mxu0
    %v7075 = vadd.f32 %v6850, %v7074
    %v7076 = vpop.f32.mrb[0].mxu0
    %7077 = vmatprep.mubr.bf16.mxu0 0
    %7078 = vmatmul.mubr.bf16.gmra.mrb[0].mxu0 %v6478
    %v7079 = vpop.f32.mrb[0].mxu0
    %v7080 = vadd.f32 %v6855, %v7079
    %v7081 = vpop.f32.mrb[0].mxu0
    %v7082 = vpop.f32.mrb[0].mxu0
    %v7083 = vadd.f32 %v6858, %v7082
    %v7084 = vpop.f32.mrb[0].mxu0
    %7085 = vmatprep.mubr.bf16.mxu0 0
    %7086 = vmatmul.mubr.bf16.gmra.mrb[0].mxu0 %v6479
    %v7087 = vpop.f32.mrb[0].mxu0
    %v7088 = vadd.f32 %v6863, %v7087
    %v7089 = vpop.f32.mrb[0].mxu0
    %v7090 = vpop.f32.mrb[0].mxu0
    %v7091 = vadd.f32 %v6866, %v7090
    %v7092 = vpop.f32.mrb[0].mxu0
    %7093 = vmatprep.mubr.bf16.mxu0 0
    %7094 = vmatmul.mubr.bf16.gmra.mrb[0].mxu0 %v6480
    %v7095 = vpop.f32.mrb[0].mxu0
    %v7096 = vadd.f32 %v6871, %v7095
    %v7097 = vpop.f32.mrb[0].mxu0
    %v7098 = vpop.f32.mrb[0].mxu0
    %v7099 = vadd.f32 %v6874, %v7098
    %v7100 = vpop.f32.mrb[0].mxu0
    %7101 = vmatprep.mubr.bf16.mxu0 0
    %7102 = vmatmul.mubr.bf16.gmra.mrb[0].mxu0 %v6481
    %v7103 = vpop.f32.mrb[0].mxu0
    %v7104 = vadd.f32 %v6879, %v7103
    %v7105 = vpop.f32.mrb[0].mxu0
    %v7106 = vpop.f32.mrb[0].mxu0
    %v7107 = vadd.f32 %v6882, %v7106
    %v7108 = vpop.f32.mrb[0].mxu0
    %7109 = vmatprep.mubr.bf16.mxu0 0
    %7110 = vmatmul.mubr.bf16.gmra.mrb[0].mxu0 %v6482
    %v7111 = vpop.f32.mrb[0].mxu0
    %v7112 = vadd.f32 %v6887, %v7111
    %v7113 = vpop.f32.mrb[0].mxu0
    %v7114 = vpop.f32.mrb[0].mxu0
    %v7115 = vadd.f32 %v6890, %v7114
    %v7116 = vpop.f32.mrb[0].mxu0
    %7117 = vmatprep.mubr.bf16.mxu0 0
    %7118 = vmatmul.mubr.bf16.gmra.mrb[0].mxu0 %v6483
    %v7119 = vpop.f32.mrb[0].mxu0
    %v7120 = vadd.f32 %v6895, %v7119
    %v7121 = vpop.f32.mrb[0].mxu0
    %v7122 = vpop.f32.mrb[0].mxu0
    %v7123 = vadd.f32 %v6898, %v7122
    %v7124 = vpop.f32.mrb[0].mxu0
    %7125 = vmatprep.mubr.bf16.mxu0 0
    %7126 = vmatmul.mubr.bf16.gmra.mrb[0].mxu0 %v6484
    %v7127 = vpop.f32.mrb[0].mxu0
    %v7128 = vadd.f32 %v6903, %v7127
    %v7129 = vpop.f32.mrb[0].mxu0
    %v7130 = vpop.f32.mrb[0].mxu0
    %v7131 = vadd.f32 %v6906, %v7130
    %v7132 = vpop.f32.mrb[0].mxu0
    %7133 = vdwg.mxu0
    %vm7134 = vcmp.ge.f32.partialorder %v6944, 0.0
    %vm7135 = vcmp.ge.f32.partialorder %v6947, 0.0
    %vm7136 = vcmp.ge.f32.partialorder %v6952, 0.0
    %vm7137 = vcmp.ge.f32.partialorder %v6955, 0.0
    %vm7138 = vcmp.ge.f32.partialorder %v6960, 0.0
    %vm7139 = vcmp.ge.f32.partialorder %v6963, 0.0
    %vm7140 = vcmp.ge.f32.partialorder %v6968, 0.0
    %vm7141 = vcmp.ge.f32.partialorder %v6971, 0.0
    %vm7142 = vcmp.ge.f32.partialorder %v6976, 0.0
    %vm7143 = vcmp.ge.f32.partialorder %v6979, 0.0
    %vm7144 = vcmp.ge.f32.partialorder %v6984, 0.0
    %vm7145 = vcmp.ge.f32.partialorder %v6987, 0.0
    %vm7146 = vcmp.ge.f32.partialorder %v6992, 0.0
    %vm7147 = vcmp.ge.f32.partialorder %v6995, 0.0
    %vm7148 = vcmp.ge.f32.partialorder %v7000, 0.0
    %vm7149 = vcmp.ge.f32.partialorder %v7003, 0.0
    %vm7150 = vcmp.ge.f32.partialorder %v7008, 0.0
    %vm7151 = vcmp.ge.f32.partialorder %v7011, 0.0
    %vm7152 = vcmp.ge.f32.partialorder %v7016, 0.0
    %vm7153 = vcmp.ge.f32.partialorder %v7019, 0.0
    %vm7154 = vcmp.ge.f32.partialorder %v7024, 0.0
    %vm7155 = vcmp.ge.f32.partialorder %v7027, 0.0
    %vm7156 = vcmp.ge.f32.partialorder %v7032, 0.0
    %vm7157 = vcmp.ge.f32.partialorder %v7035, 0.0
    %vm7158 = vcmp.ge.f32.partialorder %v7040, 0.0
    %vm7159 = vcmp.ge.f32.partialorder %v7043, 0.0
    %vm7160 = vcmp.ge.f32.partialorder %v7048, 0.0
    %vm7161 = vcmp.ge.f32.partialorder %v7051, 0.0
    %vm7162 = vcmp.ge.f32.partialorder %v7056, 0.0
    %vm7163 = vcmp.ge.f32.partialorder %v7059, 0.0
    %vm7164 = vcmp.ge.f32.partialorder %v7064, 0.0
    %vm7165 = vcmp.ge.f32.partialorder %v7067, 0.0
    %vm7166 = vcmp.ge.f32.partialorder %v7072, 0.0
    %vm7167 = vcmp.ge.f32.partialorder %v7075, 0.0
    %vm7168 = vcmp.ge.f32.partialorder %v7080, 0.0
    %vm7169 = vcmp.ge.f32.partialorder %v7083, 0.0
    %vm7170 = vcmp.ge.f32.partialorder %v7088, 0.0
    %vm7171 = vcmp.ge.f32.partialorder %v7091, 0.0
    %vm7172 = vcmp.ge.f32.partialorder %v7096, 0.0
    %vm7173 = vcmp.ge.f32.partialorder %v7099, 0.0
    %vm7174 = vcmp.ge.f32.partialorder %v7104, 0.0
    %vm7175 = vcmp.ge.f32.partialorder %v7107, 0.0
    %vm7176 = vcmp.ge.f32.partialorder %v7112, 0.0
    %vm7177 = vcmp.ge.f32.partialorder %v7115, 0.0
    %vm7178 = vcmp.ge.f32.partialorder %v7120, 0.0
    %vm7179 = vcmp.ge.f32.partialorder %v7123, 0.0
    %vm7180 = vcmp.ge.f32.partialorder %v7128, 0.0
    %vm7181 = vcmp.ge.f32.partialorder %v7131, 0.0
    %v7182 = vmul.f32 %v6944, 0.2
    %v7183 = vmul.f32 %v6947, 0.2
    %v7184 = vmul.f32 %v6952, 0.2
    %v7185 = vmul.f32 %v6955, 0.2
    %v7186 = vmul.f32 %v6960, 0.2
    %v7187 = vmul.f32 %v6963, 0.2
    %v7188 = vmul.f32 %v6968, 0.2
    %v7189 = vmul.f32 %v6971, 0.2
    %v7190 = vmul.f32 %v6976, 0.2
    %v7191 = vmul.f32 %v6979, 0.2
    %v7192 = vmul.f32 %v6984, 0.2
    %v7193 = vmul.f32 %v6987, 0.2
    %v7194 = vmul.f32 %v6992, 0.2
    %v7195 = vmul.f32 %v6995, 0.2
    %v7196 = vmul.f32 %v7000, 0.2
    %v7197 = vmul.f32 %v7003, 0.2
    %v7198 = vmul.f32 %v7008, 0.2
    %v7199 = vmul.f32 %v7011, 0.2
    %v7200 = vmul.f32 %v7016, 0.2
    %v7201 = vmul.f32 %v7019, 0.2
    %v7202 = vmul.f32 %v7024, 0.2
    %v7203 = vmul.f32 %v7027, 0.2
    %v7204 = vmul.f32 %v7032, 0.2
    %v7205 = vmul.f32 %v7035, 0.2
    %v7206 = vmul.f32 %v7040, 0.2
    %v7207 = vmul.f32 %v7043, 0.2
    %v7208 = vmul.f32 %v7048, 0.2
    %v7209 = vmul.f32 %v7051, 0.2
    %v7210 = vmul.f32 %v7056, 0.2
    %v7211 = vmul.f32 %v7059, 0.2
    %v7212 = vmul.f32 %v7064, 0.2
    %v7213 = vmul.f32 %v7067, 0.2
    %v7214 = vmul.f32 %v7072, 0.2
    %v7215 = vmul.f32 %v7075, 0.2
    %v7216 = vmul.f32 %v7080, 0.2
    %v7217 = vmul.f32 %v7083, 0.2
    %v7218 = vmul.f32 %v7088, 0.2
    %v7219 = vmul.f32 %v7091, 0.2
    %v7220 = vmul.f32 %v7096, 0.2
    %v7221 = vmul.f32 %v7099, 0.2
    %v7222 = vmul.f32 %v7104, 0.2
    %v7223 = vmul.f32 %v7107, 0.2
    %v7224 = vmul.f32 %v7112, 0.2
    %v7225 = vmul.f32 %v7115, 0.2
    %v7226 = vmul.f32 %v7120, 0.2
    %v7227 = vmul.f32 %v7123, 0.2
    %v7228 = vmul.f32 %v7128, 0.2
    %v7229 = vmul.f32 %v7131, 0.2
    %v7230 = vsel %vm7134, %v6944, %v7182
    %v7231 = vsel %vm7135, %v6947, %v7183
    %v7232 = vsel %vm7136, %v6952, %v7184
    %v7233 = vsel %vm7137, %v6955, %v7185
    %v7234 = vsel %vm7138, %v6960, %v7186
    %v7235 = vsel %vm7139, %v6963, %v7187
    %v7236 = vsel %vm7140, %v6968, %v7188
    %v7237 = vsel %vm7141, %v6971, %v7189
    %v7238 = vsel %vm7142, %v6976, %v7190
    %v7239 = vsel %vm7143, %v6979, %v7191
    %v7240 = vsel %vm7144, %v6984, %v7192
    %v7241 = vsel %vm7145, %v6987, %v7193
    %v7242 = vsel %vm7146, %v6992, %v7194
    %v7243 = vsel %vm7147, %v6995, %v7195
    %v7244 = vsel %vm7148, %v7000, %v7196
    %v7245 = vsel %vm7149, %v7003, %v7197
    %v7246 = vsel %vm7150, %v7008, %v7198
    %v7247 = vsel %vm7151, %v7011, %v7199
    %v7248 = vsel %vm7152, %v7016, %v7200
    %v7249 = vsel %vm7153, %v7019, %v7201
    %v7250 = vsel %vm7154, %v7024, %v7202
    %v7251 = vsel %vm7155, %v7027, %v7203
    %v7252 = vsel %vm7156, %v7032, %v7204
    %v7253 = vsel %vm7157, %v7035, %v7205
    %v7254 = vsel %vm7158, %v7040, %v7206
    %v7255 = vsel %vm7159, %v7043, %v7207
    %v7256 = vsel %vm7160, %v7048, %v7208
    %v7257 = vsel %vm7161, %v7051, %v7209
    %v7258 = vsel %vm7162, %v7056, %v7210
    %v7259 = vsel %vm7163, %v7059, %v7211
    %v7260 = vsel %vm7164, %v7064, %v7212
    %v7261 = vsel %vm7165, %v7067, %v7213
    %v7262 = vsel %vm7166, %v7072, %v7214
    %v7263 = vsel %vm7167, %v7075, %v7215
    %v7264 = vsel %vm7168, %v7080, %v7216
    %v7265 = vsel %vm7169, %v7083, %v7217
    %v7266 = vsel %vm7170, %v7088, %v7218
    %v7267 = vsel %vm7171, %v7091, %v7219
    %v7268 = vsel %vm7172, %v7096, %v7220
    %v7269 = vsel %vm7173, %v7099, %v7221
    %v7270 = vsel %vm7174, %v7104, %v7222
    %v7271 = vsel %vm7175, %v7107, %v7223
    %v7272 = vsel %vm7176, %v7112, %v7224
    %v7273 = vsel %vm7177, %v7115, %v7225
    %v7274 = vsel %vm7178, %v7120, %v7226
    %v7275 = vsel %vm7179, %v7123, %v7227
    %v7276 = vsel %vm7180, %v7128, %v7228
    %v7277 = vsel %vm7181, %v7131, %v7229
    %v7278 = vsel %vm3915, %v7230, 0.0
    %v7279 = vsel %vm3916, %v7231, 0.0
    %v7280 = vsel %vm3917, %v7232, 0.0
    %v7281 = vsel %vm3918, %v7233, 0.0
    %v7282 = vsel %vm3919, %v7234, 0.0
    %v7283 = vsel %vm3920, %v7235, 0.0
    %v7284 = vsel %vm3921, %v7236, 0.0
    %v7285 = vsel %vm3922, %v7237, 0.0
    %v7286 = vsel %vm3923, %v7238, 0.0
    %v7287 = vsel %vm3924, %v7239, 0.0
    %v7288 = vsel %vm3925, %v7240, 0.0
    %v7289 = vsel %vm3926, %v7241, 0.0
    %v7290 = vsel %vm3927, %v7242, 0.0
    %v7291 = vsel %vm3928, %v7243, 0.0
    %v7292 = vsel %vm3929, %v7244, 0.0
    %v7293 = vsel %vm3930, %v7245, 0.0
    %v7294 = vsel %vm3931, %v7246, 0.0
    %v7295 = vsel %vm3932, %v7247, 0.0
    %v7296 = vsel %vm3933, %v7248, 0.0
    %v7297 = vsel %vm3934, %v7249, 0.0
    %v7298 = vsel %vm3935, %v7250, 0.0
    %v7299 = vsel %vm3936, %v7251, 0.0
    %v7300 = vsel %vm3937, %v7252, 0.0
    %v7301 = vsel %vm3938, %v7253, 0.0
    %v7302 = vsel %vm3939, %v7254, 0.0
    %v7303 = vsel %vm3940, %v7255, 0.0
    %v7304 = vsel %vm3941, %v7256, 0.0
    %v7305 = vsel %vm3942, %v7257, 0.0
    %v7306 = vsel %vm3943, %v7258, 0.0
    %v7307 = vsel %vm3944, %v7259, 0.0
    %v7308 = vsel %vm3945, %v7260, 0.0
    %v7309 = vsel %vm3946, %v7261, 0.0
    %v7310 = vsel %vm3947, %v7262, 0.0
    %v7311 = vsel %vm3948, %v7263, 0.0
    %v7312 = vsel %vm3949, %v7264, 0.0
    %v7313 = vsel %vm3950, %v7265, 0.0
    %v7314 = vsel %vm3951, %v7266, 0.0
    %v7315 = vsel %vm3952, %v7267, 0.0
    %v7316 = vsel %vm3953, %v7268, 0.0
    %v7317 = vsel %vm3954, %v7269, 0.0
    %v7318 = vsel %vm3955, %v7270, 0.0
    %v7319 = vsel %vm3956, %v7271, 0.0
    %v7320 = vsel %vm3957, %v7272, 0.0
    %v7321 = vsel %vm3958, %v7273, 0.0
    %v7322 = vsel %vm3959, %v7274, 0.0
    %v7323 = vsel %vm3960, %v7275, 0.0
    %v7324 = vsel %vm3961, %v7276, 0.0
    %v7325 = vsel %vm3962, %v7277, 0.0
    %7326 = vxpose.xlu0.b32.start [1/16] %v7278, 128
    %7327 = vxpose.xlu0.b32.cont [2/16] %v7279, 128
    %7328 = vxpose.xlu0.b32.cont [3/16] %v7280, 128
    %7329 = vxpose.xlu0.b32.cont [4/16] %v7281, 128
    %7330 = vxpose.xlu0.b32.cont [5/16] %v7282, 128
    %7331 = vxpose.xlu0.b32.cont [6/16] %v7283, 128
    %7332 = vxpose.xlu0.b32.cont [7/16] %v7284, 128
    %7333 = vxpose.xlu0.b32.cont [8/16] %v7285, 128
    %7334 = vxpose.xlu0.b32.cont [9/16] %v7286, 128
    %7335 = vxpose.xlu0.b32.cont [10/16] %v7287, 128
    %7336 = vxpose.xlu0.b32.cont [11/16] %v7288, 128
    %7337 = vxpose.xlu0.b32.cont [12/16] %v7289, 128
    %7338 = vxpose.xlu0.b32.cont [13/16] %v7290, 128
    %7339 = vxpose.xlu0.b32.cont [14/16] %v7291, 128
    %7340 = vxpose.xlu0.b32.cont [15/16] %v7292, 128
    %7341 = vxpose.xlu0.b32.end [16/16] %v7293, 128
    %v7342 = vpop.trf.xlu0
    %v7343 = vpop.trf.xlu0
    %v7344 = vpop.trf.xlu0
    %v7345 = vpop.trf.xlu0
    %v7346 = vpop.trf.xlu0
    %v7347 = vpop.trf.xlu0
    %v7348 = vpop.trf.xlu0
    %v7349 = vpop.trf.xlu0
    %v7350 = vpop.trf.xlu0
    %v7351 = vpop.trf.xlu0
    %v7352 = vpop.trf.xlu0
    %v7353 = vpop.trf.xlu0
    %v7354 = vpop.trf.xlu0
    %v7355 = vpop.trf.xlu0
    %v7356 = vpop.trf.xlu0
    %v7357 = vpop.trf.xlu0
    %7358 = vxpose.xlu0.b32.start [1/16] %v7294, 128
    %7359 = vxpose.xlu0.b32.cont [2/16] %v7295, 128
    %7360 = vxpose.xlu0.b32.cont [3/16] %v7296, 128
    %7361 = vxpose.xlu0.b32.cont [4/16] %v7297, 128
    %7362 = vxpose.xlu0.b32.cont [5/16] %v7298, 128
    %7363 = vxpose.xlu0.b32.cont [6/16] %v7299, 128
    %7364 = vxpose.xlu0.b32.cont [7/16] %v7300, 128
    %7365 = vxpose.xlu0.b32.cont [8/16] %v7301, 128
    %7366 = vxpose.xlu0.b32.cont [9/16] %v7302, 128
    %7367 = vxpose.xlu0.b32.cont [10/16] %v7303, 128
    %7368 = vxpose.xlu0.b32.cont [11/16] %v7304, 128
    %7369 = vxpose.xlu0.b32.cont [12/16] %v7305, 128
    %7370 = vxpose.xlu0.b32.cont [13/16] %v7306, 128
    %7371 = vxpose.xlu0.b32.cont [14/16] %v7307, 128
    %7372 = vxpose.xlu0.b32.cont [15/16] %v7308, 128
    %7373 = vxpose.xlu0.b32.end [16/16] %v7309, 128
    %v7374 = vpop.trf.xlu0
    %v7375 = vpop.trf.xlu0
    %v7376 = vpop.trf.xlu0
    %v7377 = vpop.trf.xlu0
    %v7378 = vpop.trf.xlu0
    %v7379 = vpop.trf.xlu0
    %v7380 = vpop.trf.xlu0
    %v7381 = vpop.trf.xlu0
    %v7382 = vpop.trf.xlu0
    %v7383 = vpop.trf.xlu0
    %v7384 = vpop.trf.xlu0
    %v7385 = vpop.trf.xlu0
    %v7386 = vpop.trf.xlu0
    %v7387 = vpop.trf.xlu0
    %v7388 = vpop.trf.xlu0
    %v7389 = vpop.trf.xlu0
    %7390 = vxpose.xlu0.b32.start [1/16] %v7310, 128
    %7391 = vxpose.xlu0.b32.cont [2/16] %v7311, 128
    %7392 = vxpose.xlu0.b32.cont [3/16] %v7312, 128
    %7393 = vxpose.xlu0.b32.cont [4/16] %v7313, 128
    %7394 = vxpose.xlu0.b32.cont [5/16] %v7314, 128
    %7395 = vxpose.xlu0.b32.cont [6/16] %v7315, 128
    %7396 = vxpose.xlu0.b32.cont [7/16] %v7316, 128
    %7397 = vxpose.xlu0.b32.cont [8/16] %v7317, 128
    %7398 = vxpose.xlu0.b32.cont [9/16] %v7318, 128
    %7399 = vxpose.xlu0.b32.cont [10/16] %v7319, 128
    %7400 = vxpose.xlu0.b32.cont [11/16] %v7320, 128
    %7401 = vxpose.xlu0.b32.cont [12/16] %v7321, 128
    %7402 = vxpose.xlu0.b32.cont [13/16] %v7322, 128
    %7403 = vxpose.xlu0.b32.cont [14/16] %v7323, 128
    %7404 = vxpose.xlu0.b32.cont [15/16] %v7324, 128
    %7405 = vxpose.xlu0.b32.end [16/16] %v7325, 128
    %v7406 = vpop.trf.xlu0
    %v7407 = vpop.trf.xlu0
    %v7408 = vpop.trf.xlu0
    %v7409 = vpop.trf.xlu0
    %v7410 = vpop.trf.xlu0
    %v7411 = vpop.trf.xlu0
    %v7412 = vpop.trf.xlu0
    %v7413 = vpop.trf.xlu0
    %v7414 = vpop.trf.xlu0
    %v7415 = vpop.trf.xlu0
    %v7416 = vpop.trf.xlu0
    %v7417 = vpop.trf.xlu0
    %v7418 = vpop.trf.xlu0
    %v7419 = vpop.trf.xlu0
    %v7420 = vpop.trf.xlu0
    %v7421 = vpop.trf.xlu0
    %v7422 = vld [vmem:[%s16] sm:$0xff]
    %v7423 = vld [vmem:[%s16 + $0x8] sm:$0xff]
    %v7424 = vld [vmem:[%s16 + $0x10] sm:$0xff]
    %v7425 = vld [vmem:[%s16 + $0x18] sm:$0xff]
    %v7426 = vld [vmem:[%s16 + $0x20] sm:$0xff]
    %v7427 = vld [vmem:[%s16 + $0x28] sm:$0xff]
    %v7428 = vld [vmem:[%s16 + $0x30] sm:$0xff]
    %v7429 = vld [vmem:[%s16 + $0x38] sm:$0xff]
    %v7430 = vld [vmem:[%s16 + $0x40] sm:$0xff]
    %v7431 = vld [vmem:[%s16 + $0x48] sm:$0xff]
    %v7432 = vld [vmem:[%s16 + $0x50] sm:$0xff]
    %v7433 = vld [vmem:[%s16 + $0x58] sm:$0xff]
    %v7434 = vld [vmem:[%s16 + $0x60] sm:$0xff]
    %v7435 = vld [vmem:[%s16 + $0x68] sm:$0xff]
    %v7436 = vld [vmem:[%s16 + $0x70] sm:$0xff]
    %v7437 = vld [vmem:[%s16 + $0x78] sm:$0xff]
    %v7438 = vld [vmem:[%s16 + $0x80] sm:$0xff]
    %v7439 = vld [vmem:[%s16 + $0x88] sm:$0xff]
    %v7440 = vld [vmem:[%s16 + $0x90] sm:$0xff]
    %v7441 = vld [vmem:[%s16 + $0x98] sm:$0xff]
    %v7442 = vld [vmem:[%s16 + $0xa0] sm:$0xff]
    %v7443 = vld [vmem:[%s16 + $0xa8] sm:$0xff]
    %v7444 = vld [vmem:[%s16 + $0xb0] sm:$0xff]
    %v7445 = vld [vmem:[%s16 + $0xb8] sm:$0xff]
    %v7446 = vld [vmem:[%s16 + $0xc0] sm:$0xff]
    %v7447 = vld [vmem:[%s16 + $0xc8] sm:$0xff]
    %v7448 = vld [vmem:[%s16 + $0xd0] sm:$0xff]
    %v7449 = vld [vmem:[%s16 + $0xd8] sm:$0xff]
    %v7450 = vld [vmem:[%s16 + $0xe0] sm:$0xff]
    %v7451 = vld [vmem:[%s16 + $0xe8] sm:$0xff]
    %v7452 = vld [vmem:[%s16 + $0xf0] sm:$0xff]
    %v7453 = vld [vmem:[%s16 + $0xf8] sm:$0xff]
    %v7454 = vld [vmem:[%s16 + $0x100] sm:$0xff]
    %v7455 = vld [vmem:[%s16 + $0x108] sm:$0xff]
    %v7456 = vld [vmem:[%s16 + $0x110] sm:$0xff]
    %v7457 = vld [vmem:[%s16 + $0x118] sm:$0xff]
    %v7458 = vld [vmem:[%s16 + $0x120] sm:$0xff]
    %v7459 = vld [vmem:[%s16 + $0x128] sm:$0xff]
    %v7460 = vld [vmem:[%s16 + $0x130] sm:$0xff]
    %v7461 = vld [vmem:[%s16 + $0x138] sm:$0xff]
    %v7462 = vld [vmem:[%s16 + $0x140] sm:$0xff]
    %v7463 = vld [vmem:[%s16 + $0x148] sm:$0xff]
    %v7464 = vld [vmem:[%s16 + $0x150] sm:$0xff]
    %v7465 = vld [vmem:[%s16 + $0x158] sm:$0xff]
    %v7466 = vld [vmem:[%s16 + $0x160] sm:$0xff]
    %v7467 = vld [vmem:[%s16 + $0x168] sm:$0xff]
    %v7468 = vld [vmem:[%s16 + $0x170] sm:$0xff]
    %v7469 = vld [vmem:[%s16 + $0x178] sm:$0xff]
    %7470 = vmatprep.subr.mxu0 0.0
    %7471 = vmatpush1.msra.mxu0 %v7422
    %7472 = vmatprep.subr.mxu0 0.0
    %7473 = vmatpush1.msra.mxu0 %v7423
    %7474 = vmatprep.subr.mxu0 0.0
    %7475 = vmatpush1.msra.mxu0 %v7424
    %7476 = vmatprep.subr.mxu0 0.0
    %7477 = vmatpush1.msra.mxu0 %v7425
    %7478 = vmatprep.subr.mxu0 0.0
    %7479 = vmatpush1.msra.mxu0 %v7426
    %7480 = vmatprep.subr.mxu0 0.0
    %7481 = vmatpush1.msra.mxu0 %v7427
    %7482 = vmatprep.subr.mxu0 0.0
    %7483 = vmatpush1.msra.mxu0 %v7428
    %7484 = vmatprep.subr.mxu0 0.0
    %7485 = vmatpush1.msra.mxu0 %v7429
    %7486 = vmatprep.subr.mxu0 0.0
    %7487 = vmatpush1.msra.mxu0 %v7430
    %7488 = vmatprep.subr.mxu0 0.0
    %7489 = vmatpush1.msra.mxu0 %v7431
    %7490 = vmatprep.subr.mxu0 0.0
    %7491 = vmatpush1.msra.mxu0 %v7432
    %7492 = vmatprep.subr.mxu0 0.0
    %7493 = vmatpush1.msra.mxu0 %v7433
    %7494 = vmatprep.subr.mxu0 0.0
    %7495 = vmatpush1.msra.mxu0 %v7434
    %7496 = vmatprep.subr.mxu0 0.0
    %7497 = vmatpush1.msra.mxu0 %v7435
    %7498 = vmatprep.subr.mxu0 0.0
    %7499 = vmatpush1.msra.mxu0 %v7436
    %7500 = vmatprep.subr.mxu0 0.0
    %7501 = vmatpush1.msra.mxu0 %v7437
    %7502 = vmatprep.subr.mxu0 0.0
    %7503 = vmatpush1.msra.mxu0 %v7438
    %7504 = vmatprep.subr.mxu0 0.0
    %7505 = vmatpush1.msra.mxu0 %v7439
    %7506 = vmatprep.subr.mxu0 0.0
    %7507 = vmatpush1.msra.mxu0 %v7440
    %7508 = vmatprep.subr.mxu0 0.0
    %7509 = vmatpush1.msra.mxu0 %v7441
    %7510 = vmatprep.subr.mxu0 0.0
    %7511 = vmatpush1.msra.mxu0 %v7442
    %7512 = vmatprep.subr.mxu0 0.0
    %7513 = vmatpush1.msra.mxu0 %v7443
    %7514 = vmatprep.subr.mxu0 0.0
    %7515 = vmatpush1.msra.mxu0 %v7444
    %7516 = vmatprep.subr.mxu0 0.0
    %7517 = vmatpush1.msra.mxu0 %v7445
    %7518 = vmatprep.subr.mxu0 0.0
    %7519 = vmatpush1.msra.mxu0 %v7446
    %7520 = vmatprep.subr.mxu0 0.0
    %7521 = vmatpush1.msra.mxu0 %v7447
    %7522 = vmatprep.subr.mxu0 0.0
    %7523 = vmatpush1.msra.mxu0 %v7448
    %7524 = vmatprep.subr.mxu0 0.0
    %7525 = vmatpush1.msra.mxu0 %v7449
    %7526 = vmatprep.subr.mxu0 0.0
    %7527 = vmatpush1.msra.mxu0 %v7450
    %7528 = vmatprep.subr.mxu0 0.0
    %7529 = vmatpush1.msra.mxu0 %v7451
    %7530 = vmatprep.subr.mxu0 0.0
    %7531 = vmatpush1.msra.mxu0 %v7452
    %7532 = vmatprep.subr.mxu0 0.0
    %7533 = vmatpush1.msra.mxu0 %v7453
    %7534 = vmatprep.mubr.f32.mxu0 %v7374
    %7535 = vmatmul.mubr.f32.gmra.mrb[0].mxu0 %v7342
    %v7536 = vpop.f32.mrb[0].mxu0
    %v7537 = vadd.f32 0.0, %v7536
    %v7538 = vpop.f32.mrb[0].mxu0
    %7539 = vmatprep.mubr.f32.mxu0 %v7375
    %7540 = vmatmul.mubr.f32.gmra.mrb[0].mxu0 %v7343
    %v7541 = vpop.f32.mrb[0].mxu0
    %v7542 = vadd.f32 0.0, %v7541
    %v7543 = vpop.f32.mrb[0].mxu0
    %7544 = vdwg.mxu0
    %7545 = vmatprep.subr.mxu0 0.0
    %7546 = vmatpush1.msra.mxu0 %v7454
    %7547 = vmatprep.subr.mxu0 0.0
    %7548 = vmatpush1.msra.mxu0 %v7455
    %7549 = vmatprep.subr.mxu0 0.0
    %7550 = vmatpush1.msra.mxu0 %v7456
    %7551 = vmatprep.subr.mxu0 0.0
    %7552 = vmatpush1.msra.mxu0 %v7457
    %7553 = vmatprep.subr.mxu0 0.0
    %7554 = vmatpush1.msra.mxu0 %v7458
    %7555 = vmatprep.subr.mxu0 0.0
    %7556 = vmatpush1.msra.mxu0 %v7459
    %7557 = vmatprep.subr.mxu0 0.0
    %7558 = vmatpush1.msra.mxu0 %v7460
    %7559 = vmatprep.subr.mxu0 0.0
    %7560 = vmatpush1.msra.mxu0 %v7461
    %7561 = vmatprep.subr.mxu0 0.0
    %7562 = vmatpush1.msra.mxu0 %v7462
    %7563 = vmatprep.subr.mxu0 0.0
    %7564 = vmatpush1.msra.mxu0 %v7463
    %7565 = vmatprep.subr.mxu0 0.0
    %7566 = vmatpush1.msra.mxu0 %v7464
    %7567 = vmatprep.subr.mxu0 0.0
    %7568 = vmatpush1.msra.mxu0 %v7465
    %7569 = vmatprep.subr.mxu0 0.0
    %7570 = vmatpush1.msra.mxu0 %v7466
    %7571 = vmatprep.subr.mxu0 0.0
    %7572 = vmatpush1.msra.mxu0 %v7467
    %7573 = vmatprep.subr.mxu0 0.0
    %7574 = vmatpush1.msra.mxu0 %v7468
    %7575 = vmatprep.subr.mxu0 0.0
    %7576 = vmatpush1.msra.mxu0 %v7469
    %7577 = vmatprep.subr.mxu0 0.0
    %7578 = vmatpush1.msra.mxu0 0.0
    %7579 = vmatprep.subr.mxu0 0.0
    %7580 = vmatpush1.msra.mxu0 0.0
    %7581 = vmatprep.subr.mxu0 0.0
    %7582 = vmatpush1.msra.mxu0 0.0
    %7583 = vmatprep.subr.mxu0 0.0
    %7584 = vmatpush1.msra.mxu0 0.0
    %7585 = vmatprep.subr.mxu0 0.0
    %7586 = vmatpush1.msra.mxu0 0.0
    %7587 = vmatprep.subr.mxu0 0.0
    %7588 = vmatpush1.msra.mxu0 0.0
    %7589 = vmatprep.subr.mxu0 0.0
    %7590 = vmatpush1.msra.mxu0 0.0
    %7591 = vmatprep.subr.mxu0 0.0
    %7592 = vmatpush1.msra.mxu0 0.0
    %7593 = vmatprep.subr.mxu0 0.0
    %7594 = vmatpush1.msra.mxu0 0.0
    %7595 = vmatprep.subr.mxu0 0.0
    %7596 = vmatpush1.msra.mxu0 0.0
    %7597 = vmatprep.subr.mxu0 0.0
    %7598 = vmatpush1.msra.mxu0 0.0
    %7599 = vmatprep.subr.mxu0 0.0
    %7600 = vmatpush1.msra.mxu0 0.0
    %7601 = vmatprep.subr.mxu0 0.0
    %7602 = vmatpush1.msra.mxu0 0.0
    %7603 = vmatprep.subr.mxu0 0.0
    %7604 = vmatpush1.msra.mxu0 0.0
    %7605 = vmatprep.subr.mxu0 0.0
    %7606 = vmatpush1.msra.mxu0 0.0
    %7607 = vmatprep.subr.mxu0 0.0
    %7608 = vmatpush1.msra.mxu0 0.0
    %7609 = vmatprep.mubr.f32.mxu0 0.0
    %7610 = vmatmul.mubr.f32.gmra.mrb[0].mxu0 %v7406
    %v7611 = vpop.f32.mrb[0].mxu0
    %v7612 = vadd.f32 %v7537, %v7611
    %v7613 = vpop.f32.mrb[0].mxu0
    %7614 = vmatprep.mubr.f32.mxu0 0.0
    %7615 = vmatmul.mubr.f32.gmra.mrb[0].mxu0 %v7407
    %v7616 = vpop.f32.mrb[0].mxu0
    %v7617 = vadd.f32 %v7542, %v7616
    %v7618 = vpop.f32.mrb[0].mxu0
    %7619 = vdwg.mxu0
    %vm7620 = vcmask 310272
    %v7621 = vsel %vm7620, %v7612, 0.0
    %v7622 = vrot.slane %v7621, 4
    %v7623 = vadd.f32 %v7621, %v7622
    %v7624 = vrot.slane %v7623, 2
    %v7625 = vadd.f32 %v7623, %v7624
    %v7626 = vrot.slane %v7625, 1
    %v7627 = vadd.f32 %v7625, %v7626
    %v7628 = vsel %vm7620, %v7617, 0.0
    %v7629 = vrot.slane %v7628, 4
    %v7630 = vadd.f32 %v7628, %v7629
    %v7631 = vrot.slane %v7630, 2
    %v7632 = vadd.f32 %v7630, %v7631
    %v7633 = vrot.slane %v7632, 1
    %v7634 = vadd.f32 %v7632, %v7633
    %vm7635 = vcmask 1040384
    %v7636 = vsel %vm7635, %v7627, %v7634
    %v7637 = vld [vmem:[%s17] sm:$0x1]
    %v7639 = vlaneseq
    %v7640 = vshrl.u32 %v7639, 7
    %v7641 = vsub.s32 0, %v7640
    %v7642 = vrot.slane %v7637, %v7641
    %v7644 = vadd.f32 %v7636, %v7642
    %vm7645 = vcmask 304128
    %v7646 = vsel %vm7645, %v7644, -inf
    %7647 = vmax.xlane.f32.xlu0 %v7646
    %v7648 = vpop.xlane.xlu0 %7647
    %v7649 = vsub.f32 %v7644, %v7648
    %v7650 = vmul.f32 %v7649, 1.442695
    %v7651 = vpow.pop %v7650
    %v7652 = vsel %vm7645, %v7651, 0.0
    %7653 = vadd.xlane.f32.xlu0 %v7652
    %v7654 = vpop.xlane.xlu0 %7653
    %v7655 = vrcp.pop %v7654
    %v7656 = vmul.f32 %v7651, %v7655
    %v7658 = vrot.slane %v426, 3
    %v7660 = vsel %vm7635, %v384, %v7658
    %v7661 = vld [vmem:[%s18] sm:$0x1f]
    %v7662 = vld [vmem:[%s19] sm:$0x1]
    %v7664 = vlaneseq
    %v7665 = vshrl.u32 %v7664, 7
    %v7666 = vsub.s32 0, %v7665
    %v7667 = vrot.slane %v7662, %v7666
    %7670 = vrot.lane.b32.xlu0 %v7660, 125
    %v7671 = vpop.permute.xlu0 %7670
    %vm7672 = vcmask 39936
    %v7673 = vsel %vm7672, %v7671, 0
    %vm7675 = vcmask 1044480
    %v7677 = vsel %vm7675, %v7661, 0
    %7679 = vmatprep.subr.mxu0 0.0
    %7680 = vmatpush1.msra.mxu0 %v7677
    %7681 = vmatprep.subr.mxu0 0.0
    %7682 = vmatpush1.msra.mxu0 0.0
    %7683 = vmatprep.subr.mxu0 0.0
    %7684 = vmatpush1.msra.mxu0 0.0
    %7685 = vmatprep.subr.mxu0 0.0
    %7686 = vmatpush1.msra.mxu0 0.0
    %7687 = vmatprep.subr.mxu0 0.0
    %7688 = vmatpush1.msra.mxu0 0.0
    %7689 = vmatprep.subr.mxu0 0.0
    %7690 = vmatpush1.msra.mxu0 0.0
    %7691 = vmatprep.subr.mxu0 0.0
    %7692 = vmatpush1.msra.mxu0 0.0
    %7693 = vmatprep.subr.mxu0 0.0
    %7694 = vmatpush1.msra.mxu0 0.0
    %7695 = vmatprep.subr.mxu0 0.0
    %7696 = vmatpush1.msra.mxu0 0.0
    %7697 = vmatprep.subr.mxu0 0.0
    %7698 = vmatpush1.msra.mxu0 0.0
    %7699 = vmatprep.subr.mxu0 0.0
    %7700 = vmatpush1.msra.mxu0 0.0
    %7701 = vmatprep.subr.mxu0 0.0
    %7702 = vmatpush1.msra.mxu0 0.0
    %7703 = vmatprep.subr.mxu0 0.0
    %7704 = vmatpush1.msra.mxu0 0.0
    %7705 = vmatprep.subr.mxu0 0.0
    %7706 = vmatpush1.msra.mxu0 0.0
    %7707 = vmatprep.subr.mxu0 0.0
    %7708 = vmatpush1.msra.mxu0 0.0
    %7709 = vmatprep.subr.mxu0 0.0
    %7710 = vmatpush1.msra.mxu0 0.0
    %7711 = vmatprep.subr.mxu0 0.0
    %7712 = vmatpush1.msra.mxu0 0.0
    %7713 = vmatprep.subr.mxu0 0.0
    %7714 = vmatpush1.msra.mxu0 0.0
    %7715 = vmatprep.subr.mxu0 0.0
    %7716 = vmatpush1.msra.mxu0 0.0
    %7717 = vmatprep.subr.mxu0 0.0
    %7718 = vmatpush1.msra.mxu0 0.0
    %7719 = vmatprep.subr.mxu0 0.0
    %7720 = vmatpush1.msra.mxu0 0.0
    %7721 = vmatprep.subr.mxu0 0.0
    %7722 = vmatpush1.msra.mxu0 0.0
    %7723 = vmatprep.subr.mxu0 0.0
    %7724 = vmatpush1.msra.mxu0 0.0
    %7725 = vmatprep.subr.mxu0 0.0
    %7726 = vmatpush1.msra.mxu0 0.0
    %7727 = vmatprep.subr.mxu0 0.0
    %7728 = vmatpush1.msra.mxu0 0.0
    %7729 = vmatprep.subr.mxu0 0.0
    %7730 = vmatpush1.msra.mxu0 0.0
    %7731 = vmatprep.subr.mxu0 0.0
    %7732 = vmatpush1.msra.mxu0 0.0
    %7733 = vmatprep.subr.mxu0 0.0
    %7734 = vmatpush1.msra.mxu0 0.0
    %7735 = vmatprep.subr.mxu0 0.0
    %7736 = vmatpush1.msra.mxu0 0.0
    %7737 = vmatprep.subr.mxu0 0.0
    %7738 = vmatpush1.msra.mxu0 0.0
    %7739 = vmatprep.subr.mxu0 0.0
    %7740 = vmatpush1.msra.mxu0 0.0
    %7741 = vmatprep.subr.mxu0 0.0
    %7742 = vmatpush1.msra.mxu0 0.0
    %7743 = vmatprep.mubr.f32.mxu0 0.0
    %7744 = vmatmul.mubr.f32.gmra.mrb[0].mxu0 %v7673
    %v7745 = vpop.f32.mrb[0].mxu0
    %v7746 = vadd.f32 %v7667, %v7745
    %v7747 = vpop.f32.mrb[0].mxu0
    %7748 = vdwg.mxu0
    %vm7749 = vcmp.ge.f32.partialorder %v7746, 0.0
    %v7750 = vmul.f32 %v7746, 0.2
    %v7751 = vsel %vm7749, %v7746, %v7750
    %v7752 = vld [vmem:[%s20] sm:$0xff]
    %v7753 = vld [vmem:[%s21] sm:$0x1]
    %v7755 = vlaneseq
    %v7756 = vshrl.u32 %v7755, 7
    %v7757 = vsub.s32 0, %v7756
    %v7758 = vrot.slane %v7753, %v7757
    %v7761 = vsel %vm2740, %v7751, 0
    %7763 = vmatprep.subr.mxu0 0.0
    %7764 = vmatpush1.msra.mxu0 %v7752
    %7765 = vmatprep.subr.mxu0 0.0
    %7766 = vmatpush1.msra.mxu0 0.0
    %7767 = vmatprep.subr.mxu0 0.0
    %7768 = vmatpush1.msra.mxu0 0.0
    %7769 = vmatprep.subr.mxu0 0.0
    %7770 = vmatpush1.msra.mxu0 0.0
    %7771 = vmatprep.subr.mxu0 0.0
    %7772 = vmatpush1.msra.mxu0 0.0
    %7773 = vmatprep.subr.mxu0 0.0
    %7774 = vmatpush1.msra.mxu0 0.0
    %7775 = vmatprep.subr.mxu0 0.0
    %7776 = vmatpush1.msra.mxu0 0.0
    %7777 = vmatprep.subr.mxu0 0.0
    %7778 = vmatpush1.msra.mxu0 0.0
    %7779 = vmatprep.subr.mxu0 0.0
    %7780 = vmatpush1.msra.mxu0 0.0
    %7781 = vmatprep.subr.mxu0 0.0
    %7782 = vmatpush1.msra.mxu0 0.0
    %7783 = vmatprep.subr.mxu0 0.0
    %7784 = vmatpush1.msra.mxu0 0.0
    %7785 = vmatprep.subr.mxu0 0.0
    %7786 = vmatpush1.msra.mxu0 0.0
    %7787 = vmatprep.subr.mxu0 0.0
    %7788 = vmatpush1.msra.mxu0 0.0
    %7789 = vmatprep.subr.mxu0 0.0
    %7790 = vmatpush1.msra.mxu0 0.0
    %7791 = vmatprep.subr.mxu0 0.0
    %7792 = vmatpush1.msra.mxu0 0.0
    %7793 = vmatprep.subr.mxu0 0.0
    %7794 = vmatpush1.msra.mxu0 0.0
    %7795 = vmatprep.subr.mxu0 0.0
    %7796 = vmatpush1.msra.mxu0 0.0
    %7797 = vmatprep.subr.mxu0 0.0
    %7798 = vmatpush1.msra.mxu0 0.0
    %7799 = vmatprep.subr.mxu0 0.0
    %7800 = vmatpush1.msra.mxu0 0.0
    %7801 = vmatprep.subr.mxu0 0.0
    %7802 = vmatpush1.msra.mxu0 0.0
    %7803 = vmatprep.subr.mxu0 0.0
    %7804 = vmatpush1.msra.mxu0 0.0
    %7805 = vmatprep.subr.mxu0 0.0
    %7806 = vmatpush1.msra.mxu0 0.0
    %7807 = vmatprep.subr.mxu0 0.0
    %7808 = vmatpush1.msra.mxu0 0.0
    %7809 = vmatprep.subr.mxu0 0.0
    %7810 = vmatpush1.msra.mxu0 0.0
    %7811 = vmatprep.subr.mxu0 0.0
    %7812 = vmatpush1.msra.mxu0 0.0
    %7813 = vmatprep.subr.mxu0 0.0
    %7814 = vmatpush1.msra.mxu0 0.0
    %7815 = vmatprep.subr.mxu0 0.0
    %7816 = vmatpush1.msra.mxu0 0.0
    %7817 = vmatprep.subr.mxu0 0.0
    %7818 = vmatpush1.msra.mxu0 0.0
    %7819 = vmatprep.subr.mxu0 0.0
    %7820 = vmatpush1.msra.mxu0 0.0
    %7821 = vmatprep.subr.mxu0 0.0
    %7822 = vmatpush1.msra.mxu0 0.0
    %7823 = vmatprep.subr.mxu0 0.0
    %7824 = vmatpush1.msra.mxu0 0.0
    %7825 = vmatprep.subr.mxu0 0.0
    %7826 = vmatpush1.msra.mxu0 0.0
    %7827 = vmatprep.mubr.f32.mxu0 0.0
    %7828 = vmatmul.mubr.f32.gmra.mrb[0].mxu0 %v7761
    %v7829 = vpop.f32.mrb[0].mxu0
    %v7830 = vadd.f32 %v7758, %v7829
    %v7831 = vpop.f32.mrb[0].mxu0
    %7832 = vdwg.mxu0
    %v7833 = vmul.f32 %v7830, 1.442695
    %v7834 = vpow.pop %v7833
    %v7835 = vmul.f32 %v7834, %v7656
    %7836 = vst.msk [vmem:[#allocation2] sm:$0x3] %vm7645, %v7835
    // Predicated region
    $region90: #{tpu_custom_call.1} parent=1 // pred_check
      _
    $region91: #{tpu_custom_call.1} parent=1 // pred_check_branch
      %7838 = sbr.rel (0) target = $region93
    $region92: #{tpu_custom_call.1} parent=1 // pred_region
      %s7840 = ssub.s32 32, 32
      %7841 = vsyncadd [#allocation3], %s7840
      %s7843 = sshll.u32 [#allocation2], 4
      %s7844 = int_to_ptr.vmem [resolvable:$true] %s7843
      %7846 = dma.vmem_to_hbm [thread:$0]  %s7844, 32, %s22, [#allocation3]
    $region93: #{tpu_custom_call.1} parent=1 // pred_fallthru
      _
    // Predicated region
    $region94: #{tpu_custom_call.1} parent=1 // pred_check
      _
    $region95: #{tpu_custom_call.1} parent=1 // pred_check_branch
      %7848 = sbr.rel (0) target = $region97
    $region96: #{tpu_custom_call.1} parent=1 // pred_region
      %7849 = dma.done [#allocation3], 32
    $region97: #{tpu_custom_call.1} parent=1 // pred_fallthru
      _
    %7850 = vsyncpa [#allocation3], 1

</llo_original>
